<compile_context>
chip_gen: v6e
topology: v6e:2x2x1
jax: 0.10.0
libtpu: 0.0.40
codegen_flags: <defaults>
</compile_context>

<pallas_src>
import jax
import jax.numpy as jnp
from jax import lax
from jax.experimental import pallas as pl
from jax.experimental.pallas import tpu as pltpu

_EPS = 1e-5          # InstanceNorm3d default eps
_NEG_SLOPE = 0.01    # LeakyReLU default negative_slope


def _make_fused_kernel(c_in, c_out, kernel_size, padding, W, HW, P1, P2, S1, S2):
    """Fused conv->IN->LReLU -> conv->IN->LReLU for one batch element (channel-major, flat)."""
    KD, KH, KW = kernel_size
    pd, ph, pw = padding
    lead = pd * HW + ph * W + pw                          # flat size of the conv2 zero border
    offs1 = [kd * HW + kh * W + kw
             for kd in range(KD) for kh in range(KH) for kw in range(KW)]
    offs2 = [lead + (kd - pd) * HW + (kh - ph) * W + (kw - pw)
             for kd in range(KD) for kh in range(KH) for kw in range(KW)]
    inv1 = 1.0 / float(S1)
    inv2 = 1.0 / float(S2)

    def kernel(x_ref, w0_ref, g0_ref, be0_ref, w1_ref, g1_ref, be1_ref,
               m1_ref, m2_ref, o_ref, *scratch):
        x = x_ref[0]                                      # (C_in, D*H*W) bf16, lane-dense

        def _conv(src, w, c, offs, P):
            # Non-materialized im2col: each kernel offset is a lane-window slice of the flat
            # activation; every partial matmul output is lane-dense (C_out, P), f32-accumulated.
            acc = None
            for k, o in enumerate(offs):
                t = jnp.dot(w[:, k * c:(k + 1) * c], src[:, o:o + P],
                            preferred_element_type=jnp.float32)
                acc = t if acc is None else acc + t
            return acc                                    # (C_out, P) f32

        def _in_lrelu(a, m, inv_n, g, b):
            # one-pass masked InstanceNorm stats + folded affine + LeakyReLU
            am = a * m
            mean = jnp.sum(am, axis=1, keepdims=True) * inv_n
            var = jnp.maximum(
                jnp.sum(am * am, axis=1, keepdims=True) * inv_n - mean * mean, 0.0)
            scale = g * lax.rsqrt(var + _EPS)
            shift = b - mean * scale
            y = a * scale + shift
            return jnp.where(y > 0, y, _NEG_SLOPE * y)

        # ---- stage 1: conv + InstanceNorm + LeakyReLU (all channel-major) ----
        m1 = m1_ref[...]                                  # (1, P1) validity mask
        a1 = _conv(x, w0_ref[...], c_in, offs1, P1)       # (C_out, P1) f32
        y1 = _in_lrelu(a1, m1, inv1, g0_ref[...], be0_ref[...])

        # ---- stage-2 padding: zero-init VMEM scratch + single interior store ----
        if lead:
            ypad = scratch[0]                             # (C_out, P1 + 2*lead) bf16
            ypad[...] = jnp.zeros(ypad.shape, ypad.dtype)
            ypad[:, lead:lead + P1] = (y1 * m1).astype(jnp.bfloat16)
            src2 = ypad
        else:
            src2 = y1.astype(jnp.bfloat16)

        # ---- stage 2: conv + InstanceNorm + LeakyReLU ----
        a2 = _conv(src2, w1_ref[...], c_out, offs2, P2)   # (C_out, P2) f32
        y2 = _in_lrelu(a2, m2_ref[...], inv2, g1_ref[...], be1_ref[...])

        o_ref[0] = y2.astype(o_ref.dtype)                 # lane-dense (C_out, P2) store

    return kernel


def conv3d_block_forward(x_ncdhw, params, stride0=(1, 1, 1), stride1=(1, 1, 1),
                         padding=(0, 0, 0)):
    """Full Conv3dBlock forward. Input/output in PyTorch NCDHW layout."""
    KD, KH, KW, C_in, C_out = params["w0"].shape
    if tuple(stride0) != (1, 1, 1) or tuple(stride1) != (1, 1, 1):
        # TODO(synk): strided convs need a compact-grid im2col path (the flat-shift trick
        # assumes unit stride); not required by the module defaults.
        raise NotImplementedError("only stride (1, 1, 1) is supported")
    pd, ph, pw = padding
    assert pd < KD and ph < KH and pw < KW, "padding must be < kernel_size per dim"

    # conv1 padding applied once to x in XLA; conv2 padding handled in-kernel.
    if pd or ph or pw:
        x_ncdhw = jnp.pad(x_ncdhw, ((0, 0), (0, 0), (pd, pd), (ph, ph), (pw, pw)))
    N, _, D, H, W = x_ncdhw.shape
    HW, DHW = H * W, D * H * W

    Do1, Ho1, Wo1 = D - KD + 1, H - KH + 1, W - KW + 1
    Do2 = Do1 + 2 * pd - KD + 1
    Ho2 = Ho1 + 2 * ph - KH + 1
    Wo2 = Wo1 + 2 * pw - KW + 1
    S1, S2 = Do1 * Ho1 * Wo1, Do2 * Ho2 * Wo2
    # flat "full grid" extents (last valid top-left corner + 1): every lane-window slice
    # used by the kernel stays in bounds by construction.
    P1 = (Do1 - 1) * HW + (Ho1 - 1) * W + (Wo1 - 1) + 1
    P2 = (Do2 - 1) * HW + (Ho2 - 1) * W + (Wo2 - 1) + 1
    lead = pd * HW + ph * W + pw
    K1 = KD * KH * KW * C_in
    K2 = KD * KH * KW * C_out

    # Lane-dense, channel-major input: metadata-only reshape, no transpose; bf16 halves the DMA.
    x_flat = x_ncdhw.reshape(N, C_in, DHW).astype(jnp.bfloat16)

    # Weights flattened to (C_out, K) with K ordered (kd, kh, kw, c_in), matching the offset
    # loop order in the kernel. Norm params as (C_out, 1) columns (channel-major broadcast).
    w0_flat = params["w0"].reshape(K1, C_out).T.astype(jnp.bfloat16)
    w1_flat = params["w1"].reshape(K2, C_out).T.astype(jnp.bfloat16)
    g0 = params["g0"].reshape(C_out, 1).astype(jnp.float32)
    be0 = params["be0"].reshape(C_out, 1).astype(jnp.float32)
    g1 = params["g1"].reshape(C_out, 1).astype(jnp.float32)
    be1 = params["be1"].reshape(C_out, 1).astype(jnp.float32)
    # NOTE: conv biases b0/b1 are intentionally NOT passed — a per-channel constant added
    # before InstanceNorm is exactly removed by the per-(n, c) mean subtraction.

    # Static validity masks on the flat full grid (positions whose receptive field does not
    # wrap around a row/plane). Tiny (1, P) f32 arrays, resident in VMEM across the batch grid.
    def _valid_mask(P, Do, Ho, Wo):
        p = jnp.arange(P, dtype=jnp.int32)
        d = p // HW
        r = p - d * HW
        h = r // W
        w = r - h * W
        return ((d < Do) & (h < Ho) & (w < Wo)).astype(jnp.float32).reshape(1, P)

    mask1 = _valid_mask(P1, Do1, Ho1, Wo1)
    mask2 = _valid_mask(P2, Do2, Ho2, Wo2)

    kernel = _make_fused_kernel(C_in, C_out, (KD, KH, KW), padding, W, HW, P1, P2, S1, S2)

    flops = 2 * N * C_out * (K1 * P1 + K2 * P2) + 12 * N * C_out * (P1 + P2)
    bytes_accessed = (2 * (x_flat.size + w0_flat.size + w1_flat.size)
                      + 4 * (mask1.size + mask2.size + 4 * C_out)
                      + 4 * N * C_out * P2)

    out_flat = pl.pallas_call(
        kernel,
        out_shape=jax.ShapeDtypeStruct((N, C_out, P2), jnp.float32),
        grid=(N,),
        in_specs=[
            pl.BlockSpec((1, C_in, DHW), lambda n: (n, 0, 0)),
            pl.BlockSpec((C_out, K1), lambda n: (0, 0)),
            pl.BlockSpec((C_out, 1), lambda n: (0, 0)),
            pl.BlockSpec((C_out, 1), lambda n: (0, 0)),
            pl.BlockSpec((C_out, K2), lambda n: (0, 0)),
            pl.BlockSpec((C_out, 1), lambda n: (0, 0)),
            pl.BlockSpec((C_out, 1), lambda n: (0, 0)),
            pl.BlockSpec((1, P1), lambda n: (0, 0)),
            pl.BlockSpec((1, P2), lambda n: (0, 0)),
        ],
        out_specs=pl.BlockSpec((1, C_out, P2), lambda n: (n, 0, 0)),
        scratch_shapes=([pltpu.VMEM((C_out, P1 + 2 * lead), jnp.bfloat16)] if lead else []),
        compiler_params=pltpu.CompilerParams(
            dimension_semantics=("parallel",),
            vmem_limit_bytes=32 * 1024 * 1024),
        cost_estimate=pl.CostEstimate(flops=flops, transcendentals=2 * N * C_out,
                                      bytes_accessed=bytes_accessed),
    )(x_flat, w0_flat, g0, be0, w1_flat, g1, be1, mask1, mask2)

    # Crop the full-grid flat output to the compact NCDHW result (cheap XLA pad/reshape/slice).
    out = jnp.pad(out_flat, ((0, 0), (0, 0), (0, DHW - P2)))
    out = out.reshape(N, C_out, D, H, W)[:, :, :Do2, :Ho2, :Wo2]
    return out


# ----------------------------- pure-JAX reference ----------------------------

def _ref_stage(x_ncdhw, w_kkkio, b, gamma, beta, stride, padding):
    w_oidhw = jnp.transpose(w_kkkio, (4, 3, 0, 1, 2))
    dn = lax.conv_dimension_numbers(x_ncdhw.shape, w_oidhw.shape,
                                    ("NCDHW", "OIDHW", "NCDHW"))
    pad = [(p, p) for p in padding]
    y = lax.conv_general_dilated(x_ncdhw, w_oidhw, stride, pad, dimension_numbers=dn)
    y = y + b.reshape(1, -1, 1, 1, 1)
    mean = jnp.mean(y, axis=(2, 3, 4), keepdims=True)
    var = jnp.mean((y - mean) ** 2, axis=(2, 3, 4), keepdims=True)
    y = (y - mean) * lax.rsqrt(var + _EPS)
    y = y * gamma.reshape(1, -1, 1, 1, 1) + beta.reshape(1, -1, 1, 1, 1)
    return jnp.where(y > 0, y, _NEG_SLOPE * y)


def _ref_forward(x, params, padding=(0, 0, 0)):
    y = _ref_stage(x, params["w0"], params["b0"], params["g0"], params["be0"],
                   (1, 1, 1), padding)
    y = _ref_stage(y, params["w1"], params["b1"], params["g1"], params["be1"],
                   (1, 1, 1), padding)
    return y


# ---------------------------------- main --------------------------------------

if __name__ == "__main__":
    key = jax.random.PRNGKey(0)
    N, C_in, C_out = 2, 4, 8
    D = H = W = 10
    KD = KH = KW = 3

    ks = jax.random.split(key, 9)
    params = {
        "w0": 0.1 * jax.random.normal(ks[0], (KD, KH, KW, C_in, C_out), jnp.float32),
        "b0": 0.1 * jax.random.normal(ks[1], (C_out,), jnp.float32),
        "g0": 1.0 + 0.1 * jax.random.normal(ks[2], (C_out,), jnp.float32),
        "be0": 0.1 * jax.random.normal(ks[3], (C_out,), jnp.float32),
        "w1": 0.1 * jax.random.normal(ks[4], (KD, KH, KW, C_out, C_out), jnp.float32),
        "b1": 0.1 * jax.random.normal(ks[5], (C_out,), jnp.float32),
        "g1": 1.0 + 0.1 * jax.random.normal(ks[6], (C_out,), jnp.float32),
        "be1": 0.1 * jax.random.normal(ks[7], (C_out,), jnp.float32),
    }
    x = jax.random.normal(ks[8], (N, C_in, D, H, W), jnp.float32)  # NCDHW like PyTorch

    fwd = jax.jit(conv3d_block_forward, static_argnames=("stride0", "stride1", "padding"))

    # ---- padding = (0, 0, 0): module defaults ----
    out = jax.block_until_ready(fwd(x, params))
    ref = jax.block_until_ready(_ref_forward(x, params, (0, 0, 0)))
    assert out.shape == ref.shape == (N, C_out, D - 4, H - 4, W - 4), (out.shape, ref.shape)
    err = float(jnp.max(jnp.abs(out - ref)))
    # bf16 MXU inputs (f32 accumulation) -> relaxed tolerance vs the f32 reference
    assert jnp.allclose(out, ref, atol=5e-2, rtol=5e-2), err

    # ---- padding = (1, 1, 1): exercises the in-kernel conv2 padding path ----
    out_p = jax.block_until_ready(fwd(x, params, padding=(1, 1, 1)))
    ref_p = jax.block_until_ready(_ref_forward(x, params, (1, 1, 1)))
    assert out_p.shape == ref_p.shape == (N, C_out, D, H, W), (out_p.shape, ref_p.shape)
    err_p = float(jnp.max(jnp.abs(out_p - ref_p)))
    assert jnp.allclose(out_p, ref_p, atol=5e-2, rtol=5e-2), err_p

    print("KERNEL_OK")
</pallas_src>

<mosaic_0001>
module attributes {stable_mosaic.version = 11 : i64} {
  func.func @kernel(%arg0: i32, %arg1: memref<1x4x1000xbf16, #tpu.memory_space<vmem>>, %arg2: memref<8x108xbf16, #tpu.memory_space<vmem>>, %arg3: memref<8x1xf32, #tpu.memory_space<vmem>>, %arg4: memref<8x1xf32, #tpu.memory_space<vmem>>, %arg5: memref<8x216xbf16, #tpu.memory_space<vmem>>, %arg6: memref<8x1xf32, #tpu.memory_space<vmem>>, %arg7: memref<8x1xf32, #tpu.memory_space<vmem>>, %arg8: memref<1x778xf32, #tpu.memory_space<vmem>>, %arg9: memref<1x556xf32, #tpu.memory_space<vmem>>, %arg10: memref<1x8x556xf32, #tpu.memory_space<vmem>>) attributes {dimension_semantics = [#tpu.dimension_semantics<parallel>], iteration_bounds = array<i64: 2>, scalar_prefetch = 0 : i64, scratch_operands = 0 : i64, tpu.core_type = #tpu.core_type<tc>, window_params = [{transform_indices = @transform_0, window_bounds = array<i64: 1, 4, 1000>}, {pipeline_mode = #tpu.pipeline_mode<synchronous>, transform_indices = @transform_1, window_bounds = array<i64: 8, 108>}, {pipeline_mode = #tpu.pipeline_mode<synchronous>, transform_indices = @transform_2, window_bounds = array<i64: 8, 1>}, {pipeline_mode = #tpu.pipeline_mode<synchronous>, transform_indices = @transform_3, window_bounds = array<i64: 8, 1>}, {pipeline_mode = #tpu.pipeline_mode<synchronous>, transform_indices = @transform_4, window_bounds = array<i64: 8, 216>}, {pipeline_mode = #tpu.pipeline_mode<synchronous>, transform_indices = @transform_5, window_bounds = array<i64: 8, 1>}, {pipeline_mode = #tpu.pipeline_mode<synchronous>, transform_indices = @transform_6, window_bounds = array<i64: 8, 1>}, {pipeline_mode = #tpu.pipeline_mode<synchronous>, transform_indices = @transform_7, window_bounds = array<i64: 1, 778>}, {pipeline_mode = #tpu.pipeline_mode<synchronous>, transform_indices = @transform_8, window_bounds = array<i64: 1, 556>}, {transform_indices = @transform_9, window_bounds = array<i64: 1, 8, 556>}]} {
    %c0 = arith.constant 0 : index
    %c0_0 = arith.constant 0 : index
    %c0_1 = arith.constant 0 : index
    %0 = vector.load %arg1[%c0, %c0_0, %c0_1] : memref<1x4x1000xbf16, #tpu.memory_space<vmem>>, vector<1x4x1000xbf16>
    %1 = vector.shape_cast %0 : vector<1x4x1000xbf16> to vector<4x1000xbf16>
    %c0_2 = arith.constant 0 : index
    %c0_3 = arith.constant 0 : index
    %2 = vector.load %arg8[%c0_2, %c0_3] : memref<1x778xf32, #tpu.memory_space<vmem>>, vector<1x778xf32>
    %c0_4 = arith.constant 0 : index
    %c0_5 = arith.constant 0 : index
    %3 = vector.load %arg2[%c0_4, %c0_5] : memref<8x108xbf16, #tpu.memory_space<vmem>>, vector<8x108xbf16>
    %4 = vector.extract_strided_slice %3 {offsets = [0, 0], sizes = [8, 4], strides = [1, 1]} : vector<8x108xbf16> to vector<8x4xbf16>
    %5 = vector.extract_strided_slice %1 {offsets = [0, 0], sizes = [4, 778], strides = [1, 1]} : vector<4x1000xbf16> to vector<4x778xbf16>
    %cst = arith.constant dense<0.000000e+00> : vector<8x778xf32>
    %6 = tpu.matmul %4, %5, %cst {dimension_numbers = #tpu.dot_dimension_numbers<[1], [0], [0], [1], [0, 0, 1, 1], [], []>} : vector<8x4xbf16>, vector<4x778xbf16>, vector<8x778xf32> -> vector<8x778xf32>
    %7 = vector.extract_strided_slice %3 {offsets = [0, 4], sizes = [8, 4], strides = [1, 1]} : vector<8x108xbf16> to vector<8x4xbf16>
    %8 = vector.extract_strided_slice %1 {offsets = [0, 1], sizes = [4, 778], strides = [1, 1]} : vector<4x1000xbf16> to vector<4x778xbf16>
    %cst_6 = arith.constant dense<0.000000e+00> : vector<8x778xf32>
    %9 = tpu.matmul %7, %8, %cst_6 {dimension_numbers = #tpu.dot_dimension_numbers<[1], [0], [0], [1], [0, 0, 1, 1], [], []>} : vector<8x4xbf16>, vector<4x778xbf16>, vector<8x778xf32> -> vector<8x778xf32>
    %10 = arith.addf %6, %9 : vector<8x778xf32>
    %11 = vector.extract_strided_slice %3 {offsets = [0, 8], sizes = [8, 4], strides = [1, 1]} : vector<8x108xbf16> to vector<8x4xbf16>
    %12 = vector.extract_strided_slice %1 {offsets = [0, 2], sizes = [4, 778], strides = [1, 1]} : vector<4x1000xbf16> to vector<4x778xbf16>
    %cst_7 = arith.constant dense<0.000000e+00> : vector<8x778xf32>
    %13 = tpu.matmul %11, %12, %cst_7 {dimension_numbers = #tpu.dot_dimension_numbers<[1], [0], [0], [1], [0, 0, 1, 1], [], []>} : vector<8x4xbf16>, vector<4x778xbf16>, vector<8x778xf32> -> vector<8x778xf32>
    %14 = arith.addf %10, %13 : vector<8x778xf32>
    %15 = vector.extract_strided_slice %3 {offsets = [0, 12], sizes = [8, 4], strides = [1, 1]} : vector<8x108xbf16> to vector<8x4xbf16>
    %16 = vector.extract_strided_slice %1 {offsets = [0, 10], sizes = [4, 778], strides = [1, 1]} : vector<4x1000xbf16> to vector<4x778xbf16>
    %cst_8 = arith.constant dense<0.000000e+00> : vector<8x778xf32>
    %17 = tpu.matmul %15, %16, %cst_8 {dimension_numbers = #tpu.dot_dimension_numbers<[1], [0], [0], [1], [0, 0, 1, 1], [], []>} : vector<8x4xbf16>, vector<4x778xbf16>, vector<8x778xf32> -> vector<8x778xf32>
    %18 = arith.addf %14, %17 : vector<8x778xf32>
    %19 = vector.extract_strided_slice %3 {offsets = [0, 16], sizes = [8, 4], strides = [1, 1]} : vector<8x108xbf16> to vector<8x4xbf16>
    %20 = vector.extract_strided_slice %1 {offsets = [0, 11], sizes = [4, 778], strides = [1, 1]} : vector<4x1000xbf16> to vector<4x778xbf16>
    %cst_9 = arith.constant dense<0.000000e+00> : vector<8x778xf32>
    %21 = tpu.matmul %19, %20, %cst_9 {dimension_numbers = #tpu.dot_dimension_numbers<[1], [0], [0], [1], [0, 0, 1, 1], [], []>} : vector<8x4xbf16>, vector<4x778xbf16>, vector<8x778xf32> -> vector<8x778xf32>
    %22 = arith.addf %18, %21 : vector<8x778xf32>
    %23 = vector.extract_strided_slice %3 {offsets = [0, 20], sizes = [8, 4], strides = [1, 1]} : vector<8x108xbf16> to vector<8x4xbf16>
    %24 = vector.extract_strided_slice %1 {offsets = [0, 12], sizes = [4, 778], strides = [1, 1]} : vector<4x1000xbf16> to vector<4x778xbf16>
    %cst_10 = arith.constant dense<0.000000e+00> : vector<8x778xf32>
    %25 = tpu.matmul %23, %24, %cst_10 {dimension_numbers = #tpu.dot_dimension_numbers<[1], [0], [0], [1], [0, 0, 1, 1], [], []>} : vector<8x4xbf16>, vector<4x778xbf16>, vector<8x778xf32> -> vector<8x778xf32>
    %26 = arith.addf %22, %25 : vector<8x778xf32>
    %27 = vector.extract_strided_slice %3 {offsets = [0, 24], sizes = [8, 4], strides = [1, 1]} : vector<8x108xbf16> to vector<8x4xbf16>
    %28 = vector.extract_strided_slice %1 {offsets = [0, 20], sizes = [4, 778], strides = [1, 1]} : vector<4x1000xbf16> to vector<4x778xbf16>
    %cst_11 = arith.constant dense<0.000000e+00> : vector<8x778xf32>
    %29 = tpu.matmul %27, %28, %cst_11 {dimension_numbers = #tpu.dot_dimension_numbers<[1], [0], [0], [1], [0, 0, 1, 1], [], []>} : vector<8x4xbf16>, vector<4x778xbf16>, vector<8x778xf32> -> vector<8x778xf32>
    %30 = arith.addf %26, %29 : vector<8x778xf32>
    %31 = vector.extract_strided_slice %3 {offsets = [0, 28], sizes = [8, 4], strides = [1, 1]} : vector<8x108xbf16> to vector<8x4xbf16>
    %32 = vector.extract_strided_slice %1 {offsets = [0, 21], sizes = [4, 778], strides = [1, 1]} : vector<4x1000xbf16> to vector<4x778xbf16>
    %cst_12 = arith.constant dense<0.000000e+00> : vector<8x778xf32>
    %33 = tpu.matmul %31, %32, %cst_12 {dimension_numbers = #tpu.dot_dimension_numbers<[1], [0], [0], [1], [0, 0, 1, 1], [], []>} : vector<8x4xbf16>, vector<4x778xbf16>, vector<8x778xf32> -> vector<8x778xf32>
    %34 = arith.addf %30, %33 : vector<8x778xf32>
    %35 = vector.extract_strided_slice %3 {offsets = [0, 32], sizes = [8, 4], strides = [1, 1]} : vector<8x108xbf16> to vector<8x4xbf16>
    %36 = vector.extract_strided_slice %1 {offsets = [0, 22], sizes = [4, 778], strides = [1, 1]} : vector<4x1000xbf16> to vector<4x778xbf16>
    %cst_13 = arith.constant dense<0.000000e+00> : vector<8x778xf32>
    %37 = tpu.matmul %35, %36, %cst_13 {dimension_numbers = #tpu.dot_dimension_numbers<[1], [0], [0], [1], [0, 0, 1, 1], [], []>} : vector<8x4xbf16>, vector<4x778xbf16>, vector<8x778xf32> -> vector<8x778xf32>
    %38 = arith.addf %34, %37 : vector<8x778xf32>
    %39 = vector.extract_strided_slice %3 {offsets = [0, 36], sizes = [8, 4], strides = [1, 1]} : vector<8x108xbf16> to vector<8x4xbf16>
    %40 = vector.extract_strided_slice %1 {offsets = [0, 100], sizes = [4, 778], strides = [1, 1]} : vector<4x1000xbf16> to vector<4x778xbf16>
    %cst_14 = arith.constant dense<0.000000e+00> : vector<8x778xf32>
    %41 = tpu.matmul %39, %40, %cst_14 {dimension_numbers = #tpu.dot_dimension_numbers<[1], [0], [0], [1], [0, 0, 1, 1], [], []>} : vector<8x4xbf16>, vector<4x778xbf16>, vector<8x778xf32> -> vector<8x778xf32>
    %42 = arith.addf %38, %41 : vector<8x778xf32>
    %43 = vector.extract_strided_slice %3 {offsets = [0, 40], sizes = [8, 4], strides = [1, 1]} : vector<8x108xbf16> to vector<8x4xbf16>
    %44 = vector.extract_strided_slice %1 {offsets = [0, 101], sizes = [4, 778], strides = [1, 1]} : vector<4x1000xbf16> to vector<4x778xbf16>
    %cst_15 = arith.constant dense<0.000000e+00> : vector<8x778xf32>
    %45 = tpu.matmul %43, %44, %cst_15 {dimension_numbers = #tpu.dot_dimension_numbers<[1], [0], [0], [1], [0, 0, 1, 1], [], []>} : vector<8x4xbf16>, vector<4x778xbf16>, vector<8x778xf32> -> vector<8x778xf32>
    %46 = arith.addf %42, %45 : vector<8x778xf32>
    %47 = vector.extract_strided_slice %3 {offsets = [0, 44], sizes = [8, 4], strides = [1, 1]} : vector<8x108xbf16> to vector<8x4xbf16>
    %48 = vector.extract_strided_slice %1 {offsets = [0, 102], sizes = [4, 778], strides = [1, 1]} : vector<4x1000xbf16> to vector<4x778xbf16>
    %cst_16 = arith.constant dense<0.000000e+00> : vector<8x778xf32>
    %49 = tpu.matmul %47, %48, %cst_16 {dimension_numbers = #tpu.dot_dimension_numbers<[1], [0], [0], [1], [0, 0, 1, 1], [], []>} : vector<8x4xbf16>, vector<4x778xbf16>, vector<8x778xf32> -> vector<8x778xf32>
    %50 = arith.addf %46, %49 : vector<8x778xf32>
    %51 = vector.extract_strided_slice %3 {offsets = [0, 48], sizes = [8, 4], strides = [1, 1]} : vector<8x108xbf16> to vector<8x4xbf16>
    %52 = vector.extract_strided_slice %1 {offsets = [0, 110], sizes = [4, 778], strides = [1, 1]} : vector<4x1000xbf16> to vector<4x778xbf16>
    %cst_17 = arith.constant dense<0.000000e+00> : vector<8x778xf32>
    %53 = tpu.matmul %51, %52, %cst_17 {dimension_numbers = #tpu.dot_dimension_numbers<[1], [0], [0], [1], [0, 0, 1, 1], [], []>} : vector<8x4xbf16>, vector<4x778xbf16>, vector<8x778xf32> -> vector<8x778xf32>
    %54 = arith.addf %50, %53 : vector<8x778xf32>
    %55 = vector.extract_strided_slice %3 {offsets = [0, 52], sizes = [8, 4], strides = [1, 1]} : vector<8x108xbf16> to vector<8x4xbf16>
    %56 = vector.extract_strided_slice %1 {offsets = [0, 111], sizes = [4, 778], strides = [1, 1]} : vector<4x1000xbf16> to vector<4x778xbf16>
    %cst_18 = arith.constant dense<0.000000e+00> : vector<8x778xf32>
    %57 = tpu.matmul %55, %56, %cst_18 {dimension_numbers = #tpu.dot_dimension_numbers<[1], [0], [0], [1], [0, 0, 1, 1], [], []>} : vector<8x4xbf16>, vector<4x778xbf16>, vector<8x778xf32> -> vector<8x778xf32>
    %58 = arith.addf %54, %57 : vector<8x778xf32>
    %59 = vector.extract_strided_slice %3 {offsets = [0, 56], sizes = [8, 4], strides = [1, 1]} : vector<8x108xbf16> to vector<8x4xbf16>
    %60 = vector.extract_strided_slice %1 {offsets = [0, 112], sizes = [4, 778], strides = [1, 1]} : vector<4x1000xbf16> to vector<4x778xbf16>
    %cst_19 = arith.constant dense<0.000000e+00> : vector<8x778xf32>
    %61 = tpu.matmul %59, %60, %cst_19 {dimension_numbers = #tpu.dot_dimension_numbers<[1], [0], [0], [1], [0, 0, 1, 1], [], []>} : vector<8x4xbf16>, vector<4x778xbf16>, vector<8x778xf32> -> vector<8x778xf32>
    %62 = arith.addf %58, %61 : vector<8x778xf32>
    %63 = vector.extract_strided_slice %3 {offsets = [0, 60], sizes = [8, 4], strides = [1, 1]} : vector<8x108xbf16> to vector<8x4xbf16>
    %64 = vector.extract_strided_slice %1 {offsets = [0, 120], sizes = [4, 778], strides = [1, 1]} : vector<4x1000xbf16> to vector<4x778xbf16>
    %cst_20 = arith.constant dense<0.000000e+00> : vector<8x778xf32>
    %65 = tpu.matmul %63, %64, %cst_20 {dimension_numbers = #tpu.dot_dimension_numbers<[1], [0], [0], [1], [0, 0, 1, 1], [], []>} : vector<8x4xbf16>, vector<4x778xbf16>, vector<8x778xf32> -> vector<8x778xf32>
    %66 = arith.addf %62, %65 : vector<8x778xf32>
    %67 = vector.extract_strided_slice %3 {offsets = [0, 64], sizes = [8, 4], strides = [1, 1]} : vector<8x108xbf16> to vector<8x4xbf16>
    %68 = vector.extract_strided_slice %1 {offsets = [0, 121], sizes = [4, 778], strides = [1, 1]} : vector<4x1000xbf16> to vector<4x778xbf16>
    %cst_21 = arith.constant dense<0.000000e+00> : vector<8x778xf32>
    %69 = tpu.matmul %67, %68, %cst_21 {dimension_numbers = #tpu.dot_dimension_numbers<[1], [0], [0], [1], [0, 0, 1, 1], [], []>} : vector<8x4xbf16>, vector<4x778xbf16>, vector<8x778xf32> -> vector<8x778xf32>
    %70 = arith.addf %66, %69 : vector<8x778xf32>
    %71 = vector.extract_strided_slice %3 {offsets = [0, 68], sizes = [8, 4], strides = [1, 1]} : vector<8x108xbf16> to vector<8x4xbf16>
    %72 = vector.extract_strided_slice %1 {offsets = [0, 122], sizes = [4, 778], strides = [1, 1]} : vector<4x1000xbf16> to vector<4x778xbf16>
    %cst_22 = arith.constant dense<0.000000e+00> : vector<8x778xf32>
    %73 = tpu.matmul %71, %72, %cst_22 {dimension_numbers = #tpu.dot_dimension_numbers<[1], [0], [0], [1], [0, 0, 1, 1], [], []>} : vector<8x4xbf16>, vector<4x778xbf16>, vector<8x778xf32> -> vector<8x778xf32>
    %74 = arith.addf %70, %73 : vector<8x778xf32>
    %75 = vector.extract_strided_slice %3 {offsets = [0, 72], sizes = [8, 4], strides = [1, 1]} : vector<8x108xbf16> to vector<8x4xbf16>
    %76 = vector.extract_strided_slice %1 {offsets = [0, 200], sizes = [4, 778], strides = [1, 1]} : vector<4x1000xbf16> to vector<4x778xbf16>
    %cst_23 = arith.constant dense<0.000000e+00> : vector<8x778xf32>
    %77 = tpu.matmul %75, %76, %cst_23 {dimension_numbers = #tpu.dot_dimension_numbers<[1], [0], [0], [1], [0, 0, 1, 1], [], []>} : vector<8x4xbf16>, vector<4x778xbf16>, vector<8x778xf32> -> vector<8x778xf32>
    %78 = arith.addf %74, %77 : vector<8x778xf32>
    %79 = vector.extract_strided_slice %3 {offsets = [0, 76], sizes = [8, 4], strides = [1, 1]} : vector<8x108xbf16> to vector<8x4xbf16>
    %80 = vector.extract_strided_slice %1 {offsets = [0, 201], sizes = [4, 778], strides = [1, 1]} : vector<4x1000xbf16> to vector<4x778xbf16>
    %cst_24 = arith.constant dense<0.000000e+00> : vector<8x778xf32>
    %81 = tpu.matmul %79, %80, %cst_24 {dimension_numbers = #tpu.dot_dimension_numbers<[1], [0], [0], [1], [0, 0, 1, 1], [], []>} : vector<8x4xbf16>, vector<4x778xbf16>, vector<8x778xf32> -> vector<8x778xf32>
    %82 = arith.addf %78, %81 : vector<8x778xf32>
    %83 = vector.extract_strided_slice %3 {offsets = [0, 80], sizes = [8, 4], strides = [1, 1]} : vector<8x108xbf16> to vector<8x4xbf16>
    %84 = vector.extract_strided_slice %1 {offsets = [0, 202], sizes = [4, 778], strides = [1, 1]} : vector<4x1000xbf16> to vector<4x778xbf16>
    %cst_25 = arith.constant dense<0.000000e+00> : vector<8x778xf32>
    %85 = tpu.matmul %83, %84, %cst_25 {dimension_numbers = #tpu.dot_dimension_numbers<[1], [0], [0], [1], [0, 0, 1, 1], [], []>} : vector<8x4xbf16>, vector<4x778xbf16>, vector<8x778xf32> -> vector<8x778xf32>
    %86 = arith.addf %82, %85 : vector<8x778xf32>
    %87 = vector.extract_strided_slice %3 {offsets = [0, 84], sizes = [8, 4], strides = [1, 1]} : vector<8x108xbf16> to vector<8x4xbf16>
    %88 = vector.extract_strided_slice %1 {offsets = [0, 210], sizes = [4, 778], strides = [1, 1]} : vector<4x1000xbf16> to vector<4x778xbf16>
    %cst_26 = arith.constant dense<0.000000e+00> : vector<8x778xf32>
    %89 = tpu.matmul %87, %88, %cst_26 {dimension_numbers = #tpu.dot_dimension_numbers<[1], [0], [0], [1], [0, 0, 1, 1], [], []>} : vector<8x4xbf16>, vector<4x778xbf16>, vector<8x778xf32> -> vector<8x778xf32>
    %90 = arith.addf %86, %89 : vector<8x778xf32>
    %91 = vector.extract_strided_slice %3 {offsets = [0, 88], sizes = [8, 4], strides = [1, 1]} : vector<8x108xbf16> to vector<8x4xbf16>
    %92 = vector.extract_strided_slice %1 {offsets = [0, 211], sizes = [4, 778], strides = [1, 1]} : vector<4x1000xbf16> to vector<4x778xbf16>
    %cst_27 = arith.constant dense<0.000000e+00> : vector<8x778xf32>
    %93 = tpu.matmul %91, %92, %cst_27 {dimension_numbers = #tpu.dot_dimension_numbers<[1], [0], [0], [1], [0, 0, 1, 1], [], []>} : vector<8x4xbf16>, vector<4x778xbf16>, vector<8x778xf32> -> vector<8x778xf32>
    %94 = arith.addf %90, %93 : vector<8x778xf32>
    %95 = vector.extract_strided_slice %3 {offsets = [0, 92], sizes = [8, 4], strides = [1, 1]} : vector<8x108xbf16> to vector<8x4xbf16>
    %96 = vector.extract_strided_slice %1 {offsets = [0, 212], sizes = [4, 778], strides = [1, 1]} : vector<4x1000xbf16> to vector<4x778xbf16>
    %cst_28 = arith.constant dense<0.000000e+00> : vector<8x778xf32>
    %97 = tpu.matmul %95, %96, %cst_28 {dimension_numbers = #tpu.dot_dimension_numbers<[1], [0], [0], [1], [0, 0, 1, 1], [], []>} : vector<8x4xbf16>, vector<4x778xbf16>, vector<8x778xf32> -> vector<8x778xf32>
    %98 = arith.addf %94, %97 : vector<8x778xf32>
    %99 = vector.extract_strided_slice %3 {offsets = [0, 96], sizes = [8, 4], strides = [1, 1]} : vector<8x108xbf16> to vector<8x4xbf16>
    %100 = vector.extract_strided_slice %1 {offsets = [0, 220], sizes = [4, 778], strides = [1, 1]} : vector<4x1000xbf16> to vector<4x778xbf16>
    %cst_29 = arith.constant dense<0.000000e+00> : vector<8x778xf32>
    %101 = tpu.matmul %99, %100, %cst_29 {dimension_numbers = #tpu.dot_dimension_numbers<[1], [0], [0], [1], [0, 0, 1, 1], [], []>} : vector<8x4xbf16>, vector<4x778xbf16>, vector<8x778xf32> -> vector<8x778xf32>
    %102 = arith.addf %98, %101 : vector<8x778xf32>
    %103 = vector.extract_strided_slice %3 {offsets = [0, 100], sizes = [8, 4], strides = [1, 1]} : vector<8x108xbf16> to vector<8x4xbf16>
    %104 = vector.extract_strided_slice %1 {offsets = [0, 221], sizes = [4, 778], strides = [1, 1]} : vector<4x1000xbf16> to vector<4x778xbf16>
    %cst_30 = arith.constant dense<0.000000e+00> : vector<8x778xf32>
    %105 = tpu.matmul %103, %104, %cst_30 {dimension_numbers = #tpu.dot_dimension_numbers<[1], [0], [0], [1], [0, 0, 1, 1], [], []>} : vector<8x4xbf16>, vector<4x778xbf16>, vector<8x778xf32> -> vector<8x778xf32>
    %106 = arith.addf %102, %105 : vector<8x778xf32>
    %107 = vector.extract_strided_slice %3 {offsets = [0, 104], sizes = [8, 4], strides = [1, 1]} : vector<8x108xbf16> to vector<8x4xbf16>
    %108 = vector.extract_strided_slice %1 {offsets = [0, 222], sizes = [4, 778], strides = [1, 1]} : vector<4x1000xbf16> to vector<4x778xbf16>
    %cst_31 = arith.constant dense<0.000000e+00> : vector<8x778xf32>
    %109 = tpu.matmul %107, %108, %cst_31 {dimension_numbers = #tpu.dot_dimension_numbers<[1], [0], [0], [1], [0, 0, 1, 1], [], []>} : vector<8x4xbf16>, vector<4x778xbf16>, vector<8x778xf32> -> vector<8x778xf32>
    %110 = arith.addf %106, %109 : vector<8x778xf32>
    %c0_32 = arith.constant 0 : index
    %c0_33 = arith.constant 0 : index
    %111 = vector.load %arg3[%c0_32, %c0_33] : memref<8x1xf32, #tpu.memory_space<vmem>>, vector<8x1xf32>
    %c0_34 = arith.constant 0 : index
    %c0_35 = arith.constant 0 : index
    %112 = vector.load %arg4[%c0_34, %c0_35] : memref<8x1xf32, #tpu.memory_space<vmem>>, vector<8x1xf32>
    %113 = vector.broadcast %2 : vector<1x778xf32> to vector<8x778xf32>
    %114 = arith.mulf %110, %113 : vector<8x778xf32>
    %cst_36 = arith.constant dense<0.000000e+00> : vector<8xf32>
    %115 = vector.multi_reduction <add>, %114, %cst_36 [1] : vector<8x778xf32> to vector<8xf32>
    %116 = vector.shape_cast %115 : vector<8xf32> to vector<8x1xf32>
    %cst_37 = arith.constant 0.001953125 : f32
    %117 = vector.broadcast %cst_37 : f32 to vector<8x1xf32>
    %118 = arith.mulf %116, %117 : vector<8x1xf32>
    %119 = arith.mulf %114, %114 : vector<8x778xf32>
    %cst_38 = arith.constant dense<0.000000e+00> : vector<8xf32>
    %120 = vector.multi_reduction <add>, %119, %cst_38 [1] : vector<8x778xf32> to vector<8xf32>
    %121 = vector.shape_cast %120 : vector<8xf32> to vector<8x1xf32>
    %cst_39 = arith.constant 0.001953125 : f32
    %122 = vector.broadcast %cst_39 : f32 to vector<8x1xf32>
    %123 = arith.mulf %121, %122 : vector<8x1xf32>
    %124 = arith.mulf %118, %118 : vector<8x1xf32>
    %125 = arith.subf %123, %124 : vector<8x1xf32>
    %cst_40 = arith.constant 0.000000e+00 : f32
    %126 = vector.broadcast %cst_40 : f32 to vector<8x1xf32>
    %127 = arith.maximumf %125, %126 : vector<8x1xf32>
    %cst_41 = arith.constant 9.99999974E-6 : f32
    %128 = vector.broadcast %cst_41 : f32 to vector<8x1xf32>
    %129 = arith.addf %127, %128 : vector<8x1xf32>
    %130 = math.rsqrt %129 : vector<8x1xf32>
    %131 = arith.mulf %111, %130 : vector<8x1xf32>
    %132 = arith.mulf %118, %131 : vector<8x1xf32>
    %133 = arith.subf %112, %132 : vector<8x1xf32>
    %134 = vector.broadcast %131 : vector<8x1xf32> to vector<8x778xf32>
    %135 = arith.mulf %110, %134 : vector<8x778xf32>
    %136 = vector.broadcast %133 : vector<8x1xf32> to vector<8x778xf32>
    %137 = arith.addf %135, %136 : vector<8x778xf32>
    %cst_42 = arith.constant 0.000000e+00 : f32
    %138 = vector.broadcast %cst_42 : f32 to vector<8x778xf32>
    %139 = arith.cmpf ogt, %137, %138 : vector<8x778xf32>
    %cst_43 = arith.constant 0.00999999977 : f32
    %140 = vector.broadcast %cst_43 : f32 to vector<8x778xf32>
    %141 = arith.mulf %140, %137 : vector<8x778xf32>
    %142 = arith.select %139, %137, %141 : vector<8x778xi1>, vector<8x778xf32>
    %143 = arith.truncf %142 : vector<8x778xf32> to vector<8x778xbf16>
    %c0_44 = arith.constant 0 : index
    %c0_45 = arith.constant 0 : index
    %144 = vector.load %arg5[%c0_44, %c0_45] : memref<8x216xbf16, #tpu.memory_space<vmem>>, vector<8x216xbf16>
    %145 = vector.extract_strided_slice %144 {offsets = [0, 0], sizes = [8, 8], strides = [1, 1]} : vector<8x216xbf16> to vector<8x8xbf16>
    %146 = vector.extract_strided_slice %143 {offsets = [0, 0], sizes = [8, 556], strides = [1, 1]} : vector<8x778xbf16> to vector<8x556xbf16>
    %cst_46 = arith.constant dense<0.000000e+00> : vector<8x556xf32>
    %147 = tpu.matmul %145, %146, %cst_46 {dimension_numbers = #tpu.dot_dimension_numbers<[1], [0], [0], [1], [0, 0, 1, 1], [], []>} : vector<8x8xbf16>, vector<8x556xbf16>, vector<8x556xf32> -> vector<8x556xf32>
    %148 = vector.extract_strided_slice %144 {offsets = [0, 8], sizes = [8, 8], strides = [1, 1]} : vector<8x216xbf16> to vector<8x8xbf16>
    %149 = vector.extract_strided_slice %143 {offsets = [0, 1], sizes = [8, 556], strides = [1, 1]} : vector<8x778xbf16> to vector<8x556xbf16>
    %cst_47 = arith.constant dense<0.000000e+00> : vector<8x556xf32>
    %150 = tpu.matmul %148, %149, %cst_47 {dimension_numbers = #tpu.dot_dimension_numbers<[1], [0], [0], [1], [0, 0, 1, 1], [], []>} : vector<8x8xbf16>, vector<8x556xbf16>, vector<8x556xf32> -> vector<8x556xf32>
    %151 = arith.addf %147, %150 : vector<8x556xf32>
    %152 = vector.extract_strided_slice %144 {offsets = [0, 16], sizes = [8, 8], strides = [1, 1]} : vector<8x216xbf16> to vector<8x8xbf16>
    %153 = vector.extract_strided_slice %143 {offsets = [0, 2], sizes = [8, 556], strides = [1, 1]} : vector<8x778xbf16> to vector<8x556xbf16>
    %cst_48 = arith.constant dense<0.000000e+00> : vector<8x556xf32>
    %154 = tpu.matmul %152, %153, %cst_48 {dimension_numbers = #tpu.dot_dimension_numbers<[1], [0], [0], [1], [0, 0, 1, 1], [], []>} : vector<8x8xbf16>, vector<8x556xbf16>, vector<8x556xf32> -> vector<8x556xf32>
    %155 = arith.addf %151, %154 : vector<8x556xf32>
    %156 = vector.extract_strided_slice %144 {offsets = [0, 24], sizes = [8, 8], strides = [1, 1]} : vector<8x216xbf16> to vector<8x8xbf16>
    %157 = vector.extract_strided_slice %143 {offsets = [0, 10], sizes = [8, 556], strides = [1, 1]} : vector<8x778xbf16> to vector<8x556xbf16>
    %cst_49 = arith.constant dense<0.000000e+00> : vector<8x556xf32>
    %158 = tpu.matmul %156, %157, %cst_49 {dimension_numbers = #tpu.dot_dimension_numbers<[1], [0], [0], [1], [0, 0, 1, 1], [], []>} : vector<8x8xbf16>, vector<8x556xbf16>, vector<8x556xf32> -> vector<8x556xf32>
    %159 = arith.addf %155, %158 : vector<8x556xf32>
    %160 = vector.extract_strided_slice %144 {offsets = [0, 32], sizes = [8, 8], strides = [1, 1]} : vector<8x216xbf16> to vector<8x8xbf16>
    %161 = vector.extract_strided_slice %143 {offsets = [0, 11], sizes = [8, 556], strides = [1, 1]} : vector<8x778xbf16> to vector<8x556xbf16>
    %cst_50 = arith.constant dense<0.000000e+00> : vector<8x556xf32>
    %162 = tpu.matmul %160, %161, %cst_50 {dimension_numbers = #tpu.dot_dimension_numbers<[1], [0], [0], [1], [0, 0, 1, 1], [], []>} : vector<8x8xbf16>, vector<8x556xbf16>, vector<8x556xf32> -> vector<8x556xf32>
    %163 = arith.addf %159, %162 : vector<8x556xf32>
    %164 = vector.extract_strided_slice %144 {offsets = [0, 40], sizes = [8, 8], strides = [1, 1]} : vector<8x216xbf16> to vector<8x8xbf16>
    %165 = vector.extract_strided_slice %143 {offsets = [0, 12], sizes = [8, 556], strides = [1, 1]} : vector<8x778xbf16> to vector<8x556xbf16>
    %cst_51 = arith.constant dense<0.000000e+00> : vector<8x556xf32>
    %166 = tpu.matmul %164, %165, %cst_51 {dimension_numbers = #tpu.dot_dimension_numbers<[1], [0], [0], [1], [0, 0, 1, 1], [], []>} : vector<8x8xbf16>, vector<8x556xbf16>, vector<8x556xf32> -> vector<8x556xf32>
    %167 = arith.addf %163, %166 : vector<8x556xf32>
    %168 = vector.extract_strided_slice %144 {offsets = [0, 48], sizes = [8, 8], strides = [1, 1]} : vector<8x216xbf16> to vector<8x8xbf16>
    %169 = vector.extract_strided_slice %143 {offsets = [0, 20], sizes = [8, 556], strides = [1, 1]} : vector<8x778xbf16> to vector<8x556xbf16>
    %cst_52 = arith.constant dense<0.000000e+00> : vector<8x556xf32>
    %170 = tpu.matmul %168, %169, %cst_52 {dimension_numbers = #tpu.dot_dimension_numbers<[1], [0], [0], [1], [0, 0, 1, 1], [], []>} : vector<8x8xbf16>, vector<8x556xbf16>, vector<8x556xf32> -> vector<8x556xf32>
    %171 = arith.addf %167, %170 : vector<8x556xf32>
    %172 = vector.extract_strided_slice %144 {offsets = [0, 56], sizes = [8, 8], strides = [1, 1]} : vector<8x216xbf16> to vector<8x8xbf16>
    %173 = vector.extract_strided_slice %143 {offsets = [0, 21], sizes = [8, 556], strides = [1, 1]} : vector<8x778xbf16> to vector<8x556xbf16>
    %cst_53 = arith.constant dense<0.000000e+00> : vector<8x556xf32>
    %174 = tpu.matmul %172, %173, %cst_53 {dimension_numbers = #tpu.dot_dimension_numbers<[1], [0], [0], [1], [0, 0, 1, 1], [], []>} : vector<8x8xbf16>, vector<8x556xbf16>, vector<8x556xf32> -> vector<8x556xf32>
    %175 = arith.addf %171, %174 : vector<8x556xf32>
    %176 = vector.extract_strided_slice %144 {offsets = [0, 64], sizes = [8, 8], strides = [1, 1]} : vector<8x216xbf16> to vector<8x8xbf16>
    %177 = vector.extract_strided_slice %143 {offsets = [0, 22], sizes = [8, 556], strides = [1, 1]} : vector<8x778xbf16> to vector<8x556xbf16>
    %cst_54 = arith.constant dense<0.000000e+00> : vector<8x556xf32>
    %178 = tpu.matmul %176, %177, %cst_54 {dimension_numbers = #tpu.dot_dimension_numbers<[1], [0], [0], [1], [0, 0, 1, 1], [], []>} : vector<8x8xbf16>, vector<8x556xbf16>, vector<8x556xf32> -> vector<8x556xf32>
    %179 = arith.addf %175, %178 : vector<8x556xf32>
    %180 = vector.extract_strided_slice %144 {offsets = [0, 72], sizes = [8, 8], strides = [1, 1]} : vector<8x216xbf16> to vector<8x8xbf16>
    %181 = vector.extract_strided_slice %143 {offsets = [0, 100], sizes = [8, 556], strides = [1, 1]} : vector<8x778xbf16> to vector<8x556xbf16>
    %cst_55 = arith.constant dense<0.000000e+00> : vector<8x556xf32>
    %182 = tpu.matmul %180, %181, %cst_55 {dimension_numbers = #tpu.dot_dimension_numbers<[1], [0], [0], [1], [0, 0, 1, 1], [], []>} : vector<8x8xbf16>, vector<8x556xbf16>, vector<8x556xf32> -> vector<8x556xf32>
    %183 = arith.addf %179, %182 : vector<8x556xf32>
    %184 = vector.extract_strided_slice %144 {offsets = [0, 80], sizes = [8, 8], strides = [1, 1]} : vector<8x216xbf16> to vector<8x8xbf16>
    %185 = vector.extract_strided_slice %143 {offsets = [0, 101], sizes = [8, 556], strides = [1, 1]} : vector<8x778xbf16> to vector<8x556xbf16>
    %cst_56 = arith.constant dense<0.000000e+00> : vector<8x556xf32>
    %186 = tpu.matmul %184, %185, %cst_56 {dimension_numbers = #tpu.dot_dimension_numbers<[1], [0], [0], [1], [0, 0, 1, 1], [], []>} : vector<8x8xbf16>, vector<8x556xbf16>, vector<8x556xf32> -> vector<8x556xf32>
    %187 = arith.addf %183, %186 : vector<8x556xf32>
    %188 = vector.extract_strided_slice %144 {offsets = [0, 88], sizes = [8, 8], strides = [1, 1]} : vector<8x216xbf16> to vector<8x8xbf16>
    %189 = vector.extract_strided_slice %143 {offsets = [0, 102], sizes = [8, 556], strides = [1, 1]} : vector<8x778xbf16> to vector<8x556xbf16>
    %cst_57 = arith.constant dense<0.000000e+00> : vector<8x556xf32>
    %190 = tpu.matmul %188, %189, %cst_57 {dimension_numbers = #tpu.dot_dimension_numbers<[1], [0], [0], [1], [0, 0, 1, 1], [], []>} : vector<8x8xbf16>, vector<8x556xbf16>, vector<8x556xf32> -> vector<8x556xf32>
    %191 = arith.addf %187, %190 : vector<8x556xf32>
    %192 = vector.extract_strided_slice %144 {offsets = [0, 96], sizes = [8, 8], strides = [1, 1]} : vector<8x216xbf16> to vector<8x8xbf16>
    %193 = vector.extract_strided_slice %143 {offsets = [0, 110], sizes = [8, 556], strides = [1, 1]} : vector<8x778xbf16> to vector<8x556xbf16>
    %cst_58 = arith.constant dense<0.000000e+00> : vector<8x556xf32>
    %194 = tpu.matmul %192, %193, %cst_58 {dimension_numbers = #tpu.dot_dimension_numbers<[1], [0], [0], [1], [0, 0, 1, 1], [], []>} : vector<8x8xbf16>, vector<8x556xbf16>, vector<8x556xf32> -> vector<8x556xf32>
    %195 = arith.addf %191, %194 : vector<8x556xf32>
    %196 = vector.extract_strided_slice %144 {offsets = [0, 104], sizes = [8, 8], strides = [1, 1]} : vector<8x216xbf16> to vector<8x8xbf16>
    %197 = vector.extract_strided_slice %143 {offsets = [0, 111], sizes = [8, 556], strides = [1, 1]} : vector<8x778xbf16> to vector<8x556xbf16>
    %cst_59 = arith.constant dense<0.000000e+00> : vector<8x556xf32>
    %198 = tpu.matmul %196, %197, %cst_59 {dimension_numbers = #tpu.dot_dimension_numbers<[1], [0], [0], [1], [0, 0, 1, 1], [], []>} : vector<8x8xbf16>, vector<8x556xbf16>, vector<8x556xf32> -> vector<8x556xf32>
    %199 = arith.addf %195, %198 : vector<8x556xf32>
    %200 = vector.extract_strided_slice %144 {offsets = [0, 112], sizes = [8, 8], strides = [1, 1]} : vector<8x216xbf16> to vector<8x8xbf16>
    %201 = vector.extract_strided_slice %143 {offsets = [0, 112], sizes = [8, 556], strides = [1, 1]} : vector<8x778xbf16> to vector<8x556xbf16>
    %cst_60 = arith.constant dense<0.000000e+00> : vector<8x556xf32>
    %202 = tpu.matmul %200, %201, %cst_60 {dimension_numbers = #tpu.dot_dimension_numbers<[1], [0], [0], [1], [0, 0, 1, 1], [], []>} : vector<8x8xbf16>, vector<8x556xbf16>, vector<8x556xf32> -> vector<8x556xf32>
    %203 = arith.addf %199, %202 : vector<8x556xf32>
    %204 = vector.extract_strided_slice %144 {offsets = [0, 120], sizes = [8, 8], strides = [1, 1]} : vector<8x216xbf16> to vector<8x8xbf16>
    %205 = vector.extract_strided_slice %143 {offsets = [0, 120], sizes = [8, 556], strides = [1, 1]} : vector<8x778xbf16> to vector<8x556xbf16>
    %cst_61 = arith.constant dense<0.000000e+00> : vector<8x556xf32>
    %206 = tpu.matmul %204, %205, %cst_61 {dimension_numbers = #tpu.dot_dimension_numbers<[1], [0], [0], [1], [0, 0, 1, 1], [], []>} : vector<8x8xbf16>, vector<8x556xbf16>, vector<8x556xf32> -> vector<8x556xf32>
    %207 = arith.addf %203, %206 : vector<8x556xf32>
    %208 = vector.extract_strided_slice %144 {offsets = [0, 128], sizes = [8, 8], strides = [1, 1]} : vector<8x216xbf16> to vector<8x8xbf16>
    %209 = vector.extract_strided_slice %143 {offsets = [0, 121], sizes = [8, 556], strides = [1, 1]} : vector<8x778xbf16> to vector<8x556xbf16>
    %cst_62 = arith.constant dense<0.000000e+00> : vector<8x556xf32>
    %210 = tpu.matmul %208, %209, %cst_62 {dimension_numbers = #tpu.dot_dimension_numbers<[1], [0], [0], [1], [0, 0, 1, 1], [], []>} : vector<8x8xbf16>, vector<8x556xbf16>, vector<8x556xf32> -> vector<8x556xf32>
    %211 = arith.addf %207, %210 : vector<8x556xf32>
    %212 = vector.extract_strided_slice %144 {offsets = [0, 136], sizes = [8, 8], strides = [1, 1]} : vector<8x216xbf16> to vector<8x8xbf16>
    %213 = vector.extract_strided_slice %143 {offsets = [0, 122], sizes = [8, 556], strides = [1, 1]} : vector<8x778xbf16> to vector<8x556xbf16>
    %cst_63 = arith.constant dense<0.000000e+00> : vector<8x556xf32>
    %214 = tpu.matmul %212, %213, %cst_63 {dimension_numbers = #tpu.dot_dimension_numbers<[1], [0], [0], [1], [0, 0, 1, 1], [], []>} : vector<8x8xbf16>, vector<8x556xbf16>, vector<8x556xf32> -> vector<8x556xf32>
    %215 = arith.addf %211, %214 : vector<8x556xf32>
    %216 = vector.extract_strided_slice %144 {offsets = [0, 144], sizes = [8, 8], strides = [1, 1]} : vector<8x216xbf16> to vector<8x8xbf16>
    %217 = vector.extract_strided_slice %143 {offsets = [0, 200], sizes = [8, 556], strides = [1, 1]} : vector<8x778xbf16> to vector<8x556xbf16>
    %cst_64 = arith.constant dense<0.000000e+00> : vector<8x556xf32>
    %218 = tpu.matmul %216, %217, %cst_64 {dimension_numbers = #tpu.dot_dimension_numbers<[1], [0], [0], [1], [0, 0, 1, 1], [], []>} : vector<8x8xbf16>, vector<8x556xbf16>, vector<8x556xf32> -> vector<8x556xf32>
    %219 = arith.addf %215, %218 : vector<8x556xf32>
    %220 = vector.extract_strided_slice %144 {offsets = [0, 152], sizes = [8, 8], strides = [1, 1]} : vector<8x216xbf16> to vector<8x8xbf16>
    %221 = vector.extract_strided_slice %143 {offsets = [0, 201], sizes = [8, 556], strides = [1, 1]} : vector<8x778xbf16> to vector<8x556xbf16>
    %cst_65 = arith.constant dense<0.000000e+00> : vector<8x556xf32>
    %222 = tpu.matmul %220, %221, %cst_65 {dimension_numbers = #tpu.dot_dimension_numbers<[1], [0], [0], [1], [0, 0, 1, 1], [], []>} : vector<8x8xbf16>, vector<8x556xbf16>, vector<8x556xf32> -> vector<8x556xf32>
    %223 = arith.addf %219, %222 : vector<8x556xf32>
    %224 = vector.extract_strided_slice %144 {offsets = [0, 160], sizes = [8, 8], strides = [1, 1]} : vector<8x216xbf16> to vector<8x8xbf16>
    %225 = vector.extract_strided_slice %143 {offsets = [0, 202], sizes = [8, 556], strides = [1, 1]} : vector<8x778xbf16> to vector<8x556xbf16>
    %cst_66 = arith.constant dense<0.000000e+00> : vector<8x556xf32>
    %226 = tpu.matmul %224, %225, %cst_66 {dimension_numbers = #tpu.dot_dimension_numbers<[1], [0], [0], [1], [0, 0, 1, 1], [], []>} : vector<8x8xbf16>, vector<8x556xbf16>, vector<8x556xf32> -> vector<8x556xf32>
    %227 = arith.addf %223, %226 : vector<8x556xf32>
    %228 = vector.extract_strided_slice %144 {offsets = [0, 168], sizes = [8, 8], strides = [1, 1]} : vector<8x216xbf16> to vector<8x8xbf16>
    %229 = vector.extract_strided_slice %143 {offsets = [0, 210], sizes = [8, 556], strides = [1, 1]} : vector<8x778xbf16> to vector<8x556xbf16>
    %cst_67 = arith.constant dense<0.000000e+00> : vector<8x556xf32>
    %230 = tpu.matmul %228, %229, %cst_67 {dimension_numbers = #tpu.dot_dimension_numbers<[1], [0], [0], [1], [0, 0, 1, 1], [], []>} : vector<8x8xbf16>, vector<8x556xbf16>, vector<8x556xf32> -> vector<8x556xf32>
    %231 = arith.addf %227, %230 : vector<8x556xf32>
    %232 = vector.extract_strided_slice %144 {offsets = [0, 176], sizes = [8, 8], strides = [1, 1]} : vector<8x216xbf16> to vector<8x8xbf16>
    %233 = vector.extract_strided_slice %143 {offsets = [0, 211], sizes = [8, 556], strides = [1, 1]} : vector<8x778xbf16> to vector<8x556xbf16>
    %cst_68 = arith.constant dense<0.000000e+00> : vector<8x556xf32>
    %234 = tpu.matmul %232, %233, %cst_68 {dimension_numbers = #tpu.dot_dimension_numbers<[1], [0], [0], [1], [0, 0, 1, 1], [], []>} : vector<8x8xbf16>, vector<8x556xbf16>, vector<8x556xf32> -> vector<8x556xf32>
    %235 = arith.addf %231, %234 : vector<8x556xf32>
    %236 = vector.extract_strided_slice %144 {offsets = [0, 184], sizes = [8, 8], strides = [1, 1]} : vector<8x216xbf16> to vector<8x8xbf16>
    %237 = vector.extract_strided_slice %143 {offsets = [0, 212], sizes = [8, 556], strides = [1, 1]} : vector<8x778xbf16> to vector<8x556xbf16>
    %cst_69 = arith.constant dense<0.000000e+00> : vector<8x556xf32>
    %238 = tpu.matmul %236, %237, %cst_69 {dimension_numbers = #tpu.dot_dimension_numbers<[1], [0], [0], [1], [0, 0, 1, 1], [], []>} : vector<8x8xbf16>, vector<8x556xbf16>, vector<8x556xf32> -> vector<8x556xf32>
    %239 = arith.addf %235, %238 : vector<8x556xf32>
    %240 = vector.extract_strided_slice %144 {offsets = [0, 192], sizes = [8, 8], strides = [1, 1]} : vector<8x216xbf16> to vector<8x8xbf16>
    %241 = vector.extract_strided_slice %143 {offsets = [0, 220], sizes = [8, 556], strides = [1, 1]} : vector<8x778xbf16> to vector<8x556xbf16>
    %cst_70 = arith.constant dense<0.000000e+00> : vector<8x556xf32>
    %242 = tpu.matmul %240, %241, %cst_70 {dimension_numbers = #tpu.dot_dimension_numbers<[1], [0], [0], [1], [0, 0, 1, 1], [], []>} : vector<8x8xbf16>, vector<8x556xbf16>, vector<8x556xf32> -> vector<8x556xf32>
    %243 = arith.addf %239, %242 : vector<8x556xf32>
    %244 = vector.extract_strided_slice %144 {offsets = [0, 200], sizes = [8, 8], strides = [1, 1]} : vector<8x216xbf16> to vector<8x8xbf16>
    %245 = vector.extract_strided_slice %143 {offsets = [0, 221], sizes = [8, 556], strides = [1, 1]} : vector<8x778xbf16> to vector<8x556xbf16>
    %cst_71 = arith.constant dense<0.000000e+00> : vector<8x556xf32>
    %246 = tpu.matmul %244, %245, %cst_71 {dimension_numbers = #tpu.dot_dimension_numbers<[1], [0], [0], [1], [0, 0, 1, 1], [], []>} : vector<8x8xbf16>, vector<8x556xbf16>, vector<8x556xf32> -> vector<8x556xf32>
    %247 = arith.addf %243, %246 : vector<8x556xf32>
    %248 = vector.extract_strided_slice %144 {offsets = [0, 208], sizes = [8, 8], strides = [1, 1]} : vector<8x216xbf16> to vector<8x8xbf16>
    %249 = vector.extract_strided_slice %143 {offsets = [0, 222], sizes = [8, 556], strides = [1, 1]} : vector<8x778xbf16> to vector<8x556xbf16>
    %cst_72 = arith.constant dense<0.000000e+00> : vector<8x556xf32>
    %250 = tpu.matmul %248, %249, %cst_72 {dimension_numbers = #tpu.dot_dimension_numbers<[1], [0], [0], [1], [0, 0, 1, 1], [], []>} : vector<8x8xbf16>, vector<8x556xbf16>, vector<8x556xf32> -> vector<8x556xf32>
    %251 = arith.addf %247, %250 : vector<8x556xf32>
    %c0_73 = arith.constant 0 : index
    %c0_74 = arith.constant 0 : index
    %252 = vector.load %arg9[%c0_73, %c0_74] : memref<1x556xf32, #tpu.memory_space<vmem>>, vector<1x556xf32>
    %c0_75 = arith.constant 0 : index
    %c0_76 = arith.constant 0 : index
    %253 = vector.load %arg6[%c0_75, %c0_76] : memref<8x1xf32, #tpu.memory_space<vmem>>, vector<8x1xf32>
    %c0_77 = arith.constant 0 : index
    %c0_78 = arith.constant 0 : index
    %254 = vector.load %arg7[%c0_77, %c0_78] : memref<8x1xf32, #tpu.memory_space<vmem>>, vector<8x1xf32>
    %255 = vector.broadcast %252 : vector<1x556xf32> to vector<8x556xf32>
    %256 = arith.mulf %251, %255 : vector<8x556xf32>
    %cst_79 = arith.constant dense<0.000000e+00> : vector<8xf32>
    %257 = vector.multi_reduction <add>, %256, %cst_79 [1] : vector<8x556xf32> to vector<8xf32>
    %258 = vector.shape_cast %257 : vector<8xf32> to vector<8x1xf32>
    %cst_80 = arith.constant 0.00462962966 : f32
    %259 = vector.broadcast %cst_80 : f32 to vector<8x1xf32>
    %260 = arith.mulf %258, %259 : vector<8x1xf32>
    %261 = arith.mulf %256, %256 : vector<8x556xf32>
    %cst_81 = arith.constant dense<0.000000e+00> : vector<8xf32>
    %262 = vector.multi_reduction <add>, %261, %cst_81 [1] : vector<8x556xf32> to vector<8xf32>
    %263 = vector.shape_cast %262 : vector<8xf32> to vector<8x1xf32>
    %cst_82 = arith.constant 0.00462962966 : f32
    %264 = vector.broadcast %cst_82 : f32 to vector<8x1xf32>
    %265 = arith.mulf %263, %264 : vector<8x1xf32>
    %266 = arith.mulf %260, %260 : vector<8x1xf32>
    %267 = arith.subf %265, %266 : vector<8x1xf32>
    %cst_83 = arith.constant 0.000000e+00 : f32
    %268 = vector.broadcast %cst_83 : f32 to vector<8x1xf32>
    %269 = arith.maximumf %267, %268 : vector<8x1xf32>
    %cst_84 = arith.constant 9.99999974E-6 : f32
    %270 = vector.broadcast %cst_84 : f32 to vector<8x1xf32>
    %271 = arith.addf %269, %270 : vector<8x1xf32>
    %272 = math.rsqrt %271 : vector<8x1xf32>
    %273 = arith.mulf %253, %272 : vector<8x1xf32>
    %274 = arith.mulf %260, %273 : vector<8x1xf32>
    %275 = arith.subf %254, %274 : vector<8x1xf32>
    %276 = vector.broadcast %273 : vector<8x1xf32> to vector<8x556xf32>
    %277 = arith.mulf %251, %276 : vector<8x556xf32>
    %278 = vector.broadcast %275 : vector<8x1xf32> to vector<8x556xf32>
    %279 = arith.addf %277, %278 : vector<8x556xf32>
    %cst_85 = arith.constant 0.000000e+00 : f32
    %280 = vector.broadcast %cst_85 : f32 to vector<8x556xf32>
    %281 = arith.cmpf ogt, %279, %280 : vector<8x556xf32>
    %cst_86 = arith.constant 0.00999999977 : f32
    %282 = vector.broadcast %cst_86 : f32 to vector<8x556xf32>
    %283 = arith.mulf %282, %279 : vector<8x556xf32>
    %284 = arith.select %281, %279, %283 : vector<8x556xi1>, vector<8x556xf32>
    %c0_87 = arith.constant 0 : index
    %c0_88 = arith.constant 0 : index
    %c0_89 = arith.constant 0 : index
    %285 = vector.load %arg10[%c0_87, %c0_88, %c0_89] : memref<1x8x556xf32, #tpu.memory_space<vmem>>, vector<1x8x556xf32>
    %286 = vector.shape_cast %285 : vector<1x8x556xf32> to vector<8x556xf32>
    %287 = vector.shape_cast %284 : vector<8x556xf32> to vector<1x8x556xf32>
    tpu.vector_store %arg10[%c0_87, %c0_88, %c0_89], %287 {strides = array<i32>} : memref<1x8x556xf32, #tpu.memory_space<vmem>>, vector<1x8x556xf32>,
    return
  }
  func.func @transform_0(%arg0: i32) -> (i32, i32, i32) {
    %c0_i32 = arith.constant 0 : i32
    %c0_i32_0 = arith.constant 0 : i32
    %c0_i32_1 = arith.constant 0 : i32
    return %arg0, %c0_i32, %c0_i32_0 : i32, i32, i32
  }
  func.func @transform_1(%arg0: i32) -> (i32, i32) {
    %c0_i32 = arith.constant 0 : i32
    %c0_i32_0 = arith.constant 0 : i32
    %c0_i32_1 = arith.constant 0 : i32
    return %c0_i32, %c0_i32_0 : i32, i32
  }
  func.func @transform_2(%arg0: i32) -> (i32, i32) {
    %c0_i32 = arith.constant 0 : i32
    %c0_i32_0 = arith.constant 0 : i32
    %c0_i32_1 = arith.constant 0 : i32
    return %c0_i32, %c0_i32_0 : i32, i32
  }
  func.func @transform_3(%arg0: i32) -> (i32, i32) {
    %c0_i32 = arith.constant 0 : i32
    %c0_i32_0 = arith.constant 0 : i32
    %c0_i32_1 = arith.constant 0 : i32
    return %c0_i32, %c0_i32_0 : i32, i32
  }
  func.func @transform_4(%arg0: i32) -> (i32, i32) {
    %c0_i32 = arith.constant 0 : i32
    %c0_i32_0 = arith.constant 0 : i32
    %c0_i32_1 = arith.constant 0 : i32
    return %c0_i32, %c0_i32_0 : i32, i32
  }
  func.func @transform_5(%arg0: i32) -> (i32, i32) {
    %c0_i32 = arith.constant 0 : i32
    %c0_i32_0 = arith.constant 0 : i32
    %c0_i32_1 = arith.constant 0 : i32
    return %c0_i32, %c0_i32_0 : i32, i32
  }
  func.func @transform_6(%arg0: i32) -> (i32, i32) {
    %c0_i32 = arith.constant 0 : i32
    %c0_i32_0 = arith.constant 0 : i32
    %c0_i32_1 = arith.constant 0 : i32
    return %c0_i32, %c0_i32_0 : i32, i32
  }
  func.func @transform_7(%arg0: i32) -> (i32, i32) {
    %c0_i32 = arith.constant 0 : i32
    %c0_i32_0 = arith.constant 0 : i32
    %c0_i32_1 = arith.constant 0 : i32
    return %c0_i32, %c0_i32_0 : i32, i32
  }
  func.func @transform_8(%arg0: i32) -> (i32, i32) {
    %c0_i32 = arith.constant 0 : i32
    %c0_i32_0 = arith.constant 0 : i32
    %c0_i32_1 = arith.constant 0 : i32
    return %c0_i32, %c0_i32_0 : i32, i32
  }
  func.func @transform_9(%arg0: i32) -> (i32, i32, i32) {
    %c0_i32 = arith.constant 0 : i32
    %c0_i32_0 = arith.constant 0 : i32
    %c0_i32_1 = arith.constant 0 : i32
    return %arg0, %c0_i32, %c0_i32_0 : i32, i32, i32
  }
}

</mosaic_0001>

<llo_original>
// kernel: conv3d_block_forward.1
$region0: #{conv3d_block_forward.1}
  #allocation0 [shape = 'u32[]', space=smem, size = 0x4, offset = 0x4, fixed_abs, tag = 'smem constant byte address 0x4 - core index']
  #allocation1 [shape = 'u32[144,128]{1,0:T(1,128)}', space=vmem, size = 0x12000, scoped, tag = 'internal scratch']
  %s0 = inlined_call_operand.vmem [shape: bf16[2,4,1000], index: 0, kind: input, shape index: {}]
  %s1 = inlined_call_operand.vmem [shape: bf16[8,108], index: 1, kind: input, shape index: {}]
  %s2 = inlined_call_operand.vmem [shape: f32[8,1], index: 2, kind: input, shape index: {}]
  %s3 = inlined_call_operand.vmem [shape: f32[8,1], index: 3, kind: input, shape index: {}]
  %s4 = inlined_call_operand.vmem [shape: bf16[8,216], index: 4, kind: input, shape index: {}]
  %s5 = inlined_call_operand.vmem [shape: f32[8,1], index: 5, kind: input, shape index: {}]
  %s6 = inlined_call_operand.vmem [shape: f32[8,1], index: 6, kind: input, shape index: {}]
  %s7 = inlined_call_operand.vmem [shape: f32[1,778], index: 7, kind: input, shape index: {}]
  %s8 = inlined_call_operand.vmem [shape: f32[1,556], index: 8, kind: input, shape index: {}]
  %s9 = inlined_call_operand.vmem [shape: f32[2,8,556], index: 9, kind: output, shape index: {}]
  %s10 = sld [smem:[#allocation0]]
  $region69: #{conv3d_block_forward.1} parent=0
    _
  %s12 = ssub.s32 1, %s10
  %s13 = scalar_select 0, %s12, %s10
  loop: start=0, step=1, limit=4
  $region2: #{conv3d_block_forward.1} parent=0 // loop_pre_header
    _
  $region3: #{conv3d_block_forward.1} parent=0 // loop_header
    %s15 = sphi 0, %s19
    %p16 = scmp.ge.s32.totalorder %s15, 4
    %s25 = sphi 0, %s27
    %s28 = sphi 0, %s25
    %s29 = sphi 0, %s28
    %s45 = sphi 0, %s29
    %s49 = sphi 0, %s49
    %s51 = sphi 0, %s49
    %s52 = sphi 0, %s51
    %s66 = sphi 0, %s52
    %s70 = sphi 0, %s70
    %s72 = sphi 0, %s70
    %s73 = sphi 0, %s72
    %s87 = sphi 0, %s73
    %s91 = sphi 0, %s91
    %s93 = sphi 0, %s91
    %s94 = sphi 0, %s93
    %s108 = sphi 0, %s94
    %s112 = sphi 0, %s112
    %s114 = sphi 0, %s112
    %s115 = sphi 0, %s114
    %s129 = sphi 0, %s115
    %s133 = sphi 0, %s133
    %s135 = sphi 0, %s133
    %s136 = sphi 0, %s135
    %s150 = sphi 0, %s136
    %s154 = sphi 0, %s154
    %s156 = sphi 0, %s154
    %s157 = sphi 0, %s156
    %s171 = sphi 0, %s157
    %s175 = sphi 0, %s175
    %s177 = sphi 0, %s175
    %s178 = sphi 0, %s177
    %s192 = sphi 0, %s178
    %s196 = sphi 0, %s196
    %s198 = sphi 0, %s196
    %s199 = sphi 0, %s198
    %s213 = sphi 0, %s199
    %s219 = sphi 0, %s221
    %s222 = sphi 0, %s219
    %s223 = sphi 0, %s222
    %s239 = sphi 0, %s223
  $region4: #{conv3d_block_forward.1} parent=0 // loop_header_branch
    %18 = sbr.rel (%p16) target = $region8
  $region5: #{conv3d_block_forward.1} parent=0 // loop_body
    %s20 = ssub.s32 %s15, 1
    %s21 = ssub.s32 %s15, 2
    %s22 = sadd.s32 %s15, 1
    %s23 = ssub.s32 %s15, %s22
    %p24 = scmp.eq.s32.totalorder %s23, 0
    %s26 = sadd.s32 %s25, 1
    %s27 = scalar_select %p24, %s25, %s26
    %p30 = pneg %p24
    %p31 = scmp.eq.s32.totalorder %s15, 1
    %p32 = por %p30, %p31
    %p33 = scmp.ne.s32.totalorder %s25, %s28
    %p34 = scmp.eq.s32.totalorder %s15, 0
    %p35 = por %p33, %p34
    %p36 = scmp.ne.s32.totalorder %s25, %s28
    %p37 = scmp.eq.s32.totalorder %s20, 1
    %p38 = por %p36, %p37
    %p39 = scmp.ne.s32.totalorder %s28, %s29
    %p40 = scmp.eq.s32.totalorder %s20, 0
    %p41 = por %p39, %p40
    %p42 = scmp.ne.s32.totalorder %s28, %s29
    %p43 = scmp.eq.s32.totalorder %s21, 1
    %p44 = por %p42, %p43
    %p46 = scmp.ne.s32.totalorder %s29, %s45
    %p47 = scmp.eq.s32.totalorder %s21, 0
    %p48 = por %p46, %p47
    %s50 = sadd.s32 %s49, 1
    %p53 = scmp.eq.s32.totalorder %s15, 1
    %p54 = scmp.ne.s32.totalorder %s49, %s51
    %p55 = scmp.eq.s32.totalorder %s15, 0
    %p56 = por %p54, %p55
    %p57 = scmp.ne.s32.totalorder %s49, %s51
    %p58 = scmp.eq.s32.totalorder %s20, 1
    %p59 = por %p57, %p58
    %p60 = scmp.ne.s32.totalorder %s51, %s52
    %p61 = scmp.eq.s32.totalorder %s20, 0
    %p62 = por %p60, %p61
    %p63 = scmp.ne.s32.totalorder %s51, %s52
    %p64 = scmp.eq.s32.totalorder %s21, 1
    %p65 = por %p63, %p64
    %p67 = scmp.ne.s32.totalorder %s52, %s66
    %p68 = scmp.eq.s32.totalorder %s21, 0
    %p69 = por %p67, %p68
    %s71 = sadd.s32 %s70, 1
    %p74 = scmp.eq.s32.totalorder %s15, 1
    %p75 = scmp.ne.s32.totalorder %s70, %s72
    %p76 = scmp.eq.s32.totalorder %s15, 0
    %p77 = por %p75, %p76
    %p78 = scmp.ne.s32.totalorder %s70, %s72
    %p79 = scmp.eq.s32.totalorder %s20, 1
    %p80 = por %p78, %p79
    %p81 = scmp.ne.s32.totalorder %s72, %s73
    %p82 = scmp.eq.s32.totalorder %s20, 0
    %p83 = por %p81, %p82
    %p84 = scmp.ne.s32.totalorder %s72, %s73
    %p85 = scmp.eq.s32.totalorder %s21, 1
    %p86 = por %p84, %p85
    %p88 = scmp.ne.s32.totalorder %s73, %s87
    %p89 = scmp.eq.s32.totalorder %s21, 0
    %p90 = por %p88, %p89
    %s92 = sadd.s32 %s91, 1
    %p95 = scmp.eq.s32.totalorder %s15, 1
    %p96 = scmp.ne.s32.totalorder %s91, %s93
    %p97 = scmp.eq.s32.totalorder %s15, 0
    %p98 = por %p96, %p97
    %p99 = scmp.ne.s32.totalorder %s91, %s93
    %p100 = scmp.eq.s32.totalorder %s20, 1
    %p101 = por %p99, %p100
    %p102 = scmp.ne.s32.totalorder %s93, %s94
    %p103 = scmp.eq.s32.totalorder %s20, 0
    %p104 = por %p102, %p103
    %p105 = scmp.ne.s32.totalorder %s93, %s94
    %p106 = scmp.eq.s32.totalorder %s21, 1
    %p107 = por %p105, %p106
    %p109 = scmp.ne.s32.totalorder %s94, %s108
    %p110 = scmp.eq.s32.totalorder %s21, 0
    %p111 = por %p109, %p110
    %s113 = sadd.s32 %s112, 1
    %p116 = scmp.eq.s32.totalorder %s15, 1
    %p117 = scmp.ne.s32.totalorder %s112, %s114
    %p118 = scmp.eq.s32.totalorder %s15, 0
    %p119 = por %p117, %p118
    %p120 = scmp.ne.s32.totalorder %s112, %s114
    %p121 = scmp.eq.s32.totalorder %s20, 1
    %p122 = por %p120, %p121
    %p123 = scmp.ne.s32.totalorder %s114, %s115
    %p124 = scmp.eq.s32.totalorder %s20, 0
    %p125 = por %p123, %p124
    %p126 = scmp.ne.s32.totalorder %s114, %s115
    %p127 = scmp.eq.s32.totalorder %s21, 1
    %p128 = por %p126, %p127
    %p130 = scmp.ne.s32.totalorder %s115, %s129
    %p131 = scmp.eq.s32.totalorder %s21, 0
    %p132 = por %p130, %p131
    %s134 = sadd.s32 %s133, 1
    %p137 = scmp.eq.s32.totalorder %s15, 1
    %p138 = scmp.ne.s32.totalorder %s133, %s135
    %p139 = scmp.eq.s32.totalorder %s15, 0
    %p140 = por %p138, %p139
    %p141 = scmp.ne.s32.totalorder %s133, %s135
    %p142 = scmp.eq.s32.totalorder %s20, 1
    %p143 = por %p141, %p142
    %p144 = scmp.ne.s32.totalorder %s135, %s136
    %p145 = scmp.eq.s32.totalorder %s20, 0
    %p146 = por %p144, %p145
    %p147 = scmp.ne.s32.totalorder %s135, %s136
    %p148 = scmp.eq.s32.totalorder %s21, 1
    %p149 = por %p147, %p148
    %p151 = scmp.ne.s32.totalorder %s136, %s150
    %p152 = scmp.eq.s32.totalorder %s21, 0
    %p153 = por %p151, %p152
    %s155 = sadd.s32 %s154, 1
    %p158 = scmp.eq.s32.totalorder %s15, 1
    %p159 = scmp.ne.s32.totalorder %s154, %s156
    %p160 = scmp.eq.s32.totalorder %s15, 0
    %p161 = por %p159, %p160
    %p162 = scmp.ne.s32.totalorder %s154, %s156
    %p163 = scmp.eq.s32.totalorder %s20, 1
    %p164 = por %p162, %p163
    %p165 = scmp.ne.s32.totalorder %s156, %s157
    %p166 = scmp.eq.s32.totalorder %s20, 0
    %p167 = por %p165, %p166
    %p168 = scmp.ne.s32.totalorder %s156, %s157
    %p169 = scmp.eq.s32.totalorder %s21, 1
    %p170 = por %p168, %p169
    %p172 = scmp.ne.s32.totalorder %s157, %s171
    %p173 = scmp.eq.s32.totalorder %s21, 0
    %p174 = por %p172, %p173
    %s176 = sadd.s32 %s175, 1
    %p179 = scmp.eq.s32.totalorder %s15, 1
    %p180 = scmp.ne.s32.totalorder %s175, %s177
    %p181 = scmp.eq.s32.totalorder %s15, 0
    %p182 = por %p180, %p181
    %p183 = scmp.ne.s32.totalorder %s175, %s177
    %p184 = scmp.eq.s32.totalorder %s20, 1
    %p185 = por %p183, %p184
    %p186 = scmp.ne.s32.totalorder %s177, %s178
    %p187 = scmp.eq.s32.totalorder %s20, 0
    %p188 = por %p186, %p187
    %p189 = scmp.ne.s32.totalorder %s177, %s178
    %p190 = scmp.eq.s32.totalorder %s21, 1
    %p191 = por %p189, %p190
    %p193 = scmp.ne.s32.totalorder %s178, %s192
    %p194 = scmp.eq.s32.totalorder %s21, 0
    %p195 = por %p193, %p194
    %s197 = sadd.s32 %s196, 1
    %p200 = scmp.eq.s32.totalorder %s15, 1
    %p201 = scmp.ne.s32.totalorder %s196, %s198
    %p202 = scmp.eq.s32.totalorder %s15, 0
    %p203 = por %p201, %p202
    %p204 = scmp.ne.s32.totalorder %s196, %s198
    %p205 = scmp.eq.s32.totalorder %s20, 1
    %p206 = por %p204, %p205
    %p207 = scmp.ne.s32.totalorder %s198, %s199
    %p208 = scmp.eq.s32.totalorder %s20, 0
    %p209 = por %p207, %p208
    %p210 = scmp.ne.s32.totalorder %s198, %s199
    %p211 = scmp.eq.s32.totalorder %s21, 1
    %p212 = por %p210, %p211
    %p214 = scmp.ne.s32.totalorder %s199, %s213
    %p215 = scmp.eq.s32.totalorder %s21, 0
    %p216 = por %p214, %p215
    %s217 = ssub.s32 %s15, %s22
    %p218 = scmp.eq.s32.totalorder %s217, 0
    %s220 = sadd.s32 %s219, 1
    %s221 = scalar_select %p218, %s219, %s220
    %p224 = pneg %p218
    %p225 = scmp.eq.s32.totalorder %s15, 1
    %p226 = por %p224, %p225
    %p227 = scmp.ne.s32.totalorder %s219, %s222
    %p228 = scmp.eq.s32.totalorder %s15, 0
    %p229 = por %p227, %p228
    %p230 = scmp.ne.s32.totalorder %s219, %s222
    %p231 = scmp.eq.s32.totalorder %s20, 1
    %p232 = por %p230, %p231
    %p233 = scmp.ne.s32.totalorder %s222, %s223
    %p234 = scmp.eq.s32.totalorder %s20, 0
    %p235 = por %p233, %p234
    %p236 = scmp.ne.s32.totalorder %s222, %s223
    %p237 = scmp.eq.s32.totalorder %s21, 1
    %p238 = por %p236, %p237
    %p240 = scmp.ne.s32.totalorder %s223, %s239
    %p241 = scmp.eq.s32.totalorder %s21, 0
    %p242 = por %p240, %p241
    %p243 = scmp.le.s32.totalorder 1, %s15
    %p244 = scmp.lt.s32.totalorder %s15, 3
    %p245 = pnand %p243, %p244
    %p246 = pneg %p245
    // Predicated region
    $region9: #{conv3d_block_forward.1} parent=5 // pred_check
      _
    $region10: #{conv3d_block_forward.1} parent=5 // pred_check_branch
      %248 = sbr.rel (%p245) target = $region12
    $region11: #{conv3d_block_forward.1} parent=5 // pred_region
      %s249 = ssub.s32 %s15, 1
      // Predicated region
      $region13: #{conv3d_block_forward.1} parent=11 // pred_check
        %p250 = pneg %p62
      $region14: #{conv3d_block_forward.1} parent=11 // pred_check_branch
        %252 = sbr.rel (%p250) target = $region16
      $region15: #{conv3d_block_forward.1} parent=11 // pred_region
        _
      $region16: #{conv3d_block_forward.1} parent=11 // pred_fallthru
        _
      // Predicated region
      $region17: #{conv3d_block_forward.1} parent=11 // pred_check
        %p253 = pneg %p83
      $region18: #{conv3d_block_forward.1} parent=11 // pred_check_branch
        %255 = sbr.rel (%p253) target = $region20
      $region19: #{conv3d_block_forward.1} parent=11 // pred_region
        _
      $region20: #{conv3d_block_forward.1} parent=11 // pred_fallthru
        _
      // Predicated region
      $region21: #{conv3d_block_forward.1} parent=11 // pred_check
        %p256 = pneg %p104
      $region22: #{conv3d_block_forward.1} parent=11 // pred_check_branch
        %258 = sbr.rel (%p256) target = $region24
      $region23: #{conv3d_block_forward.1} parent=11 // pred_region
        _
      $region24: #{conv3d_block_forward.1} parent=11 // pred_fallthru
        _
      // Predicated region
      $region25: #{conv3d_block_forward.1} parent=11 // pred_check
        %p259 = pneg %p125
      $region26: #{conv3d_block_forward.1} parent=11 // pred_check_branch
        %261 = sbr.rel (%p259) target = $region28
      $region27: #{conv3d_block_forward.1} parent=11 // pred_region
        _
      $region28: #{conv3d_block_forward.1} parent=11 // pred_fallthru
        _
      // Predicated region
      $region29: #{conv3d_block_forward.1} parent=11 // pred_check
        %p262 = pneg %p146
      $region30: #{conv3d_block_forward.1} parent=11 // pred_check_branch
        %264 = sbr.rel (%p262) target = $region32
      $region31: #{conv3d_block_forward.1} parent=11 // pred_region
        _
      $region32: #{conv3d_block_forward.1} parent=11 // pred_fallthru
        _
      // Predicated region
      $region33: #{conv3d_block_forward.1} parent=11 // pred_check
        %p265 = pneg %p167
      $region34: #{conv3d_block_forward.1} parent=11 // pred_check_branch
        %267 = sbr.rel (%p265) target = $region36
      $region35: #{conv3d_block_forward.1} parent=11 // pred_region
        _
      $region36: #{conv3d_block_forward.1} parent=11 // pred_fallthru
        _
      // Predicated region
      $region37: #{conv3d_block_forward.1} parent=11 // pred_check
        %p268 = pneg %p188
      $region38: #{conv3d_block_forward.1} parent=11 // pred_check_branch
        %270 = sbr.rel (%p268) target = $region40
      $region39: #{conv3d_block_forward.1} parent=11 // pred_region
        _
      $region40: #{conv3d_block_forward.1} parent=11 // pred_fallthru
        _
      // Predicated region
      $region41: #{conv3d_block_forward.1} parent=11 // pred_check
        %p271 = pneg %p209
      $region42: #{conv3d_block_forward.1} parent=11 // pred_check_branch
        %273 = sbr.rel (%p271) target = $region44
      $region43: #{conv3d_block_forward.1} parent=11 // pred_region
        _
      $region44: #{conv3d_block_forward.1} parent=11 // pred_fallthru
        _
    $region12: #{conv3d_block_forward.1} parent=5 // pred_fallthru
      _
    %p274 = scmp.lt.s32.totalorder %s15, 2
    // Predicated region
    $region45: #{conv3d_block_forward.1} parent=5 // pred_check
      %p275 = pneg %p274
    $region46: #{conv3d_block_forward.1} parent=5 // pred_check_branch
      %277 = sbr.rel (%p275) target = $region48
    $region47: #{conv3d_block_forward.1} parent=5 // pred_region
      // Predicated region
      $region49: #{conv3d_block_forward.1} parent=47 // pred_check
        %p278 = pneg %p35
      $region50: #{conv3d_block_forward.1} parent=47 // pred_check_branch
        %280 = sbr.rel (%p278) target = $region52
      $region51: #{conv3d_block_forward.1} parent=47 // pred_region
        %p281 = scmp.lt.s32.totalorder %s15, 1
        %s282 = scalar_select %p281, %s15, 1
        %s283 = smul.addr %s282, 8
        %s284 = smul.addr %s283, 2
        %s285 = scalar_lea.vmem %s0, %s284
      $region52: #{conv3d_block_forward.1} parent=47 // pred_fallthru
        _
    $region48: #{conv3d_block_forward.1} parent=5 // pred_fallthru
      _
    %p286 = scmp.le.s32.totalorder 1, %s15
    %p287 = scmp.lt.s32.totalorder %s15, 3
    %p288 = pnand %p286, %p287
    %p289 = pneg %p288
    // Predicated region
    $region53: #{conv3d_block_forward.1} parent=5 // pred_check
      _
    $region54: #{conv3d_block_forward.1} parent=5 // pred_check_branch
      %291 = sbr.rel (%p288) target = $region56
    $region55: #{conv3d_block_forward.1} parent=5 // pred_region
      %s292 = ssub.s32 %s15, 1
      %p293 = scmp.lt.s32.totalorder %s20, 1
      %s294 = scalar_select %p293, %s20, 1
      %s295 = smul.addr %s294, 8
      %s296 = smul.addr %s295, 2
      %s297 = scalar_lea.vmem %s0, %s296
      %p298 = pneg %p41
      %p299 = pneg %p38
      %p300 = pneg %p62
      %p301 = pneg %p59
      %p302 = pneg %p83
      %p303 = pneg %p80
      %p304 = pneg %p104
      %p305 = pneg %p101
      %p306 = pneg %p125
      %p307 = pneg %p122
      %p308 = pneg %p146
      %p309 = pneg %p143
      %p310 = pneg %p167
      %p311 = pneg %p164
      %p312 = pneg %p188
      %p313 = pneg %p185
      %p314 = pneg %p209
      %p315 = pneg %p206
      %p316 = pneg %p235
      %p317 = pneg %p232
      %p318 = scmp.lt.s32.totalorder %s20, 1
      %s319 = scalar_select %p318, %s20, 1
      %s320 = smul.addr %s319, 5
      %s321 = smul.addr %s320, 8
      %s322 = scalar_lea.vmem %s9, %s321
      %p323 = scmp.lt.s32.totalorder %s20, 1
      %s324 = scalar_select %p323, %s20, 1
      %s325 = smul.addr %s324, 8
      %s326 = smul.addr %s325, 2
      %s327 = scalar_lea.vmem %s0, %s326
      %p328 = scmp.lt.s32.totalorder %s20, 1
      %s329 = scalar_select %p328, %s20, 1
      %s330 = smul.addr %s329, 5
      %s331 = smul.addr %s330, 8
      %s332 = scalar_lea.vmem %s9, %s331
      %v334 = vld [vmem:[%s327] sm:$0xff]
      %v335 = vld [vmem:[%s327 + $0x8] sm:$0xff]
      %v336 = vld [vmem:[%s7] sm:$0x7f]
      %v337 = vld [vmem:[%s1] sm:$0xf]
      %v339 = vunpack.c.l.b16 %v337
      %v340 = vpack.c.b16 %v339, %v339
      %341 = vrot.lane.b32.xlu0 %v340, 124
      %v342 = vpop.permute.xlu0 %341
      %v345 = vcombine.high %v334, %v334
      %v347 = vunpack.c.l.s4 1983009808
      %v348 = vunpack.c.0.s8 %v347
      %v349 = vlaneseq
      %v350 = vshrl.u32 %v349, 7
      %v351 = vsub.s32 %v348, %v350
      %v352 = vrot.slane %v334, %v351
      %v354 = vunpack.c.l.s4 1983009808
      %v355 = vunpack.c.0.s8 %v354
      %v356 = vlaneseq
      %v357 = vshrl.u32 %v356, 7
      %v358 = vsub.s32 %v355, %v357
      %v359 = vrot.slane %v345, %v358
      %v360 = vcombine.high %v352, %v352
      %v361 = vcombine.high %v359, %v359
      %v362 = vcombine.high %v335, %v335
      %v364 = vunpack.c.l.s4 1983009808
      %v365 = vunpack.c.0.s8 %v364
      %v366 = vlaneseq
      %v367 = vshrl.u32 %v366, 7
      %v368 = vsub.s32 %v365, %v367
      %v369 = vrot.slane %v335, %v368
      %v371 = vunpack.c.l.s4 1983009808
      %v372 = vunpack.c.0.s8 %v371
      %v373 = vlaneseq
      %v374 = vshrl.u32 %v373, 7
      %v375 = vsub.s32 %v372, %v374
      %v376 = vrot.slane %v362, %v375
      %v377 = vcombine.high %v369, %v369
      %378 = vrot.lane.b32.xlu0 %v352, 127
      %v379 = vpop.permute.xlu0 %378
      %380 = vrot.lane.b32.xlu0 %v360, 127
      %v381 = vpop.permute.xlu0 %380
      %382 = vrot.lane.b32.xlu0 %v359, 127
      %v383 = vpop.permute.xlu0 %382
      %384 = vrot.lane.b32.xlu0 %v361, 127
      %v385 = vpop.permute.xlu0 %384
      %386 = vrot.lane.b32.xlu0 %v369, 127
      %v387 = vpop.permute.xlu0 %386
      %388 = vrot.lane.b32.xlu0 %v377, 127
      %v389 = vpop.permute.xlu0 %388
      %390 = vrot.lane.b32.xlu0 %v376, 127
      %v391 = vpop.permute.xlu0 %390
      %vm392 = vcmask 1039360
      %v393 = vsel %vm392, %v379, %v381
      %v394 = vsel %vm392, %v381, %v383
      %v395 = vsel %vm392, %v383, %v385
      %v396 = vsel %vm392, %v385, %v387
      %v397 = vsel %vm392, %v387, %v389
      %v398 = vsel %vm392, %v389, %v391
      %vm399 = vcmask 31744
      %v401 = vsel %vm399, %v342, 0
      %vm403 = vcmask 1041408
      %v405 = vsel %vm403, %v393, 0
      %v408 = vsel %vm403, %v394, 0
      %v411 = vsel %vm403, %v395, 0
      %v414 = vsel %vm403, %v396, 0
      %v417 = vsel %vm403, %v397, 0
      %v420 = vsel %vm403, %v398, 0
      %v423 = vsel %vm403, %v391, 0
      %425 = vmatprep.subr.bf16.mxu0 0
      %426 = vmatpush1.bf16.msra.mxu0 0
      %427 = vmatprep.subr.bf16.mxu0 0
      %428 = vmatpush1.bf16.msra.mxu0 0
      %429 = vmatprep.subr.bf16.mxu0 0
      %430 = vmatpush1.bf16.msra.mxu0 0
      %431 = vmatprep.subr.bf16.mxu0 0
      %432 = vmatpush1.bf16.msra.mxu0 0
      %433 = vmatprep.subr.bf16.mxu0 0
      %434 = vmatpush1.bf16.msra.mxu0 0
      %435 = vmatprep.subr.bf16.mxu0 0
      %436 = vmatpush1.bf16.msra.mxu0 0
      %437 = vmatprep.subr.bf16.mxu0 0
      %438 = vmatpush1.bf16.msra.mxu0 0
      %439 = vmatprep.subr.bf16.mxu0 %v408
      %440 = vmatpush1.bf16.msra.mxu0 %v405
      %441 = vmatprep.subr.bf16.mxu0 0
      %442 = vmatpush2.bf16.msra.mxu0 0
      %443 = vmatprep.subr.bf16.mxu0 0
      %444 = vmatpush2.bf16.msra.mxu0 0
      %445 = vmatprep.subr.bf16.mxu0 0
      %446 = vmatpush2.bf16.msra.mxu0 0
      %447 = vmatprep.subr.bf16.mxu0 0
      %448 = vmatpush2.bf16.msra.mxu0 0
      %449 = vmatprep.subr.bf16.mxu0 0
      %450 = vmatpush2.bf16.msra.mxu0 0
      %451 = vmatprep.subr.bf16.mxu0 0
      %452 = vmatpush2.bf16.msra.mxu0 0
      %453 = vmatprep.subr.bf16.mxu0 0
      %454 = vmatpush2.bf16.msra.mxu0 0
      %455 = vmatprep.subr.bf16.mxu0 0
      %456 = vmatpush2.bf16.msra.mxu0 0
      %457 = vmatprep.mubr.bf16.mxu0 0
      %458 = vmatmul.mubr.bf16.gmra.mxu0 %v401
      %v459 = vpop.f32.mrf.mxu0
      %v460 = vadd.f32 0.0, %v459
      %v461 = vpop.f32.mrf.mxu0
      %v462 = vadd.f32 0.0, %v461
      %v463 = vpop.f32.mrf.mxu0
      %v464 = vpop.f32.mrf.mxu0
      %465 = vdwg.mxu0
      %466 = vmatprep.subr.bf16.mxu0 0
      %467 = vmatpush1.bf16.msra.mxu0 0
      %468 = vmatprep.subr.bf16.mxu0 0
      %469 = vmatpush1.bf16.msra.mxu0 0
      %470 = vmatprep.subr.bf16.mxu0 0
      %471 = vmatpush1.bf16.msra.mxu0 0
      %472 = vmatprep.subr.bf16.mxu0 0
      %473 = vmatpush1.bf16.msra.mxu0 0
      %474 = vmatprep.subr.bf16.mxu0 0
      %475 = vmatpush1.bf16.msra.mxu0 0
      %476 = vmatprep.subr.bf16.mxu0 0
      %477 = vmatpush1.bf16.msra.mxu0 0
      %478 = vmatprep.subr.bf16.mxu0 0
      %479 = vmatpush1.bf16.msra.mxu0 0
      %480 = vmatprep.subr.bf16.mxu0 %v414
      %481 = vmatpush1.bf16.msra.mxu0 %v411
      %482 = vmatprep.subr.bf16.mxu0 0
      %483 = vmatpush2.bf16.msra.mxu0 0
      %484 = vmatprep.subr.bf16.mxu0 0
      %485 = vmatpush2.bf16.msra.mxu0 0
      %486 = vmatprep.subr.bf16.mxu0 0
      %487 = vmatpush2.bf16.msra.mxu0 0
      %488 = vmatprep.subr.bf16.mxu0 0
      %489 = vmatpush2.bf16.msra.mxu0 0
      %490 = vmatprep.subr.bf16.mxu0 0
      %491 = vmatpush2.bf16.msra.mxu0 0
      %492 = vmatprep.subr.bf16.mxu0 0
      %493 = vmatpush2.bf16.msra.mxu0 0
      %494 = vmatprep.subr.bf16.mxu0 0
      %495 = vmatpush2.bf16.msra.mxu0 0
      %496 = vmatprep.subr.bf16.mxu0 0
      %497 = vmatpush2.bf16.msra.mxu0 0
      %498 = vmatprep.mubr.bf16.mxu0 0
      %499 = vmatmul.mubr.bf16.gmra.mxu0 %v401
      %v500 = vpop.f32.mrf.mxu0
      %v501 = vadd.f32 0.0, %v500
      %v502 = vpop.f32.mrf.mxu0
      %v503 = vadd.f32 0.0, %v502
      %v504 = vpop.f32.mrf.mxu0
      %v505 = vpop.f32.mrf.mxu0
      %506 = vdwg.mxu0
      %507 = vmatprep.subr.bf16.mxu0 0
      %508 = vmatpush1.bf16.msra.mxu0 0
      %509 = vmatprep.subr.bf16.mxu0 0
      %510 = vmatpush1.bf16.msra.mxu0 0
      %511 = vmatprep.subr.bf16.mxu0 0
      %512 = vmatpush1.bf16.msra.mxu0 0
      %513 = vmatprep.subr.bf16.mxu0 0
      %514 = vmatpush1.bf16.msra.mxu0 0
      %515 = vmatprep.subr.bf16.mxu0 0
      %516 = vmatpush1.bf16.msra.mxu0 0
      %517 = vmatprep.subr.bf16.mxu0 0
      %518 = vmatpush1.bf16.msra.mxu0 0
      %519 = vmatprep.subr.bf16.mxu0 0
      %520 = vmatpush1.bf16.msra.mxu0 0
      %521 = vmatprep.subr.bf16.mxu0 %v420
      %522 = vmatpush1.bf16.msra.mxu0 %v417
      %523 = vmatprep.subr.bf16.mxu0 0
      %524 = vmatpush2.bf16.msra.mxu0 0
      %525 = vmatprep.subr.bf16.mxu0 0
      %526 = vmatpush2.bf16.msra.mxu0 0
      %527 = vmatprep.subr.bf16.mxu0 0
      %528 = vmatpush2.bf16.msra.mxu0 0
      %529 = vmatprep.subr.bf16.mxu0 0
      %530 = vmatpush2.bf16.msra.mxu0 0
      %531 = vmatprep.subr.bf16.mxu0 0
      %532 = vmatpush2.bf16.msra.mxu0 0
      %533 = vmatprep.subr.bf16.mxu0 0
      %534 = vmatpush2.bf16.msra.mxu0 0
      %535 = vmatprep.subr.bf16.mxu0 0
      %536 = vmatpush2.bf16.msra.mxu0 0
      %537 = vmatprep.subr.bf16.mxu0 0
      %538 = vmatpush2.bf16.msra.mxu0 0
      %539 = vmatprep.mubr.bf16.mxu0 0
      %540 = vmatmul.mubr.bf16.gmra.mxu0 %v401
      %v541 = vpop.f32.mrf.mxu0
      %v542 = vadd.f32 0.0, %v541
      %v543 = vpop.f32.mrf.mxu0
      %v544 = vadd.f32 0.0, %v543
      %v545 = vpop.f32.mrf.mxu0
      %v546 = vpop.f32.mrf.mxu0
      %547 = vdwg.mxu0
      %548 = vmatprep.subr.bf16.mxu0 0
      %549 = vmatpush1.bf16.msra.mxu0 0
      %550 = vmatprep.subr.bf16.mxu0 0
      %551 = vmatpush1.bf16.msra.mxu0 0
      %552 = vmatprep.subr.bf16.mxu0 0
      %553 = vmatpush1.bf16.msra.mxu0 0
      %554 = vmatprep.subr.bf16.mxu0 0
      %555 = vmatpush1.bf16.msra.mxu0 0
      %556 = vmatprep.subr.bf16.mxu0 0
      %557 = vmatpush1.bf16.msra.mxu0 0
      %558 = vmatprep.subr.bf16.mxu0 0
      %559 = vmatpush1.bf16.msra.mxu0 0
      %560 = vmatprep.subr.bf16.mxu0 0
      %561 = vmatpush1.bf16.msra.mxu0 0
      %562 = vmatprep.subr.bf16.mxu0 0
      %563 = vmatpush1.bf16.msra.mxu0 %v423
      %564 = vmatprep.subr.bf16.mxu0 0
      %565 = vmatpush2.bf16.msra.mxu0 0
      %566 = vmatprep.subr.bf16.mxu0 0
      %567 = vmatpush2.bf16.msra.mxu0 0
      %568 = vmatprep.subr.bf16.mxu0 0
      %569 = vmatpush2.bf16.msra.mxu0 0
      %570 = vmatprep.subr.bf16.mxu0 0
      %571 = vmatpush2.bf16.msra.mxu0 0
      %572 = vmatprep.subr.bf16.mxu0 0
      %573 = vmatpush2.bf16.msra.mxu0 0
      %574 = vmatprep.subr.bf16.mxu0 0
      %575 = vmatpush2.bf16.msra.mxu0 0
      %576 = vmatprep.subr.bf16.mxu0 0
      %577 = vmatpush2.bf16.msra.mxu0 0
      %578 = vmatprep.subr.bf16.mxu0 0
      %579 = vmatpush2.bf16.msra.mxu0 0
      %580 = vmatprep.mubr.bf16.mxu0 0
      %581 = vmatmul.mubr.bf16.gmra.mxu0 %v401
      %v582 = vpop.f32.mrf.mxu0
      %v583 = vadd.f32 0.0, %v582
      %v584 = vpop.f32.mrf.mxu0
      %v585 = vpop.f32.mrf.mxu0
      %v586 = vpop.f32.mrf.mxu0
      %587 = vdwg.mxu0
      %v589 = vsel %vm399, %v337, 0
      %v592 = vsel %vm403, %v352, 0
      %v595 = vsel %vm403, %v360, 0
      %v598 = vsel %vm403, %v359, 0
      %v601 = vsel %vm403, %v361, 0
      %v604 = vsel %vm403, %v369, 0
      %v607 = vsel %vm403, %v377, 0
      %v610 = vsel %vm403, %v376, 0
      %612 = vmatprep.subr.bf16.mxu0 0
      %613 = vmatpush1.bf16.msra.mxu0 0
      %614 = vmatprep.subr.bf16.mxu0 0
      %615 = vmatpush1.bf16.msra.mxu0 0
      %616 = vmatprep.subr.bf16.mxu0 0
      %617 = vmatpush1.bf16.msra.mxu0 0
      %618 = vmatprep.subr.bf16.mxu0 0
      %619 = vmatpush1.bf16.msra.mxu0 0
      %620 = vmatprep.subr.bf16.mxu0 0
      %621 = vmatpush1.bf16.msra.mxu0 0
      %622 = vmatprep.subr.bf16.mxu0 0
      %623 = vmatpush1.bf16.msra.mxu0 0
      %624 = vmatprep.subr.bf16.mxu0 0
      %625 = vmatpush1.bf16.msra.mxu0 0
      %626 = vmatprep.subr.bf16.mxu0 %v595
      %627 = vmatpush1.bf16.msra.mxu0 %v592
      %628 = vmatprep.subr.bf16.mxu0 0
      %629 = vmatpush2.bf16.msra.mxu0 0
      %630 = vmatprep.subr.bf16.mxu0 0
      %631 = vmatpush2.bf16.msra.mxu0 0
      %632 = vmatprep.subr.bf16.mxu0 0
      %633 = vmatpush2.bf16.msra.mxu0 0
      %634 = vmatprep.subr.bf16.mxu0 0
      %635 = vmatpush2.bf16.msra.mxu0 0
      %636 = vmatprep.subr.bf16.mxu0 0
      %637 = vmatpush2.bf16.msra.mxu0 0
      %638 = vmatprep.subr.bf16.mxu0 0
      %639 = vmatpush2.bf16.msra.mxu0 0
      %640 = vmatprep.subr.bf16.mxu0 0
      %641 = vmatpush2.bf16.msra.mxu0 0
      %642 = vmatprep.subr.bf16.mxu0 0
      %643 = vmatpush2.bf16.msra.mxu0 0
      %644 = vmatprep.mubr.bf16.mxu0 0
      %645 = vmatmul.mubr.bf16.gmra.mxu0 %v589
      %v646 = vpop.f32.mrf.mxu0
      %v647 = vadd.f32 %v460, %v646
      %v648 = vpop.f32.mrf.mxu0
      %v649 = vadd.f32 %v462, %v648
      %v650 = vpop.f32.mrf.mxu0
      %v651 = vpop.f32.mrf.mxu0
      %652 = vdwg.mxu0
      %653 = vmatprep.subr.bf16.mxu0 0
      %654 = vmatpush1.bf16.msra.mxu0 0
      %655 = vmatprep.subr.bf16.mxu0 0
      %656 = vmatpush1.bf16.msra.mxu0 0
      %657 = vmatprep.subr.bf16.mxu0 0
      %658 = vmatpush1.bf16.msra.mxu0 0
      %659 = vmatprep.subr.bf16.mxu0 0
      %660 = vmatpush1.bf16.msra.mxu0 0
      %661 = vmatprep.subr.bf16.mxu0 0
      %662 = vmatpush1.bf16.msra.mxu0 0
      %663 = vmatprep.subr.bf16.mxu0 0
      %664 = vmatpush1.bf16.msra.mxu0 0
      %665 = vmatprep.subr.bf16.mxu0 0
      %666 = vmatpush1.bf16.msra.mxu0 0
      %667 = vmatprep.subr.bf16.mxu0 %v601
      %668 = vmatpush1.bf16.msra.mxu0 %v598
      %669 = vmatprep.subr.bf16.mxu0 0
      %670 = vmatpush2.bf16.msra.mxu0 0
      %671 = vmatprep.subr.bf16.mxu0 0
      %672 = vmatpush2.bf16.msra.mxu0 0
      %673 = vmatprep.subr.bf16.mxu0 0
      %674 = vmatpush2.bf16.msra.mxu0 0
      %675 = vmatprep.subr.bf16.mxu0 0
      %676 = vmatpush2.bf16.msra.mxu0 0
      %677 = vmatprep.subr.bf16.mxu0 0
      %678 = vmatpush2.bf16.msra.mxu0 0
      %679 = vmatprep.subr.bf16.mxu0 0
      %680 = vmatpush2.bf16.msra.mxu0 0
      %681 = vmatprep.subr.bf16.mxu0 0
      %682 = vmatpush2.bf16.msra.mxu0 0
      %683 = vmatprep.subr.bf16.mxu0 0
      %684 = vmatpush2.bf16.msra.mxu0 0
      %685 = vmatprep.mubr.bf16.mxu0 0
      %686 = vmatmul.mubr.bf16.gmra.mxu0 %v589
      %v687 = vpop.f32.mrf.mxu0
      %v688 = vadd.f32 %v501, %v687
      %v689 = vpop.f32.mrf.mxu0
      %v690 = vadd.f32 %v503, %v689
      %v691 = vpop.f32.mrf.mxu0
      %v692 = vpop.f32.mrf.mxu0
      %693 = vdwg.mxu0
      %694 = vmatprep.subr.bf16.mxu0 0
      %695 = vmatpush1.bf16.msra.mxu0 0
      %696 = vmatprep.subr.bf16.mxu0 0
      %697 = vmatpush1.bf16.msra.mxu0 0
      %698 = vmatprep.subr.bf16.mxu0 0
      %699 = vmatpush1.bf16.msra.mxu0 0
      %700 = vmatprep.subr.bf16.mxu0 0
      %701 = vmatpush1.bf16.msra.mxu0 0
      %702 = vmatprep.subr.bf16.mxu0 0
      %703 = vmatpush1.bf16.msra.mxu0 0
      %704 = vmatprep.subr.bf16.mxu0 0
      %705 = vmatpush1.bf16.msra.mxu0 0
      %706 = vmatprep.subr.bf16.mxu0 0
      %707 = vmatpush1.bf16.msra.mxu0 0
      %708 = vmatprep.subr.bf16.mxu0 %v607
      %709 = vmatpush1.bf16.msra.mxu0 %v604
      %710 = vmatprep.subr.bf16.mxu0 0
      %711 = vmatpush2.bf16.msra.mxu0 0
      %712 = vmatprep.subr.bf16.mxu0 0
      %713 = vmatpush2.bf16.msra.mxu0 0
      %714 = vmatprep.subr.bf16.mxu0 0
      %715 = vmatpush2.bf16.msra.mxu0 0
      %716 = vmatprep.subr.bf16.mxu0 0
      %717 = vmatpush2.bf16.msra.mxu0 0
      %718 = vmatprep.subr.bf16.mxu0 0
      %719 = vmatpush2.bf16.msra.mxu0 0
      %720 = vmatprep.subr.bf16.mxu0 0
      %721 = vmatpush2.bf16.msra.mxu0 0
      %722 = vmatprep.subr.bf16.mxu0 0
      %723 = vmatpush2.bf16.msra.mxu0 0
      %724 = vmatprep.subr.bf16.mxu0 0
      %725 = vmatpush2.bf16.msra.mxu0 0
      %726 = vmatprep.mubr.bf16.mxu0 0
      %727 = vmatmul.mubr.bf16.gmra.mxu0 %v589
      %v728 = vpop.f32.mrf.mxu0
      %v729 = vadd.f32 %v542, %v728
      %v730 = vpop.f32.mrf.mxu0
      %v731 = vadd.f32 %v544, %v730
      %v732 = vpop.f32.mrf.mxu0
      %v733 = vpop.f32.mrf.mxu0
      %734 = vdwg.mxu0
      %735 = vmatprep.subr.bf16.mxu0 0
      %736 = vmatpush1.bf16.msra.mxu0 0
      %737 = vmatprep.subr.bf16.mxu0 0
      %738 = vmatpush1.bf16.msra.mxu0 0
      %739 = vmatprep.subr.bf16.mxu0 0
      %740 = vmatpush1.bf16.msra.mxu0 0
      %741 = vmatprep.subr.bf16.mxu0 0
      %742 = vmatpush1.bf16.msra.mxu0 0
      %743 = vmatprep.subr.bf16.mxu0 0
      %744 = vmatpush1.bf16.msra.mxu0 0
      %745 = vmatprep.subr.bf16.mxu0 0
      %746 = vmatpush1.bf16.msra.mxu0 0
      %747 = vmatprep.subr.bf16.mxu0 0
      %748 = vmatpush1.bf16.msra.mxu0 0
      %749 = vmatprep.subr.bf16.mxu0 0
      %750 = vmatpush1.bf16.msra.mxu0 %v610
      %751 = vmatprep.subr.bf16.mxu0 0
      %752 = vmatpush2.bf16.msra.mxu0 0
      %753 = vmatprep.subr.bf16.mxu0 0
      %754 = vmatpush2.bf16.msra.mxu0 0
      %755 = vmatprep.subr.bf16.mxu0 0
      %756 = vmatpush2.bf16.msra.mxu0 0
      %757 = vmatprep.subr.bf16.mxu0 0
      %758 = vmatpush2.bf16.msra.mxu0 0
      %759 = vmatprep.subr.bf16.mxu0 0
      %760 = vmatpush2.bf16.msra.mxu0 0
      %761 = vmatprep.subr.bf16.mxu0 0
      %762 = vmatpush2.bf16.msra.mxu0 0
      %763 = vmatprep.subr.bf16.mxu0 0
      %764 = vmatpush2.bf16.msra.mxu0 0
      %765 = vmatprep.subr.bf16.mxu0 0
      %766 = vmatpush2.bf16.msra.mxu0 0
      %767 = vmatprep.mubr.bf16.mxu0 0
      %768 = vmatmul.mubr.bf16.gmra.mxu0 %v589
      %v769 = vpop.f32.mrf.mxu0
      %v770 = vadd.f32 %v583, %v769
      %v771 = vpop.f32.mrf.mxu0
      %v772 = vpop.f32.mrf.mxu0
      %v773 = vpop.f32.mrf.mxu0
      %774 = vdwg.mxu0
      %775 = vrot.lane.b32.xlu0 %v340, 120
      %v776 = vpop.permute.xlu0 %775
      %777 = vrot.lane.b32.xlu0 %v352, 126
      %v778 = vpop.permute.xlu0 %777
      %779 = vrot.lane.b32.xlu0 %v360, 126
      %v780 = vpop.permute.xlu0 %779
      %781 = vrot.lane.b32.xlu0 %v359, 126
      %v782 = vpop.permute.xlu0 %781
      %783 = vrot.lane.b32.xlu0 %v361, 126
      %v784 = vpop.permute.xlu0 %783
      %785 = vrot.lane.b32.xlu0 %v369, 126
      %v786 = vpop.permute.xlu0 %785
      %787 = vrot.lane.b32.xlu0 %v377, 126
      %v788 = vpop.permute.xlu0 %787
      %789 = vrot.lane.b32.xlu0 %v376, 126
      %v790 = vpop.permute.xlu0 %789
      %vm791 = vcmask 1031168
      %v792 = vsel %vm791, %v778, %v780
      %v793 = vsel %vm791, %v780, %v782
      %v794 = vsel %vm791, %v782, %v784
      %v795 = vsel %vm791, %v784, %v786
      %v796 = vsel %vm791, %v786, %v788
      %v797 = vsel %vm791, %v788, %v790
      %v799 = vsel %vm399, %v776, 0
      %v802 = vsel %vm403, %v792, 0
      %v805 = vsel %vm403, %v793, 0
      %v808 = vsel %vm403, %v794, 0
      %v811 = vsel %vm403, %v795, 0
      %v814 = vsel %vm403, %v796, 0
      %v817 = vsel %vm403, %v797, 0
      %v820 = vsel %vm403, %v790, 0
      %822 = vmatprep.subr.bf16.mxu0 0
      %823 = vmatpush1.bf16.msra.mxu0 0
      %824 = vmatprep.subr.bf16.mxu0 0
      %825 = vmatpush1.bf16.msra.mxu0 0
      %826 = vmatprep.subr.bf16.mxu0 0
      %827 = vmatpush1.bf16.msra.mxu0 0
      %828 = vmatprep.subr.bf16.mxu0 0
      %829 = vmatpush1.bf16.msra.mxu0 0
      %830 = vmatprep.subr.bf16.mxu0 0
      %831 = vmatpush1.bf16.msra.mxu0 0
      %832 = vmatprep.subr.bf16.mxu0 0
      %833 = vmatpush1.bf16.msra.mxu0 0
      %834 = vmatprep.subr.bf16.mxu0 0
      %835 = vmatpush1.bf16.msra.mxu0 0
      %836 = vmatprep.subr.bf16.mxu0 %v805
      %837 = vmatpush1.bf16.msra.mxu0 %v802
      %838 = vmatprep.subr.bf16.mxu0 0
      %839 = vmatpush2.bf16.msra.mxu0 0
      %840 = vmatprep.subr.bf16.mxu0 0
      %841 = vmatpush2.bf16.msra.mxu0 0
      %842 = vmatprep.subr.bf16.mxu0 0
      %843 = vmatpush2.bf16.msra.mxu0 0
      %844 = vmatprep.subr.bf16.mxu0 0
      %845 = vmatpush2.bf16.msra.mxu0 0
      %846 = vmatprep.subr.bf16.mxu0 0
      %847 = vmatpush2.bf16.msra.mxu0 0
      %848 = vmatprep.subr.bf16.mxu0 0
      %849 = vmatpush2.bf16.msra.mxu0 0
      %850 = vmatprep.subr.bf16.mxu0 0
      %851 = vmatpush2.bf16.msra.mxu0 0
      %852 = vmatprep.subr.bf16.mxu0 0
      %853 = vmatpush2.bf16.msra.mxu0 0
      %854 = vmatprep.mubr.bf16.mxu0 0
      %855 = vmatmul.mubr.bf16.gmra.mxu0 %v799
      %v856 = vpop.f32.mrf.mxu0
      %v857 = vadd.f32 0.0, %v856
      %v858 = vpop.f32.mrf.mxu0
      %v859 = vadd.f32 0.0, %v858
      %v860 = vpop.f32.mrf.mxu0
      %v861 = vpop.f32.mrf.mxu0
      %862 = vdwg.mxu0
      %863 = vmatprep.subr.bf16.mxu0 0
      %864 = vmatpush1.bf16.msra.mxu0 0
      %865 = vmatprep.subr.bf16.mxu0 0
      %866 = vmatpush1.bf16.msra.mxu0 0
      %867 = vmatprep.subr.bf16.mxu0 0
      %868 = vmatpush1.bf16.msra.mxu0 0
      %869 = vmatprep.subr.bf16.mxu0 0
      %870 = vmatpush1.bf16.msra.mxu0 0
      %871 = vmatprep.subr.bf16.mxu0 0
      %872 = vmatpush1.bf16.msra.mxu0 0
      %873 = vmatprep.subr.bf16.mxu0 0
      %874 = vmatpush1.bf16.msra.mxu0 0
      %875 = vmatprep.subr.bf16.mxu0 0
      %876 = vmatpush1.bf16.msra.mxu0 0
      %877 = vmatprep.subr.bf16.mxu0 %v811
      %878 = vmatpush1.bf16.msra.mxu0 %v808
      %879 = vmatprep.subr.bf16.mxu0 0
      %880 = vmatpush2.bf16.msra.mxu0 0
      %881 = vmatprep.subr.bf16.mxu0 0
      %882 = vmatpush2.bf16.msra.mxu0 0
      %883 = vmatprep.subr.bf16.mxu0 0
      %884 = vmatpush2.bf16.msra.mxu0 0
      %885 = vmatprep.subr.bf16.mxu0 0
      %886 = vmatpush2.bf16.msra.mxu0 0
      %887 = vmatprep.subr.bf16.mxu0 0
      %888 = vmatpush2.bf16.msra.mxu0 0
      %889 = vmatprep.subr.bf16.mxu0 0
      %890 = vmatpush2.bf16.msra.mxu0 0
      %891 = vmatprep.subr.bf16.mxu0 0
      %892 = vmatpush2.bf16.msra.mxu0 0
      %893 = vmatprep.subr.bf16.mxu0 0
      %894 = vmatpush2.bf16.msra.mxu0 0
      %895 = vmatprep.mubr.bf16.mxu0 0
      %896 = vmatmul.mubr.bf16.gmra.mxu0 %v799
      %v897 = vpop.f32.mrf.mxu0
      %v898 = vadd.f32 0.0, %v897
      %v899 = vpop.f32.mrf.mxu0
      %v900 = vadd.f32 0.0, %v899
      %v901 = vpop.f32.mrf.mxu0
      %v902 = vpop.f32.mrf.mxu0
      %903 = vdwg.mxu0
      %904 = vmatprep.subr.bf16.mxu0 0
      %905 = vmatpush1.bf16.msra.mxu0 0
      %906 = vmatprep.subr.bf16.mxu0 0
      %907 = vmatpush1.bf16.msra.mxu0 0
      %908 = vmatprep.subr.bf16.mxu0 0
      %909 = vmatpush1.bf16.msra.mxu0 0
      %910 = vmatprep.subr.bf16.mxu0 0
      %911 = vmatpush1.bf16.msra.mxu0 0
      %912 = vmatprep.subr.bf16.mxu0 0
      %913 = vmatpush1.bf16.msra.mxu0 0
      %914 = vmatprep.subr.bf16.mxu0 0
      %915 = vmatpush1.bf16.msra.mxu0 0
      %916 = vmatprep.subr.bf16.mxu0 0
      %917 = vmatpush1.bf16.msra.mxu0 0
      %918 = vmatprep.subr.bf16.mxu0 %v817
      %919 = vmatpush1.bf16.msra.mxu0 %v814
      %920 = vmatprep.subr.bf16.mxu0 0
      %921 = vmatpush2.bf16.msra.mxu0 0
      %922 = vmatprep.subr.bf16.mxu0 0
      %923 = vmatpush2.bf16.msra.mxu0 0
      %924 = vmatprep.subr.bf16.mxu0 0
      %925 = vmatpush2.bf16.msra.mxu0 0
      %926 = vmatprep.subr.bf16.mxu0 0
      %927 = vmatpush2.bf16.msra.mxu0 0
      %928 = vmatprep.subr.bf16.mxu0 0
      %929 = vmatpush2.bf16.msra.mxu0 0
      %930 = vmatprep.subr.bf16.mxu0 0
      %931 = vmatpush2.bf16.msra.mxu0 0
      %932 = vmatprep.subr.bf16.mxu0 0
      %933 = vmatpush2.bf16.msra.mxu0 0
      %934 = vmatprep.subr.bf16.mxu0 0
      %935 = vmatpush2.bf16.msra.mxu0 0
      %936 = vmatprep.mubr.bf16.mxu0 0
      %937 = vmatmul.mubr.bf16.gmra.mxu0 %v799
      %v938 = vpop.f32.mrf.mxu0
      %v939 = vadd.f32 0.0, %v938
      %v940 = vpop.f32.mrf.mxu0
      %v941 = vadd.f32 0.0, %v940
      %v942 = vpop.f32.mrf.mxu0
      %v943 = vpop.f32.mrf.mxu0
      %944 = vdwg.mxu0
      %945 = vmatprep.subr.bf16.mxu0 0
      %946 = vmatpush1.bf16.msra.mxu0 0
      %947 = vmatprep.subr.bf16.mxu0 0
      %948 = vmatpush1.bf16.msra.mxu0 0
      %949 = vmatprep.subr.bf16.mxu0 0
      %950 = vmatpush1.bf16.msra.mxu0 0
      %951 = vmatprep.subr.bf16.mxu0 0
      %952 = vmatpush1.bf16.msra.mxu0 0
      %953 = vmatprep.subr.bf16.mxu0 0
      %954 = vmatpush1.bf16.msra.mxu0 0
      %955 = vmatprep.subr.bf16.mxu0 0
      %956 = vmatpush1.bf16.msra.mxu0 0
      %957 = vmatprep.subr.bf16.mxu0 0
      %958 = vmatpush1.bf16.msra.mxu0 0
      %959 = vmatprep.subr.bf16.mxu0 0
      %960 = vmatpush1.bf16.msra.mxu0 %v820
      %961 = vmatprep.subr.bf16.mxu0 0
      %962 = vmatpush2.bf16.msra.mxu0 0
      %963 = vmatprep.subr.bf16.mxu0 0
      %964 = vmatpush2.bf16.msra.mxu0 0
      %965 = vmatprep.subr.bf16.mxu0 0
      %966 = vmatpush2.bf16.msra.mxu0 0
      %967 = vmatprep.subr.bf16.mxu0 0
      %968 = vmatpush2.bf16.msra.mxu0 0
      %969 = vmatprep.subr.bf16.mxu0 0
      %970 = vmatpush2.bf16.msra.mxu0 0
      %971 = vmatprep.subr.bf16.mxu0 0
      %972 = vmatpush2.bf16.msra.mxu0 0
      %973 = vmatprep.subr.bf16.mxu0 0
      %974 = vmatpush2.bf16.msra.mxu0 0
      %975 = vmatprep.subr.bf16.mxu0 0
      %976 = vmatpush2.bf16.msra.mxu0 0
      %977 = vmatprep.mubr.bf16.mxu0 0
      %978 = vmatmul.mubr.bf16.gmra.mxu0 %v799
      %v979 = vpop.f32.mrf.mxu0
      %v980 = vadd.f32 0.0, %v979
      %v981 = vpop.f32.mrf.mxu0
      %v982 = vpop.f32.mrf.mxu0
      %v983 = vpop.f32.mrf.mxu0
      %984 = vdwg.mxu0
      %v985 = vadd.f32 %v647, %v857
      %v986 = vadd.f32 %v649, %v859
      %v987 = vadd.f32 %v688, %v898
      %v988 = vadd.f32 %v690, %v900
      %v989 = vadd.f32 %v729, %v939
      %v990 = vadd.f32 %v731, %v941
      %v991 = vadd.f32 %v770, %v980
      %992 = vrot.lane.b32.xlu0 %v340, 116
      %v993 = vpop.permute.xlu0 %992
      %994 = vrot.lane.b32.xlu0 %v352, 118
      %v995 = vpop.permute.xlu0 %994
      %996 = vrot.lane.b32.xlu0 %v360, 118
      %v997 = vpop.permute.xlu0 %996
      %998 = vrot.lane.b32.xlu0 %v359, 118
      %v999 = vpop.permute.xlu0 %998
      %1000 = vrot.lane.b32.xlu0 %v361, 118
      %v1001 = vpop.permute.xlu0 %1000
      %1002 = vrot.lane.b32.xlu0 %v369, 118
      %v1003 = vpop.permute.xlu0 %1002
      %1004 = vrot.lane.b32.xlu0 %v377, 118
      %v1005 = vpop.permute.xlu0 %1004
      %1006 = vrot.lane.b32.xlu0 %v376, 118
      %v1007 = vpop.permute.xlu0 %1006
      %vm1008 = vcmask 965632
      %v1009 = vsel %vm1008, %v995, %v997
      %v1010 = vsel %vm1008, %v997, %v999
      %v1011 = vsel %vm1008, %v999, %v1001
      %v1012 = vsel %vm1008, %v1001, %v1003
      %v1013 = vsel %vm1008, %v1003, %v1005
      %v1014 = vsel %vm1008, %v1005, %v1007
      %v1016 = vsel %vm399, %v993, 0
      %v1019 = vsel %vm403, %v1009, 0
      %v1022 = vsel %vm403, %v1010, 0
      %v1025 = vsel %vm403, %v1011, 0
      %v1028 = vsel %vm403, %v1012, 0
      %v1031 = vsel %vm403, %v1013, 0
      %v1034 = vsel %vm403, %v1014, 0
      %v1037 = vsel %vm403, %v1007, 0
      %1039 = vmatprep.subr.bf16.mxu0 0
      %1040 = vmatpush1.bf16.msra.mxu0 0
      %1041 = vmatprep.subr.bf16.mxu0 0
      %1042 = vmatpush1.bf16.msra.mxu0 0
      %1043 = vmatprep.subr.bf16.mxu0 0
      %1044 = vmatpush1.bf16.msra.mxu0 0
      %1045 = vmatprep.subr.bf16.mxu0 0
      %1046 = vmatpush1.bf16.msra.mxu0 0
      %1047 = vmatprep.subr.bf16.mxu0 0
      %1048 = vmatpush1.bf16.msra.mxu0 0
      %1049 = vmatprep.subr.bf16.mxu0 0
      %1050 = vmatpush1.bf16.msra.mxu0 0
      %1051 = vmatprep.subr.bf16.mxu0 0
      %1052 = vmatpush1.bf16.msra.mxu0 0
      %1053 = vmatprep.subr.bf16.mxu0 %v1022
      %1054 = vmatpush1.bf16.msra.mxu0 %v1019
      %1055 = vmatprep.subr.bf16.mxu0 0
      %1056 = vmatpush2.bf16.msra.mxu0 0
      %1057 = vmatprep.subr.bf16.mxu0 0
      %1058 = vmatpush2.bf16.msra.mxu0 0
      %1059 = vmatprep.subr.bf16.mxu0 0
      %1060 = vmatpush2.bf16.msra.mxu0 0
      %1061 = vmatprep.subr.bf16.mxu0 0
      %1062 = vmatpush2.bf16.msra.mxu0 0
      %1063 = vmatprep.subr.bf16.mxu0 0
      %1064 = vmatpush2.bf16.msra.mxu0 0
      %1065 = vmatprep.subr.bf16.mxu0 0
      %1066 = vmatpush2.bf16.msra.mxu0 0
      %1067 = vmatprep.subr.bf16.mxu0 0
      %1068 = vmatpush2.bf16.msra.mxu0 0
      %1069 = vmatprep.subr.bf16.mxu0 0
      %1070 = vmatpush2.bf16.msra.mxu0 0
      %1071 = vmatprep.mubr.bf16.mxu0 0
      %1072 = vmatmul.mubr.bf16.gmra.mxu0 %v1016
      %v1073 = vpop.f32.mrf.mxu0
      %v1074 = vadd.f32 0.0, %v1073
      %v1075 = vpop.f32.mrf.mxu0
      %v1076 = vadd.f32 0.0, %v1075
      %v1077 = vpop.f32.mrf.mxu0
      %v1078 = vpop.f32.mrf.mxu0
      %1079 = vdwg.mxu0
      %1080 = vmatprep.subr.bf16.mxu0 0
      %1081 = vmatpush1.bf16.msra.mxu0 0
      %1082 = vmatprep.subr.bf16.mxu0 0
      %1083 = vmatpush1.bf16.msra.mxu0 0
      %1084 = vmatprep.subr.bf16.mxu0 0
      %1085 = vmatpush1.bf16.msra.mxu0 0
      %1086 = vmatprep.subr.bf16.mxu0 0
      %1087 = vmatpush1.bf16.msra.mxu0 0
      %1088 = vmatprep.subr.bf16.mxu0 0
      %1089 = vmatpush1.bf16.msra.mxu0 0
      %1090 = vmatprep.subr.bf16.mxu0 0
      %1091 = vmatpush1.bf16.msra.mxu0 0
      %1092 = vmatprep.subr.bf16.mxu0 0
      %1093 = vmatpush1.bf16.msra.mxu0 0
      %1094 = vmatprep.subr.bf16.mxu0 %v1028
      %1095 = vmatpush1.bf16.msra.mxu0 %v1025
      %1096 = vmatprep.subr.bf16.mxu0 0
      %1097 = vmatpush2.bf16.msra.mxu0 0
      %1098 = vmatprep.subr.bf16.mxu0 0
      %1099 = vmatpush2.bf16.msra.mxu0 0
      %1100 = vmatprep.subr.bf16.mxu0 0
      %1101 = vmatpush2.bf16.msra.mxu0 0
      %1102 = vmatprep.subr.bf16.mxu0 0
      %1103 = vmatpush2.bf16.msra.mxu0 0
      %1104 = vmatprep.subr.bf16.mxu0 0
      %1105 = vmatpush2.bf16.msra.mxu0 0
      %1106 = vmatprep.subr.bf16.mxu0 0
      %1107 = vmatpush2.bf16.msra.mxu0 0
      %1108 = vmatprep.subr.bf16.mxu0 0
      %1109 = vmatpush2.bf16.msra.mxu0 0
      %1110 = vmatprep.subr.bf16.mxu0 0
      %1111 = vmatpush2.bf16.msra.mxu0 0
      %1112 = vmatprep.mubr.bf16.mxu0 0
      %1113 = vmatmul.mubr.bf16.gmra.mxu0 %v1016
      %v1114 = vpop.f32.mrf.mxu0
      %v1115 = vadd.f32 0.0, %v1114
      %v1116 = vpop.f32.mrf.mxu0
      %v1117 = vadd.f32 0.0, %v1116
      %v1118 = vpop.f32.mrf.mxu0
      %v1119 = vpop.f32.mrf.mxu0
      %1120 = vdwg.mxu0
      %1121 = vmatprep.subr.bf16.mxu0 0
      %1122 = vmatpush1.bf16.msra.mxu0 0
      %1123 = vmatprep.subr.bf16.mxu0 0
      %1124 = vmatpush1.bf16.msra.mxu0 0
      %1125 = vmatprep.subr.bf16.mxu0 0
      %1126 = vmatpush1.bf16.msra.mxu0 0
      %1127 = vmatprep.subr.bf16.mxu0 0
      %1128 = vmatpush1.bf16.msra.mxu0 0
      %1129 = vmatprep.subr.bf16.mxu0 0
      %1130 = vmatpush1.bf16.msra.mxu0 0
      %1131 = vmatprep.subr.bf16.mxu0 0
      %1132 = vmatpush1.bf16.msra.mxu0 0
      %1133 = vmatprep.subr.bf16.mxu0 0
      %1134 = vmatpush1.bf16.msra.mxu0 0
      %1135 = vmatprep.subr.bf16.mxu0 %v1034
      %1136 = vmatpush1.bf16.msra.mxu0 %v1031
      %1137 = vmatprep.subr.bf16.mxu0 0
      %1138 = vmatpush2.bf16.msra.mxu0 0
      %1139 = vmatprep.subr.bf16.mxu0 0
      %1140 = vmatpush2.bf16.msra.mxu0 0
      %1141 = vmatprep.subr.bf16.mxu0 0
      %1142 = vmatpush2.bf16.msra.mxu0 0
      %1143 = vmatprep.subr.bf16.mxu0 0
      %1144 = vmatpush2.bf16.msra.mxu0 0
      %1145 = vmatprep.subr.bf16.mxu0 0
      %1146 = vmatpush2.bf16.msra.mxu0 0
      %1147 = vmatprep.subr.bf16.mxu0 0
      %1148 = vmatpush2.bf16.msra.mxu0 0
      %1149 = vmatprep.subr.bf16.mxu0 0
      %1150 = vmatpush2.bf16.msra.mxu0 0
      %1151 = vmatprep.subr.bf16.mxu0 0
      %1152 = vmatpush2.bf16.msra.mxu0 0
      %1153 = vmatprep.mubr.bf16.mxu0 0
      %1154 = vmatmul.mubr.bf16.gmra.mxu0 %v1016
      %v1155 = vpop.f32.mrf.mxu0
      %v1156 = vadd.f32 0.0, %v1155
      %v1157 = vpop.f32.mrf.mxu0
      %v1158 = vadd.f32 0.0, %v1157
      %v1159 = vpop.f32.mrf.mxu0
      %v1160 = vpop.f32.mrf.mxu0
      %1161 = vdwg.mxu0
      %1162 = vmatprep.subr.bf16.mxu0 0
      %1163 = vmatpush1.bf16.msra.mxu0 0
      %1164 = vmatprep.subr.bf16.mxu0 0
      %1165 = vmatpush1.bf16.msra.mxu0 0
      %1166 = vmatprep.subr.bf16.mxu0 0
      %1167 = vmatpush1.bf16.msra.mxu0 0
      %1168 = vmatprep.subr.bf16.mxu0 0
      %1169 = vmatpush1.bf16.msra.mxu0 0
      %1170 = vmatprep.subr.bf16.mxu0 0
      %1171 = vmatpush1.bf16.msra.mxu0 0
      %1172 = vmatprep.subr.bf16.mxu0 0
      %1173 = vmatpush1.bf16.msra.mxu0 0
      %1174 = vmatprep.subr.bf16.mxu0 0
      %1175 = vmatpush1.bf16.msra.mxu0 0
      %1176 = vmatprep.subr.bf16.mxu0 0
      %1177 = vmatpush1.bf16.msra.mxu0 %v1037
      %1178 = vmatprep.subr.bf16.mxu0 0
      %1179 = vmatpush2.bf16.msra.mxu0 0
      %1180 = vmatprep.subr.bf16.mxu0 0
      %1181 = vmatpush2.bf16.msra.mxu0 0
      %1182 = vmatprep.subr.bf16.mxu0 0
      %1183 = vmatpush2.bf16.msra.mxu0 0
      %1184 = vmatprep.subr.bf16.mxu0 0
      %1185 = vmatpush2.bf16.msra.mxu0 0
      %1186 = vmatprep.subr.bf16.mxu0 0
      %1187 = vmatpush2.bf16.msra.mxu0 0
      %1188 = vmatprep.subr.bf16.mxu0 0
      %1189 = vmatpush2.bf16.msra.mxu0 0
      %1190 = vmatprep.subr.bf16.mxu0 0
      %1191 = vmatpush2.bf16.msra.mxu0 0
      %1192 = vmatprep.subr.bf16.mxu0 0
      %1193 = vmatpush2.bf16.msra.mxu0 0
      %1194 = vmatprep.mubr.bf16.mxu0 0
      %1195 = vmatmul.mubr.bf16.gmra.mxu0 %v1016
      %v1196 = vpop.f32.mrf.mxu0
      %v1197 = vadd.f32 0.0, %v1196
      %v1198 = vpop.f32.mrf.mxu0
      %v1199 = vpop.f32.mrf.mxu0
      %v1200 = vpop.f32.mrf.mxu0
      %1201 = vdwg.mxu0
      %v1202 = vadd.f32 %v985, %v1074
      %v1203 = vadd.f32 %v986, %v1076
      %v1204 = vadd.f32 %v987, %v1115
      %v1205 = vadd.f32 %v988, %v1117
      %v1206 = vadd.f32 %v989, %v1156
      %v1207 = vadd.f32 %v990, %v1158
      %v1208 = vadd.f32 %v991, %v1197
      %1209 = vrot.lane.b32.xlu0 %v340, 112
      %v1210 = vpop.permute.xlu0 %1209
      %1211 = vrot.lane.b32.xlu0 %v352, 117
      %v1212 = vpop.permute.xlu0 %1211
      %1213 = vrot.lane.b32.xlu0 %v360, 117
      %v1214 = vpop.permute.xlu0 %1213
      %1215 = vrot.lane.b32.xlu0 %v359, 117
      %v1216 = vpop.permute.xlu0 %1215
      %1217 = vrot.lane.b32.xlu0 %v361, 117
      %v1218 = vpop.permute.xlu0 %1217
      %1219 = vrot.lane.b32.xlu0 %v369, 117
      %v1220 = vpop.permute.xlu0 %1219
      %1221 = vrot.lane.b32.xlu0 %v377, 117
      %v1222 = vpop.permute.xlu0 %1221
      %1223 = vrot.lane.b32.xlu0 %v376, 117
      %v1224 = vpop.permute.xlu0 %1223
      %vm1225 = vcmask 957440
      %v1226 = vsel %vm1225, %v1212, %v1214
      %v1227 = vsel %vm1225, %v1214, %v1216
      %v1228 = vsel %vm1225, %v1216, %v1218
      %v1229 = vsel %vm1225, %v1218, %v1220
      %v1230 = vsel %vm1225, %v1220, %v1222
      %v1231 = vsel %vm1225, %v1222, %v1224
      %v1233 = vsel %vm399, %v1210, 0
      %v1236 = vsel %vm403, %v1226, 0
      %v1239 = vsel %vm403, %v1227, 0
      %v1242 = vsel %vm403, %v1228, 0
      %v1245 = vsel %vm403, %v1229, 0
      %v1248 = vsel %vm403, %v1230, 0
      %v1251 = vsel %vm403, %v1231, 0
      %v1254 = vsel %vm403, %v1224, 0
      %1256 = vmatprep.subr.bf16.mxu0 0
      %1257 = vmatpush1.bf16.msra.mxu0 0
      %1258 = vmatprep.subr.bf16.mxu0 0
      %1259 = vmatpush1.bf16.msra.mxu0 0
      %1260 = vmatprep.subr.bf16.mxu0 0
      %1261 = vmatpush1.bf16.msra.mxu0 0
      %1262 = vmatprep.subr.bf16.mxu0 0
      %1263 = vmatpush1.bf16.msra.mxu0 0
      %1264 = vmatprep.subr.bf16.mxu0 0
      %1265 = vmatpush1.bf16.msra.mxu0 0
      %1266 = vmatprep.subr.bf16.mxu0 0
      %1267 = vmatpush1.bf16.msra.mxu0 0
      %1268 = vmatprep.subr.bf16.mxu0 0
      %1269 = vmatpush1.bf16.msra.mxu0 0
      %1270 = vmatprep.subr.bf16.mxu0 %v1239
      %1271 = vmatpush1.bf16.msra.mxu0 %v1236
      %1272 = vmatprep.subr.bf16.mxu0 0
      %1273 = vmatpush2.bf16.msra.mxu0 0
      %1274 = vmatprep.subr.bf16.mxu0 0
      %1275 = vmatpush2.bf16.msra.mxu0 0
      %1276 = vmatprep.subr.bf16.mxu0 0
      %1277 = vmatpush2.bf16.msra.mxu0 0
      %1278 = vmatprep.subr.bf16.mxu0 0
      %1279 = vmatpush2.bf16.msra.mxu0 0
      %1280 = vmatprep.subr.bf16.mxu0 0
      %1281 = vmatpush2.bf16.msra.mxu0 0
      %1282 = vmatprep.subr.bf16.mxu0 0
      %1283 = vmatpush2.bf16.msra.mxu0 0
      %1284 = vmatprep.subr.bf16.mxu0 0
      %1285 = vmatpush2.bf16.msra.mxu0 0
      %1286 = vmatprep.subr.bf16.mxu0 0
      %1287 = vmatpush2.bf16.msra.mxu0 0
      %1288 = vmatprep.mubr.bf16.mxu0 0
      %1289 = vmatmul.mubr.bf16.gmra.mxu0 %v1233
      %v1290 = vpop.f32.mrf.mxu0
      %v1291 = vadd.f32 0.0, %v1290
      %v1292 = vpop.f32.mrf.mxu0
      %v1293 = vadd.f32 0.0, %v1292
      %v1294 = vpop.f32.mrf.mxu0
      %v1295 = vpop.f32.mrf.mxu0
      %1296 = vdwg.mxu0
      %1297 = vmatprep.subr.bf16.mxu0 0
      %1298 = vmatpush1.bf16.msra.mxu0 0
      %1299 = vmatprep.subr.bf16.mxu0 0
      %1300 = vmatpush1.bf16.msra.mxu0 0
      %1301 = vmatprep.subr.bf16.mxu0 0
      %1302 = vmatpush1.bf16.msra.mxu0 0
      %1303 = vmatprep.subr.bf16.mxu0 0
      %1304 = vmatpush1.bf16.msra.mxu0 0
      %1305 = vmatprep.subr.bf16.mxu0 0
      %1306 = vmatpush1.bf16.msra.mxu0 0
      %1307 = vmatprep.subr.bf16.mxu0 0
      %1308 = vmatpush1.bf16.msra.mxu0 0
      %1309 = vmatprep.subr.bf16.mxu0 0
      %1310 = vmatpush1.bf16.msra.mxu0 0
      %1311 = vmatprep.subr.bf16.mxu0 %v1245
      %1312 = vmatpush1.bf16.msra.mxu0 %v1242
      %1313 = vmatprep.subr.bf16.mxu0 0
      %1314 = vmatpush2.bf16.msra.mxu0 0
      %1315 = vmatprep.subr.bf16.mxu0 0
      %1316 = vmatpush2.bf16.msra.mxu0 0
      %1317 = vmatprep.subr.bf16.mxu0 0
      %1318 = vmatpush2.bf16.msra.mxu0 0
      %1319 = vmatprep.subr.bf16.mxu0 0
      %1320 = vmatpush2.bf16.msra.mxu0 0
      %1321 = vmatprep.subr.bf16.mxu0 0
      %1322 = vmatpush2.bf16.msra.mxu0 0
      %1323 = vmatprep.subr.bf16.mxu0 0
      %1324 = vmatpush2.bf16.msra.mxu0 0
      %1325 = vmatprep.subr.bf16.mxu0 0
      %1326 = vmatpush2.bf16.msra.mxu0 0
      %1327 = vmatprep.subr.bf16.mxu0 0
      %1328 = vmatpush2.bf16.msra.mxu0 0
      %1329 = vmatprep.mubr.bf16.mxu0 0
      %1330 = vmatmul.mubr.bf16.gmra.mxu0 %v1233
      %v1331 = vpop.f32.mrf.mxu0
      %v1332 = vadd.f32 0.0, %v1331
      %v1333 = vpop.f32.mrf.mxu0
      %v1334 = vadd.f32 0.0, %v1333
      %v1335 = vpop.f32.mrf.mxu0
      %v1336 = vpop.f32.mrf.mxu0
      %1337 = vdwg.mxu0
      %1338 = vmatprep.subr.bf16.mxu0 0
      %1339 = vmatpush1.bf16.msra.mxu0 0
      %1340 = vmatprep.subr.bf16.mxu0 0
      %1341 = vmatpush1.bf16.msra.mxu0 0
      %1342 = vmatprep.subr.bf16.mxu0 0
      %1343 = vmatpush1.bf16.msra.mxu0 0
      %1344 = vmatprep.subr.bf16.mxu0 0
      %1345 = vmatpush1.bf16.msra.mxu0 0
      %1346 = vmatprep.subr.bf16.mxu0 0
      %1347 = vmatpush1.bf16.msra.mxu0 0
      %1348 = vmatprep.subr.bf16.mxu0 0
      %1349 = vmatpush1.bf16.msra.mxu0 0
      %1350 = vmatprep.subr.bf16.mxu0 0
      %1351 = vmatpush1.bf16.msra.mxu0 0
      %1352 = vmatprep.subr.bf16.mxu0 %v1251
      %1353 = vmatpush1.bf16.msra.mxu0 %v1248
      %1354 = vmatprep.subr.bf16.mxu0 0
      %1355 = vmatpush2.bf16.msra.mxu0 0
      %1356 = vmatprep.subr.bf16.mxu0 0
      %1357 = vmatpush2.bf16.msra.mxu0 0
      %1358 = vmatprep.subr.bf16.mxu0 0
      %1359 = vmatpush2.bf16.msra.mxu0 0
      %1360 = vmatprep.subr.bf16.mxu0 0
      %1361 = vmatpush2.bf16.msra.mxu0 0
      %1362 = vmatprep.subr.bf16.mxu0 0
      %1363 = vmatpush2.bf16.msra.mxu0 0
      %1364 = vmatprep.subr.bf16.mxu0 0
      %1365 = vmatpush2.bf16.msra.mxu0 0
      %1366 = vmatprep.subr.bf16.mxu0 0
      %1367 = vmatpush2.bf16.msra.mxu0 0
      %1368 = vmatprep.subr.bf16.mxu0 0
      %1369 = vmatpush2.bf16.msra.mxu0 0
      %1370 = vmatprep.mubr.bf16.mxu0 0
      %1371 = vmatmul.mubr.bf16.gmra.mxu0 %v1233
      %v1372 = vpop.f32.mrf.mxu0
      %v1373 = vadd.f32 0.0, %v1372
      %v1374 = vpop.f32.mrf.mxu0
      %v1375 = vadd.f32 0.0, %v1374
      %v1376 = vpop.f32.mrf.mxu0
      %v1377 = vpop.f32.mrf.mxu0
      %1378 = vdwg.mxu0
      %1379 = vmatprep.subr.bf16.mxu0 0
      %1380 = vmatpush1.bf16.msra.mxu0 0
      %1381 = vmatprep.subr.bf16.mxu0 0
      %1382 = vmatpush1.bf16.msra.mxu0 0
      %1383 = vmatprep.subr.bf16.mxu0 0
      %1384 = vmatpush1.bf16.msra.mxu0 0
      %1385 = vmatprep.subr.bf16.mxu0 0
      %1386 = vmatpush1.bf16.msra.mxu0 0
      %1387 = vmatprep.subr.bf16.mxu0 0
      %1388 = vmatpush1.bf16.msra.mxu0 0
      %1389 = vmatprep.subr.bf16.mxu0 0
      %1390 = vmatpush1.bf16.msra.mxu0 0
      %1391 = vmatprep.subr.bf16.mxu0 0
      %1392 = vmatpush1.bf16.msra.mxu0 0
      %1393 = vmatprep.subr.bf16.mxu0 0
      %1394 = vmatpush1.bf16.msra.mxu0 %v1254
      %1395 = vmatprep.subr.bf16.mxu0 0
      %1396 = vmatpush2.bf16.msra.mxu0 0
      %1397 = vmatprep.subr.bf16.mxu0 0
      %1398 = vmatpush2.bf16.msra.mxu0 0
      %1399 = vmatprep.subr.bf16.mxu0 0
      %1400 = vmatpush2.bf16.msra.mxu0 0
      %1401 = vmatprep.subr.bf16.mxu0 0
      %1402 = vmatpush2.bf16.msra.mxu0 0
      %1403 = vmatprep.subr.bf16.mxu0 0
      %1404 = vmatpush2.bf16.msra.mxu0 0
      %1405 = vmatprep.subr.bf16.mxu0 0
      %1406 = vmatpush2.bf16.msra.mxu0 0
      %1407 = vmatprep.subr.bf16.mxu0 0
      %1408 = vmatpush2.bf16.msra.mxu0 0
      %1409 = vmatprep.subr.bf16.mxu0 0
      %1410 = vmatpush2.bf16.msra.mxu0 0
      %1411 = vmatprep.mubr.bf16.mxu0 0
      %1412 = vmatmul.mubr.bf16.gmra.mxu0 %v1233
      %v1413 = vpop.f32.mrf.mxu0
      %v1414 = vadd.f32 0.0, %v1413
      %v1415 = vpop.f32.mrf.mxu0
      %v1416 = vpop.f32.mrf.mxu0
      %v1417 = vpop.f32.mrf.mxu0
      %1418 = vdwg.mxu0
      %v1419 = vadd.f32 %v1202, %v1291
      %v1420 = vadd.f32 %v1203, %v1293
      %v1421 = vadd.f32 %v1204, %v1332
      %v1422 = vadd.f32 %v1205, %v1334
      %v1423 = vadd.f32 %v1206, %v1373
      %v1424 = vadd.f32 %v1207, %v1375
      %v1425 = vadd.f32 %v1208, %v1414
      %1426 = vrot.lane.b32.xlu0 %v340, 108
      %v1427 = vpop.permute.xlu0 %1426
      %1428 = vrot.lane.b32.xlu0 %v352, 116
      %v1429 = vpop.permute.xlu0 %1428
      %1430 = vrot.lane.b32.xlu0 %v360, 116
      %v1431 = vpop.permute.xlu0 %1430
      %1432 = vrot.lane.b32.xlu0 %v359, 116
      %v1433 = vpop.permute.xlu0 %1432
      %1434 = vrot.lane.b32.xlu0 %v361, 116
      %v1435 = vpop.permute.xlu0 %1434
      %1436 = vrot.lane.b32.xlu0 %v369, 116
      %v1437 = vpop.permute.xlu0 %1436
      %1438 = vrot.lane.b32.xlu0 %v377, 116
      %v1439 = vpop.permute.xlu0 %1438
      %1440 = vrot.lane.b32.xlu0 %v376, 116
      %v1441 = vpop.permute.xlu0 %1440
      %vm1442 = vcmask 949248
      %v1443 = vsel %vm1442, %v1429, %v1431
      %v1444 = vsel %vm1442, %v1431, %v1433
      %v1445 = vsel %vm1442, %v1433, %v1435
      %v1446 = vsel %vm1442, %v1435, %v1437
      %v1447 = vsel %vm1442, %v1437, %v1439
      %v1448 = vsel %vm1442, %v1439, %v1441
      %v1450 = vsel %vm399, %v1427, 0
      %v1453 = vsel %vm403, %v1443, 0
      %v1456 = vsel %vm403, %v1444, 0
      %v1459 = vsel %vm403, %v1445, 0
      %v1462 = vsel %vm403, %v1446, 0
      %v1465 = vsel %vm403, %v1447, 0
      %v1468 = vsel %vm403, %v1448, 0
      %v1471 = vsel %vm403, %v1441, 0
      %1473 = vmatprep.subr.bf16.mxu0 0
      %1474 = vmatpush1.bf16.msra.mxu0 0
      %1475 = vmatprep.subr.bf16.mxu0 0
      %1476 = vmatpush1.bf16.msra.mxu0 0
      %1477 = vmatprep.subr.bf16.mxu0 0
      %1478 = vmatpush1.bf16.msra.mxu0 0
      %1479 = vmatprep.subr.bf16.mxu0 0
      %1480 = vmatpush1.bf16.msra.mxu0 0
      %1481 = vmatprep.subr.bf16.mxu0 0
      %1482 = vmatpush1.bf16.msra.mxu0 0
      %1483 = vmatprep.subr.bf16.mxu0 0
      %1484 = vmatpush1.bf16.msra.mxu0 0
      %1485 = vmatprep.subr.bf16.mxu0 0
      %1486 = vmatpush1.bf16.msra.mxu0 0
      %1487 = vmatprep.subr.bf16.mxu0 %v1456
      %1488 = vmatpush1.bf16.msra.mxu0 %v1453
      %1489 = vmatprep.subr.bf16.mxu0 0
      %1490 = vmatpush2.bf16.msra.mxu0 0
      %1491 = vmatprep.subr.bf16.mxu0 0
      %1492 = vmatpush2.bf16.msra.mxu0 0
      %1493 = vmatprep.subr.bf16.mxu0 0
      %1494 = vmatpush2.bf16.msra.mxu0 0
      %1495 = vmatprep.subr.bf16.mxu0 0
      %1496 = vmatpush2.bf16.msra.mxu0 0
      %1497 = vmatprep.subr.bf16.mxu0 0
      %1498 = vmatpush2.bf16.msra.mxu0 0
      %1499 = vmatprep.subr.bf16.mxu0 0
      %1500 = vmatpush2.bf16.msra.mxu0 0
      %1501 = vmatprep.subr.bf16.mxu0 0
      %1502 = vmatpush2.bf16.msra.mxu0 0
      %1503 = vmatprep.subr.bf16.mxu0 0
      %1504 = vmatpush2.bf16.msra.mxu0 0
      %1505 = vmatprep.mubr.bf16.mxu0 0
      %1506 = vmatmul.mubr.bf16.gmra.mxu0 %v1450
      %v1507 = vpop.f32.mrf.mxu0
      %v1508 = vadd.f32 0.0, %v1507
      %v1509 = vpop.f32.mrf.mxu0
      %v1510 = vadd.f32 0.0, %v1509
      %v1511 = vpop.f32.mrf.mxu0
      %v1512 = vpop.f32.mrf.mxu0
      %1513 = vdwg.mxu0
      %1514 = vmatprep.subr.bf16.mxu0 0
      %1515 = vmatpush1.bf16.msra.mxu0 0
      %1516 = vmatprep.subr.bf16.mxu0 0
      %1517 = vmatpush1.bf16.msra.mxu0 0
      %1518 = vmatprep.subr.bf16.mxu0 0
      %1519 = vmatpush1.bf16.msra.mxu0 0
      %1520 = vmatprep.subr.bf16.mxu0 0
      %1521 = vmatpush1.bf16.msra.mxu0 0
      %1522 = vmatprep.subr.bf16.mxu0 0
      %1523 = vmatpush1.bf16.msra.mxu0 0
      %1524 = vmatprep.subr.bf16.mxu0 0
      %1525 = vmatpush1.bf16.msra.mxu0 0
      %1526 = vmatprep.subr.bf16.mxu0 0
      %1527 = vmatpush1.bf16.msra.mxu0 0
      %1528 = vmatprep.subr.bf16.mxu0 %v1462
      %1529 = vmatpush1.bf16.msra.mxu0 %v1459
      %1530 = vmatprep.subr.bf16.mxu0 0
      %1531 = vmatpush2.bf16.msra.mxu0 0
      %1532 = vmatprep.subr.bf16.mxu0 0
      %1533 = vmatpush2.bf16.msra.mxu0 0
      %1534 = vmatprep.subr.bf16.mxu0 0
      %1535 = vmatpush2.bf16.msra.mxu0 0
      %1536 = vmatprep.subr.bf16.mxu0 0
      %1537 = vmatpush2.bf16.msra.mxu0 0
      %1538 = vmatprep.subr.bf16.mxu0 0
      %1539 = vmatpush2.bf16.msra.mxu0 0
      %1540 = vmatprep.subr.bf16.mxu0 0
      %1541 = vmatpush2.bf16.msra.mxu0 0
      %1542 = vmatprep.subr.bf16.mxu0 0
      %1543 = vmatpush2.bf16.msra.mxu0 0
      %1544 = vmatprep.subr.bf16.mxu0 0
      %1545 = vmatpush2.bf16.msra.mxu0 0
      %1546 = vmatprep.mubr.bf16.mxu0 0
      %1547 = vmatmul.mubr.bf16.gmra.mxu0 %v1450
      %v1548 = vpop.f32.mrf.mxu0
      %v1549 = vadd.f32 0.0, %v1548
      %v1550 = vpop.f32.mrf.mxu0
      %v1551 = vadd.f32 0.0, %v1550
      %v1552 = vpop.f32.mrf.mxu0
      %v1553 = vpop.f32.mrf.mxu0
      %1554 = vdwg.mxu0
      %1555 = vmatprep.subr.bf16.mxu0 0
      %1556 = vmatpush1.bf16.msra.mxu0 0
      %1557 = vmatprep.subr.bf16.mxu0 0
      %1558 = vmatpush1.bf16.msra.mxu0 0
      %1559 = vmatprep.subr.bf16.mxu0 0
      %1560 = vmatpush1.bf16.msra.mxu0 0
      %1561 = vmatprep.subr.bf16.mxu0 0
      %1562 = vmatpush1.bf16.msra.mxu0 0
      %1563 = vmatprep.subr.bf16.mxu0 0
      %1564 = vmatpush1.bf16.msra.mxu0 0
      %1565 = vmatprep.subr.bf16.mxu0 0
      %1566 = vmatpush1.bf16.msra.mxu0 0
      %1567 = vmatprep.subr.bf16.mxu0 0
      %1568 = vmatpush1.bf16.msra.mxu0 0
      %1569 = vmatprep.subr.bf16.mxu0 %v1468
      %1570 = vmatpush1.bf16.msra.mxu0 %v1465
      %1571 = vmatprep.subr.bf16.mxu0 0
      %1572 = vmatpush2.bf16.msra.mxu0 0
      %1573 = vmatprep.subr.bf16.mxu0 0
      %1574 = vmatpush2.bf16.msra.mxu0 0
      %1575 = vmatprep.subr.bf16.mxu0 0
      %1576 = vmatpush2.bf16.msra.mxu0 0
      %1577 = vmatprep.subr.bf16.mxu0 0
      %1578 = vmatpush2.bf16.msra.mxu0 0
      %1579 = vmatprep.subr.bf16.mxu0 0
      %1580 = vmatpush2.bf16.msra.mxu0 0
      %1581 = vmatprep.subr.bf16.mxu0 0
      %1582 = vmatpush2.bf16.msra.mxu0 0
      %1583 = vmatprep.subr.bf16.mxu0 0
      %1584 = vmatpush2.bf16.msra.mxu0 0
      %1585 = vmatprep.subr.bf16.mxu0 0
      %1586 = vmatpush2.bf16.msra.mxu0 0
      %1587 = vmatprep.mubr.bf16.mxu0 0
      %1588 = vmatmul.mubr.bf16.gmra.mxu0 %v1450
      %v1589 = vpop.f32.mrf.mxu0
      %v1590 = vadd.f32 0.0, %v1589
      %v1591 = vpop.f32.mrf.mxu0
      %v1592 = vadd.f32 0.0, %v1591
      %v1593 = vpop.f32.mrf.mxu0
      %v1594 = vpop.f32.mrf.mxu0
      %1595 = vdwg.mxu0
      %1596 = vmatprep.subr.bf16.mxu0 0
      %1597 = vmatpush1.bf16.msra.mxu0 0
      %1598 = vmatprep.subr.bf16.mxu0 0
      %1599 = vmatpush1.bf16.msra.mxu0 0
      %1600 = vmatprep.subr.bf16.mxu0 0
      %1601 = vmatpush1.bf16.msra.mxu0 0
      %1602 = vmatprep.subr.bf16.mxu0 0
      %1603 = vmatpush1.bf16.msra.mxu0 0
      %1604 = vmatprep.subr.bf16.mxu0 0
      %1605 = vmatpush1.bf16.msra.mxu0 0
      %1606 = vmatprep.subr.bf16.mxu0 0
      %1607 = vmatpush1.bf16.msra.mxu0 0
      %1608 = vmatprep.subr.bf16.mxu0 0
      %1609 = vmatpush1.bf16.msra.mxu0 0
      %1610 = vmatprep.subr.bf16.mxu0 0
      %1611 = vmatpush1.bf16.msra.mxu0 %v1471
      %1612 = vmatprep.subr.bf16.mxu0 0
      %1613 = vmatpush2.bf16.msra.mxu0 0
      %1614 = vmatprep.subr.bf16.mxu0 0
      %1615 = vmatpush2.bf16.msra.mxu0 0
      %1616 = vmatprep.subr.bf16.mxu0 0
      %1617 = vmatpush2.bf16.msra.mxu0 0
      %1618 = vmatprep.subr.bf16.mxu0 0
      %1619 = vmatpush2.bf16.msra.mxu0 0
      %1620 = vmatprep.subr.bf16.mxu0 0
      %1621 = vmatpush2.bf16.msra.mxu0 0
      %1622 = vmatprep.subr.bf16.mxu0 0
      %1623 = vmatpush2.bf16.msra.mxu0 0
      %1624 = vmatprep.subr.bf16.mxu0 0
      %1625 = vmatpush2.bf16.msra.mxu0 0
      %1626 = vmatprep.subr.bf16.mxu0 0
      %1627 = vmatpush2.bf16.msra.mxu0 0
      %1628 = vmatprep.mubr.bf16.mxu0 0
      %1629 = vmatmul.mubr.bf16.gmra.mxu0 %v1450
      %v1630 = vpop.f32.mrf.mxu0
      %v1631 = vadd.f32 0.0, %v1630
      %v1632 = vpop.f32.mrf.mxu0
      %v1633 = vpop.f32.mrf.mxu0
      %v1634 = vpop.f32.mrf.mxu0
      %1635 = vdwg.mxu0
      %v1636 = vadd.f32 %v1419, %v1508
      %v1637 = vadd.f32 %v1420, %v1510
      %v1638 = vadd.f32 %v1421, %v1549
      %v1639 = vadd.f32 %v1422, %v1551
      %v1640 = vadd.f32 %v1423, %v1590
      %v1641 = vadd.f32 %v1424, %v1592
      %v1642 = vadd.f32 %v1425, %v1631
      %1643 = vrot.lane.b32.xlu0 %v340, 104
      %v1644 = vpop.permute.xlu0 %1643
      %1645 = vrot.lane.b32.xlu0 %v352, 108
      %v1646 = vpop.permute.xlu0 %1645
      %1647 = vrot.lane.b32.xlu0 %v360, 108
      %v1648 = vpop.permute.xlu0 %1647
      %1649 = vrot.lane.b32.xlu0 %v359, 108
      %v1650 = vpop.permute.xlu0 %1649
      %1651 = vrot.lane.b32.xlu0 %v361, 108
      %v1652 = vpop.permute.xlu0 %1651
      %1653 = vrot.lane.b32.xlu0 %v369, 108
      %v1654 = vpop.permute.xlu0 %1653
      %1655 = vrot.lane.b32.xlu0 %v377, 108
      %v1656 = vpop.permute.xlu0 %1655
      %1657 = vrot.lane.b32.xlu0 %v376, 108
      %v1658 = vpop.permute.xlu0 %1657
      %vm1659 = vcmask 883712
      %v1660 = vsel %vm1659, %v1646, %v1648
      %v1661 = vsel %vm1659, %v1648, %v1650
      %v1662 = vsel %vm1659, %v1650, %v1652
      %v1663 = vsel %vm1659, %v1652, %v1654
      %v1664 = vsel %vm1659, %v1654, %v1656
      %v1665 = vsel %vm1659, %v1656, %v1658
      %v1667 = vsel %vm399, %v1644, 0
      %v1670 = vsel %vm403, %v1660, 0
      %v1673 = vsel %vm403, %v1661, 0
      %v1676 = vsel %vm403, %v1662, 0
      %v1679 = vsel %vm403, %v1663, 0
      %v1682 = vsel %vm403, %v1664, 0
      %v1685 = vsel %vm403, %v1665, 0
      %v1688 = vsel %vm403, %v1658, 0
      %1690 = vmatprep.subr.bf16.mxu0 0
      %1691 = vmatpush1.bf16.msra.mxu0 0
      %1692 = vmatprep.subr.bf16.mxu0 0
      %1693 = vmatpush1.bf16.msra.mxu0 0
      %1694 = vmatprep.subr.bf16.mxu0 0
      %1695 = vmatpush1.bf16.msra.mxu0 0
      %1696 = vmatprep.subr.bf16.mxu0 0
      %1697 = vmatpush1.bf16.msra.mxu0 0
      %1698 = vmatprep.subr.bf16.mxu0 0
      %1699 = vmatpush1.bf16.msra.mxu0 0
      %1700 = vmatprep.subr.bf16.mxu0 0
      %1701 = vmatpush1.bf16.msra.mxu0 0
      %1702 = vmatprep.subr.bf16.mxu0 0
      %1703 = vmatpush1.bf16.msra.mxu0 0
      %1704 = vmatprep.subr.bf16.mxu0 %v1673
      %1705 = vmatpush1.bf16.msra.mxu0 %v1670
      %1706 = vmatprep.subr.bf16.mxu0 0
      %1707 = vmatpush2.bf16.msra.mxu0 0
      %1708 = vmatprep.subr.bf16.mxu0 0
      %1709 = vmatpush2.bf16.msra.mxu0 0
      %1710 = vmatprep.subr.bf16.mxu0 0
      %1711 = vmatpush2.bf16.msra.mxu0 0
      %1712 = vmatprep.subr.bf16.mxu0 0
      %1713 = vmatpush2.bf16.msra.mxu0 0
      %1714 = vmatprep.subr.bf16.mxu0 0
      %1715 = vmatpush2.bf16.msra.mxu0 0
      %1716 = vmatprep.subr.bf16.mxu0 0
      %1717 = vmatpush2.bf16.msra.mxu0 0
      %1718 = vmatprep.subr.bf16.mxu0 0
      %1719 = vmatpush2.bf16.msra.mxu0 0
      %1720 = vmatprep.subr.bf16.mxu0 0
      %1721 = vmatpush2.bf16.msra.mxu0 0
      %1722 = vmatprep.mubr.bf16.mxu0 0
      %1723 = vmatmul.mubr.bf16.gmra.mxu0 %v1667
      %v1724 = vpop.f32.mrf.mxu0
      %v1725 = vadd.f32 0.0, %v1724
      %v1726 = vpop.f32.mrf.mxu0
      %v1727 = vadd.f32 0.0, %v1726
      %v1728 = vpop.f32.mrf.mxu0
      %v1729 = vpop.f32.mrf.mxu0
      %1730 = vdwg.mxu0
      %1731 = vmatprep.subr.bf16.mxu0 0
      %1732 = vmatpush1.bf16.msra.mxu0 0
      %1733 = vmatprep.subr.bf16.mxu0 0
      %1734 = vmatpush1.bf16.msra.mxu0 0
      %1735 = vmatprep.subr.bf16.mxu0 0
      %1736 = vmatpush1.bf16.msra.mxu0 0
      %1737 = vmatprep.subr.bf16.mxu0 0
      %1738 = vmatpush1.bf16.msra.mxu0 0
      %1739 = vmatprep.subr.bf16.mxu0 0
      %1740 = vmatpush1.bf16.msra.mxu0 0
      %1741 = vmatprep.subr.bf16.mxu0 0
      %1742 = vmatpush1.bf16.msra.mxu0 0
      %1743 = vmatprep.subr.bf16.mxu0 0
      %1744 = vmatpush1.bf16.msra.mxu0 0
      %1745 = vmatprep.subr.bf16.mxu0 %v1679
      %1746 = vmatpush1.bf16.msra.mxu0 %v1676
      %1747 = vmatprep.subr.bf16.mxu0 0
      %1748 = vmatpush2.bf16.msra.mxu0 0
      %1749 = vmatprep.subr.bf16.mxu0 0
      %1750 = vmatpush2.bf16.msra.mxu0 0
      %1751 = vmatprep.subr.bf16.mxu0 0
      %1752 = vmatpush2.bf16.msra.mxu0 0
      %1753 = vmatprep.subr.bf16.mxu0 0
      %1754 = vmatpush2.bf16.msra.mxu0 0
      %1755 = vmatprep.subr.bf16.mxu0 0
      %1756 = vmatpush2.bf16.msra.mxu0 0
      %1757 = vmatprep.subr.bf16.mxu0 0
      %1758 = vmatpush2.bf16.msra.mxu0 0
      %1759 = vmatprep.subr.bf16.mxu0 0
      %1760 = vmatpush2.bf16.msra.mxu0 0
      %1761 = vmatprep.subr.bf16.mxu0 0
      %1762 = vmatpush2.bf16.msra.mxu0 0
      %1763 = vmatprep.mubr.bf16.mxu0 0
      %1764 = vmatmul.mubr.bf16.gmra.mxu0 %v1667
      %v1765 = vpop.f32.mrf.mxu0
      %v1766 = vadd.f32 0.0, %v1765
      %v1767 = vpop.f32.mrf.mxu0
      %v1768 = vadd.f32 0.0, %v1767
      %v1769 = vpop.f32.mrf.mxu0
      %v1770 = vpop.f32.mrf.mxu0
      %1771 = vdwg.mxu0
      %1772 = vmatprep.subr.bf16.mxu0 0
      %1773 = vmatpush1.bf16.msra.mxu0 0
      %1774 = vmatprep.subr.bf16.mxu0 0
      %1775 = vmatpush1.bf16.msra.mxu0 0
      %1776 = vmatprep.subr.bf16.mxu0 0
      %1777 = vmatpush1.bf16.msra.mxu0 0
      %1778 = vmatprep.subr.bf16.mxu0 0
      %1779 = vmatpush1.bf16.msra.mxu0 0
      %1780 = vmatprep.subr.bf16.mxu0 0
      %1781 = vmatpush1.bf16.msra.mxu0 0
      %1782 = vmatprep.subr.bf16.mxu0 0
      %1783 = vmatpush1.bf16.msra.mxu0 0
      %1784 = vmatprep.subr.bf16.mxu0 0
      %1785 = vmatpush1.bf16.msra.mxu0 0
      %1786 = vmatprep.subr.bf16.mxu0 %v1685
      %1787 = vmatpush1.bf16.msra.mxu0 %v1682
      %1788 = vmatprep.subr.bf16.mxu0 0
      %1789 = vmatpush2.bf16.msra.mxu0 0
      %1790 = vmatprep.subr.bf16.mxu0 0
      %1791 = vmatpush2.bf16.msra.mxu0 0
      %1792 = vmatprep.subr.bf16.mxu0 0
      %1793 = vmatpush2.bf16.msra.mxu0 0
      %1794 = vmatprep.subr.bf16.mxu0 0
      %1795 = vmatpush2.bf16.msra.mxu0 0
      %1796 = vmatprep.subr.bf16.mxu0 0
      %1797 = vmatpush2.bf16.msra.mxu0 0
      %1798 = vmatprep.subr.bf16.mxu0 0
      %1799 = vmatpush2.bf16.msra.mxu0 0
      %1800 = vmatprep.subr.bf16.mxu0 0
      %1801 = vmatpush2.bf16.msra.mxu0 0
      %1802 = vmatprep.subr.bf16.mxu0 0
      %1803 = vmatpush2.bf16.msra.mxu0 0
      %1804 = vmatprep.mubr.bf16.mxu0 0
      %1805 = vmatmul.mubr.bf16.gmra.mxu0 %v1667
      %v1806 = vpop.f32.mrf.mxu0
      %v1807 = vadd.f32 0.0, %v1806
      %v1808 = vpop.f32.mrf.mxu0
      %v1809 = vadd.f32 0.0, %v1808
      %v1810 = vpop.f32.mrf.mxu0
      %v1811 = vpop.f32.mrf.mxu0
      %1812 = vdwg.mxu0
      %1813 = vmatprep.subr.bf16.mxu0 0
      %1814 = vmatpush1.bf16.msra.mxu0 0
      %1815 = vmatprep.subr.bf16.mxu0 0
      %1816 = vmatpush1.bf16.msra.mxu0 0
      %1817 = vmatprep.subr.bf16.mxu0 0
      %1818 = vmatpush1.bf16.msra.mxu0 0
      %1819 = vmatprep.subr.bf16.mxu0 0
      %1820 = vmatpush1.bf16.msra.mxu0 0
      %1821 = vmatprep.subr.bf16.mxu0 0
      %1822 = vmatpush1.bf16.msra.mxu0 0
      %1823 = vmatprep.subr.bf16.mxu0 0
      %1824 = vmatpush1.bf16.msra.mxu0 0
      %1825 = vmatprep.subr.bf16.mxu0 0
      %1826 = vmatpush1.bf16.msra.mxu0 0
      %1827 = vmatprep.subr.bf16.mxu0 0
      %1828 = vmatpush1.bf16.msra.mxu0 %v1688
      %1829 = vmatprep.subr.bf16.mxu0 0
      %1830 = vmatpush2.bf16.msra.mxu0 0
      %1831 = vmatprep.subr.bf16.mxu0 0
      %1832 = vmatpush2.bf16.msra.mxu0 0
      %1833 = vmatprep.subr.bf16.mxu0 0
      %1834 = vmatpush2.bf16.msra.mxu0 0
      %1835 = vmatprep.subr.bf16.mxu0 0
      %1836 = vmatpush2.bf16.msra.mxu0 0
      %1837 = vmatprep.subr.bf16.mxu0 0
      %1838 = vmatpush2.bf16.msra.mxu0 0
      %1839 = vmatprep.subr.bf16.mxu0 0
      %1840 = vmatpush2.bf16.msra.mxu0 0
      %1841 = vmatprep.subr.bf16.mxu0 0
      %1842 = vmatpush2.bf16.msra.mxu0 0
      %1843 = vmatprep.subr.bf16.mxu0 0
      %1844 = vmatpush2.bf16.msra.mxu0 0
      %1845 = vmatprep.mubr.bf16.mxu0 0
      %1846 = vmatmul.mubr.bf16.gmra.mxu0 %v1667
      %v1847 = vpop.f32.mrf.mxu0
      %v1848 = vadd.f32 0.0, %v1847
      %v1849 = vpop.f32.mrf.mxu0
      %v1850 = vpop.f32.mrf.mxu0
      %v1851 = vpop.f32.mrf.mxu0
      %1852 = vdwg.mxu0
      %v1853 = vadd.f32 %v1636, %v1725
      %v1854 = vadd.f32 %v1637, %v1727
      %v1855 = vadd.f32 %v1638, %v1766
      %v1856 = vadd.f32 %v1639, %v1768
      %v1857 = vadd.f32 %v1640, %v1807
      %v1858 = vadd.f32 %v1641, %v1809
      %v1859 = vadd.f32 %v1642, %v1848
      %1860 = vrot.lane.b32.xlu0 %v340, 100
      %v1861 = vpop.permute.xlu0 %1860
      %1862 = vrot.lane.b32.xlu0 %v352, 107
      %v1863 = vpop.permute.xlu0 %1862
      %1864 = vrot.lane.b32.xlu0 %v360, 107
      %v1865 = vpop.permute.xlu0 %1864
      %1866 = vrot.lane.b32.xlu0 %v359, 107
      %v1867 = vpop.permute.xlu0 %1866
      %1868 = vrot.lane.b32.xlu0 %v361, 107
      %v1869 = vpop.permute.xlu0 %1868
      %1870 = vrot.lane.b32.xlu0 %v369, 107
      %v1871 = vpop.permute.xlu0 %1870
      %1872 = vrot.lane.b32.xlu0 %v377, 107
      %v1873 = vpop.permute.xlu0 %1872
      %1874 = vrot.lane.b32.xlu0 %v376, 107
      %v1875 = vpop.permute.xlu0 %1874
      %vm1876 = vcmask 875520
      %v1877 = vsel %vm1876, %v1863, %v1865
      %v1878 = vsel %vm1876, %v1865, %v1867
      %v1879 = vsel %vm1876, %v1867, %v1869
      %v1880 = vsel %vm1876, %v1869, %v1871
      %v1881 = vsel %vm1876, %v1871, %v1873
      %v1882 = vsel %vm1876, %v1873, %v1875
      %v1884 = vsel %vm399, %v1861, 0
      %v1887 = vsel %vm403, %v1877, 0
      %v1890 = vsel %vm403, %v1878, 0
      %v1893 = vsel %vm403, %v1879, 0
      %v1896 = vsel %vm403, %v1880, 0
      %v1899 = vsel %vm403, %v1881, 0
      %v1902 = vsel %vm403, %v1882, 0
      %v1905 = vsel %vm403, %v1875, 0
      %1907 = vmatprep.subr.bf16.mxu0 0
      %1908 = vmatpush1.bf16.msra.mxu0 0
      %1909 = vmatprep.subr.bf16.mxu0 0
      %1910 = vmatpush1.bf16.msra.mxu0 0
      %1911 = vmatprep.subr.bf16.mxu0 0
      %1912 = vmatpush1.bf16.msra.mxu0 0
      %1913 = vmatprep.subr.bf16.mxu0 0
      %1914 = vmatpush1.bf16.msra.mxu0 0
      %1915 = vmatprep.subr.bf16.mxu0 0
      %1916 = vmatpush1.bf16.msra.mxu0 0
      %1917 = vmatprep.subr.bf16.mxu0 0
      %1918 = vmatpush1.bf16.msra.mxu0 0
      %1919 = vmatprep.subr.bf16.mxu0 0
      %1920 = vmatpush1.bf16.msra.mxu0 0
      %1921 = vmatprep.subr.bf16.mxu0 %v1890
      %1922 = vmatpush1.bf16.msra.mxu0 %v1887
      %1923 = vmatprep.subr.bf16.mxu0 0
      %1924 = vmatpush2.bf16.msra.mxu0 0
      %1925 = vmatprep.subr.bf16.mxu0 0
      %1926 = vmatpush2.bf16.msra.mxu0 0
      %1927 = vmatprep.subr.bf16.mxu0 0
      %1928 = vmatpush2.bf16.msra.mxu0 0
      %1929 = vmatprep.subr.bf16.mxu0 0
      %1930 = vmatpush2.bf16.msra.mxu0 0
      %1931 = vmatprep.subr.bf16.mxu0 0
      %1932 = vmatpush2.bf16.msra.mxu0 0
      %1933 = vmatprep.subr.bf16.mxu0 0
      %1934 = vmatpush2.bf16.msra.mxu0 0
      %1935 = vmatprep.subr.bf16.mxu0 0
      %1936 = vmatpush2.bf16.msra.mxu0 0
      %1937 = vmatprep.subr.bf16.mxu0 0
      %1938 = vmatpush2.bf16.msra.mxu0 0
      %1939 = vmatprep.mubr.bf16.mxu0 0
      %1940 = vmatmul.mubr.bf16.gmra.mxu0 %v1884
      %v1941 = vpop.f32.mrf.mxu0
      %v1942 = vadd.f32 0.0, %v1941
      %v1943 = vpop.f32.mrf.mxu0
      %v1944 = vadd.f32 0.0, %v1943
      %v1945 = vpop.f32.mrf.mxu0
      %v1946 = vpop.f32.mrf.mxu0
      %1947 = vdwg.mxu0
      %1948 = vmatprep.subr.bf16.mxu0 0
      %1949 = vmatpush1.bf16.msra.mxu0 0
      %1950 = vmatprep.subr.bf16.mxu0 0
      %1951 = vmatpush1.bf16.msra.mxu0 0
      %1952 = vmatprep.subr.bf16.mxu0 0
      %1953 = vmatpush1.bf16.msra.mxu0 0
      %1954 = vmatprep.subr.bf16.mxu0 0
      %1955 = vmatpush1.bf16.msra.mxu0 0
      %1956 = vmatprep.subr.bf16.mxu0 0
      %1957 = vmatpush1.bf16.msra.mxu0 0
      %1958 = vmatprep.subr.bf16.mxu0 0
      %1959 = vmatpush1.bf16.msra.mxu0 0
      %1960 = vmatprep.subr.bf16.mxu0 0
      %1961 = vmatpush1.bf16.msra.mxu0 0
      %1962 = vmatprep.subr.bf16.mxu0 %v1896
      %1963 = vmatpush1.bf16.msra.mxu0 %v1893
      %1964 = vmatprep.subr.bf16.mxu0 0
      %1965 = vmatpush2.bf16.msra.mxu0 0
      %1966 = vmatprep.subr.bf16.mxu0 0
      %1967 = vmatpush2.bf16.msra.mxu0 0
      %1968 = vmatprep.subr.bf16.mxu0 0
      %1969 = vmatpush2.bf16.msra.mxu0 0
      %1970 = vmatprep.subr.bf16.mxu0 0
      %1971 = vmatpush2.bf16.msra.mxu0 0
      %1972 = vmatprep.subr.bf16.mxu0 0
      %1973 = vmatpush2.bf16.msra.mxu0 0
      %1974 = vmatprep.subr.bf16.mxu0 0
      %1975 = vmatpush2.bf16.msra.mxu0 0
      %1976 = vmatprep.subr.bf16.mxu0 0
      %1977 = vmatpush2.bf16.msra.mxu0 0
      %1978 = vmatprep.subr.bf16.mxu0 0
      %1979 = vmatpush2.bf16.msra.mxu0 0
      %1980 = vmatprep.mubr.bf16.mxu0 0
      %1981 = vmatmul.mubr.bf16.gmra.mxu0 %v1884
      %v1982 = vpop.f32.mrf.mxu0
      %v1983 = vadd.f32 0.0, %v1982
      %v1984 = vpop.f32.mrf.mxu0
      %v1985 = vadd.f32 0.0, %v1984
      %v1986 = vpop.f32.mrf.mxu0
      %v1987 = vpop.f32.mrf.mxu0
      %1988 = vdwg.mxu0
      %1989 = vmatprep.subr.bf16.mxu0 0
      %1990 = vmatpush1.bf16.msra.mxu0 0
      %1991 = vmatprep.subr.bf16.mxu0 0
      %1992 = vmatpush1.bf16.msra.mxu0 0
      %1993 = vmatprep.subr.bf16.mxu0 0
      %1994 = vmatpush1.bf16.msra.mxu0 0
      %1995 = vmatprep.subr.bf16.mxu0 0
      %1996 = vmatpush1.bf16.msra.mxu0 0
      %1997 = vmatprep.subr.bf16.mxu0 0
      %1998 = vmatpush1.bf16.msra.mxu0 0
      %1999 = vmatprep.subr.bf16.mxu0 0
      %2000 = vmatpush1.bf16.msra.mxu0 0
      %2001 = vmatprep.subr.bf16.mxu0 0
      %2002 = vmatpush1.bf16.msra.mxu0 0
      %2003 = vmatprep.subr.bf16.mxu0 %v1902
      %2004 = vmatpush1.bf16.msra.mxu0 %v1899
      %2005 = vmatprep.subr.bf16.mxu0 0
      %2006 = vmatpush2.bf16.msra.mxu0 0
      %2007 = vmatprep.subr.bf16.mxu0 0
      %2008 = vmatpush2.bf16.msra.mxu0 0
      %2009 = vmatprep.subr.bf16.mxu0 0
      %2010 = vmatpush2.bf16.msra.mxu0 0
      %2011 = vmatprep.subr.bf16.mxu0 0
      %2012 = vmatpush2.bf16.msra.mxu0 0
      %2013 = vmatprep.subr.bf16.mxu0 0
      %2014 = vmatpush2.bf16.msra.mxu0 0
      %2015 = vmatprep.subr.bf16.mxu0 0
      %2016 = vmatpush2.bf16.msra.mxu0 0
      %2017 = vmatprep.subr.bf16.mxu0 0
      %2018 = vmatpush2.bf16.msra.mxu0 0
      %2019 = vmatprep.subr.bf16.mxu0 0
      %2020 = vmatpush2.bf16.msra.mxu0 0
      %2021 = vmatprep.mubr.bf16.mxu0 0
      %2022 = vmatmul.mubr.bf16.gmra.mxu0 %v1884
      %v2023 = vpop.f32.mrf.mxu0
      %v2024 = vadd.f32 0.0, %v2023
      %v2025 = vpop.f32.mrf.mxu0
      %v2026 = vadd.f32 0.0, %v2025
      %v2027 = vpop.f32.mrf.mxu0
      %v2028 = vpop.f32.mrf.mxu0
      %2029 = vdwg.mxu0
      %2030 = vmatprep.subr.bf16.mxu0 0
      %2031 = vmatpush1.bf16.msra.mxu0 0
      %2032 = vmatprep.subr.bf16.mxu0 0
      %2033 = vmatpush1.bf16.msra.mxu0 0
      %2034 = vmatprep.subr.bf16.mxu0 0
      %2035 = vmatpush1.bf16.msra.mxu0 0
      %2036 = vmatprep.subr.bf16.mxu0 0
      %2037 = vmatpush1.bf16.msra.mxu0 0
      %2038 = vmatprep.subr.bf16.mxu0 0
      %2039 = vmatpush1.bf16.msra.mxu0 0
      %2040 = vmatprep.subr.bf16.mxu0 0
      %2041 = vmatpush1.bf16.msra.mxu0 0
      %2042 = vmatprep.subr.bf16.mxu0 0
      %2043 = vmatpush1.bf16.msra.mxu0 0
      %2044 = vmatprep.subr.bf16.mxu0 0
      %2045 = vmatpush1.bf16.msra.mxu0 %v1905
      %2046 = vmatprep.subr.bf16.mxu0 0
      %2047 = vmatpush2.bf16.msra.mxu0 0
      %2048 = vmatprep.subr.bf16.mxu0 0
      %2049 = vmatpush2.bf16.msra.mxu0 0
      %2050 = vmatprep.subr.bf16.mxu0 0
      %2051 = vmatpush2.bf16.msra.mxu0 0
      %2052 = vmatprep.subr.bf16.mxu0 0
      %2053 = vmatpush2.bf16.msra.mxu0 0
      %2054 = vmatprep.subr.bf16.mxu0 0
      %2055 = vmatpush2.bf16.msra.mxu0 0
      %2056 = vmatprep.subr.bf16.mxu0 0
      %2057 = vmatpush2.bf16.msra.mxu0 0
      %2058 = vmatprep.subr.bf16.mxu0 0
      %2059 = vmatpush2.bf16.msra.mxu0 0
      %2060 = vmatprep.subr.bf16.mxu0 0
      %2061 = vmatpush2.bf16.msra.mxu0 0
      %2062 = vmatprep.mubr.bf16.mxu0 0
      %2063 = vmatmul.mubr.bf16.gmra.mxu0 %v1884
      %v2064 = vpop.f32.mrf.mxu0
      %v2065 = vadd.f32 0.0, %v2064
      %v2066 = vpop.f32.mrf.mxu0
      %v2067 = vpop.f32.mrf.mxu0
      %v2068 = vpop.f32.mrf.mxu0
      %2069 = vdwg.mxu0
      %v2070 = vadd.f32 %v1853, %v1942
      %v2071 = vadd.f32 %v1854, %v1944
      %v2072 = vadd.f32 %v1855, %v1983
      %v2073 = vadd.f32 %v1856, %v1985
      %v2074 = vadd.f32 %v1857, %v2024
      %v2075 = vadd.f32 %v1858, %v2026
      %v2076 = vadd.f32 %v1859, %v2065
      %2077 = vrot.lane.b32.xlu0 %v340, 96
      %v2078 = vpop.permute.xlu0 %2077
      %2079 = vrot.lane.b32.xlu0 %v352, 106
      %v2080 = vpop.permute.xlu0 %2079
      %2081 = vrot.lane.b32.xlu0 %v360, 106
      %v2082 = vpop.permute.xlu0 %2081
      %2083 = vrot.lane.b32.xlu0 %v359, 106
      %v2084 = vpop.permute.xlu0 %2083
      %2085 = vrot.lane.b32.xlu0 %v361, 106
      %v2086 = vpop.permute.xlu0 %2085
      %2087 = vrot.lane.b32.xlu0 %v369, 106
      %v2088 = vpop.permute.xlu0 %2087
      %2089 = vrot.lane.b32.xlu0 %v377, 106
      %v2090 = vpop.permute.xlu0 %2089
      %2091 = vrot.lane.b32.xlu0 %v376, 106
      %v2092 = vpop.permute.xlu0 %2091
      %vm2093 = vcmask 867328
      %v2094 = vsel %vm2093, %v2080, %v2082
      %v2095 = vsel %vm2093, %v2082, %v2084
      %v2096 = vsel %vm2093, %v2084, %v2086
      %v2097 = vsel %vm2093, %v2086, %v2088
      %v2098 = vsel %vm2093, %v2088, %v2090
      %v2099 = vsel %vm2093, %v2090, %v2092
      %v2101 = vsel %vm399, %v2078, 0
      %v2104 = vsel %vm403, %v2094, 0
      %v2107 = vsel %vm403, %v2095, 0
      %v2110 = vsel %vm403, %v2096, 0
      %v2113 = vsel %vm403, %v2097, 0
      %v2116 = vsel %vm403, %v2098, 0
      %v2119 = vsel %vm403, %v2099, 0
      %v2122 = vsel %vm403, %v2092, 0
      %2124 = vmatprep.subr.bf16.mxu0 0
      %2125 = vmatpush1.bf16.msra.mxu0 0
      %2126 = vmatprep.subr.bf16.mxu0 0
      %2127 = vmatpush1.bf16.msra.mxu0 0
      %2128 = vmatprep.subr.bf16.mxu0 0
      %2129 = vmatpush1.bf16.msra.mxu0 0
      %2130 = vmatprep.subr.bf16.mxu0 0
      %2131 = vmatpush1.bf16.msra.mxu0 0
      %2132 = vmatprep.subr.bf16.mxu0 0
      %2133 = vmatpush1.bf16.msra.mxu0 0
      %2134 = vmatprep.subr.bf16.mxu0 0
      %2135 = vmatpush1.bf16.msra.mxu0 0
      %2136 = vmatprep.subr.bf16.mxu0 0
      %2137 = vmatpush1.bf16.msra.mxu0 0
      %2138 = vmatprep.subr.bf16.mxu0 %v2107
      %2139 = vmatpush1.bf16.msra.mxu0 %v2104
      %2140 = vmatprep.subr.bf16.mxu0 0
      %2141 = vmatpush2.bf16.msra.mxu0 0
      %2142 = vmatprep.subr.bf16.mxu0 0
      %2143 = vmatpush2.bf16.msra.mxu0 0
      %2144 = vmatprep.subr.bf16.mxu0 0
      %2145 = vmatpush2.bf16.msra.mxu0 0
      %2146 = vmatprep.subr.bf16.mxu0 0
      %2147 = vmatpush2.bf16.msra.mxu0 0
      %2148 = vmatprep.subr.bf16.mxu0 0
      %2149 = vmatpush2.bf16.msra.mxu0 0
      %2150 = vmatprep.subr.bf16.mxu0 0
      %2151 = vmatpush2.bf16.msra.mxu0 0
      %2152 = vmatprep.subr.bf16.mxu0 0
      %2153 = vmatpush2.bf16.msra.mxu0 0
      %2154 = vmatprep.subr.bf16.mxu0 0
      %2155 = vmatpush2.bf16.msra.mxu0 0
      %2156 = vmatprep.mubr.bf16.mxu0 0
      %2157 = vmatmul.mubr.bf16.gmra.mxu0 %v2101
      %v2158 = vpop.f32.mrf.mxu0
      %v2159 = vadd.f32 0.0, %v2158
      %v2160 = vpop.f32.mrf.mxu0
      %v2161 = vadd.f32 0.0, %v2160
      %v2162 = vpop.f32.mrf.mxu0
      %v2163 = vpop.f32.mrf.mxu0
      %2164 = vdwg.mxu0
      %2165 = vmatprep.subr.bf16.mxu0 0
      %2166 = vmatpush1.bf16.msra.mxu0 0
      %2167 = vmatprep.subr.bf16.mxu0 0
      %2168 = vmatpush1.bf16.msra.mxu0 0
      %2169 = vmatprep.subr.bf16.mxu0 0
      %2170 = vmatpush1.bf16.msra.mxu0 0
      %2171 = vmatprep.subr.bf16.mxu0 0
      %2172 = vmatpush1.bf16.msra.mxu0 0
      %2173 = vmatprep.subr.bf16.mxu0 0
      %2174 = vmatpush1.bf16.msra.mxu0 0
      %2175 = vmatprep.subr.bf16.mxu0 0
      %2176 = vmatpush1.bf16.msra.mxu0 0
      %2177 = vmatprep.subr.bf16.mxu0 0
      %2178 = vmatpush1.bf16.msra.mxu0 0
      %2179 = vmatprep.subr.bf16.mxu0 %v2113
      %2180 = vmatpush1.bf16.msra.mxu0 %v2110
      %2181 = vmatprep.subr.bf16.mxu0 0
      %2182 = vmatpush2.bf16.msra.mxu0 0
      %2183 = vmatprep.subr.bf16.mxu0 0
      %2184 = vmatpush2.bf16.msra.mxu0 0
      %2185 = vmatprep.subr.bf16.mxu0 0
      %2186 = vmatpush2.bf16.msra.mxu0 0
      %2187 = vmatprep.subr.bf16.mxu0 0
      %2188 = vmatpush2.bf16.msra.mxu0 0
      %2189 = vmatprep.subr.bf16.mxu0 0
      %2190 = vmatpush2.bf16.msra.mxu0 0
      %2191 = vmatprep.subr.bf16.mxu0 0
      %2192 = vmatpush2.bf16.msra.mxu0 0
      %2193 = vmatprep.subr.bf16.mxu0 0
      %2194 = vmatpush2.bf16.msra.mxu0 0
      %2195 = vmatprep.subr.bf16.mxu0 0
      %2196 = vmatpush2.bf16.msra.mxu0 0
      %2197 = vmatprep.mubr.bf16.mxu0 0
      %2198 = vmatmul.mubr.bf16.gmra.mxu0 %v2101
      %v2199 = vpop.f32.mrf.mxu0
      %v2200 = vadd.f32 0.0, %v2199
      %v2201 = vpop.f32.mrf.mxu0
      %v2202 = vadd.f32 0.0, %v2201
      %v2203 = vpop.f32.mrf.mxu0
      %v2204 = vpop.f32.mrf.mxu0
      %2205 = vdwg.mxu0
      %2206 = vmatprep.subr.bf16.mxu0 0
      %2207 = vmatpush1.bf16.msra.mxu0 0
      %2208 = vmatprep.subr.bf16.mxu0 0
      %2209 = vmatpush1.bf16.msra.mxu0 0
      %2210 = vmatprep.subr.bf16.mxu0 0
      %2211 = vmatpush1.bf16.msra.mxu0 0
      %2212 = vmatprep.subr.bf16.mxu0 0
      %2213 = vmatpush1.bf16.msra.mxu0 0
      %2214 = vmatprep.subr.bf16.mxu0 0
      %2215 = vmatpush1.bf16.msra.mxu0 0
      %2216 = vmatprep.subr.bf16.mxu0 0
      %2217 = vmatpush1.bf16.msra.mxu0 0
      %2218 = vmatprep.subr.bf16.mxu0 0
      %2219 = vmatpush1.bf16.msra.mxu0 0
      %2220 = vmatprep.subr.bf16.mxu0 %v2119
      %2221 = vmatpush1.bf16.msra.mxu0 %v2116
      %2222 = vmatprep.subr.bf16.mxu0 0
      %2223 = vmatpush2.bf16.msra.mxu0 0
      %2224 = vmatprep.subr.bf16.mxu0 0
      %2225 = vmatpush2.bf16.msra.mxu0 0
      %2226 = vmatprep.subr.bf16.mxu0 0
      %2227 = vmatpush2.bf16.msra.mxu0 0
      %2228 = vmatprep.subr.bf16.mxu0 0
      %2229 = vmatpush2.bf16.msra.mxu0 0
      %2230 = vmatprep.subr.bf16.mxu0 0
      %2231 = vmatpush2.bf16.msra.mxu0 0
      %2232 = vmatprep.subr.bf16.mxu0 0
      %2233 = vmatpush2.bf16.msra.mxu0 0
      %2234 = vmatprep.subr.bf16.mxu0 0
      %2235 = vmatpush2.bf16.msra.mxu0 0
      %2236 = vmatprep.subr.bf16.mxu0 0
      %2237 = vmatpush2.bf16.msra.mxu0 0
      %2238 = vmatprep.mubr.bf16.mxu0 0
      %2239 = vmatmul.mubr.bf16.gmra.mxu0 %v2101
      %v2240 = vpop.f32.mrf.mxu0
      %v2241 = vadd.f32 0.0, %v2240
      %v2242 = vpop.f32.mrf.mxu0
      %v2243 = vadd.f32 0.0, %v2242
      %v2244 = vpop.f32.mrf.mxu0
      %v2245 = vpop.f32.mrf.mxu0
      %2246 = vdwg.mxu0
      %2247 = vmatprep.subr.bf16.mxu0 0
      %2248 = vmatpush1.bf16.msra.mxu0 0
      %2249 = vmatprep.subr.bf16.mxu0 0
      %2250 = vmatpush1.bf16.msra.mxu0 0
      %2251 = vmatprep.subr.bf16.mxu0 0
      %2252 = vmatpush1.bf16.msra.mxu0 0
      %2253 = vmatprep.subr.bf16.mxu0 0
      %2254 = vmatpush1.bf16.msra.mxu0 0
      %2255 = vmatprep.subr.bf16.mxu0 0
      %2256 = vmatpush1.bf16.msra.mxu0 0
      %2257 = vmatprep.subr.bf16.mxu0 0
      %2258 = vmatpush1.bf16.msra.mxu0 0
      %2259 = vmatprep.subr.bf16.mxu0 0
      %2260 = vmatpush1.bf16.msra.mxu0 0
      %2261 = vmatprep.subr.bf16.mxu0 0
      %2262 = vmatpush1.bf16.msra.mxu0 %v2122
      %2263 = vmatprep.subr.bf16.mxu0 0
      %2264 = vmatpush2.bf16.msra.mxu0 0
      %2265 = vmatprep.subr.bf16.mxu0 0
      %2266 = vmatpush2.bf16.msra.mxu0 0
      %2267 = vmatprep.subr.bf16.mxu0 0
      %2268 = vmatpush2.bf16.msra.mxu0 0
      %2269 = vmatprep.subr.bf16.mxu0 0
      %2270 = vmatpush2.bf16.msra.mxu0 0
      %2271 = vmatprep.subr.bf16.mxu0 0
      %2272 = vmatpush2.bf16.msra.mxu0 0
      %2273 = vmatprep.subr.bf16.mxu0 0
      %2274 = vmatpush2.bf16.msra.mxu0 0
      %2275 = vmatprep.subr.bf16.mxu0 0
      %2276 = vmatpush2.bf16.msra.mxu0 0
      %2277 = vmatprep.subr.bf16.mxu0 0
      %2278 = vmatpush2.bf16.msra.mxu0 0
      %2279 = vmatprep.mubr.bf16.mxu0 0
      %2280 = vmatmul.mubr.bf16.gmra.mxu0 %v2101
      %v2281 = vpop.f32.mrf.mxu0
      %v2282 = vadd.f32 0.0, %v2281
      %v2283 = vpop.f32.mrf.mxu0
      %v2284 = vpop.f32.mrf.mxu0
      %v2285 = vpop.f32.mrf.mxu0
      %2286 = vdwg.mxu0
      %v2287 = vadd.f32 %v2070, %v2159
      %v2288 = vadd.f32 %v2071, %v2161
      %v2289 = vadd.f32 %v2072, %v2200
      %v2290 = vadd.f32 %v2073, %v2202
      %v2291 = vadd.f32 %v2074, %v2241
      %v2292 = vadd.f32 %v2075, %v2243
      %v2293 = vadd.f32 %v2076, %v2282
      %2294 = vrot.lane.b32.xlu0 %v340, 92
      %v2295 = vpop.permute.xlu0 %2294
      %2296 = vrot.lane.b32.xlu0 %v352, 28
      %v2297 = vpop.permute.xlu0 %2296
      %2298 = vrot.lane.b32.xlu0 %v360, 28
      %v2299 = vpop.permute.xlu0 %2298
      %2300 = vrot.lane.b32.xlu0 %v359, 28
      %v2301 = vpop.permute.xlu0 %2300
      %2302 = vrot.lane.b32.xlu0 %v361, 28
      %v2303 = vpop.permute.xlu0 %2302
      %2304 = vrot.lane.b32.xlu0 %v369, 28
      %v2305 = vpop.permute.xlu0 %2304
      %2306 = vrot.lane.b32.xlu0 %v377, 28
      %v2307 = vpop.permute.xlu0 %2306
      %2308 = vrot.lane.b32.xlu0 %v376, 28
      %v2309 = vpop.permute.xlu0 %2308
      %vm2310 = vcmask 228352
      %v2311 = vsel %vm2310, %v2297, %v2299
      %v2312 = vsel %vm2310, %v2299, %v2301
      %v2313 = vsel %vm2310, %v2301, %v2303
      %v2314 = vsel %vm2310, %v2303, %v2305
      %v2315 = vsel %vm2310, %v2305, %v2307
      %v2316 = vsel %vm2310, %v2307, %v2309
      %v2318 = vsel %vm399, %v2295, 0
      %v2321 = vsel %vm403, %v2311, 0
      %v2324 = vsel %vm403, %v2312, 0
      %v2327 = vsel %vm403, %v2313, 0
      %v2330 = vsel %vm403, %v2314, 0
      %v2333 = vsel %vm403, %v2315, 0
      %v2336 = vsel %vm403, %v2316, 0
      %v2339 = vsel %vm403, %v2309, 0
      %2341 = vmatprep.subr.bf16.mxu0 0
      %2342 = vmatpush1.bf16.msra.mxu0 0
      %2343 = vmatprep.subr.bf16.mxu0 0
      %2344 = vmatpush1.bf16.msra.mxu0 0
      %2345 = vmatprep.subr.bf16.mxu0 0
      %2346 = vmatpush1.bf16.msra.mxu0 0
      %2347 = vmatprep.subr.bf16.mxu0 0
      %2348 = vmatpush1.bf16.msra.mxu0 0
      %2349 = vmatprep.subr.bf16.mxu0 0
      %2350 = vmatpush1.bf16.msra.mxu0 0
      %2351 = vmatprep.subr.bf16.mxu0 0
      %2352 = vmatpush1.bf16.msra.mxu0 0
      %2353 = vmatprep.subr.bf16.mxu0 0
      %2354 = vmatpush1.bf16.msra.mxu0 0
      %2355 = vmatprep.subr.bf16.mxu0 %v2324
      %2356 = vmatpush1.bf16.msra.mxu0 %v2321
      %2357 = vmatprep.subr.bf16.mxu0 0
      %2358 = vmatpush2.bf16.msra.mxu0 0
      %2359 = vmatprep.subr.bf16.mxu0 0
      %2360 = vmatpush2.bf16.msra.mxu0 0
      %2361 = vmatprep.subr.bf16.mxu0 0
      %2362 = vmatpush2.bf16.msra.mxu0 0
      %2363 = vmatprep.subr.bf16.mxu0 0
      %2364 = vmatpush2.bf16.msra.mxu0 0
      %2365 = vmatprep.subr.bf16.mxu0 0
      %2366 = vmatpush2.bf16.msra.mxu0 0
      %2367 = vmatprep.subr.bf16.mxu0 0
      %2368 = vmatpush2.bf16.msra.mxu0 0
      %2369 = vmatprep.subr.bf16.mxu0 0
      %2370 = vmatpush2.bf16.msra.mxu0 0
      %2371 = vmatprep.subr.bf16.mxu0 0
      %2372 = vmatpush2.bf16.msra.mxu0 0
      %2373 = vmatprep.mubr.bf16.mxu0 0
      %2374 = vmatmul.mubr.bf16.gmra.mxu0 %v2318
      %v2375 = vpop.f32.mrf.mxu0
      %v2376 = vadd.f32 0.0, %v2375
      %v2377 = vpop.f32.mrf.mxu0
      %v2378 = vadd.f32 0.0, %v2377
      %v2379 = vpop.f32.mrf.mxu0
      %v2380 = vpop.f32.mrf.mxu0
      %2381 = vdwg.mxu0
      %2382 = vmatprep.subr.bf16.mxu0 0
      %2383 = vmatpush1.bf16.msra.mxu0 0
      %2384 = vmatprep.subr.bf16.mxu0 0
      %2385 = vmatpush1.bf16.msra.mxu0 0
      %2386 = vmatprep.subr.bf16.mxu0 0
      %2387 = vmatpush1.bf16.msra.mxu0 0
      %2388 = vmatprep.subr.bf16.mxu0 0
      %2389 = vmatpush1.bf16.msra.mxu0 0
      %2390 = vmatprep.subr.bf16.mxu0 0
      %2391 = vmatpush1.bf16.msra.mxu0 0
      %2392 = vmatprep.subr.bf16.mxu0 0
      %2393 = vmatpush1.bf16.msra.mxu0 0
      %2394 = vmatprep.subr.bf16.mxu0 0
      %2395 = vmatpush1.bf16.msra.mxu0 0
      %2396 = vmatprep.subr.bf16.mxu0 %v2330
      %2397 = vmatpush1.bf16.msra.mxu0 %v2327
      %2398 = vmatprep.subr.bf16.mxu0 0
      %2399 = vmatpush2.bf16.msra.mxu0 0
      %2400 = vmatprep.subr.bf16.mxu0 0
      %2401 = vmatpush2.bf16.msra.mxu0 0
      %2402 = vmatprep.subr.bf16.mxu0 0
      %2403 = vmatpush2.bf16.msra.mxu0 0
      %2404 = vmatprep.subr.bf16.mxu0 0
      %2405 = vmatpush2.bf16.msra.mxu0 0
      %2406 = vmatprep.subr.bf16.mxu0 0
      %2407 = vmatpush2.bf16.msra.mxu0 0
      %2408 = vmatprep.subr.bf16.mxu0 0
      %2409 = vmatpush2.bf16.msra.mxu0 0
      %2410 = vmatprep.subr.bf16.mxu0 0
      %2411 = vmatpush2.bf16.msra.mxu0 0
      %2412 = vmatprep.subr.bf16.mxu0 0
      %2413 = vmatpush2.bf16.msra.mxu0 0
      %2414 = vmatprep.mubr.bf16.mxu0 0
      %2415 = vmatmul.mubr.bf16.gmra.mxu0 %v2318
      %v2416 = vpop.f32.mrf.mxu0
      %v2417 = vadd.f32 0.0, %v2416
      %v2418 = vpop.f32.mrf.mxu0
      %v2419 = vadd.f32 0.0, %v2418
      %v2420 = vpop.f32.mrf.mxu0
      %v2421 = vpop.f32.mrf.mxu0
      %2422 = vdwg.mxu0
      %2423 = vmatprep.subr.bf16.mxu0 0
      %2424 = vmatpush1.bf16.msra.mxu0 0
      %2425 = vmatprep.subr.bf16.mxu0 0
      %2426 = vmatpush1.bf16.msra.mxu0 0
      %2427 = vmatprep.subr.bf16.mxu0 0
      %2428 = vmatpush1.bf16.msra.mxu0 0
      %2429 = vmatprep.subr.bf16.mxu0 0
      %2430 = vmatpush1.bf16.msra.mxu0 0
      %2431 = vmatprep.subr.bf16.mxu0 0
      %2432 = vmatpush1.bf16.msra.mxu0 0
      %2433 = vmatprep.subr.bf16.mxu0 0
      %2434 = vmatpush1.bf16.msra.mxu0 0
      %2435 = vmatprep.subr.bf16.mxu0 0
      %2436 = vmatpush1.bf16.msra.mxu0 0
      %2437 = vmatprep.subr.bf16.mxu0 %v2336
      %2438 = vmatpush1.bf16.msra.mxu0 %v2333
      %2439 = vmatprep.subr.bf16.mxu0 0
      %2440 = vmatpush2.bf16.msra.mxu0 0
      %2441 = vmatprep.subr.bf16.mxu0 0
      %2442 = vmatpush2.bf16.msra.mxu0 0
      %2443 = vmatprep.subr.bf16.mxu0 0
      %2444 = vmatpush2.bf16.msra.mxu0 0
      %2445 = vmatprep.subr.bf16.mxu0 0
      %2446 = vmatpush2.bf16.msra.mxu0 0
      %2447 = vmatprep.subr.bf16.mxu0 0
      %2448 = vmatpush2.bf16.msra.mxu0 0
      %2449 = vmatprep.subr.bf16.mxu0 0
      %2450 = vmatpush2.bf16.msra.mxu0 0
      %2451 = vmatprep.subr.bf16.mxu0 0
      %2452 = vmatpush2.bf16.msra.mxu0 0
      %2453 = vmatprep.subr.bf16.mxu0 0
      %2454 = vmatpush2.bf16.msra.mxu0 0
      %2455 = vmatprep.mubr.bf16.mxu0 0
      %2456 = vmatmul.mubr.bf16.gmra.mxu0 %v2318
      %v2457 = vpop.f32.mrf.mxu0
      %v2458 = vadd.f32 0.0, %v2457
      %v2459 = vpop.f32.mrf.mxu0
      %v2460 = vadd.f32 0.0, %v2459
      %v2461 = vpop.f32.mrf.mxu0
      %v2462 = vpop.f32.mrf.mxu0
      %2463 = vdwg.mxu0
      %2464 = vmatprep.subr.bf16.mxu0 0
      %2465 = vmatpush1.bf16.msra.mxu0 0
      %2466 = vmatprep.subr.bf16.mxu0 0
      %2467 = vmatpush1.bf16.msra.mxu0 0
      %2468 = vmatprep.subr.bf16.mxu0 0
      %2469 = vmatpush1.bf16.msra.mxu0 0
      %2470 = vmatprep.subr.bf16.mxu0 0
      %2471 = vmatpush1.bf16.msra.mxu0 0
      %2472 = vmatprep.subr.bf16.mxu0 0
      %2473 = vmatpush1.bf16.msra.mxu0 0
      %2474 = vmatprep.subr.bf16.mxu0 0
      %2475 = vmatpush1.bf16.msra.mxu0 0
      %2476 = vmatprep.subr.bf16.mxu0 0
      %2477 = vmatpush1.bf16.msra.mxu0 0
      %2478 = vmatprep.subr.bf16.mxu0 0
      %2479 = vmatpush1.bf16.msra.mxu0 %v2339
      %2480 = vmatprep.subr.bf16.mxu0 0
      %2481 = vmatpush2.bf16.msra.mxu0 0
      %2482 = vmatprep.subr.bf16.mxu0 0
      %2483 = vmatpush2.bf16.msra.mxu0 0
      %2484 = vmatprep.subr.bf16.mxu0 0
      %2485 = vmatpush2.bf16.msra.mxu0 0
      %2486 = vmatprep.subr.bf16.mxu0 0
      %2487 = vmatpush2.bf16.msra.mxu0 0
      %2488 = vmatprep.subr.bf16.mxu0 0
      %2489 = vmatpush2.bf16.msra.mxu0 0
      %2490 = vmatprep.subr.bf16.mxu0 0
      %2491 = vmatpush2.bf16.msra.mxu0 0
      %2492 = vmatprep.subr.bf16.mxu0 0
      %2493 = vmatpush2.bf16.msra.mxu0 0
      %2494 = vmatprep.subr.bf16.mxu0 0
      %2495 = vmatpush2.bf16.msra.mxu0 0
      %2496 = vmatprep.mubr.bf16.mxu0 0
      %2497 = vmatmul.mubr.bf16.gmra.mxu0 %v2318
      %v2498 = vpop.f32.mrf.mxu0
      %v2499 = vadd.f32 0.0, %v2498
      %v2500 = vpop.f32.mrf.mxu0
      %v2501 = vpop.f32.mrf.mxu0
      %v2502 = vpop.f32.mrf.mxu0
      %2503 = vdwg.mxu0
      %v2504 = vadd.f32 %v2287, %v2376
      %v2505 = vadd.f32 %v2288, %v2378
      %v2506 = vadd.f32 %v2289, %v2417
      %v2507 = vadd.f32 %v2290, %v2419
      %v2508 = vadd.f32 %v2291, %v2458
      %v2509 = vadd.f32 %v2292, %v2460
      %v2510 = vadd.f32 %v2293, %v2499
      %2511 = vrot.lane.b32.xlu0 %v340, 88
      %v2512 = vpop.permute.xlu0 %2511
      %2513 = vrot.lane.b32.xlu0 %v352, 27
      %v2514 = vpop.permute.xlu0 %2513
      %2515 = vrot.lane.b32.xlu0 %v360, 27
      %v2516 = vpop.permute.xlu0 %2515
      %2517 = vrot.lane.b32.xlu0 %v359, 27
      %v2518 = vpop.permute.xlu0 %2517
      %2519 = vrot.lane.b32.xlu0 %v361, 27
      %v2520 = vpop.permute.xlu0 %2519
      %2521 = vrot.lane.b32.xlu0 %v369, 27
      %v2522 = vpop.permute.xlu0 %2521
      %2523 = vrot.lane.b32.xlu0 %v377, 27
      %v2524 = vpop.permute.xlu0 %2523
      %2525 = vrot.lane.b32.xlu0 %v376, 27
      %v2526 = vpop.permute.xlu0 %2525
      %vm2527 = vcmask 220160
      %v2528 = vsel %vm2527, %v2514, %v2516
      %v2529 = vsel %vm2527, %v2516, %v2518
      %v2530 = vsel %vm2527, %v2518, %v2520
      %v2531 = vsel %vm2527, %v2520, %v2522
      %v2532 = vsel %vm2527, %v2522, %v2524
      %v2533 = vsel %vm2527, %v2524, %v2526
      %v2535 = vsel %vm399, %v2512, 0
      %v2538 = vsel %vm403, %v2528, 0
      %v2541 = vsel %vm403, %v2529, 0
      %v2544 = vsel %vm403, %v2530, 0
      %v2547 = vsel %vm403, %v2531, 0
      %v2550 = vsel %vm403, %v2532, 0
      %v2553 = vsel %vm403, %v2533, 0
      %v2556 = vsel %vm403, %v2526, 0
      %2558 = vmatprep.subr.bf16.mxu0 0
      %2559 = vmatpush1.bf16.msra.mxu0 0
      %2560 = vmatprep.subr.bf16.mxu0 0
      %2561 = vmatpush1.bf16.msra.mxu0 0
      %2562 = vmatprep.subr.bf16.mxu0 0
      %2563 = vmatpush1.bf16.msra.mxu0 0
      %2564 = vmatprep.subr.bf16.mxu0 0
      %2565 = vmatpush1.bf16.msra.mxu0 0
      %2566 = vmatprep.subr.bf16.mxu0 0
      %2567 = vmatpush1.bf16.msra.mxu0 0
      %2568 = vmatprep.subr.bf16.mxu0 0
      %2569 = vmatpush1.bf16.msra.mxu0 0
      %2570 = vmatprep.subr.bf16.mxu0 0
      %2571 = vmatpush1.bf16.msra.mxu0 0
      %2572 = vmatprep.subr.bf16.mxu0 %v2541
      %2573 = vmatpush1.bf16.msra.mxu0 %v2538
      %2574 = vmatprep.subr.bf16.mxu0 0
      %2575 = vmatpush2.bf16.msra.mxu0 0
      %2576 = vmatprep.subr.bf16.mxu0 0
      %2577 = vmatpush2.bf16.msra.mxu0 0
      %2578 = vmatprep.subr.bf16.mxu0 0
      %2579 = vmatpush2.bf16.msra.mxu0 0
      %2580 = vmatprep.subr.bf16.mxu0 0
      %2581 = vmatpush2.bf16.msra.mxu0 0
      %2582 = vmatprep.subr.bf16.mxu0 0
      %2583 = vmatpush2.bf16.msra.mxu0 0
      %2584 = vmatprep.subr.bf16.mxu0 0
      %2585 = vmatpush2.bf16.msra.mxu0 0
      %2586 = vmatprep.subr.bf16.mxu0 0
      %2587 = vmatpush2.bf16.msra.mxu0 0
      %2588 = vmatprep.subr.bf16.mxu0 0
      %2589 = vmatpush2.bf16.msra.mxu0 0
      %2590 = vmatprep.mubr.bf16.mxu0 0
      %2591 = vmatmul.mubr.bf16.gmra.mxu0 %v2535
      %v2592 = vpop.f32.mrf.mxu0
      %v2593 = vadd.f32 0.0, %v2592
      %v2594 = vpop.f32.mrf.mxu0
      %v2595 = vadd.f32 0.0, %v2594
      %v2596 = vpop.f32.mrf.mxu0
      %v2597 = vpop.f32.mrf.mxu0
      %2598 = vdwg.mxu0
      %2599 = vmatprep.subr.bf16.mxu0 0
      %2600 = vmatpush1.bf16.msra.mxu0 0
      %2601 = vmatprep.subr.bf16.mxu0 0
      %2602 = vmatpush1.bf16.msra.mxu0 0
      %2603 = vmatprep.subr.bf16.mxu0 0
      %2604 = vmatpush1.bf16.msra.mxu0 0
      %2605 = vmatprep.subr.bf16.mxu0 0
      %2606 = vmatpush1.bf16.msra.mxu0 0
      %2607 = vmatprep.subr.bf16.mxu0 0
      %2608 = vmatpush1.bf16.msra.mxu0 0
      %2609 = vmatprep.subr.bf16.mxu0 0
      %2610 = vmatpush1.bf16.msra.mxu0 0
      %2611 = vmatprep.subr.bf16.mxu0 0
      %2612 = vmatpush1.bf16.msra.mxu0 0
      %2613 = vmatprep.subr.bf16.mxu0 %v2547
      %2614 = vmatpush1.bf16.msra.mxu0 %v2544
      %2615 = vmatprep.subr.bf16.mxu0 0
      %2616 = vmatpush2.bf16.msra.mxu0 0
      %2617 = vmatprep.subr.bf16.mxu0 0
      %2618 = vmatpush2.bf16.msra.mxu0 0
      %2619 = vmatprep.subr.bf16.mxu0 0
      %2620 = vmatpush2.bf16.msra.mxu0 0
      %2621 = vmatprep.subr.bf16.mxu0 0
      %2622 = vmatpush2.bf16.msra.mxu0 0
      %2623 = vmatprep.subr.bf16.mxu0 0
      %2624 = vmatpush2.bf16.msra.mxu0 0
      %2625 = vmatprep.subr.bf16.mxu0 0
      %2626 = vmatpush2.bf16.msra.mxu0 0
      %2627 = vmatprep.subr.bf16.mxu0 0
      %2628 = vmatpush2.bf16.msra.mxu0 0
      %2629 = vmatprep.subr.bf16.mxu0 0
      %2630 = vmatpush2.bf16.msra.mxu0 0
      %2631 = vmatprep.mubr.bf16.mxu0 0
      %2632 = vmatmul.mubr.bf16.gmra.mxu0 %v2535
      %v2633 = vpop.f32.mrf.mxu0
      %v2634 = vadd.f32 0.0, %v2633
      %v2635 = vpop.f32.mrf.mxu0
      %v2636 = vadd.f32 0.0, %v2635
      %v2637 = vpop.f32.mrf.mxu0
      %v2638 = vpop.f32.mrf.mxu0
      %2639 = vdwg.mxu0
      %2640 = vmatprep.subr.bf16.mxu0 0
      %2641 = vmatpush1.bf16.msra.mxu0 0
      %2642 = vmatprep.subr.bf16.mxu0 0
      %2643 = vmatpush1.bf16.msra.mxu0 0
      %2644 = vmatprep.subr.bf16.mxu0 0
      %2645 = vmatpush1.bf16.msra.mxu0 0
      %2646 = vmatprep.subr.bf16.mxu0 0
      %2647 = vmatpush1.bf16.msra.mxu0 0
      %2648 = vmatprep.subr.bf16.mxu0 0
      %2649 = vmatpush1.bf16.msra.mxu0 0
      %2650 = vmatprep.subr.bf16.mxu0 0
      %2651 = vmatpush1.bf16.msra.mxu0 0
      %2652 = vmatprep.subr.bf16.mxu0 0
      %2653 = vmatpush1.bf16.msra.mxu0 0
      %2654 = vmatprep.subr.bf16.mxu0 %v2553
      %2655 = vmatpush1.bf16.msra.mxu0 %v2550
      %2656 = vmatprep.subr.bf16.mxu0 0
      %2657 = vmatpush2.bf16.msra.mxu0 0
      %2658 = vmatprep.subr.bf16.mxu0 0
      %2659 = vmatpush2.bf16.msra.mxu0 0
      %2660 = vmatprep.subr.bf16.mxu0 0
      %2661 = vmatpush2.bf16.msra.mxu0 0
      %2662 = vmatprep.subr.bf16.mxu0 0
      %2663 = vmatpush2.bf16.msra.mxu0 0
      %2664 = vmatprep.subr.bf16.mxu0 0
      %2665 = vmatpush2.bf16.msra.mxu0 0
      %2666 = vmatprep.subr.bf16.mxu0 0
      %2667 = vmatpush2.bf16.msra.mxu0 0
      %2668 = vmatprep.subr.bf16.mxu0 0
      %2669 = vmatpush2.bf16.msra.mxu0 0
      %2670 = vmatprep.subr.bf16.mxu0 0
      %2671 = vmatpush2.bf16.msra.mxu0 0
      %2672 = vmatprep.mubr.bf16.mxu0 0
      %2673 = vmatmul.mubr.bf16.gmra.mxu0 %v2535
      %v2674 = vpop.f32.mrf.mxu0
      %v2675 = vadd.f32 0.0, %v2674
      %v2676 = vpop.f32.mrf.mxu0
      %v2677 = vadd.f32 0.0, %v2676
      %v2678 = vpop.f32.mrf.mxu0
      %v2679 = vpop.f32.mrf.mxu0
      %2680 = vdwg.mxu0
      %2681 = vmatprep.subr.bf16.mxu0 0
      %2682 = vmatpush1.bf16.msra.mxu0 0
      %2683 = vmatprep.subr.bf16.mxu0 0
      %2684 = vmatpush1.bf16.msra.mxu0 0
      %2685 = vmatprep.subr.bf16.mxu0 0
      %2686 = vmatpush1.bf16.msra.mxu0 0
      %2687 = vmatprep.subr.bf16.mxu0 0
      %2688 = vmatpush1.bf16.msra.mxu0 0
      %2689 = vmatprep.subr.bf16.mxu0 0
      %2690 = vmatpush1.bf16.msra.mxu0 0
      %2691 = vmatprep.subr.bf16.mxu0 0
      %2692 = vmatpush1.bf16.msra.mxu0 0
      %2693 = vmatprep.subr.bf16.mxu0 0
      %2694 = vmatpush1.bf16.msra.mxu0 0
      %2695 = vmatprep.subr.bf16.mxu0 0
      %2696 = vmatpush1.bf16.msra.mxu0 %v2556
      %2697 = vmatprep.subr.bf16.mxu0 0
      %2698 = vmatpush2.bf16.msra.mxu0 0
      %2699 = vmatprep.subr.bf16.mxu0 0
      %2700 = vmatpush2.bf16.msra.mxu0 0
      %2701 = vmatprep.subr.bf16.mxu0 0
      %2702 = vmatpush2.bf16.msra.mxu0 0
      %2703 = vmatprep.subr.bf16.mxu0 0
      %2704 = vmatpush2.bf16.msra.mxu0 0
      %2705 = vmatprep.subr.bf16.mxu0 0
      %2706 = vmatpush2.bf16.msra.mxu0 0
      %2707 = vmatprep.subr.bf16.mxu0 0
      %2708 = vmatpush2.bf16.msra.mxu0 0
      %2709 = vmatprep.subr.bf16.mxu0 0
      %2710 = vmatpush2.bf16.msra.mxu0 0
      %2711 = vmatprep.subr.bf16.mxu0 0
      %2712 = vmatpush2.bf16.msra.mxu0 0
      %2713 = vmatprep.mubr.bf16.mxu0 0
      %2714 = vmatmul.mubr.bf16.gmra.mxu0 %v2535
      %v2715 = vpop.f32.mrf.mxu0
      %v2716 = vadd.f32 0.0, %v2715
      %v2717 = vpop.f32.mrf.mxu0
      %v2718 = vpop.f32.mrf.mxu0
      %v2719 = vpop.f32.mrf.mxu0
      %2720 = vdwg.mxu0
      %v2721 = vadd.f32 %v2504, %v2593
      %v2722 = vadd.f32 %v2505, %v2595
      %v2723 = vadd.f32 %v2506, %v2634
      %v2724 = vadd.f32 %v2507, %v2636
      %v2725 = vadd.f32 %v2508, %v2675
      %v2726 = vadd.f32 %v2509, %v2677
      %v2727 = vadd.f32 %v2510, %v2716
      %2728 = vrot.lane.b32.xlu0 %v340, 84
      %v2729 = vpop.permute.xlu0 %2728
      %2730 = vrot.lane.b32.xlu0 %v352, 26
      %v2731 = vpop.permute.xlu0 %2730
      %2732 = vrot.lane.b32.xlu0 %v360, 26
      %v2733 = vpop.permute.xlu0 %2732
      %2734 = vrot.lane.b32.xlu0 %v359, 26
      %v2735 = vpop.permute.xlu0 %2734
      %2736 = vrot.lane.b32.xlu0 %v361, 26
      %v2737 = vpop.permute.xlu0 %2736
      %2738 = vrot.lane.b32.xlu0 %v369, 26
      %v2739 = vpop.permute.xlu0 %2738
      %2740 = vrot.lane.b32.xlu0 %v377, 26
      %v2741 = vpop.permute.xlu0 %2740
      %2742 = vrot.lane.b32.xlu0 %v376, 26
      %v2743 = vpop.permute.xlu0 %2742
      %vm2744 = vcmask 211968
      %v2745 = vsel %vm2744, %v2731, %v2733
      %v2746 = vsel %vm2744, %v2733, %v2735
      %v2747 = vsel %vm2744, %v2735, %v2737
      %v2748 = vsel %vm2744, %v2737, %v2739
      %v2749 = vsel %vm2744, %v2739, %v2741
      %v2750 = vsel %vm2744, %v2741, %v2743
      %v2752 = vsel %vm399, %v2729, 0
      %v2755 = vsel %vm403, %v2745, 0
      %v2758 = vsel %vm403, %v2746, 0
      %v2761 = vsel %vm403, %v2747, 0
      %v2764 = vsel %vm403, %v2748, 0
      %v2767 = vsel %vm403, %v2749, 0
      %v2770 = vsel %vm403, %v2750, 0
      %v2773 = vsel %vm403, %v2743, 0
      %2775 = vmatprep.subr.bf16.mxu0 0
      %2776 = vmatpush1.bf16.msra.mxu0 0
      %2777 = vmatprep.subr.bf16.mxu0 0
      %2778 = vmatpush1.bf16.msra.mxu0 0
      %2779 = vmatprep.subr.bf16.mxu0 0
      %2780 = vmatpush1.bf16.msra.mxu0 0
      %2781 = vmatprep.subr.bf16.mxu0 0
      %2782 = vmatpush1.bf16.msra.mxu0 0
      %2783 = vmatprep.subr.bf16.mxu0 0
      %2784 = vmatpush1.bf16.msra.mxu0 0
      %2785 = vmatprep.subr.bf16.mxu0 0
      %2786 = vmatpush1.bf16.msra.mxu0 0
      %2787 = vmatprep.subr.bf16.mxu0 0
      %2788 = vmatpush1.bf16.msra.mxu0 0
      %2789 = vmatprep.subr.bf16.mxu0 %v2758
      %2790 = vmatpush1.bf16.msra.mxu0 %v2755
      %2791 = vmatprep.subr.bf16.mxu0 0
      %2792 = vmatpush2.bf16.msra.mxu0 0
      %2793 = vmatprep.subr.bf16.mxu0 0
      %2794 = vmatpush2.bf16.msra.mxu0 0
      %2795 = vmatprep.subr.bf16.mxu0 0
      %2796 = vmatpush2.bf16.msra.mxu0 0
      %2797 = vmatprep.subr.bf16.mxu0 0
      %2798 = vmatpush2.bf16.msra.mxu0 0
      %2799 = vmatprep.subr.bf16.mxu0 0
      %2800 = vmatpush2.bf16.msra.mxu0 0
      %2801 = vmatprep.subr.bf16.mxu0 0
      %2802 = vmatpush2.bf16.msra.mxu0 0
      %2803 = vmatprep.subr.bf16.mxu0 0
      %2804 = vmatpush2.bf16.msra.mxu0 0
      %2805 = vmatprep.subr.bf16.mxu0 0
      %2806 = vmatpush2.bf16.msra.mxu0 0
      %2807 = vmatprep.mubr.bf16.mxu0 0
      %2808 = vmatmul.mubr.bf16.gmra.mxu0 %v2752
      %v2809 = vpop.f32.mrf.mxu0
      %v2810 = vadd.f32 0.0, %v2809
      %v2811 = vpop.f32.mrf.mxu0
      %v2812 = vadd.f32 0.0, %v2811
      %v2813 = vpop.f32.mrf.mxu0
      %v2814 = vpop.f32.mrf.mxu0
      %2815 = vdwg.mxu0
      %2816 = vmatprep.subr.bf16.mxu0 0
      %2817 = vmatpush1.bf16.msra.mxu0 0
      %2818 = vmatprep.subr.bf16.mxu0 0
      %2819 = vmatpush1.bf16.msra.mxu0 0
      %2820 = vmatprep.subr.bf16.mxu0 0
      %2821 = vmatpush1.bf16.msra.mxu0 0
      %2822 = vmatprep.subr.bf16.mxu0 0
      %2823 = vmatpush1.bf16.msra.mxu0 0
      %2824 = vmatprep.subr.bf16.mxu0 0
      %2825 = vmatpush1.bf16.msra.mxu0 0
      %2826 = vmatprep.subr.bf16.mxu0 0
      %2827 = vmatpush1.bf16.msra.mxu0 0
      %2828 = vmatprep.subr.bf16.mxu0 0
      %2829 = vmatpush1.bf16.msra.mxu0 0
      %2830 = vmatprep.subr.bf16.mxu0 %v2764
      %2831 = vmatpush1.bf16.msra.mxu0 %v2761
      %2832 = vmatprep.subr.bf16.mxu0 0
      %2833 = vmatpush2.bf16.msra.mxu0 0
      %2834 = vmatprep.subr.bf16.mxu0 0
      %2835 = vmatpush2.bf16.msra.mxu0 0
      %2836 = vmatprep.subr.bf16.mxu0 0
      %2837 = vmatpush2.bf16.msra.mxu0 0
      %2838 = vmatprep.subr.bf16.mxu0 0
      %2839 = vmatpush2.bf16.msra.mxu0 0
      %2840 = vmatprep.subr.bf16.mxu0 0
      %2841 = vmatpush2.bf16.msra.mxu0 0
      %2842 = vmatprep.subr.bf16.mxu0 0
      %2843 = vmatpush2.bf16.msra.mxu0 0
      %2844 = vmatprep.subr.bf16.mxu0 0
      %2845 = vmatpush2.bf16.msra.mxu0 0
      %2846 = vmatprep.subr.bf16.mxu0 0
      %2847 = vmatpush2.bf16.msra.mxu0 0
      %2848 = vmatprep.mubr.bf16.mxu0 0
      %2849 = vmatmul.mubr.bf16.gmra.mxu0 %v2752
      %v2850 = vpop.f32.mrf.mxu0
      %v2851 = vadd.f32 0.0, %v2850
      %v2852 = vpop.f32.mrf.mxu0
      %v2853 = vadd.f32 0.0, %v2852
      %v2854 = vpop.f32.mrf.mxu0
      %v2855 = vpop.f32.mrf.mxu0
      %2856 = vdwg.mxu0
      %2857 = vmatprep.subr.bf16.mxu0 0
      %2858 = vmatpush1.bf16.msra.mxu0 0
      %2859 = vmatprep.subr.bf16.mxu0 0
      %2860 = vmatpush1.bf16.msra.mxu0 0
      %2861 = vmatprep.subr.bf16.mxu0 0
      %2862 = vmatpush1.bf16.msra.mxu0 0
      %2863 = vmatprep.subr.bf16.mxu0 0
      %2864 = vmatpush1.bf16.msra.mxu0 0
      %2865 = vmatprep.subr.bf16.mxu0 0
      %2866 = vmatpush1.bf16.msra.mxu0 0
      %2867 = vmatprep.subr.bf16.mxu0 0
      %2868 = vmatpush1.bf16.msra.mxu0 0
      %2869 = vmatprep.subr.bf16.mxu0 0
      %2870 = vmatpush1.bf16.msra.mxu0 0
      %2871 = vmatprep.subr.bf16.mxu0 %v2770
      %2872 = vmatpush1.bf16.msra.mxu0 %v2767
      %2873 = vmatprep.subr.bf16.mxu0 0
      %2874 = vmatpush2.bf16.msra.mxu0 0
      %2875 = vmatprep.subr.bf16.mxu0 0
      %2876 = vmatpush2.bf16.msra.mxu0 0
      %2877 = vmatprep.subr.bf16.mxu0 0
      %2878 = vmatpush2.bf16.msra.mxu0 0
      %2879 = vmatprep.subr.bf16.mxu0 0
      %2880 = vmatpush2.bf16.msra.mxu0 0
      %2881 = vmatprep.subr.bf16.mxu0 0
      %2882 = vmatpush2.bf16.msra.mxu0 0
      %2883 = vmatprep.subr.bf16.mxu0 0
      %2884 = vmatpush2.bf16.msra.mxu0 0
      %2885 = vmatprep.subr.bf16.mxu0 0
      %2886 = vmatpush2.bf16.msra.mxu0 0
      %2887 = vmatprep.subr.bf16.mxu0 0
      %2888 = vmatpush2.bf16.msra.mxu0 0
      %2889 = vmatprep.mubr.bf16.mxu0 0
      %2890 = vmatmul.mubr.bf16.gmra.mxu0 %v2752
      %v2891 = vpop.f32.mrf.mxu0
      %v2892 = vadd.f32 0.0, %v2891
      %v2893 = vpop.f32.mrf.mxu0
      %v2894 = vadd.f32 0.0, %v2893
      %v2895 = vpop.f32.mrf.mxu0
      %v2896 = vpop.f32.mrf.mxu0
      %2897 = vdwg.mxu0
      %2898 = vmatprep.subr.bf16.mxu0 0
      %2899 = vmatpush1.bf16.msra.mxu0 0
      %2900 = vmatprep.subr.bf16.mxu0 0
      %2901 = vmatpush1.bf16.msra.mxu0 0
      %2902 = vmatprep.subr.bf16.mxu0 0
      %2903 = vmatpush1.bf16.msra.mxu0 0
      %2904 = vmatprep.subr.bf16.mxu0 0
      %2905 = vmatpush1.bf16.msra.mxu0 0
      %2906 = vmatprep.subr.bf16.mxu0 0
      %2907 = vmatpush1.bf16.msra.mxu0 0
      %2908 = vmatprep.subr.bf16.mxu0 0
      %2909 = vmatpush1.bf16.msra.mxu0 0
      %2910 = vmatprep.subr.bf16.mxu0 0
      %2911 = vmatpush1.bf16.msra.mxu0 0
      %2912 = vmatprep.subr.bf16.mxu0 0
      %2913 = vmatpush1.bf16.msra.mxu0 %v2773
      %2914 = vmatprep.subr.bf16.mxu0 0
      %2915 = vmatpush2.bf16.msra.mxu0 0
      %2916 = vmatprep.subr.bf16.mxu0 0
      %2917 = vmatpush2.bf16.msra.mxu0 0
      %2918 = vmatprep.subr.bf16.mxu0 0
      %2919 = vmatpush2.bf16.msra.mxu0 0
      %2920 = vmatprep.subr.bf16.mxu0 0
      %2921 = vmatpush2.bf16.msra.mxu0 0
      %2922 = vmatprep.subr.bf16.mxu0 0
      %2923 = vmatpush2.bf16.msra.mxu0 0
      %2924 = vmatprep.subr.bf16.mxu0 0
      %2925 = vmatpush2.bf16.msra.mxu0 0
      %2926 = vmatprep.subr.bf16.mxu0 0
      %2927 = vmatpush2.bf16.msra.mxu0 0
      %2928 = vmatprep.subr.bf16.mxu0 0
      %2929 = vmatpush2.bf16.msra.mxu0 0
      %2930 = vmatprep.mubr.bf16.mxu0 0
      %2931 = vmatmul.mubr.bf16.gmra.mxu0 %v2752
      %v2932 = vpop.f32.mrf.mxu0
      %v2933 = vadd.f32 0.0, %v2932
      %v2934 = vpop.f32.mrf.mxu0
      %v2935 = vpop.f32.mrf.mxu0
      %v2936 = vpop.f32.mrf.mxu0
      %2937 = vdwg.mxu0
      %v2938 = vadd.f32 %v2721, %v2810
      %v2939 = vadd.f32 %v2722, %v2812
      %v2940 = vadd.f32 %v2723, %v2851
      %v2941 = vadd.f32 %v2724, %v2853
      %v2942 = vadd.f32 %v2725, %v2892
      %v2943 = vadd.f32 %v2726, %v2894
      %v2944 = vadd.f32 %v2727, %v2933
      %2945 = vrot.lane.b32.xlu0 %v340, 80
      %v2946 = vpop.permute.xlu0 %2945
      %2947 = vrot.lane.b32.xlu0 %v352, 18
      %v2948 = vpop.permute.xlu0 %2947
      %2949 = vrot.lane.b32.xlu0 %v360, 18
      %v2950 = vpop.permute.xlu0 %2949
      %2951 = vrot.lane.b32.xlu0 %v359, 18
      %v2952 = vpop.permute.xlu0 %2951
      %2953 = vrot.lane.b32.xlu0 %v361, 18
      %v2954 = vpop.permute.xlu0 %2953
      %2955 = vrot.lane.b32.xlu0 %v369, 18
      %v2956 = vpop.permute.xlu0 %2955
      %2957 = vrot.lane.b32.xlu0 %v377, 18
      %v2958 = vpop.permute.xlu0 %2957
      %2959 = vrot.lane.b32.xlu0 %v376, 18
      %v2960 = vpop.permute.xlu0 %2959
      %vm2961 = vcmask 146432
      %v2962 = vsel %vm2961, %v2948, %v2950
      %v2963 = vsel %vm2961, %v2950, %v2952
      %v2964 = vsel %vm2961, %v2952, %v2954
      %v2965 = vsel %vm2961, %v2954, %v2956
      %v2966 = vsel %vm2961, %v2956, %v2958
      %v2967 = vsel %vm2961, %v2958, %v2960
      %v2969 = vsel %vm399, %v2946, 0
      %v2972 = vsel %vm403, %v2962, 0
      %v2975 = vsel %vm403, %v2963, 0
      %v2978 = vsel %vm403, %v2964, 0
      %v2981 = vsel %vm403, %v2965, 0
      %v2984 = vsel %vm403, %v2966, 0
      %v2987 = vsel %vm403, %v2967, 0
      %v2990 = vsel %vm403, %v2960, 0
      %2992 = vmatprep.subr.bf16.mxu0 0
      %2993 = vmatpush1.bf16.msra.mxu0 0
      %2994 = vmatprep.subr.bf16.mxu0 0
      %2995 = vmatpush1.bf16.msra.mxu0 0
      %2996 = vmatprep.subr.bf16.mxu0 0
      %2997 = vmatpush1.bf16.msra.mxu0 0
      %2998 = vmatprep.subr.bf16.mxu0 0
      %2999 = vmatpush1.bf16.msra.mxu0 0
      %3000 = vmatprep.subr.bf16.mxu0 0
      %3001 = vmatpush1.bf16.msra.mxu0 0
      %3002 = vmatprep.subr.bf16.mxu0 0
      %3003 = vmatpush1.bf16.msra.mxu0 0
      %3004 = vmatprep.subr.bf16.mxu0 0
      %3005 = vmatpush1.bf16.msra.mxu0 0
      %3006 = vmatprep.subr.bf16.mxu0 %v2975
      %3007 = vmatpush1.bf16.msra.mxu0 %v2972
      %3008 = vmatprep.subr.bf16.mxu0 0
      %3009 = vmatpush2.bf16.msra.mxu0 0
      %3010 = vmatprep.subr.bf16.mxu0 0
      %3011 = vmatpush2.bf16.msra.mxu0 0
      %3012 = vmatprep.subr.bf16.mxu0 0
      %3013 = vmatpush2.bf16.msra.mxu0 0
      %3014 = vmatprep.subr.bf16.mxu0 0
      %3015 = vmatpush2.bf16.msra.mxu0 0
      %3016 = vmatprep.subr.bf16.mxu0 0
      %3017 = vmatpush2.bf16.msra.mxu0 0
      %3018 = vmatprep.subr.bf16.mxu0 0
      %3019 = vmatpush2.bf16.msra.mxu0 0
      %3020 = vmatprep.subr.bf16.mxu0 0
      %3021 = vmatpush2.bf16.msra.mxu0 0
      %3022 = vmatprep.subr.bf16.mxu0 0
      %3023 = vmatpush2.bf16.msra.mxu0 0
      %3024 = vmatprep.mubr.bf16.mxu0 0
      %3025 = vmatmul.mubr.bf16.gmra.mxu0 %v2969
      %v3026 = vpop.f32.mrf.mxu0
      %v3027 = vadd.f32 0.0, %v3026
      %v3028 = vpop.f32.mrf.mxu0
      %v3029 = vadd.f32 0.0, %v3028
      %v3030 = vpop.f32.mrf.mxu0
      %v3031 = vpop.f32.mrf.mxu0
      %3032 = vdwg.mxu0
      %3033 = vmatprep.subr.bf16.mxu0 0
      %3034 = vmatpush1.bf16.msra.mxu0 0
      %3035 = vmatprep.subr.bf16.mxu0 0
      %3036 = vmatpush1.bf16.msra.mxu0 0
      %3037 = vmatprep.subr.bf16.mxu0 0
      %3038 = vmatpush1.bf16.msra.mxu0 0
      %3039 = vmatprep.subr.bf16.mxu0 0
      %3040 = vmatpush1.bf16.msra.mxu0 0
      %3041 = vmatprep.subr.bf16.mxu0 0
      %3042 = vmatpush1.bf16.msra.mxu0 0
      %3043 = vmatprep.subr.bf16.mxu0 0
      %3044 = vmatpush1.bf16.msra.mxu0 0
      %3045 = vmatprep.subr.bf16.mxu0 0
      %3046 = vmatpush1.bf16.msra.mxu0 0
      %3047 = vmatprep.subr.bf16.mxu0 %v2981
      %3048 = vmatpush1.bf16.msra.mxu0 %v2978
      %3049 = vmatprep.subr.bf16.mxu0 0
      %3050 = vmatpush2.bf16.msra.mxu0 0
      %3051 = vmatprep.subr.bf16.mxu0 0
      %3052 = vmatpush2.bf16.msra.mxu0 0
      %3053 = vmatprep.subr.bf16.mxu0 0
      %3054 = vmatpush2.bf16.msra.mxu0 0
      %3055 = vmatprep.subr.bf16.mxu0 0
      %3056 = vmatpush2.bf16.msra.mxu0 0
      %3057 = vmatprep.subr.bf16.mxu0 0
      %3058 = vmatpush2.bf16.msra.mxu0 0
      %3059 = vmatprep.subr.bf16.mxu0 0
      %3060 = vmatpush2.bf16.msra.mxu0 0
      %3061 = vmatprep.subr.bf16.mxu0 0
      %3062 = vmatpush2.bf16.msra.mxu0 0
      %3063 = vmatprep.subr.bf16.mxu0 0
      %3064 = vmatpush2.bf16.msra.mxu0 0
      %3065 = vmatprep.mubr.bf16.mxu0 0
      %3066 = vmatmul.mubr.bf16.gmra.mxu0 %v2969
      %v3067 = vpop.f32.mrf.mxu0
      %v3068 = vadd.f32 0.0, %v3067
      %v3069 = vpop.f32.mrf.mxu0
      %v3070 = vadd.f32 0.0, %v3069
      %v3071 = vpop.f32.mrf.mxu0
      %v3072 = vpop.f32.mrf.mxu0
      %3073 = vdwg.mxu0
      %3074 = vmatprep.subr.bf16.mxu0 0
      %3075 = vmatpush1.bf16.msra.mxu0 0
      %3076 = vmatprep.subr.bf16.mxu0 0
      %3077 = vmatpush1.bf16.msra.mxu0 0
      %3078 = vmatprep.subr.bf16.mxu0 0
      %3079 = vmatpush1.bf16.msra.mxu0 0
      %3080 = vmatprep.subr.bf16.mxu0 0
      %3081 = vmatpush1.bf16.msra.mxu0 0
      %3082 = vmatprep.subr.bf16.mxu0 0
      %3083 = vmatpush1.bf16.msra.mxu0 0
      %3084 = vmatprep.subr.bf16.mxu0 0
      %3085 = vmatpush1.bf16.msra.mxu0 0
      %3086 = vmatprep.subr.bf16.mxu0 0
      %3087 = vmatpush1.bf16.msra.mxu0 0
      %3088 = vmatprep.subr.bf16.mxu0 %v2987
      %3089 = vmatpush1.bf16.msra.mxu0 %v2984
      %3090 = vmatprep.subr.bf16.mxu0 0
      %3091 = vmatpush2.bf16.msra.mxu0 0
      %3092 = vmatprep.subr.bf16.mxu0 0
      %3093 = vmatpush2.bf16.msra.mxu0 0
      %3094 = vmatprep.subr.bf16.mxu0 0
      %3095 = vmatpush2.bf16.msra.mxu0 0
      %3096 = vmatprep.subr.bf16.mxu0 0
      %3097 = vmatpush2.bf16.msra.mxu0 0
      %3098 = vmatprep.subr.bf16.mxu0 0
      %3099 = vmatpush2.bf16.msra.mxu0 0
      %3100 = vmatprep.subr.bf16.mxu0 0
      %3101 = vmatpush2.bf16.msra.mxu0 0
      %3102 = vmatprep.subr.bf16.mxu0 0
      %3103 = vmatpush2.bf16.msra.mxu0 0
      %3104 = vmatprep.subr.bf16.mxu0 0
      %3105 = vmatpush2.bf16.msra.mxu0 0
      %3106 = vmatprep.mubr.bf16.mxu0 0
      %3107 = vmatmul.mubr.bf16.gmra.mxu0 %v2969
      %v3108 = vpop.f32.mrf.mxu0
      %v3109 = vadd.f32 0.0, %v3108
      %v3110 = vpop.f32.mrf.mxu0
      %v3111 = vadd.f32 0.0, %v3110
      %v3112 = vpop.f32.mrf.mxu0
      %v3113 = vpop.f32.mrf.mxu0
      %3114 = vdwg.mxu0
      %3115 = vmatprep.subr.bf16.mxu0 0
      %3116 = vmatpush1.bf16.msra.mxu0 0
      %3117 = vmatprep.subr.bf16.mxu0 0
      %3118 = vmatpush1.bf16.msra.mxu0 0
      %3119 = vmatprep.subr.bf16.mxu0 0
      %3120 = vmatpush1.bf16.msra.mxu0 0
      %3121 = vmatprep.subr.bf16.mxu0 0
      %3122 = vmatpush1.bf16.msra.mxu0 0
      %3123 = vmatprep.subr.bf16.mxu0 0
      %3124 = vmatpush1.bf16.msra.mxu0 0
      %3125 = vmatprep.subr.bf16.mxu0 0
      %3126 = vmatpush1.bf16.msra.mxu0 0
      %3127 = vmatprep.subr.bf16.mxu0 0
      %3128 = vmatpush1.bf16.msra.mxu0 0
      %3129 = vmatprep.subr.bf16.mxu0 0
      %3130 = vmatpush1.bf16.msra.mxu0 %v2990
      %3131 = vmatprep.subr.bf16.mxu0 0
      %3132 = vmatpush2.bf16.msra.mxu0 0
      %3133 = vmatprep.subr.bf16.mxu0 0
      %3134 = vmatpush2.bf16.msra.mxu0 0
      %3135 = vmatprep.subr.bf16.mxu0 0
      %3136 = vmatpush2.bf16.msra.mxu0 0
      %3137 = vmatprep.subr.bf16.mxu0 0
      %3138 = vmatpush2.bf16.msra.mxu0 0
      %3139 = vmatprep.subr.bf16.mxu0 0
      %3140 = vmatpush2.bf16.msra.mxu0 0
      %3141 = vmatprep.subr.bf16.mxu0 0
      %3142 = vmatpush2.bf16.msra.mxu0 0
      %3143 = vmatprep.subr.bf16.mxu0 0
      %3144 = vmatpush2.bf16.msra.mxu0 0
      %3145 = vmatprep.subr.bf16.mxu0 0
      %3146 = vmatpush2.bf16.msra.mxu0 0
      %3147 = vmatprep.mubr.bf16.mxu0 0
      %3148 = vmatmul.mubr.bf16.gmra.mxu0 %v2969
      %v3149 = vpop.f32.mrf.mxu0
      %v3150 = vadd.f32 0.0, %v3149
      %v3151 = vpop.f32.mrf.mxu0
      %v3152 = vpop.f32.mrf.mxu0
      %v3153 = vpop.f32.mrf.mxu0
      %3154 = vdwg.mxu0
      %v3155 = vadd.f32 %v2938, %v3027
      %v3156 = vadd.f32 %v2939, %v3029
      %v3157 = vadd.f32 %v2940, %v3068
      %v3158 = vadd.f32 %v2941, %v3070
      %v3159 = vadd.f32 %v2942, %v3109
      %v3160 = vadd.f32 %v2943, %v3111
      %v3161 = vadd.f32 %v2944, %v3150
      %3162 = vrot.lane.b32.xlu0 %v340, 76
      %v3163 = vpop.permute.xlu0 %3162
      %3164 = vrot.lane.b32.xlu0 %v352, 17
      %v3165 = vpop.permute.xlu0 %3164
      %3166 = vrot.lane.b32.xlu0 %v360, 17
      %v3167 = vpop.permute.xlu0 %3166
      %3168 = vrot.lane.b32.xlu0 %v359, 17
      %v3169 = vpop.permute.xlu0 %3168
      %3170 = vrot.lane.b32.xlu0 %v361, 17
      %v3171 = vpop.permute.xlu0 %3170
      %3172 = vrot.lane.b32.xlu0 %v369, 17
      %v3173 = vpop.permute.xlu0 %3172
      %3174 = vrot.lane.b32.xlu0 %v377, 17
      %v3175 = vpop.permute.xlu0 %3174
      %3176 = vrot.lane.b32.xlu0 %v376, 17
      %v3177 = vpop.permute.xlu0 %3176
      %vm3178 = vcmask 138240
      %v3179 = vsel %vm3178, %v3165, %v3167
      %v3180 = vsel %vm3178, %v3167, %v3169
      %v3181 = vsel %vm3178, %v3169, %v3171
      %v3182 = vsel %vm3178, %v3171, %v3173
      %v3183 = vsel %vm3178, %v3173, %v3175
      %v3184 = vsel %vm3178, %v3175, %v3177
      %v3186 = vsel %vm399, %v3163, 0
      %v3189 = vsel %vm403, %v3179, 0
      %v3192 = vsel %vm403, %v3180, 0
      %v3195 = vsel %vm403, %v3181, 0
      %v3198 = vsel %vm403, %v3182, 0
      %v3201 = vsel %vm403, %v3183, 0
      %v3204 = vsel %vm403, %v3184, 0
      %v3207 = vsel %vm403, %v3177, 0
      %3209 = vmatprep.subr.bf16.mxu0 0
      %3210 = vmatpush1.bf16.msra.mxu0 0
      %3211 = vmatprep.subr.bf16.mxu0 0
      %3212 = vmatpush1.bf16.msra.mxu0 0
      %3213 = vmatprep.subr.bf16.mxu0 0
      %3214 = vmatpush1.bf16.msra.mxu0 0
      %3215 = vmatprep.subr.bf16.mxu0 0
      %3216 = vmatpush1.bf16.msra.mxu0 0
      %3217 = vmatprep.subr.bf16.mxu0 0
      %3218 = vmatpush1.bf16.msra.mxu0 0
      %3219 = vmatprep.subr.bf16.mxu0 0
      %3220 = vmatpush1.bf16.msra.mxu0 0
      %3221 = vmatprep.subr.bf16.mxu0 0
      %3222 = vmatpush1.bf16.msra.mxu0 0
      %3223 = vmatprep.subr.bf16.mxu0 %v3192
      %3224 = vmatpush1.bf16.msra.mxu0 %v3189
      %3225 = vmatprep.subr.bf16.mxu0 0
      %3226 = vmatpush2.bf16.msra.mxu0 0
      %3227 = vmatprep.subr.bf16.mxu0 0
      %3228 = vmatpush2.bf16.msra.mxu0 0
      %3229 = vmatprep.subr.bf16.mxu0 0
      %3230 = vmatpush2.bf16.msra.mxu0 0
      %3231 = vmatprep.subr.bf16.mxu0 0
      %3232 = vmatpush2.bf16.msra.mxu0 0
      %3233 = vmatprep.subr.bf16.mxu0 0
      %3234 = vmatpush2.bf16.msra.mxu0 0
      %3235 = vmatprep.subr.bf16.mxu0 0
      %3236 = vmatpush2.bf16.msra.mxu0 0
      %3237 = vmatprep.subr.bf16.mxu0 0
      %3238 = vmatpush2.bf16.msra.mxu0 0
      %3239 = vmatprep.subr.bf16.mxu0 0
      %3240 = vmatpush2.bf16.msra.mxu0 0
      %3241 = vmatprep.mubr.bf16.mxu0 0
      %3242 = vmatmul.mubr.bf16.gmra.mxu0 %v3186
      %v3243 = vpop.f32.mrf.mxu0
      %v3244 = vadd.f32 0.0, %v3243
      %v3245 = vpop.f32.mrf.mxu0
      %v3246 = vadd.f32 0.0, %v3245
      %v3247 = vpop.f32.mrf.mxu0
      %v3248 = vpop.f32.mrf.mxu0
      %3249 = vdwg.mxu0
      %3250 = vmatprep.subr.bf16.mxu0 0
      %3251 = vmatpush1.bf16.msra.mxu0 0
      %3252 = vmatprep.subr.bf16.mxu0 0
      %3253 = vmatpush1.bf16.msra.mxu0 0
      %3254 = vmatprep.subr.bf16.mxu0 0
      %3255 = vmatpush1.bf16.msra.mxu0 0
      %3256 = vmatprep.subr.bf16.mxu0 0
      %3257 = vmatpush1.bf16.msra.mxu0 0
      %3258 = vmatprep.subr.bf16.mxu0 0
      %3259 = vmatpush1.bf16.msra.mxu0 0
      %3260 = vmatprep.subr.bf16.mxu0 0
      %3261 = vmatpush1.bf16.msra.mxu0 0
      %3262 = vmatprep.subr.bf16.mxu0 0
      %3263 = vmatpush1.bf16.msra.mxu0 0
      %3264 = vmatprep.subr.bf16.mxu0 %v3198
      %3265 = vmatpush1.bf16.msra.mxu0 %v3195
      %3266 = vmatprep.subr.bf16.mxu0 0
      %3267 = vmatpush2.bf16.msra.mxu0 0
      %3268 = vmatprep.subr.bf16.mxu0 0
      %3269 = vmatpush2.bf16.msra.mxu0 0
      %3270 = vmatprep.subr.bf16.mxu0 0
      %3271 = vmatpush2.bf16.msra.mxu0 0
      %3272 = vmatprep.subr.bf16.mxu0 0
      %3273 = vmatpush2.bf16.msra.mxu0 0
      %3274 = vmatprep.subr.bf16.mxu0 0
      %3275 = vmatpush2.bf16.msra.mxu0 0
      %3276 = vmatprep.subr.bf16.mxu0 0
      %3277 = vmatpush2.bf16.msra.mxu0 0
      %3278 = vmatprep.subr.bf16.mxu0 0
      %3279 = vmatpush2.bf16.msra.mxu0 0
      %3280 = vmatprep.subr.bf16.mxu0 0
      %3281 = vmatpush2.bf16.msra.mxu0 0
      %3282 = vmatprep.mubr.bf16.mxu0 0
      %3283 = vmatmul.mubr.bf16.gmra.mxu0 %v3186
      %v3284 = vpop.f32.mrf.mxu0
      %v3285 = vadd.f32 0.0, %v3284
      %v3286 = vpop.f32.mrf.mxu0
      %v3287 = vadd.f32 0.0, %v3286
      %v3288 = vpop.f32.mrf.mxu0
      %v3289 = vpop.f32.mrf.mxu0
      %3290 = vdwg.mxu0
      %3291 = vmatprep.subr.bf16.mxu0 0
      %3292 = vmatpush1.bf16.msra.mxu0 0
      %3293 = vmatprep.subr.bf16.mxu0 0
      %3294 = vmatpush1.bf16.msra.mxu0 0
      %3295 = vmatprep.subr.bf16.mxu0 0
      %3296 = vmatpush1.bf16.msra.mxu0 0
      %3297 = vmatprep.subr.bf16.mxu0 0
      %3298 = vmatpush1.bf16.msra.mxu0 0
      %3299 = vmatprep.subr.bf16.mxu0 0
      %3300 = vmatpush1.bf16.msra.mxu0 0
      %3301 = vmatprep.subr.bf16.mxu0 0
      %3302 = vmatpush1.bf16.msra.mxu0 0
      %3303 = vmatprep.subr.bf16.mxu0 0
      %3304 = vmatpush1.bf16.msra.mxu0 0
      %3305 = vmatprep.subr.bf16.mxu0 %v3204
      %3306 = vmatpush1.bf16.msra.mxu0 %v3201
      %3307 = vmatprep.subr.bf16.mxu0 0
      %3308 = vmatpush2.bf16.msra.mxu0 0
      %3309 = vmatprep.subr.bf16.mxu0 0
      %3310 = vmatpush2.bf16.msra.mxu0 0
      %3311 = vmatprep.subr.bf16.mxu0 0
      %3312 = vmatpush2.bf16.msra.mxu0 0
      %3313 = vmatprep.subr.bf16.mxu0 0
      %3314 = vmatpush2.bf16.msra.mxu0 0
      %3315 = vmatprep.subr.bf16.mxu0 0
      %3316 = vmatpush2.bf16.msra.mxu0 0
      %3317 = vmatprep.subr.bf16.mxu0 0
      %3318 = vmatpush2.bf16.msra.mxu0 0
      %3319 = vmatprep.subr.bf16.mxu0 0
      %3320 = vmatpush2.bf16.msra.mxu0 0
      %3321 = vmatprep.subr.bf16.mxu0 0
      %3322 = vmatpush2.bf16.msra.mxu0 0
      %3323 = vmatprep.mubr.bf16.mxu0 0
      %3324 = vmatmul.mubr.bf16.gmra.mxu0 %v3186
      %v3325 = vpop.f32.mrf.mxu0
      %v3326 = vadd.f32 0.0, %v3325
      %v3327 = vpop.f32.mrf.mxu0
      %v3328 = vadd.f32 0.0, %v3327
      %v3329 = vpop.f32.mrf.mxu0
      %v3330 = vpop.f32.mrf.mxu0
      %3331 = vdwg.mxu0
      %3332 = vmatprep.subr.bf16.mxu0 0
      %3333 = vmatpush1.bf16.msra.mxu0 0
      %3334 = vmatprep.subr.bf16.mxu0 0
      %3335 = vmatpush1.bf16.msra.mxu0 0
      %3336 = vmatprep.subr.bf16.mxu0 0
      %3337 = vmatpush1.bf16.msra.mxu0 0
      %3338 = vmatprep.subr.bf16.mxu0 0
      %3339 = vmatpush1.bf16.msra.mxu0 0
      %3340 = vmatprep.subr.bf16.mxu0 0
      %3341 = vmatpush1.bf16.msra.mxu0 0
      %3342 = vmatprep.subr.bf16.mxu0 0
      %3343 = vmatpush1.bf16.msra.mxu0 0
      %3344 = vmatprep.subr.bf16.mxu0 0
      %3345 = vmatpush1.bf16.msra.mxu0 0
      %3346 = vmatprep.subr.bf16.mxu0 0
      %3347 = vmatpush1.bf16.msra.mxu0 %v3207
      %3348 = vmatprep.subr.bf16.mxu0 0
      %3349 = vmatpush2.bf16.msra.mxu0 0
      %3350 = vmatprep.subr.bf16.mxu0 0
      %3351 = vmatpush2.bf16.msra.mxu0 0
      %3352 = vmatprep.subr.bf16.mxu0 0
      %3353 = vmatpush2.bf16.msra.mxu0 0
      %3354 = vmatprep.subr.bf16.mxu0 0
      %3355 = vmatpush2.bf16.msra.mxu0 0
      %3356 = vmatprep.subr.bf16.mxu0 0
      %3357 = vmatpush2.bf16.msra.mxu0 0
      %3358 = vmatprep.subr.bf16.mxu0 0
      %3359 = vmatpush2.bf16.msra.mxu0 0
      %3360 = vmatprep.subr.bf16.mxu0 0
      %3361 = vmatpush2.bf16.msra.mxu0 0
      %3362 = vmatprep.subr.bf16.mxu0 0
      %3363 = vmatpush2.bf16.msra.mxu0 0
      %3364 = vmatprep.mubr.bf16.mxu0 0
      %3365 = vmatmul.mubr.bf16.gmra.mxu0 %v3186
      %v3366 = vpop.f32.mrf.mxu0
      %v3367 = vadd.f32 0.0, %v3366
      %v3368 = vpop.f32.mrf.mxu0
      %v3369 = vpop.f32.mrf.mxu0
      %v3370 = vpop.f32.mrf.mxu0
      %3371 = vdwg.mxu0
      %v3372 = vadd.f32 %v3155, %v3244
      %v3373 = vadd.f32 %v3156, %v3246
      %v3374 = vadd.f32 %v3157, %v3285
      %v3375 = vadd.f32 %v3158, %v3287
      %v3376 = vadd.f32 %v3159, %v3326
      %v3377 = vadd.f32 %v3160, %v3328
      %v3378 = vadd.f32 %v3161, %v3367
      %3379 = vrot.lane.b32.xlu0 %v340, 72
      %v3380 = vpop.permute.xlu0 %3379
      %3381 = vrot.lane.b32.xlu0 %v352, 16
      %v3382 = vpop.permute.xlu0 %3381
      %3383 = vrot.lane.b32.xlu0 %v360, 16
      %v3384 = vpop.permute.xlu0 %3383
      %3385 = vrot.lane.b32.xlu0 %v359, 16
      %v3386 = vpop.permute.xlu0 %3385
      %3387 = vrot.lane.b32.xlu0 %v361, 16
      %v3388 = vpop.permute.xlu0 %3387
      %3389 = vrot.lane.b32.xlu0 %v369, 16
      %v3390 = vpop.permute.xlu0 %3389
      %3391 = vrot.lane.b32.xlu0 %v377, 16
      %v3392 = vpop.permute.xlu0 %3391
      %3393 = vrot.lane.b32.xlu0 %v376, 16
      %v3394 = vpop.permute.xlu0 %3393
      %vm3395 = vcmask 130048
      %v3396 = vsel %vm3395, %v3382, %v3384
      %v3397 = vsel %vm3395, %v3384, %v3386
      %v3398 = vsel %vm3395, %v3386, %v3388
      %v3399 = vsel %vm3395, %v3388, %v3390
      %v3400 = vsel %vm3395, %v3390, %v3392
      %v3401 = vsel %vm3395, %v3392, %v3394
      %v3403 = vsel %vm399, %v3380, 0
      %v3406 = vsel %vm403, %v3396, 0
      %v3409 = vsel %vm403, %v3397, 0
      %v3412 = vsel %vm403, %v3398, 0
      %v3415 = vsel %vm403, %v3399, 0
      %v3418 = vsel %vm403, %v3400, 0
      %v3421 = vsel %vm403, %v3401, 0
      %v3424 = vsel %vm403, %v3394, 0
      %3426 = vmatprep.subr.bf16.mxu0 0
      %3427 = vmatpush1.bf16.msra.mxu0 0
      %3428 = vmatprep.subr.bf16.mxu0 0
      %3429 = vmatpush1.bf16.msra.mxu0 0
      %3430 = vmatprep.subr.bf16.mxu0 0
      %3431 = vmatpush1.bf16.msra.mxu0 0
      %3432 = vmatprep.subr.bf16.mxu0 0
      %3433 = vmatpush1.bf16.msra.mxu0 0
      %3434 = vmatprep.subr.bf16.mxu0 0
      %3435 = vmatpush1.bf16.msra.mxu0 0
      %3436 = vmatprep.subr.bf16.mxu0 0
      %3437 = vmatpush1.bf16.msra.mxu0 0
      %3438 = vmatprep.subr.bf16.mxu0 0
      %3439 = vmatpush1.bf16.msra.mxu0 0
      %3440 = vmatprep.subr.bf16.mxu0 %v3409
      %3441 = vmatpush1.bf16.msra.mxu0 %v3406
      %3442 = vmatprep.subr.bf16.mxu0 0
      %3443 = vmatpush2.bf16.msra.mxu0 0
      %3444 = vmatprep.subr.bf16.mxu0 0
      %3445 = vmatpush2.bf16.msra.mxu0 0
      %3446 = vmatprep.subr.bf16.mxu0 0
      %3447 = vmatpush2.bf16.msra.mxu0 0
      %3448 = vmatprep.subr.bf16.mxu0 0
      %3449 = vmatpush2.bf16.msra.mxu0 0
      %3450 = vmatprep.subr.bf16.mxu0 0
      %3451 = vmatpush2.bf16.msra.mxu0 0
      %3452 = vmatprep.subr.bf16.mxu0 0
      %3453 = vmatpush2.bf16.msra.mxu0 0
      %3454 = vmatprep.subr.bf16.mxu0 0
      %3455 = vmatpush2.bf16.msra.mxu0 0
      %3456 = vmatprep.subr.bf16.mxu0 0
      %3457 = vmatpush2.bf16.msra.mxu0 0
      %3458 = vmatprep.mubr.bf16.mxu0 0
      %3459 = vmatmul.mubr.bf16.gmra.mxu0 %v3403
      %v3460 = vpop.f32.mrf.mxu0
      %v3461 = vadd.f32 0.0, %v3460
      %v3462 = vpop.f32.mrf.mxu0
      %v3463 = vadd.f32 0.0, %v3462
      %v3464 = vpop.f32.mrf.mxu0
      %v3465 = vpop.f32.mrf.mxu0
      %3466 = vdwg.mxu0
      %3467 = vmatprep.subr.bf16.mxu0 0
      %3468 = vmatpush1.bf16.msra.mxu0 0
      %3469 = vmatprep.subr.bf16.mxu0 0
      %3470 = vmatpush1.bf16.msra.mxu0 0
      %3471 = vmatprep.subr.bf16.mxu0 0
      %3472 = vmatpush1.bf16.msra.mxu0 0
      %3473 = vmatprep.subr.bf16.mxu0 0
      %3474 = vmatpush1.bf16.msra.mxu0 0
      %3475 = vmatprep.subr.bf16.mxu0 0
      %3476 = vmatpush1.bf16.msra.mxu0 0
      %3477 = vmatprep.subr.bf16.mxu0 0
      %3478 = vmatpush1.bf16.msra.mxu0 0
      %3479 = vmatprep.subr.bf16.mxu0 0
      %3480 = vmatpush1.bf16.msra.mxu0 0
      %3481 = vmatprep.subr.bf16.mxu0 %v3415
      %3482 = vmatpush1.bf16.msra.mxu0 %v3412
      %3483 = vmatprep.subr.bf16.mxu0 0
      %3484 = vmatpush2.bf16.msra.mxu0 0
      %3485 = vmatprep.subr.bf16.mxu0 0
      %3486 = vmatpush2.bf16.msra.mxu0 0
      %3487 = vmatprep.subr.bf16.mxu0 0
      %3488 = vmatpush2.bf16.msra.mxu0 0
      %3489 = vmatprep.subr.bf16.mxu0 0
      %3490 = vmatpush2.bf16.msra.mxu0 0
      %3491 = vmatprep.subr.bf16.mxu0 0
      %3492 = vmatpush2.bf16.msra.mxu0 0
      %3493 = vmatprep.subr.bf16.mxu0 0
      %3494 = vmatpush2.bf16.msra.mxu0 0
      %3495 = vmatprep.subr.bf16.mxu0 0
      %3496 = vmatpush2.bf16.msra.mxu0 0
      %3497 = vmatprep.subr.bf16.mxu0 0
      %3498 = vmatpush2.bf16.msra.mxu0 0
      %3499 = vmatprep.mubr.bf16.mxu0 0
      %3500 = vmatmul.mubr.bf16.gmra.mxu0 %v3403
      %v3501 = vpop.f32.mrf.mxu0
      %v3502 = vadd.f32 0.0, %v3501
      %v3503 = vpop.f32.mrf.mxu0
      %v3504 = vadd.f32 0.0, %v3503
      %v3505 = vpop.f32.mrf.mxu0
      %v3506 = vpop.f32.mrf.mxu0
      %3507 = vdwg.mxu0
      %3508 = vmatprep.subr.bf16.mxu0 0
      %3509 = vmatpush1.bf16.msra.mxu0 0
      %3510 = vmatprep.subr.bf16.mxu0 0
      %3511 = vmatpush1.bf16.msra.mxu0 0
      %3512 = vmatprep.subr.bf16.mxu0 0
      %3513 = vmatpush1.bf16.msra.mxu0 0
      %3514 = vmatprep.subr.bf16.mxu0 0
      %3515 = vmatpush1.bf16.msra.mxu0 0
      %3516 = vmatprep.subr.bf16.mxu0 0
      %3517 = vmatpush1.bf16.msra.mxu0 0
      %3518 = vmatprep.subr.bf16.mxu0 0
      %3519 = vmatpush1.bf16.msra.mxu0 0
      %3520 = vmatprep.subr.bf16.mxu0 0
      %3521 = vmatpush1.bf16.msra.mxu0 0
      %3522 = vmatprep.subr.bf16.mxu0 %v3421
      %3523 = vmatpush1.bf16.msra.mxu0 %v3418
      %3524 = vmatprep.subr.bf16.mxu0 0
      %3525 = vmatpush2.bf16.msra.mxu0 0
      %3526 = vmatprep.subr.bf16.mxu0 0
      %3527 = vmatpush2.bf16.msra.mxu0 0
      %3528 = vmatprep.subr.bf16.mxu0 0
      %3529 = vmatpush2.bf16.msra.mxu0 0
      %3530 = vmatprep.subr.bf16.mxu0 0
      %3531 = vmatpush2.bf16.msra.mxu0 0
      %3532 = vmatprep.subr.bf16.mxu0 0
      %3533 = vmatpush2.bf16.msra.mxu0 0
      %3534 = vmatprep.subr.bf16.mxu0 0
      %3535 = vmatpush2.bf16.msra.mxu0 0
      %3536 = vmatprep.subr.bf16.mxu0 0
      %3537 = vmatpush2.bf16.msra.mxu0 0
      %3538 = vmatprep.subr.bf16.mxu0 0
      %3539 = vmatpush2.bf16.msra.mxu0 0
      %3540 = vmatprep.mubr.bf16.mxu0 0
      %3541 = vmatmul.mubr.bf16.gmra.mxu0 %v3403
      %v3542 = vpop.f32.mrf.mxu0
      %v3543 = vadd.f32 0.0, %v3542
      %v3544 = vpop.f32.mrf.mxu0
      %v3545 = vadd.f32 0.0, %v3544
      %v3546 = vpop.f32.mrf.mxu0
      %v3547 = vpop.f32.mrf.mxu0
      %3548 = vdwg.mxu0
      %3549 = vmatprep.subr.bf16.mxu0 0
      %3550 = vmatpush1.bf16.msra.mxu0 0
      %3551 = vmatprep.subr.bf16.mxu0 0
      %3552 = vmatpush1.bf16.msra.mxu0 0
      %3553 = vmatprep.subr.bf16.mxu0 0
      %3554 = vmatpush1.bf16.msra.mxu0 0
      %3555 = vmatprep.subr.bf16.mxu0 0
      %3556 = vmatpush1.bf16.msra.mxu0 0
      %3557 = vmatprep.subr.bf16.mxu0 0
      %3558 = vmatpush1.bf16.msra.mxu0 0
      %3559 = vmatprep.subr.bf16.mxu0 0
      %3560 = vmatpush1.bf16.msra.mxu0 0
      %3561 = vmatprep.subr.bf16.mxu0 0
      %3562 = vmatpush1.bf16.msra.mxu0 0
      %3563 = vmatprep.subr.bf16.mxu0 0
      %3564 = vmatpush1.bf16.msra.mxu0 %v3424
      %3565 = vmatprep.subr.bf16.mxu0 0
      %3566 = vmatpush2.bf16.msra.mxu0 0
      %3567 = vmatprep.subr.bf16.mxu0 0
      %3568 = vmatpush2.bf16.msra.mxu0 0
      %3569 = vmatprep.subr.bf16.mxu0 0
      %3570 = vmatpush2.bf16.msra.mxu0 0
      %3571 = vmatprep.subr.bf16.mxu0 0
      %3572 = vmatpush2.bf16.msra.mxu0 0
      %3573 = vmatprep.subr.bf16.mxu0 0
      %3574 = vmatpush2.bf16.msra.mxu0 0
      %3575 = vmatprep.subr.bf16.mxu0 0
      %3576 = vmatpush2.bf16.msra.mxu0 0
      %3577 = vmatprep.subr.bf16.mxu0 0
      %3578 = vmatpush2.bf16.msra.mxu0 0
      %3579 = vmatprep.subr.bf16.mxu0 0
      %3580 = vmatpush2.bf16.msra.mxu0 0
      %3581 = vmatprep.mubr.bf16.mxu0 0
      %3582 = vmatmul.mubr.bf16.gmra.mxu0 %v3403
      %v3583 = vpop.f32.mrf.mxu0
      %v3584 = vadd.f32 0.0, %v3583
      %v3585 = vpop.f32.mrf.mxu0
      %v3586 = vpop.f32.mrf.mxu0
      %v3587 = vpop.f32.mrf.mxu0
      %3588 = vdwg.mxu0
      %v3589 = vadd.f32 %v3372, %v3461
      %v3590 = vadd.f32 %v3373, %v3463
      %v3591 = vadd.f32 %v3374, %v3502
      %v3592 = vadd.f32 %v3375, %v3504
      %v3593 = vadd.f32 %v3376, %v3543
      %v3594 = vadd.f32 %v3377, %v3545
      %v3595 = vadd.f32 %v3378, %v3584
      %3596 = vrot.lane.b32.xlu0 %v340, 68
      %v3597 = vpop.permute.xlu0 %3596
      %v3598 = vcombine.high %v376, %v376
      %3599 = vrot.lane.b32.xlu0 %v352, 8
      %v3600 = vpop.permute.xlu0 %3599
      %3601 = vrot.lane.b32.xlu0 %v360, 8
      %v3602 = vpop.permute.xlu0 %3601
      %3603 = vrot.lane.b32.xlu0 %v359, 8
      %v3604 = vpop.permute.xlu0 %3603
      %3605 = vrot.lane.b32.xlu0 %v361, 8
      %v3606 = vpop.permute.xlu0 %3605
      %3607 = vrot.lane.b32.xlu0 %v369, 8
      %v3608 = vpop.permute.xlu0 %3607
      %3609 = vrot.lane.b32.xlu0 %v377, 8
      %v3610 = vpop.permute.xlu0 %3609
      %3611 = vrot.lane.b32.xlu0 %v376, 8
      %v3612 = vpop.permute.xlu0 %3611
      %3613 = vrot.lane.b32.xlu0 %v3598, 8
      %v3614 = vpop.permute.xlu0 %3613
      %vm3615 = vcmask 64512
      %v3616 = vsel %vm3615, %v3600, %v3602
      %v3617 = vsel %vm3615, %v3602, %v3604
      %v3618 = vsel %vm3615, %v3604, %v3606
      %v3619 = vsel %vm3615, %v3606, %v3608
      %v3620 = vsel %vm3615, %v3608, %v3610
      %v3621 = vsel %vm3615, %v3610, %v3612
      %v3622 = vsel %vm3615, %v3612, %v3614
      %v3624 = vsel %vm399, %v3597, 0
      %v3627 = vsel %vm403, %v3616, 0
      %v3630 = vsel %vm403, %v3617, 0
      %v3633 = vsel %vm403, %v3618, 0
      %v3636 = vsel %vm403, %v3619, 0
      %v3639 = vsel %vm403, %v3620, 0
      %v3642 = vsel %vm403, %v3621, 0
      %v3645 = vsel %vm403, %v3622, 0
      %3647 = vmatprep.subr.bf16.mxu0 0
      %3648 = vmatpush1.bf16.msra.mxu0 0
      %3649 = vmatprep.subr.bf16.mxu0 0
      %3650 = vmatpush1.bf16.msra.mxu0 0
      %3651 = vmatprep.subr.bf16.mxu0 0
      %3652 = vmatpush1.bf16.msra.mxu0 0
      %3653 = vmatprep.subr.bf16.mxu0 0
      %3654 = vmatpush1.bf16.msra.mxu0 0
      %3655 = vmatprep.subr.bf16.mxu0 0
      %3656 = vmatpush1.bf16.msra.mxu0 0
      %3657 = vmatprep.subr.bf16.mxu0 0
      %3658 = vmatpush1.bf16.msra.mxu0 0
      %3659 = vmatprep.subr.bf16.mxu0 0
      %3660 = vmatpush1.bf16.msra.mxu0 0
      %3661 = vmatprep.subr.bf16.mxu0 %v3630
      %3662 = vmatpush1.bf16.msra.mxu0 %v3627
      %3663 = vmatprep.subr.bf16.mxu0 0
      %3664 = vmatpush2.bf16.msra.mxu0 0
      %3665 = vmatprep.subr.bf16.mxu0 0
      %3666 = vmatpush2.bf16.msra.mxu0 0
      %3667 = vmatprep.subr.bf16.mxu0 0
      %3668 = vmatpush2.bf16.msra.mxu0 0
      %3669 = vmatprep.subr.bf16.mxu0 0
      %3670 = vmatpush2.bf16.msra.mxu0 0
      %3671 = vmatprep.subr.bf16.mxu0 0
      %3672 = vmatpush2.bf16.msra.mxu0 0
      %3673 = vmatprep.subr.bf16.mxu0 0
      %3674 = vmatpush2.bf16.msra.mxu0 0
      %3675 = vmatprep.subr.bf16.mxu0 0
      %3676 = vmatpush2.bf16.msra.mxu0 0
      %3677 = vmatprep.subr.bf16.mxu0 0
      %3678 = vmatpush2.bf16.msra.mxu0 0
      %3679 = vmatprep.mubr.bf16.mxu0 0
      %3680 = vmatmul.mubr.bf16.gmra.mxu0 %v3624
      %v3681 = vpop.f32.mrf.mxu0
      %v3682 = vadd.f32 0.0, %v3681
      %v3683 = vpop.f32.mrf.mxu0
      %v3684 = vadd.f32 0.0, %v3683
      %v3685 = vpop.f32.mrf.mxu0
      %v3686 = vpop.f32.mrf.mxu0
      %3687 = vdwg.mxu0
      %3688 = vmatprep.subr.bf16.mxu0 0
      %3689 = vmatpush1.bf16.msra.mxu0 0
      %3690 = vmatprep.subr.bf16.mxu0 0
      %3691 = vmatpush1.bf16.msra.mxu0 0
      %3692 = vmatprep.subr.bf16.mxu0 0
      %3693 = vmatpush1.bf16.msra.mxu0 0
      %3694 = vmatprep.subr.bf16.mxu0 0
      %3695 = vmatpush1.bf16.msra.mxu0 0
      %3696 = vmatprep.subr.bf16.mxu0 0
      %3697 = vmatpush1.bf16.msra.mxu0 0
      %3698 = vmatprep.subr.bf16.mxu0 0
      %3699 = vmatpush1.bf16.msra.mxu0 0
      %3700 = vmatprep.subr.bf16.mxu0 0
      %3701 = vmatpush1.bf16.msra.mxu0 0
      %3702 = vmatprep.subr.bf16.mxu0 %v3636
      %3703 = vmatpush1.bf16.msra.mxu0 %v3633
      %3704 = vmatprep.subr.bf16.mxu0 0
      %3705 = vmatpush2.bf16.msra.mxu0 0
      %3706 = vmatprep.subr.bf16.mxu0 0
      %3707 = vmatpush2.bf16.msra.mxu0 0
      %3708 = vmatprep.subr.bf16.mxu0 0
      %3709 = vmatpush2.bf16.msra.mxu0 0
      %3710 = vmatprep.subr.bf16.mxu0 0
      %3711 = vmatpush2.bf16.msra.mxu0 0
      %3712 = vmatprep.subr.bf16.mxu0 0
      %3713 = vmatpush2.bf16.msra.mxu0 0
      %3714 = vmatprep.subr.bf16.mxu0 0
      %3715 = vmatpush2.bf16.msra.mxu0 0
      %3716 = vmatprep.subr.bf16.mxu0 0
      %3717 = vmatpush2.bf16.msra.mxu0 0
      %3718 = vmatprep.subr.bf16.mxu0 0
      %3719 = vmatpush2.bf16.msra.mxu0 0
      %3720 = vmatprep.mubr.bf16.mxu0 0
      %3721 = vmatmul.mubr.bf16.gmra.mxu0 %v3624
      %v3722 = vpop.f32.mrf.mxu0
      %v3723 = vadd.f32 0.0, %v3722
      %v3724 = vpop.f32.mrf.mxu0
      %v3725 = vadd.f32 0.0, %v3724
      %v3726 = vpop.f32.mrf.mxu0
      %v3727 = vpop.f32.mrf.mxu0
      %3728 = vdwg.mxu0
      %3729 = vmatprep.subr.bf16.mxu0 0
      %3730 = vmatpush1.bf16.msra.mxu0 0
      %3731 = vmatprep.subr.bf16.mxu0 0
      %3732 = vmatpush1.bf16.msra.mxu0 0
      %3733 = vmatprep.subr.bf16.mxu0 0
      %3734 = vmatpush1.bf16.msra.mxu0 0
      %3735 = vmatprep.subr.bf16.mxu0 0
      %3736 = vmatpush1.bf16.msra.mxu0 0
      %3737 = vmatprep.subr.bf16.mxu0 0
      %3738 = vmatpush1.bf16.msra.mxu0 0
      %3739 = vmatprep.subr.bf16.mxu0 0
      %3740 = vmatpush1.bf16.msra.mxu0 0
      %3741 = vmatprep.subr.bf16.mxu0 0
      %3742 = vmatpush1.bf16.msra.mxu0 0
      %3743 = vmatprep.subr.bf16.mxu0 %v3642
      %3744 = vmatpush1.bf16.msra.mxu0 %v3639
      %3745 = vmatprep.subr.bf16.mxu0 0
      %3746 = vmatpush2.bf16.msra.mxu0 0
      %3747 = vmatprep.subr.bf16.mxu0 0
      %3748 = vmatpush2.bf16.msra.mxu0 0
      %3749 = vmatprep.subr.bf16.mxu0 0
      %3750 = vmatpush2.bf16.msra.mxu0 0
      %3751 = vmatprep.subr.bf16.mxu0 0
      %3752 = vmatpush2.bf16.msra.mxu0 0
      %3753 = vmatprep.subr.bf16.mxu0 0
      %3754 = vmatpush2.bf16.msra.mxu0 0
      %3755 = vmatprep.subr.bf16.mxu0 0
      %3756 = vmatpush2.bf16.msra.mxu0 0
      %3757 = vmatprep.subr.bf16.mxu0 0
      %3758 = vmatpush2.bf16.msra.mxu0 0
      %3759 = vmatprep.subr.bf16.mxu0 0
      %3760 = vmatpush2.bf16.msra.mxu0 0
      %3761 = vmatprep.mubr.bf16.mxu0 0
      %3762 = vmatmul.mubr.bf16.gmra.mxu0 %v3624
      %v3763 = vpop.f32.mrf.mxu0
      %v3764 = vadd.f32 0.0, %v3763
      %v3765 = vpop.f32.mrf.mxu0
      %v3766 = vadd.f32 0.0, %v3765
      %v3767 = vpop.f32.mrf.mxu0
      %v3768 = vpop.f32.mrf.mxu0
      %3769 = vdwg.mxu0
      %3770 = vmatprep.subr.bf16.mxu0 0
      %3771 = vmatpush1.bf16.msra.mxu0 0
      %3772 = vmatprep.subr.bf16.mxu0 0
      %3773 = vmatpush1.bf16.msra.mxu0 0
      %3774 = vmatprep.subr.bf16.mxu0 0
      %3775 = vmatpush1.bf16.msra.mxu0 0
      %3776 = vmatprep.subr.bf16.mxu0 0
      %3777 = vmatpush1.bf16.msra.mxu0 0
      %3778 = vmatprep.subr.bf16.mxu0 0
      %3779 = vmatpush1.bf16.msra.mxu0 0
      %3780 = vmatprep.subr.bf16.mxu0 0
      %3781 = vmatpush1.bf16.msra.mxu0 0
      %3782 = vmatprep.subr.bf16.mxu0 0
      %3783 = vmatpush1.bf16.msra.mxu0 0
      %3784 = vmatprep.subr.bf16.mxu0 0
      %3785 = vmatpush1.bf16.msra.mxu0 %v3645
      %3786 = vmatprep.subr.bf16.mxu0 0
      %3787 = vmatpush2.bf16.msra.mxu0 0
      %3788 = vmatprep.subr.bf16.mxu0 0
      %3789 = vmatpush2.bf16.msra.mxu0 0
      %3790 = vmatprep.subr.bf16.mxu0 0
      %3791 = vmatpush2.bf16.msra.mxu0 0
      %3792 = vmatprep.subr.bf16.mxu0 0
      %3793 = vmatpush2.bf16.msra.mxu0 0
      %3794 = vmatprep.subr.bf16.mxu0 0
      %3795 = vmatpush2.bf16.msra.mxu0 0
      %3796 = vmatprep.subr.bf16.mxu0 0
      %3797 = vmatpush2.bf16.msra.mxu0 0
      %3798 = vmatprep.subr.bf16.mxu0 0
      %3799 = vmatpush2.bf16.msra.mxu0 0
      %3800 = vmatprep.subr.bf16.mxu0 0
      %3801 = vmatpush2.bf16.msra.mxu0 0
      %3802 = vmatprep.mubr.bf16.mxu0 0
      %3803 = vmatmul.mubr.bf16.gmra.mxu0 %v3624
      %v3804 = vpop.f32.mrf.mxu0
      %v3805 = vadd.f32 0.0, %v3804
      %v3806 = vpop.f32.mrf.mxu0
      %v3807 = vpop.f32.mrf.mxu0
      %v3808 = vpop.f32.mrf.mxu0
      %3809 = vdwg.mxu0
      %v3810 = vadd.f32 %v3589, %v3682
      %v3811 = vadd.f32 %v3590, %v3684
      %v3812 = vadd.f32 %v3591, %v3723
      %v3813 = vadd.f32 %v3592, %v3725
      %v3814 = vadd.f32 %v3593, %v3764
      %v3815 = vadd.f32 %v3594, %v3766
      %v3816 = vadd.f32 %v3595, %v3805
      %3817 = vrot.lane.b32.xlu0 %v340, 64
      %v3818 = vpop.permute.xlu0 %3817
      %3819 = vrot.lane.b32.xlu0 %v352, 7
      %v3820 = vpop.permute.xlu0 %3819
      %3821 = vrot.lane.b32.xlu0 %v360, 7
      %v3822 = vpop.permute.xlu0 %3821
      %3823 = vrot.lane.b32.xlu0 %v359, 7
      %v3824 = vpop.permute.xlu0 %3823
      %3825 = vrot.lane.b32.xlu0 %v361, 7
      %v3826 = vpop.permute.xlu0 %3825
      %3827 = vrot.lane.b32.xlu0 %v369, 7
      %v3828 = vpop.permute.xlu0 %3827
      %3829 = vrot.lane.b32.xlu0 %v377, 7
      %v3830 = vpop.permute.xlu0 %3829
      %3831 = vrot.lane.b32.xlu0 %v376, 7
      %v3832 = vpop.permute.xlu0 %3831
      %3833 = vrot.lane.b32.xlu0 %v3598, 7
      %v3834 = vpop.permute.xlu0 %3833
      %vm3835 = vcmask 56320
      %v3836 = vsel %vm3835, %v3820, %v3822
      %v3837 = vsel %vm3835, %v3822, %v3824
      %v3838 = vsel %vm3835, %v3824, %v3826
      %v3839 = vsel %vm3835, %v3826, %v3828
      %v3840 = vsel %vm3835, %v3828, %v3830
      %v3841 = vsel %vm3835, %v3830, %v3832
      %v3842 = vsel %vm3835, %v3832, %v3834
      %v3844 = vsel %vm399, %v3818, 0
      %v3847 = vsel %vm403, %v3836, 0
      %v3850 = vsel %vm403, %v3837, 0
      %v3853 = vsel %vm403, %v3838, 0
      %v3856 = vsel %vm403, %v3839, 0
      %v3859 = vsel %vm403, %v3840, 0
      %v3862 = vsel %vm403, %v3841, 0
      %v3865 = vsel %vm403, %v3842, 0
      %3867 = vmatprep.subr.bf16.mxu0 0
      %3868 = vmatpush1.bf16.msra.mxu0 0
      %3869 = vmatprep.subr.bf16.mxu0 0
      %3870 = vmatpush1.bf16.msra.mxu0 0
      %3871 = vmatprep.subr.bf16.mxu0 0
      %3872 = vmatpush1.bf16.msra.mxu0 0
      %3873 = vmatprep.subr.bf16.mxu0 0
      %3874 = vmatpush1.bf16.msra.mxu0 0
      %3875 = vmatprep.subr.bf16.mxu0 0
      %3876 = vmatpush1.bf16.msra.mxu0 0
      %3877 = vmatprep.subr.bf16.mxu0 0
      %3878 = vmatpush1.bf16.msra.mxu0 0
      %3879 = vmatprep.subr.bf16.mxu0 0
      %3880 = vmatpush1.bf16.msra.mxu0 0
      %3881 = vmatprep.subr.bf16.mxu0 %v3850
      %3882 = vmatpush1.bf16.msra.mxu0 %v3847
      %3883 = vmatprep.subr.bf16.mxu0 0
      %3884 = vmatpush2.bf16.msra.mxu0 0
      %3885 = vmatprep.subr.bf16.mxu0 0
      %3886 = vmatpush2.bf16.msra.mxu0 0
      %3887 = vmatprep.subr.bf16.mxu0 0
      %3888 = vmatpush2.bf16.msra.mxu0 0
      %3889 = vmatprep.subr.bf16.mxu0 0
      %3890 = vmatpush2.bf16.msra.mxu0 0
      %3891 = vmatprep.subr.bf16.mxu0 0
      %3892 = vmatpush2.bf16.msra.mxu0 0
      %3893 = vmatprep.subr.bf16.mxu0 0
      %3894 = vmatpush2.bf16.msra.mxu0 0
      %3895 = vmatprep.subr.bf16.mxu0 0
      %3896 = vmatpush2.bf16.msra.mxu0 0
      %3897 = vmatprep.subr.bf16.mxu0 0
      %3898 = vmatpush2.bf16.msra.mxu0 0
      %3899 = vmatprep.mubr.bf16.mxu0 0
      %3900 = vmatmul.mubr.bf16.gmra.mxu0 %v3844
      %v3901 = vpop.f32.mrf.mxu0
      %v3902 = vadd.f32 0.0, %v3901
      %v3903 = vpop.f32.mrf.mxu0
      %v3904 = vadd.f32 0.0, %v3903
      %v3905 = vpop.f32.mrf.mxu0
      %v3906 = vpop.f32.mrf.mxu0
      %3907 = vdwg.mxu0
      %3908 = vmatprep.subr.bf16.mxu0 0
      %3909 = vmatpush1.bf16.msra.mxu0 0
      %3910 = vmatprep.subr.bf16.mxu0 0
      %3911 = vmatpush1.bf16.msra.mxu0 0
      %3912 = vmatprep.subr.bf16.mxu0 0
      %3913 = vmatpush1.bf16.msra.mxu0 0
      %3914 = vmatprep.subr.bf16.mxu0 0
      %3915 = vmatpush1.bf16.msra.mxu0 0
      %3916 = vmatprep.subr.bf16.mxu0 0
      %3917 = vmatpush1.bf16.msra.mxu0 0
      %3918 = vmatprep.subr.bf16.mxu0 0
      %3919 = vmatpush1.bf16.msra.mxu0 0
      %3920 = vmatprep.subr.bf16.mxu0 0
      %3921 = vmatpush1.bf16.msra.mxu0 0
      %3922 = vmatprep.subr.bf16.mxu0 %v3856
      %3923 = vmatpush1.bf16.msra.mxu0 %v3853
      %3924 = vmatprep.subr.bf16.mxu0 0
      %3925 = vmatpush2.bf16.msra.mxu0 0
      %3926 = vmatprep.subr.bf16.mxu0 0
      %3927 = vmatpush2.bf16.msra.mxu0 0
      %3928 = vmatprep.subr.bf16.mxu0 0
      %3929 = vmatpush2.bf16.msra.mxu0 0
      %3930 = vmatprep.subr.bf16.mxu0 0
      %3931 = vmatpush2.bf16.msra.mxu0 0
      %3932 = vmatprep.subr.bf16.mxu0 0
      %3933 = vmatpush2.bf16.msra.mxu0 0
      %3934 = vmatprep.subr.bf16.mxu0 0
      %3935 = vmatpush2.bf16.msra.mxu0 0
      %3936 = vmatprep.subr.bf16.mxu0 0
      %3937 = vmatpush2.bf16.msra.mxu0 0
      %3938 = vmatprep.subr.bf16.mxu0 0
      %3939 = vmatpush2.bf16.msra.mxu0 0
      %3940 = vmatprep.mubr.bf16.mxu0 0
      %3941 = vmatmul.mubr.bf16.gmra.mxu0 %v3844
      %v3942 = vpop.f32.mrf.mxu0
      %v3943 = vadd.f32 0.0, %v3942
      %v3944 = vpop.f32.mrf.mxu0
      %v3945 = vadd.f32 0.0, %v3944
      %v3946 = vpop.f32.mrf.mxu0
      %v3947 = vpop.f32.mrf.mxu0
      %3948 = vdwg.mxu0
      %3949 = vmatprep.subr.bf16.mxu0 0
      %3950 = vmatpush1.bf16.msra.mxu0 0
      %3951 = vmatprep.subr.bf16.mxu0 0
      %3952 = vmatpush1.bf16.msra.mxu0 0
      %3953 = vmatprep.subr.bf16.mxu0 0
      %3954 = vmatpush1.bf16.msra.mxu0 0
      %3955 = vmatprep.subr.bf16.mxu0 0
      %3956 = vmatpush1.bf16.msra.mxu0 0
      %3957 = vmatprep.subr.bf16.mxu0 0
      %3958 = vmatpush1.bf16.msra.mxu0 0
      %3959 = vmatprep.subr.bf16.mxu0 0
      %3960 = vmatpush1.bf16.msra.mxu0 0
      %3961 = vmatprep.subr.bf16.mxu0 0
      %3962 = vmatpush1.bf16.msra.mxu0 0
      %3963 = vmatprep.subr.bf16.mxu0 %v3862
      %3964 = vmatpush1.bf16.msra.mxu0 %v3859
      %3965 = vmatprep.subr.bf16.mxu0 0
      %3966 = vmatpush2.bf16.msra.mxu0 0
      %3967 = vmatprep.subr.bf16.mxu0 0
      %3968 = vmatpush2.bf16.msra.mxu0 0
      %3969 = vmatprep.subr.bf16.mxu0 0
      %3970 = vmatpush2.bf16.msra.mxu0 0
      %3971 = vmatprep.subr.bf16.mxu0 0
      %3972 = vmatpush2.bf16.msra.mxu0 0
      %3973 = vmatprep.subr.bf16.mxu0 0
      %3974 = vmatpush2.bf16.msra.mxu0 0
      %3975 = vmatprep.subr.bf16.mxu0 0
      %3976 = vmatpush2.bf16.msra.mxu0 0
      %3977 = vmatprep.subr.bf16.mxu0 0
      %3978 = vmatpush2.bf16.msra.mxu0 0
      %3979 = vmatprep.subr.bf16.mxu0 0
      %3980 = vmatpush2.bf16.msra.mxu0 0
      %3981 = vmatprep.mubr.bf16.mxu0 0
      %3982 = vmatmul.mubr.bf16.gmra.mxu0 %v3844
      %v3983 = vpop.f32.mrf.mxu0
      %v3984 = vadd.f32 0.0, %v3983
      %v3985 = vpop.f32.mrf.mxu0
      %v3986 = vadd.f32 0.0, %v3985
      %v3987 = vpop.f32.mrf.mxu0
      %v3988 = vpop.f32.mrf.mxu0
      %3989 = vdwg.mxu0
      %3990 = vmatprep.subr.bf16.mxu0 0
      %3991 = vmatpush1.bf16.msra.mxu0 0
      %3992 = vmatprep.subr.bf16.mxu0 0
      %3993 = vmatpush1.bf16.msra.mxu0 0
      %3994 = vmatprep.subr.bf16.mxu0 0
      %3995 = vmatpush1.bf16.msra.mxu0 0
      %3996 = vmatprep.subr.bf16.mxu0 0
      %3997 = vmatpush1.bf16.msra.mxu0 0
      %3998 = vmatprep.subr.bf16.mxu0 0
      %3999 = vmatpush1.bf16.msra.mxu0 0
      %4000 = vmatprep.subr.bf16.mxu0 0
      %4001 = vmatpush1.bf16.msra.mxu0 0
      %4002 = vmatprep.subr.bf16.mxu0 0
      %4003 = vmatpush1.bf16.msra.mxu0 0
      %4004 = vmatprep.subr.bf16.mxu0 0
      %4005 = vmatpush1.bf16.msra.mxu0 %v3865
      %4006 = vmatprep.subr.bf16.mxu0 0
      %4007 = vmatpush2.bf16.msra.mxu0 0
      %4008 = vmatprep.subr.bf16.mxu0 0
      %4009 = vmatpush2.bf16.msra.mxu0 0
      %4010 = vmatprep.subr.bf16.mxu0 0
      %4011 = vmatpush2.bf16.msra.mxu0 0
      %4012 = vmatprep.subr.bf16.mxu0 0
      %4013 = vmatpush2.bf16.msra.mxu0 0
      %4014 = vmatprep.subr.bf16.mxu0 0
      %4015 = vmatpush2.bf16.msra.mxu0 0
      %4016 = vmatprep.subr.bf16.mxu0 0
      %4017 = vmatpush2.bf16.msra.mxu0 0
      %4018 = vmatprep.subr.bf16.mxu0 0
      %4019 = vmatpush2.bf16.msra.mxu0 0
      %4020 = vmatprep.subr.bf16.mxu0 0
      %4021 = vmatpush2.bf16.msra.mxu0 0
      %4022 = vmatprep.mubr.bf16.mxu0 0
      %4023 = vmatmul.mubr.bf16.gmra.mxu0 %v3844
      %v4024 = vpop.f32.mrf.mxu0
      %v4025 = vadd.f32 0.0, %v4024
      %v4026 = vpop.f32.mrf.mxu0
      %v4027 = vpop.f32.mrf.mxu0
      %v4028 = vpop.f32.mrf.mxu0
      %4029 = vdwg.mxu0
      %v4030 = vadd.f32 %v3810, %v3902
      %v4031 = vadd.f32 %v3811, %v3904
      %v4032 = vadd.f32 %v3812, %v3943
      %v4033 = vadd.f32 %v3813, %v3945
      %v4034 = vadd.f32 %v3814, %v3984
      %v4035 = vadd.f32 %v3815, %v3986
      %v4036 = vadd.f32 %v3816, %v4025
      %4037 = vrot.lane.b32.xlu0 %v340, 60
      %v4038 = vpop.permute.xlu0 %4037
      %4039 = vrot.lane.b32.xlu0 %v352, 6
      %v4040 = vpop.permute.xlu0 %4039
      %4041 = vrot.lane.b32.xlu0 %v360, 6
      %v4042 = vpop.permute.xlu0 %4041
      %4043 = vrot.lane.b32.xlu0 %v359, 6
      %v4044 = vpop.permute.xlu0 %4043
      %4045 = vrot.lane.b32.xlu0 %v361, 6
      %v4046 = vpop.permute.xlu0 %4045
      %4047 = vrot.lane.b32.xlu0 %v369, 6
      %v4048 = vpop.permute.xlu0 %4047
      %4049 = vrot.lane.b32.xlu0 %v377, 6
      %v4050 = vpop.permute.xlu0 %4049
      %4051 = vrot.lane.b32.xlu0 %v376, 6
      %v4052 = vpop.permute.xlu0 %4051
      %4053 = vrot.lane.b32.xlu0 %v3598, 6
      %v4054 = vpop.permute.xlu0 %4053
      %vm4055 = vcmask 48128
      %v4056 = vsel %vm4055, %v4040, %v4042
      %v4057 = vsel %vm4055, %v4042, %v4044
      %v4058 = vsel %vm4055, %v4044, %v4046
      %v4059 = vsel %vm4055, %v4046, %v4048
      %v4060 = vsel %vm4055, %v4048, %v4050
      %v4061 = vsel %vm4055, %v4050, %v4052
      %v4062 = vsel %vm4055, %v4052, %v4054
      %v4064 = vsel %vm399, %v4038, 0
      %v4067 = vsel %vm403, %v4056, 0
      %v4070 = vsel %vm403, %v4057, 0
      %v4073 = vsel %vm403, %v4058, 0
      %v4076 = vsel %vm403, %v4059, 0
      %v4079 = vsel %vm403, %v4060, 0
      %v4082 = vsel %vm403, %v4061, 0
      %v4085 = vsel %vm403, %v4062, 0
      %4087 = vmatprep.subr.bf16.mxu0 0
      %4088 = vmatpush1.bf16.msra.mxu0 0
      %4089 = vmatprep.subr.bf16.mxu0 0
      %4090 = vmatpush1.bf16.msra.mxu0 0
      %4091 = vmatprep.subr.bf16.mxu0 0
      %4092 = vmatpush1.bf16.msra.mxu0 0
      %4093 = vmatprep.subr.bf16.mxu0 0
      %4094 = vmatpush1.bf16.msra.mxu0 0
      %4095 = vmatprep.subr.bf16.mxu0 0
      %4096 = vmatpush1.bf16.msra.mxu0 0
      %4097 = vmatprep.subr.bf16.mxu0 0
      %4098 = vmatpush1.bf16.msra.mxu0 0
      %4099 = vmatprep.subr.bf16.mxu0 0
      %4100 = vmatpush1.bf16.msra.mxu0 0
      %4101 = vmatprep.subr.bf16.mxu0 %v4070
      %4102 = vmatpush1.bf16.msra.mxu0 %v4067
      %4103 = vmatprep.subr.bf16.mxu0 0
      %4104 = vmatpush2.bf16.msra.mxu0 0
      %4105 = vmatprep.subr.bf16.mxu0 0
      %4106 = vmatpush2.bf16.msra.mxu0 0
      %4107 = vmatprep.subr.bf16.mxu0 0
      %4108 = vmatpush2.bf16.msra.mxu0 0
      %4109 = vmatprep.subr.bf16.mxu0 0
      %4110 = vmatpush2.bf16.msra.mxu0 0
      %4111 = vmatprep.subr.bf16.mxu0 0
      %4112 = vmatpush2.bf16.msra.mxu0 0
      %4113 = vmatprep.subr.bf16.mxu0 0
      %4114 = vmatpush2.bf16.msra.mxu0 0
      %4115 = vmatprep.subr.bf16.mxu0 0
      %4116 = vmatpush2.bf16.msra.mxu0 0
      %4117 = vmatprep.subr.bf16.mxu0 0
      %4118 = vmatpush2.bf16.msra.mxu0 0
      %4119 = vmatprep.mubr.bf16.mxu0 0
      %4120 = vmatmul.mubr.bf16.gmra.mxu0 %v4064
      %v4121 = vpop.f32.mrf.mxu0
      %v4122 = vadd.f32 0.0, %v4121
      %v4123 = vpop.f32.mrf.mxu0
      %v4124 = vadd.f32 0.0, %v4123
      %v4125 = vpop.f32.mrf.mxu0
      %v4126 = vpop.f32.mrf.mxu0
      %4127 = vdwg.mxu0
      %4128 = vmatprep.subr.bf16.mxu0 0
      %4129 = vmatpush1.bf16.msra.mxu0 0
      %4130 = vmatprep.subr.bf16.mxu0 0
      %4131 = vmatpush1.bf16.msra.mxu0 0
      %4132 = vmatprep.subr.bf16.mxu0 0
      %4133 = vmatpush1.bf16.msra.mxu0 0
      %4134 = vmatprep.subr.bf16.mxu0 0
      %4135 = vmatpush1.bf16.msra.mxu0 0
      %4136 = vmatprep.subr.bf16.mxu0 0
      %4137 = vmatpush1.bf16.msra.mxu0 0
      %4138 = vmatprep.subr.bf16.mxu0 0
      %4139 = vmatpush1.bf16.msra.mxu0 0
      %4140 = vmatprep.subr.bf16.mxu0 0
      %4141 = vmatpush1.bf16.msra.mxu0 0
      %4142 = vmatprep.subr.bf16.mxu0 %v4076
      %4143 = vmatpush1.bf16.msra.mxu0 %v4073
      %4144 = vmatprep.subr.bf16.mxu0 0
      %4145 = vmatpush2.bf16.msra.mxu0 0
      %4146 = vmatprep.subr.bf16.mxu0 0
      %4147 = vmatpush2.bf16.msra.mxu0 0
      %4148 = vmatprep.subr.bf16.mxu0 0
      %4149 = vmatpush2.bf16.msra.mxu0 0
      %4150 = vmatprep.subr.bf16.mxu0 0
      %4151 = vmatpush2.bf16.msra.mxu0 0
      %4152 = vmatprep.subr.bf16.mxu0 0
      %4153 = vmatpush2.bf16.msra.mxu0 0
      %4154 = vmatprep.subr.bf16.mxu0 0
      %4155 = vmatpush2.bf16.msra.mxu0 0
      %4156 = vmatprep.subr.bf16.mxu0 0
      %4157 = vmatpush2.bf16.msra.mxu0 0
      %4158 = vmatprep.subr.bf16.mxu0 0
      %4159 = vmatpush2.bf16.msra.mxu0 0
      %4160 = vmatprep.mubr.bf16.mxu0 0
      %4161 = vmatmul.mubr.bf16.gmra.mxu0 %v4064
      %v4162 = vpop.f32.mrf.mxu0
      %v4163 = vadd.f32 0.0, %v4162
      %v4164 = vpop.f32.mrf.mxu0
      %v4165 = vadd.f32 0.0, %v4164
      %v4166 = vpop.f32.mrf.mxu0
      %v4167 = vpop.f32.mrf.mxu0
      %4168 = vdwg.mxu0
      %4169 = vmatprep.subr.bf16.mxu0 0
      %4170 = vmatpush1.bf16.msra.mxu0 0
      %4171 = vmatprep.subr.bf16.mxu0 0
      %4172 = vmatpush1.bf16.msra.mxu0 0
      %4173 = vmatprep.subr.bf16.mxu0 0
      %4174 = vmatpush1.bf16.msra.mxu0 0
      %4175 = vmatprep.subr.bf16.mxu0 0
      %4176 = vmatpush1.bf16.msra.mxu0 0
      %4177 = vmatprep.subr.bf16.mxu0 0
      %4178 = vmatpush1.bf16.msra.mxu0 0
      %4179 = vmatprep.subr.bf16.mxu0 0
      %4180 = vmatpush1.bf16.msra.mxu0 0
      %4181 = vmatprep.subr.bf16.mxu0 0
      %4182 = vmatpush1.bf16.msra.mxu0 0
      %4183 = vmatprep.subr.bf16.mxu0 %v4082
      %4184 = vmatpush1.bf16.msra.mxu0 %v4079
      %4185 = vmatprep.subr.bf16.mxu0 0
      %4186 = vmatpush2.bf16.msra.mxu0 0
      %4187 = vmatprep.subr.bf16.mxu0 0
      %4188 = vmatpush2.bf16.msra.mxu0 0
      %4189 = vmatprep.subr.bf16.mxu0 0
      %4190 = vmatpush2.bf16.msra.mxu0 0
      %4191 = vmatprep.subr.bf16.mxu0 0
      %4192 = vmatpush2.bf16.msra.mxu0 0
      %4193 = vmatprep.subr.bf16.mxu0 0
      %4194 = vmatpush2.bf16.msra.mxu0 0
      %4195 = vmatprep.subr.bf16.mxu0 0
      %4196 = vmatpush2.bf16.msra.mxu0 0
      %4197 = vmatprep.subr.bf16.mxu0 0
      %4198 = vmatpush2.bf16.msra.mxu0 0
      %4199 = vmatprep.subr.bf16.mxu0 0
      %4200 = vmatpush2.bf16.msra.mxu0 0
      %4201 = vmatprep.mubr.bf16.mxu0 0
      %4202 = vmatmul.mubr.bf16.gmra.mxu0 %v4064
      %v4203 = vpop.f32.mrf.mxu0
      %v4204 = vadd.f32 0.0, %v4203
      %v4205 = vpop.f32.mrf.mxu0
      %v4206 = vadd.f32 0.0, %v4205
      %v4207 = vpop.f32.mrf.mxu0
      %v4208 = vpop.f32.mrf.mxu0
      %4209 = vdwg.mxu0
      %4210 = vmatprep.subr.bf16.mxu0 0
      %4211 = vmatpush1.bf16.msra.mxu0 0
      %4212 = vmatprep.subr.bf16.mxu0 0
      %4213 = vmatpush1.bf16.msra.mxu0 0
      %4214 = vmatprep.subr.bf16.mxu0 0
      %4215 = vmatpush1.bf16.msra.mxu0 0
      %4216 = vmatprep.subr.bf16.mxu0 0
      %4217 = vmatpush1.bf16.msra.mxu0 0
      %4218 = vmatprep.subr.bf16.mxu0 0
      %4219 = vmatpush1.bf16.msra.mxu0 0
      %4220 = vmatprep.subr.bf16.mxu0 0
      %4221 = vmatpush1.bf16.msra.mxu0 0
      %4222 = vmatprep.subr.bf16.mxu0 0
      %4223 = vmatpush1.bf16.msra.mxu0 0
      %4224 = vmatprep.subr.bf16.mxu0 0
      %4225 = vmatpush1.bf16.msra.mxu0 %v4085
      %4226 = vmatprep.subr.bf16.mxu0 0
      %4227 = vmatpush2.bf16.msra.mxu0 0
      %4228 = vmatprep.subr.bf16.mxu0 0
      %4229 = vmatpush2.bf16.msra.mxu0 0
      %4230 = vmatprep.subr.bf16.mxu0 0
      %4231 = vmatpush2.bf16.msra.mxu0 0
      %4232 = vmatprep.subr.bf16.mxu0 0
      %4233 = vmatpush2.bf16.msra.mxu0 0
      %4234 = vmatprep.subr.bf16.mxu0 0
      %4235 = vmatpush2.bf16.msra.mxu0 0
      %4236 = vmatprep.subr.bf16.mxu0 0
      %4237 = vmatpush2.bf16.msra.mxu0 0
      %4238 = vmatprep.subr.bf16.mxu0 0
      %4239 = vmatpush2.bf16.msra.mxu0 0
      %4240 = vmatprep.subr.bf16.mxu0 0
      %4241 = vmatpush2.bf16.msra.mxu0 0
      %4242 = vmatprep.mubr.bf16.mxu0 0
      %4243 = vmatmul.mubr.bf16.gmra.mxu0 %v4064
      %v4244 = vpop.f32.mrf.mxu0
      %v4245 = vadd.f32 0.0, %v4244
      %v4246 = vpop.f32.mrf.mxu0
      %v4247 = vpop.f32.mrf.mxu0
      %v4248 = vpop.f32.mrf.mxu0
      %4249 = vdwg.mxu0
      %v4250 = vadd.f32 %v4030, %v4122
      %v4251 = vadd.f32 %v4031, %v4124
      %v4252 = vadd.f32 %v4032, %v4163
      %v4253 = vadd.f32 %v4033, %v4165
      %v4254 = vadd.f32 %v4034, %v4204
      %v4255 = vadd.f32 %v4035, %v4206
      %v4256 = vadd.f32 %v4036, %v4245
      %4257 = vrot.lane.b32.xlu0 %v340, 56
      %v4258 = vpop.permute.xlu0 %4257
      %4259 = vrot.lane.b32.xlu0 %v360, 56
      %v4260 = vpop.permute.xlu0 %4259
      %4261 = vrot.lane.b32.xlu0 %v359, 56
      %v4262 = vpop.permute.xlu0 %4261
      %4263 = vrot.lane.b32.xlu0 %v361, 56
      %v4264 = vpop.permute.xlu0 %4263
      %4265 = vrot.lane.b32.xlu0 %v369, 56
      %v4266 = vpop.permute.xlu0 %4265
      %4267 = vrot.lane.b32.xlu0 %v377, 56
      %v4268 = vpop.permute.xlu0 %4267
      %4269 = vrot.lane.b32.xlu0 %v376, 56
      %v4270 = vpop.permute.xlu0 %4269
      %4271 = vrot.lane.b32.xlu0 %v3598, 56
      %v4272 = vpop.permute.xlu0 %4271
      %vm4273 = vcmask 457728
      %v4274 = vsel %vm4273, %v4260, %v4262
      %v4275 = vsel %vm4273, %v4262, %v4264
      %v4276 = vsel %vm4273, %v4264, %v4266
      %v4277 = vsel %vm4273, %v4266, %v4268
      %v4278 = vsel %vm4273, %v4268, %v4270
      %v4279 = vsel %vm4273, %v4270, %v4272
      %v4281 = vsel %vm399, %v4258, 0
      %v4284 = vsel %vm403, %v4274, 0
      %v4287 = vsel %vm403, %v4275, 0
      %v4290 = vsel %vm403, %v4276, 0
      %v4293 = vsel %vm403, %v4277, 0
      %v4296 = vsel %vm403, %v4278, 0
      %v4299 = vsel %vm403, %v4279, 0
      %v4302 = vsel %vm403, %v4272, 0
      %4304 = vmatprep.subr.bf16.mxu0 0
      %4305 = vmatpush1.bf16.msra.mxu0 0
      %4306 = vmatprep.subr.bf16.mxu0 0
      %4307 = vmatpush1.bf16.msra.mxu0 0
      %4308 = vmatprep.subr.bf16.mxu0 0
      %4309 = vmatpush1.bf16.msra.mxu0 0
      %4310 = vmatprep.subr.bf16.mxu0 0
      %4311 = vmatpush1.bf16.msra.mxu0 0
      %4312 = vmatprep.subr.bf16.mxu0 0
      %4313 = vmatpush1.bf16.msra.mxu0 0
      %4314 = vmatprep.subr.bf16.mxu0 0
      %4315 = vmatpush1.bf16.msra.mxu0 0
      %4316 = vmatprep.subr.bf16.mxu0 0
      %4317 = vmatpush1.bf16.msra.mxu0 0
      %4318 = vmatprep.subr.bf16.mxu0 %v4287
      %4319 = vmatpush1.bf16.msra.mxu0 %v4284
      %4320 = vmatprep.subr.bf16.mxu0 0
      %4321 = vmatpush2.bf16.msra.mxu0 0
      %4322 = vmatprep.subr.bf16.mxu0 0
      %4323 = vmatpush2.bf16.msra.mxu0 0
      %4324 = vmatprep.subr.bf16.mxu0 0
      %4325 = vmatpush2.bf16.msra.mxu0 0
      %4326 = vmatprep.subr.bf16.mxu0 0
      %4327 = vmatpush2.bf16.msra.mxu0 0
      %4328 = vmatprep.subr.bf16.mxu0 0
      %4329 = vmatpush2.bf16.msra.mxu0 0
      %4330 = vmatprep.subr.bf16.mxu0 0
      %4331 = vmatpush2.bf16.msra.mxu0 0
      %4332 = vmatprep.subr.bf16.mxu0 0
      %4333 = vmatpush2.bf16.msra.mxu0 0
      %4334 = vmatprep.subr.bf16.mxu0 0
      %4335 = vmatpush2.bf16.msra.mxu0 0
      %4336 = vmatprep.mubr.bf16.mxu0 0
      %4337 = vmatmul.mubr.bf16.gmra.mxu0 %v4281
      %v4338 = vpop.f32.mrf.mxu0
      %v4339 = vadd.f32 0.0, %v4338
      %v4340 = vpop.f32.mrf.mxu0
      %v4341 = vadd.f32 0.0, %v4340
      %v4342 = vpop.f32.mrf.mxu0
      %v4343 = vpop.f32.mrf.mxu0
      %4344 = vdwg.mxu0
      %4345 = vmatprep.subr.bf16.mxu0 0
      %4346 = vmatpush1.bf16.msra.mxu0 0
      %4347 = vmatprep.subr.bf16.mxu0 0
      %4348 = vmatpush1.bf16.msra.mxu0 0
      %4349 = vmatprep.subr.bf16.mxu0 0
      %4350 = vmatpush1.bf16.msra.mxu0 0
      %4351 = vmatprep.subr.bf16.mxu0 0
      %4352 = vmatpush1.bf16.msra.mxu0 0
      %4353 = vmatprep.subr.bf16.mxu0 0
      %4354 = vmatpush1.bf16.msra.mxu0 0
      %4355 = vmatprep.subr.bf16.mxu0 0
      %4356 = vmatpush1.bf16.msra.mxu0 0
      %4357 = vmatprep.subr.bf16.mxu0 0
      %4358 = vmatpush1.bf16.msra.mxu0 0
      %4359 = vmatprep.subr.bf16.mxu0 %v4293
      %4360 = vmatpush1.bf16.msra.mxu0 %v4290
      %4361 = vmatprep.subr.bf16.mxu0 0
      %4362 = vmatpush2.bf16.msra.mxu0 0
      %4363 = vmatprep.subr.bf16.mxu0 0
      %4364 = vmatpush2.bf16.msra.mxu0 0
      %4365 = vmatprep.subr.bf16.mxu0 0
      %4366 = vmatpush2.bf16.msra.mxu0 0
      %4367 = vmatprep.subr.bf16.mxu0 0
      %4368 = vmatpush2.bf16.msra.mxu0 0
      %4369 = vmatprep.subr.bf16.mxu0 0
      %4370 = vmatpush2.bf16.msra.mxu0 0
      %4371 = vmatprep.subr.bf16.mxu0 0
      %4372 = vmatpush2.bf16.msra.mxu0 0
      %4373 = vmatprep.subr.bf16.mxu0 0
      %4374 = vmatpush2.bf16.msra.mxu0 0
      %4375 = vmatprep.subr.bf16.mxu0 0
      %4376 = vmatpush2.bf16.msra.mxu0 0
      %4377 = vmatprep.mubr.bf16.mxu0 0
      %4378 = vmatmul.mubr.bf16.gmra.mxu0 %v4281
      %v4379 = vpop.f32.mrf.mxu0
      %v4380 = vadd.f32 0.0, %v4379
      %v4381 = vpop.f32.mrf.mxu0
      %v4382 = vadd.f32 0.0, %v4381
      %v4383 = vpop.f32.mrf.mxu0
      %v4384 = vpop.f32.mrf.mxu0
      %4385 = vdwg.mxu0
      %4386 = vmatprep.subr.bf16.mxu0 0
      %4387 = vmatpush1.bf16.msra.mxu0 0
      %4388 = vmatprep.subr.bf16.mxu0 0
      %4389 = vmatpush1.bf16.msra.mxu0 0
      %4390 = vmatprep.subr.bf16.mxu0 0
      %4391 = vmatpush1.bf16.msra.mxu0 0
      %4392 = vmatprep.subr.bf16.mxu0 0
      %4393 = vmatpush1.bf16.msra.mxu0 0
      %4394 = vmatprep.subr.bf16.mxu0 0
      %4395 = vmatpush1.bf16.msra.mxu0 0
      %4396 = vmatprep.subr.bf16.mxu0 0
      %4397 = vmatpush1.bf16.msra.mxu0 0
      %4398 = vmatprep.subr.bf16.mxu0 0
      %4399 = vmatpush1.bf16.msra.mxu0 0
      %4400 = vmatprep.subr.bf16.mxu0 %v4299
      %4401 = vmatpush1.bf16.msra.mxu0 %v4296
      %4402 = vmatprep.subr.bf16.mxu0 0
      %4403 = vmatpush2.bf16.msra.mxu0 0
      %4404 = vmatprep.subr.bf16.mxu0 0
      %4405 = vmatpush2.bf16.msra.mxu0 0
      %4406 = vmatprep.subr.bf16.mxu0 0
      %4407 = vmatpush2.bf16.msra.mxu0 0
      %4408 = vmatprep.subr.bf16.mxu0 0
      %4409 = vmatpush2.bf16.msra.mxu0 0
      %4410 = vmatprep.subr.bf16.mxu0 0
      %4411 = vmatpush2.bf16.msra.mxu0 0
      %4412 = vmatprep.subr.bf16.mxu0 0
      %4413 = vmatpush2.bf16.msra.mxu0 0
      %4414 = vmatprep.subr.bf16.mxu0 0
      %4415 = vmatpush2.bf16.msra.mxu0 0
      %4416 = vmatprep.subr.bf16.mxu0 0
      %4417 = vmatpush2.bf16.msra.mxu0 0
      %4418 = vmatprep.mubr.bf16.mxu0 0
      %4419 = vmatmul.mubr.bf16.gmra.mxu0 %v4281
      %v4420 = vpop.f32.mrf.mxu0
      %v4421 = vadd.f32 0.0, %v4420
      %v4422 = vpop.f32.mrf.mxu0
      %v4423 = vadd.f32 0.0, %v4422
      %v4424 = vpop.f32.mrf.mxu0
      %v4425 = vpop.f32.mrf.mxu0
      %4426 = vdwg.mxu0
      %4427 = vmatprep.subr.bf16.mxu0 0
      %4428 = vmatpush1.bf16.msra.mxu0 0
      %4429 = vmatprep.subr.bf16.mxu0 0
      %4430 = vmatpush1.bf16.msra.mxu0 0
      %4431 = vmatprep.subr.bf16.mxu0 0
      %4432 = vmatpush1.bf16.msra.mxu0 0
      %4433 = vmatprep.subr.bf16.mxu0 0
      %4434 = vmatpush1.bf16.msra.mxu0 0
      %4435 = vmatprep.subr.bf16.mxu0 0
      %4436 = vmatpush1.bf16.msra.mxu0 0
      %4437 = vmatprep.subr.bf16.mxu0 0
      %4438 = vmatpush1.bf16.msra.mxu0 0
      %4439 = vmatprep.subr.bf16.mxu0 0
      %4440 = vmatpush1.bf16.msra.mxu0 0
      %4441 = vmatprep.subr.bf16.mxu0 0
      %4442 = vmatpush1.bf16.msra.mxu0 %v4302
      %4443 = vmatprep.subr.bf16.mxu0 0
      %4444 = vmatpush2.bf16.msra.mxu0 0
      %4445 = vmatprep.subr.bf16.mxu0 0
      %4446 = vmatpush2.bf16.msra.mxu0 0
      %4447 = vmatprep.subr.bf16.mxu0 0
      %4448 = vmatpush2.bf16.msra.mxu0 0
      %4449 = vmatprep.subr.bf16.mxu0 0
      %4450 = vmatpush2.bf16.msra.mxu0 0
      %4451 = vmatprep.subr.bf16.mxu0 0
      %4452 = vmatpush2.bf16.msra.mxu0 0
      %4453 = vmatprep.subr.bf16.mxu0 0
      %4454 = vmatpush2.bf16.msra.mxu0 0
      %4455 = vmatprep.subr.bf16.mxu0 0
      %4456 = vmatpush2.bf16.msra.mxu0 0
      %4457 = vmatprep.subr.bf16.mxu0 0
      %4458 = vmatpush2.bf16.msra.mxu0 0
      %4459 = vmatprep.mubr.bf16.mxu0 0
      %4460 = vmatmul.mubr.bf16.gmra.mxu0 %v4281
      %v4461 = vpop.f32.mrf.mxu0
      %v4462 = vadd.f32 0.0, %v4461
      %v4463 = vpop.f32.mrf.mxu0
      %v4464 = vpop.f32.mrf.mxu0
      %v4465 = vpop.f32.mrf.mxu0
      %4466 = vdwg.mxu0
      %v4467 = vadd.f32 %v4250, %v4339
      %v4468 = vadd.f32 %v4251, %v4341
      %v4469 = vadd.f32 %v4252, %v4380
      %v4470 = vadd.f32 %v4253, %v4382
      %v4471 = vadd.f32 %v4254, %v4421
      %v4472 = vadd.f32 %v4255, %v4423
      %v4473 = vadd.f32 %v4256, %v4462
      %4474 = vrot.lane.b32.xlu0 %v340, 52
      %v4475 = vpop.permute.xlu0 %4474
      %4476 = vrot.lane.b32.xlu0 %v360, 55
      %v4477 = vpop.permute.xlu0 %4476
      %4478 = vrot.lane.b32.xlu0 %v359, 55
      %v4479 = vpop.permute.xlu0 %4478
      %4480 = vrot.lane.b32.xlu0 %v361, 55
      %v4481 = vpop.permute.xlu0 %4480
      %4482 = vrot.lane.b32.xlu0 %v369, 55
      %v4483 = vpop.permute.xlu0 %4482
      %4484 = vrot.lane.b32.xlu0 %v377, 55
      %v4485 = vpop.permute.xlu0 %4484
      %4486 = vrot.lane.b32.xlu0 %v376, 55
      %v4487 = vpop.permute.xlu0 %4486
      %4488 = vrot.lane.b32.xlu0 %v3598, 55
      %v4489 = vpop.permute.xlu0 %4488
      %vm4490 = vcmask 449536
      %v4491 = vsel %vm4490, %v4477, %v4479
      %v4492 = vsel %vm4490, %v4479, %v4481
      %v4493 = vsel %vm4490, %v4481, %v4483
      %v4494 = vsel %vm4490, %v4483, %v4485
      %v4495 = vsel %vm4490, %v4485, %v4487
      %v4496 = vsel %vm4490, %v4487, %v4489
      %v4498 = vsel %vm399, %v4475, 0
      %v4501 = vsel %vm403, %v4491, 0
      %v4504 = vsel %vm403, %v4492, 0
      %v4507 = vsel %vm403, %v4493, 0
      %v4510 = vsel %vm403, %v4494, 0
      %v4513 = vsel %vm403, %v4495, 0
      %v4516 = vsel %vm403, %v4496, 0
      %v4519 = vsel %vm403, %v4489, 0
      %4521 = vmatprep.subr.bf16.mxu0 0
      %4522 = vmatpush1.bf16.msra.mxu0 0
      %4523 = vmatprep.subr.bf16.mxu0 0
      %4524 = vmatpush1.bf16.msra.mxu0 0
      %4525 = vmatprep.subr.bf16.mxu0 0
      %4526 = vmatpush1.bf16.msra.mxu0 0
      %4527 = vmatprep.subr.bf16.mxu0 0
      %4528 = vmatpush1.bf16.msra.mxu0 0
      %4529 = vmatprep.subr.bf16.mxu0 0
      %4530 = vmatpush1.bf16.msra.mxu0 0
      %4531 = vmatprep.subr.bf16.mxu0 0
      %4532 = vmatpush1.bf16.msra.mxu0 0
      %4533 = vmatprep.subr.bf16.mxu0 0
      %4534 = vmatpush1.bf16.msra.mxu0 0
      %4535 = vmatprep.subr.bf16.mxu0 %v4504
      %4536 = vmatpush1.bf16.msra.mxu0 %v4501
      %4537 = vmatprep.subr.bf16.mxu0 0
      %4538 = vmatpush2.bf16.msra.mxu0 0
      %4539 = vmatprep.subr.bf16.mxu0 0
      %4540 = vmatpush2.bf16.msra.mxu0 0
      %4541 = vmatprep.subr.bf16.mxu0 0
      %4542 = vmatpush2.bf16.msra.mxu0 0
      %4543 = vmatprep.subr.bf16.mxu0 0
      %4544 = vmatpush2.bf16.msra.mxu0 0
      %4545 = vmatprep.subr.bf16.mxu0 0
      %4546 = vmatpush2.bf16.msra.mxu0 0
      %4547 = vmatprep.subr.bf16.mxu0 0
      %4548 = vmatpush2.bf16.msra.mxu0 0
      %4549 = vmatprep.subr.bf16.mxu0 0
      %4550 = vmatpush2.bf16.msra.mxu0 0
      %4551 = vmatprep.subr.bf16.mxu0 0
      %4552 = vmatpush2.bf16.msra.mxu0 0
      %4553 = vmatprep.mubr.bf16.mxu0 0
      %4554 = vmatmul.mubr.bf16.gmra.mxu0 %v4498
      %v4555 = vpop.f32.mrf.mxu0
      %v4556 = vadd.f32 0.0, %v4555
      %v4557 = vpop.f32.mrf.mxu0
      %v4558 = vadd.f32 0.0, %v4557
      %v4559 = vpop.f32.mrf.mxu0
      %v4560 = vpop.f32.mrf.mxu0
      %4561 = vdwg.mxu0
      %4562 = vmatprep.subr.bf16.mxu0 0
      %4563 = vmatpush1.bf16.msra.mxu0 0
      %4564 = vmatprep.subr.bf16.mxu0 0
      %4565 = vmatpush1.bf16.msra.mxu0 0
      %4566 = vmatprep.subr.bf16.mxu0 0
      %4567 = vmatpush1.bf16.msra.mxu0 0
      %4568 = vmatprep.subr.bf16.mxu0 0
      %4569 = vmatpush1.bf16.msra.mxu0 0
      %4570 = vmatprep.subr.bf16.mxu0 0
      %4571 = vmatpush1.bf16.msra.mxu0 0
      %4572 = vmatprep.subr.bf16.mxu0 0
      %4573 = vmatpush1.bf16.msra.mxu0 0
      %4574 = vmatprep.subr.bf16.mxu0 0
      %4575 = vmatpush1.bf16.msra.mxu0 0
      %4576 = vmatprep.subr.bf16.mxu0 %v4510
      %4577 = vmatpush1.bf16.msra.mxu0 %v4507
      %4578 = vmatprep.subr.bf16.mxu0 0
      %4579 = vmatpush2.bf16.msra.mxu0 0
      %4580 = vmatprep.subr.bf16.mxu0 0
      %4581 = vmatpush2.bf16.msra.mxu0 0
      %4582 = vmatprep.subr.bf16.mxu0 0
      %4583 = vmatpush2.bf16.msra.mxu0 0
      %4584 = vmatprep.subr.bf16.mxu0 0
      %4585 = vmatpush2.bf16.msra.mxu0 0
      %4586 = vmatprep.subr.bf16.mxu0 0
      %4587 = vmatpush2.bf16.msra.mxu0 0
      %4588 = vmatprep.subr.bf16.mxu0 0
      %4589 = vmatpush2.bf16.msra.mxu0 0
      %4590 = vmatprep.subr.bf16.mxu0 0
      %4591 = vmatpush2.bf16.msra.mxu0 0
      %4592 = vmatprep.subr.bf16.mxu0 0
      %4593 = vmatpush2.bf16.msra.mxu0 0
      %4594 = vmatprep.mubr.bf16.mxu0 0
      %4595 = vmatmul.mubr.bf16.gmra.mxu0 %v4498
      %v4596 = vpop.f32.mrf.mxu0
      %v4597 = vadd.f32 0.0, %v4596
      %v4598 = vpop.f32.mrf.mxu0
      %v4599 = vadd.f32 0.0, %v4598
      %v4600 = vpop.f32.mrf.mxu0
      %v4601 = vpop.f32.mrf.mxu0
      %4602 = vdwg.mxu0
      %4603 = vmatprep.subr.bf16.mxu0 0
      %4604 = vmatpush1.bf16.msra.mxu0 0
      %4605 = vmatprep.subr.bf16.mxu0 0
      %4606 = vmatpush1.bf16.msra.mxu0 0
      %4607 = vmatprep.subr.bf16.mxu0 0
      %4608 = vmatpush1.bf16.msra.mxu0 0
      %4609 = vmatprep.subr.bf16.mxu0 0
      %4610 = vmatpush1.bf16.msra.mxu0 0
      %4611 = vmatprep.subr.bf16.mxu0 0
      %4612 = vmatpush1.bf16.msra.mxu0 0
      %4613 = vmatprep.subr.bf16.mxu0 0
      %4614 = vmatpush1.bf16.msra.mxu0 0
      %4615 = vmatprep.subr.bf16.mxu0 0
      %4616 = vmatpush1.bf16.msra.mxu0 0
      %4617 = vmatprep.subr.bf16.mxu0 %v4516
      %4618 = vmatpush1.bf16.msra.mxu0 %v4513
      %4619 = vmatprep.subr.bf16.mxu0 0
      %4620 = vmatpush2.bf16.msra.mxu0 0
      %4621 = vmatprep.subr.bf16.mxu0 0
      %4622 = vmatpush2.bf16.msra.mxu0 0
      %4623 = vmatprep.subr.bf16.mxu0 0
      %4624 = vmatpush2.bf16.msra.mxu0 0
      %4625 = vmatprep.subr.bf16.mxu0 0
      %4626 = vmatpush2.bf16.msra.mxu0 0
      %4627 = vmatprep.subr.bf16.mxu0 0
      %4628 = vmatpush2.bf16.msra.mxu0 0
      %4629 = vmatprep.subr.bf16.mxu0 0
      %4630 = vmatpush2.bf16.msra.mxu0 0
      %4631 = vmatprep.subr.bf16.mxu0 0
      %4632 = vmatpush2.bf16.msra.mxu0 0
      %4633 = vmatprep.subr.bf16.mxu0 0
      %4634 = vmatpush2.bf16.msra.mxu0 0
      %4635 = vmatprep.mubr.bf16.mxu0 0
      %4636 = vmatmul.mubr.bf16.gmra.mxu0 %v4498
      %v4637 = vpop.f32.mrf.mxu0
      %v4638 = vadd.f32 0.0, %v4637
      %v4639 = vpop.f32.mrf.mxu0
      %v4640 = vadd.f32 0.0, %v4639
      %v4641 = vpop.f32.mrf.mxu0
      %v4642 = vpop.f32.mrf.mxu0
      %4643 = vdwg.mxu0
      %4644 = vmatprep.subr.bf16.mxu0 0
      %4645 = vmatpush1.bf16.msra.mxu0 0
      %4646 = vmatprep.subr.bf16.mxu0 0
      %4647 = vmatpush1.bf16.msra.mxu0 0
      %4648 = vmatprep.subr.bf16.mxu0 0
      %4649 = vmatpush1.bf16.msra.mxu0 0
      %4650 = vmatprep.subr.bf16.mxu0 0
      %4651 = vmatpush1.bf16.msra.mxu0 0
      %4652 = vmatprep.subr.bf16.mxu0 0
      %4653 = vmatpush1.bf16.msra.mxu0 0
      %4654 = vmatprep.subr.bf16.mxu0 0
      %4655 = vmatpush1.bf16.msra.mxu0 0
      %4656 = vmatprep.subr.bf16.mxu0 0
      %4657 = vmatpush1.bf16.msra.mxu0 0
      %4658 = vmatprep.subr.bf16.mxu0 0
      %4659 = vmatpush1.bf16.msra.mxu0 %v4519
      %4660 = vmatprep.subr.bf16.mxu0 0
      %4661 = vmatpush2.bf16.msra.mxu0 0
      %4662 = vmatprep.subr.bf16.mxu0 0
      %4663 = vmatpush2.bf16.msra.mxu0 0
      %4664 = vmatprep.subr.bf16.mxu0 0
      %4665 = vmatpush2.bf16.msra.mxu0 0
      %4666 = vmatprep.subr.bf16.mxu0 0
      %4667 = vmatpush2.bf16.msra.mxu0 0
      %4668 = vmatprep.subr.bf16.mxu0 0
      %4669 = vmatpush2.bf16.msra.mxu0 0
      %4670 = vmatprep.subr.bf16.mxu0 0
      %4671 = vmatpush2.bf16.msra.mxu0 0
      %4672 = vmatprep.subr.bf16.mxu0 0
      %4673 = vmatpush2.bf16.msra.mxu0 0
      %4674 = vmatprep.subr.bf16.mxu0 0
      %4675 = vmatpush2.bf16.msra.mxu0 0
      %4676 = vmatprep.mubr.bf16.mxu0 0
      %4677 = vmatmul.mubr.bf16.gmra.mxu0 %v4498
      %v4678 = vpop.f32.mrf.mxu0
      %v4679 = vadd.f32 0.0, %v4678
      %v4680 = vpop.f32.mrf.mxu0
      %v4681 = vpop.f32.mrf.mxu0
      %v4682 = vpop.f32.mrf.mxu0
      %4683 = vdwg.mxu0
      %v4684 = vadd.f32 %v4467, %v4556
      %v4685 = vadd.f32 %v4468, %v4558
      %v4686 = vadd.f32 %v4469, %v4597
      %v4687 = vadd.f32 %v4470, %v4599
      %v4688 = vadd.f32 %v4471, %v4638
      %v4689 = vadd.f32 %v4472, %v4640
      %v4690 = vadd.f32 %v4473, %v4679
      %4691 = vrot.lane.b32.xlu0 %v340, 48
      %v4692 = vpop.permute.xlu0 %4691
      %4693 = vrot.lane.b32.xlu0 %v360, 54
      %v4694 = vpop.permute.xlu0 %4693
      %4695 = vrot.lane.b32.xlu0 %v359, 54
      %v4696 = vpop.permute.xlu0 %4695
      %4697 = vrot.lane.b32.xlu0 %v361, 54
      %v4698 = vpop.permute.xlu0 %4697
      %4699 = vrot.lane.b32.xlu0 %v369, 54
      %v4700 = vpop.permute.xlu0 %4699
      %4701 = vrot.lane.b32.xlu0 %v377, 54
      %v4702 = vpop.permute.xlu0 %4701
      %4703 = vrot.lane.b32.xlu0 %v376, 54
      %v4704 = vpop.permute.xlu0 %4703
      %4705 = vrot.lane.b32.xlu0 %v3598, 54
      %v4706 = vpop.permute.xlu0 %4705
      %vm4707 = vcmask 441344
      %v4708 = vsel %vm4707, %v4694, %v4696
      %v4709 = vsel %vm4707, %v4696, %v4698
      %v4710 = vsel %vm4707, %v4698, %v4700
      %v4711 = vsel %vm4707, %v4700, %v4702
      %v4712 = vsel %vm4707, %v4702, %v4704
      %v4713 = vsel %vm4707, %v4704, %v4706
      %v4715 = vsel %vm399, %v4692, 0
      %v4718 = vsel %vm403, %v4708, 0
      %v4721 = vsel %vm403, %v4709, 0
      %v4724 = vsel %vm403, %v4710, 0
      %v4727 = vsel %vm403, %v4711, 0
      %v4730 = vsel %vm403, %v4712, 0
      %v4733 = vsel %vm403, %v4713, 0
      %v4736 = vsel %vm403, %v4706, 0
      %4738 = vmatprep.subr.bf16.mxu0 0
      %4739 = vmatpush1.bf16.msra.mxu0 0
      %4740 = vmatprep.subr.bf16.mxu0 0
      %4741 = vmatpush1.bf16.msra.mxu0 0
      %4742 = vmatprep.subr.bf16.mxu0 0
      %4743 = vmatpush1.bf16.msra.mxu0 0
      %4744 = vmatprep.subr.bf16.mxu0 0
      %4745 = vmatpush1.bf16.msra.mxu0 0
      %4746 = vmatprep.subr.bf16.mxu0 0
      %4747 = vmatpush1.bf16.msra.mxu0 0
      %4748 = vmatprep.subr.bf16.mxu0 0
      %4749 = vmatpush1.bf16.msra.mxu0 0
      %4750 = vmatprep.subr.bf16.mxu0 0
      %4751 = vmatpush1.bf16.msra.mxu0 0
      %4752 = vmatprep.subr.bf16.mxu0 %v4721
      %4753 = vmatpush1.bf16.msra.mxu0 %v4718
      %4754 = vmatprep.subr.bf16.mxu0 0
      %4755 = vmatpush2.bf16.msra.mxu0 0
      %4756 = vmatprep.subr.bf16.mxu0 0
      %4757 = vmatpush2.bf16.msra.mxu0 0
      %4758 = vmatprep.subr.bf16.mxu0 0
      %4759 = vmatpush2.bf16.msra.mxu0 0
      %4760 = vmatprep.subr.bf16.mxu0 0
      %4761 = vmatpush2.bf16.msra.mxu0 0
      %4762 = vmatprep.subr.bf16.mxu0 0
      %4763 = vmatpush2.bf16.msra.mxu0 0
      %4764 = vmatprep.subr.bf16.mxu0 0
      %4765 = vmatpush2.bf16.msra.mxu0 0
      %4766 = vmatprep.subr.bf16.mxu0 0
      %4767 = vmatpush2.bf16.msra.mxu0 0
      %4768 = vmatprep.subr.bf16.mxu0 0
      %4769 = vmatpush2.bf16.msra.mxu0 0
      %4770 = vmatprep.mubr.bf16.mxu0 0
      %4771 = vmatmul.mubr.bf16.gmra.mxu0 %v4715
      %v4772 = vpop.f32.mrf.mxu0
      %v4773 = vadd.f32 0.0, %v4772
      %v4774 = vpop.f32.mrf.mxu0
      %v4775 = vadd.f32 0.0, %v4774
      %v4776 = vpop.f32.mrf.mxu0
      %v4777 = vpop.f32.mrf.mxu0
      %4778 = vdwg.mxu0
      %4779 = vmatprep.subr.bf16.mxu0 0
      %4780 = vmatpush1.bf16.msra.mxu0 0
      %4781 = vmatprep.subr.bf16.mxu0 0
      %4782 = vmatpush1.bf16.msra.mxu0 0
      %4783 = vmatprep.subr.bf16.mxu0 0
      %4784 = vmatpush1.bf16.msra.mxu0 0
      %4785 = vmatprep.subr.bf16.mxu0 0
      %4786 = vmatpush1.bf16.msra.mxu0 0
      %4787 = vmatprep.subr.bf16.mxu0 0
      %4788 = vmatpush1.bf16.msra.mxu0 0
      %4789 = vmatprep.subr.bf16.mxu0 0
      %4790 = vmatpush1.bf16.msra.mxu0 0
      %4791 = vmatprep.subr.bf16.mxu0 0
      %4792 = vmatpush1.bf16.msra.mxu0 0
      %4793 = vmatprep.subr.bf16.mxu0 %v4727
      %4794 = vmatpush1.bf16.msra.mxu0 %v4724
      %4795 = vmatprep.subr.bf16.mxu0 0
      %4796 = vmatpush2.bf16.msra.mxu0 0
      %4797 = vmatprep.subr.bf16.mxu0 0
      %4798 = vmatpush2.bf16.msra.mxu0 0
      %4799 = vmatprep.subr.bf16.mxu0 0
      %4800 = vmatpush2.bf16.msra.mxu0 0
      %4801 = vmatprep.subr.bf16.mxu0 0
      %4802 = vmatpush2.bf16.msra.mxu0 0
      %4803 = vmatprep.subr.bf16.mxu0 0
      %4804 = vmatpush2.bf16.msra.mxu0 0
      %4805 = vmatprep.subr.bf16.mxu0 0
      %4806 = vmatpush2.bf16.msra.mxu0 0
      %4807 = vmatprep.subr.bf16.mxu0 0
      %4808 = vmatpush2.bf16.msra.mxu0 0
      %4809 = vmatprep.subr.bf16.mxu0 0
      %4810 = vmatpush2.bf16.msra.mxu0 0
      %4811 = vmatprep.mubr.bf16.mxu0 0
      %4812 = vmatmul.mubr.bf16.gmra.mxu0 %v4715
      %v4813 = vpop.f32.mrf.mxu0
      %v4814 = vadd.f32 0.0, %v4813
      %v4815 = vpop.f32.mrf.mxu0
      %v4816 = vadd.f32 0.0, %v4815
      %v4817 = vpop.f32.mrf.mxu0
      %v4818 = vpop.f32.mrf.mxu0
      %4819 = vdwg.mxu0
      %4820 = vmatprep.subr.bf16.mxu0 0
      %4821 = vmatpush1.bf16.msra.mxu0 0
      %4822 = vmatprep.subr.bf16.mxu0 0
      %4823 = vmatpush1.bf16.msra.mxu0 0
      %4824 = vmatprep.subr.bf16.mxu0 0
      %4825 = vmatpush1.bf16.msra.mxu0 0
      %4826 = vmatprep.subr.bf16.mxu0 0
      %4827 = vmatpush1.bf16.msra.mxu0 0
      %4828 = vmatprep.subr.bf16.mxu0 0
      %4829 = vmatpush1.bf16.msra.mxu0 0
      %4830 = vmatprep.subr.bf16.mxu0 0
      %4831 = vmatpush1.bf16.msra.mxu0 0
      %4832 = vmatprep.subr.bf16.mxu0 0
      %4833 = vmatpush1.bf16.msra.mxu0 0
      %4834 = vmatprep.subr.bf16.mxu0 %v4733
      %4835 = vmatpush1.bf16.msra.mxu0 %v4730
      %4836 = vmatprep.subr.bf16.mxu0 0
      %4837 = vmatpush2.bf16.msra.mxu0 0
      %4838 = vmatprep.subr.bf16.mxu0 0
      %4839 = vmatpush2.bf16.msra.mxu0 0
      %4840 = vmatprep.subr.bf16.mxu0 0
      %4841 = vmatpush2.bf16.msra.mxu0 0
      %4842 = vmatprep.subr.bf16.mxu0 0
      %4843 = vmatpush2.bf16.msra.mxu0 0
      %4844 = vmatprep.subr.bf16.mxu0 0
      %4845 = vmatpush2.bf16.msra.mxu0 0
      %4846 = vmatprep.subr.bf16.mxu0 0
      %4847 = vmatpush2.bf16.msra.mxu0 0
      %4848 = vmatprep.subr.bf16.mxu0 0
      %4849 = vmatpush2.bf16.msra.mxu0 0
      %4850 = vmatprep.subr.bf16.mxu0 0
      %4851 = vmatpush2.bf16.msra.mxu0 0
      %4852 = vmatprep.mubr.bf16.mxu0 0
      %4853 = vmatmul.mubr.bf16.gmra.mxu0 %v4715
      %v4854 = vpop.f32.mrf.mxu0
      %v4855 = vadd.f32 0.0, %v4854
      %v4856 = vpop.f32.mrf.mxu0
      %v4857 = vadd.f32 0.0, %v4856
      %v4858 = vpop.f32.mrf.mxu0
      %v4859 = vpop.f32.mrf.mxu0
      %4860 = vdwg.mxu0
      %4861 = vmatprep.subr.bf16.mxu0 0
      %4862 = vmatpush1.bf16.msra.mxu0 0
      %4863 = vmatprep.subr.bf16.mxu0 0
      %4864 = vmatpush1.bf16.msra.mxu0 0
      %4865 = vmatprep.subr.bf16.mxu0 0
      %4866 = vmatpush1.bf16.msra.mxu0 0
      %4867 = vmatprep.subr.bf16.mxu0 0
      %4868 = vmatpush1.bf16.msra.mxu0 0
      %4869 = vmatprep.subr.bf16.mxu0 0
      %4870 = vmatpush1.bf16.msra.mxu0 0
      %4871 = vmatprep.subr.bf16.mxu0 0
      %4872 = vmatpush1.bf16.msra.mxu0 0
      %4873 = vmatprep.subr.bf16.mxu0 0
      %4874 = vmatpush1.bf16.msra.mxu0 0
      %4875 = vmatprep.subr.bf16.mxu0 0
      %4876 = vmatpush1.bf16.msra.mxu0 %v4736
      %4877 = vmatprep.subr.bf16.mxu0 0
      %4878 = vmatpush2.bf16.msra.mxu0 0
      %4879 = vmatprep.subr.bf16.mxu0 0
      %4880 = vmatpush2.bf16.msra.mxu0 0
      %4881 = vmatprep.subr.bf16.mxu0 0
      %4882 = vmatpush2.bf16.msra.mxu0 0
      %4883 = vmatprep.subr.bf16.mxu0 0
      %4884 = vmatpush2.bf16.msra.mxu0 0
      %4885 = vmatprep.subr.bf16.mxu0 0
      %4886 = vmatpush2.bf16.msra.mxu0 0
      %4887 = vmatprep.subr.bf16.mxu0 0
      %4888 = vmatpush2.bf16.msra.mxu0 0
      %4889 = vmatprep.subr.bf16.mxu0 0
      %4890 = vmatpush2.bf16.msra.mxu0 0
      %4891 = vmatprep.subr.bf16.mxu0 0
      %4892 = vmatpush2.bf16.msra.mxu0 0
      %4893 = vmatprep.mubr.bf16.mxu0 0
      %4894 = vmatmul.mubr.bf16.gmra.mxu0 %v4715
      %v4895 = vpop.f32.mrf.mxu0
      %v4896 = vadd.f32 0.0, %v4895
      %v4897 = vpop.f32.mrf.mxu0
      %v4898 = vpop.f32.mrf.mxu0
      %v4899 = vpop.f32.mrf.mxu0
      %4900 = vdwg.mxu0
      %v4901 = vadd.f32 %v4684, %v4773
      %v4902 = vadd.f32 %v4685, %v4775
      %v4903 = vadd.f32 %v4686, %v4814
      %v4904 = vadd.f32 %v4687, %v4816
      %v4905 = vadd.f32 %v4688, %v4855
      %v4906 = vadd.f32 %v4689, %v4857
      %v4907 = vadd.f32 %v4690, %v4896
      %4908 = vrot.lane.b32.xlu0 %v340, 44
      %v4909 = vpop.permute.xlu0 %4908
      %4910 = vrot.lane.b32.xlu0 %v360, 46
      %v4911 = vpop.permute.xlu0 %4910
      %4912 = vrot.lane.b32.xlu0 %v359, 46
      %v4913 = vpop.permute.xlu0 %4912
      %4914 = vrot.lane.b32.xlu0 %v361, 46
      %v4915 = vpop.permute.xlu0 %4914
      %4916 = vrot.lane.b32.xlu0 %v369, 46
      %v4917 = vpop.permute.xlu0 %4916
      %4918 = vrot.lane.b32.xlu0 %v377, 46
      %v4919 = vpop.permute.xlu0 %4918
      %4920 = vrot.lane.b32.xlu0 %v376, 46
      %v4921 = vpop.permute.xlu0 %4920
      %4922 = vrot.lane.b32.xlu0 %v3598, 46
      %v4923 = vpop.permute.xlu0 %4922
      %vm4924 = vcmask 375808
      %v4925 = vsel %vm4924, %v4911, %v4913
      %v4926 = vsel %vm4924, %v4913, %v4915
      %v4927 = vsel %vm4924, %v4915, %v4917
      %v4928 = vsel %vm4924, %v4917, %v4919
      %v4929 = vsel %vm4924, %v4919, %v4921
      %v4930 = vsel %vm4924, %v4921, %v4923
      %v4932 = vsel %vm399, %v4909, 0
      %v4935 = vsel %vm403, %v4925, 0
      %v4938 = vsel %vm403, %v4926, 0
      %v4941 = vsel %vm403, %v4927, 0
      %v4944 = vsel %vm403, %v4928, 0
      %v4947 = vsel %vm403, %v4929, 0
      %v4950 = vsel %vm403, %v4930, 0
      %v4953 = vsel %vm403, %v4923, 0
      %4955 = vmatprep.subr.bf16.mxu0 0
      %4956 = vmatpush1.bf16.msra.mxu0 0
      %4957 = vmatprep.subr.bf16.mxu0 0
      %4958 = vmatpush1.bf16.msra.mxu0 0
      %4959 = vmatprep.subr.bf16.mxu0 0
      %4960 = vmatpush1.bf16.msra.mxu0 0
      %4961 = vmatprep.subr.bf16.mxu0 0
      %4962 = vmatpush1.bf16.msra.mxu0 0
      %4963 = vmatprep.subr.bf16.mxu0 0
      %4964 = vmatpush1.bf16.msra.mxu0 0
      %4965 = vmatprep.subr.bf16.mxu0 0
      %4966 = vmatpush1.bf16.msra.mxu0 0
      %4967 = vmatprep.subr.bf16.mxu0 0
      %4968 = vmatpush1.bf16.msra.mxu0 0
      %4969 = vmatprep.subr.bf16.mxu0 %v4938
      %4970 = vmatpush1.bf16.msra.mxu0 %v4935
      %4971 = vmatprep.subr.bf16.mxu0 0
      %4972 = vmatpush2.bf16.msra.mxu0 0
      %4973 = vmatprep.subr.bf16.mxu0 0
      %4974 = vmatpush2.bf16.msra.mxu0 0
      %4975 = vmatprep.subr.bf16.mxu0 0
      %4976 = vmatpush2.bf16.msra.mxu0 0
      %4977 = vmatprep.subr.bf16.mxu0 0
      %4978 = vmatpush2.bf16.msra.mxu0 0
      %4979 = vmatprep.subr.bf16.mxu0 0
      %4980 = vmatpush2.bf16.msra.mxu0 0
      %4981 = vmatprep.subr.bf16.mxu0 0
      %4982 = vmatpush2.bf16.msra.mxu0 0
      %4983 = vmatprep.subr.bf16.mxu0 0
      %4984 = vmatpush2.bf16.msra.mxu0 0
      %4985 = vmatprep.subr.bf16.mxu0 0
      %4986 = vmatpush2.bf16.msra.mxu0 0
      %4987 = vmatprep.mubr.bf16.mxu0 0
      %4988 = vmatmul.mubr.bf16.gmra.mxu0 %v4932
      %v4989 = vpop.f32.mrf.mxu0
      %v4990 = vadd.f32 0.0, %v4989
      %v4991 = vpop.f32.mrf.mxu0
      %v4992 = vadd.f32 0.0, %v4991
      %v4993 = vpop.f32.mrf.mxu0
      %v4994 = vpop.f32.mrf.mxu0
      %4995 = vdwg.mxu0
      %4996 = vmatprep.subr.bf16.mxu0 0
      %4997 = vmatpush1.bf16.msra.mxu0 0
      %4998 = vmatprep.subr.bf16.mxu0 0
      %4999 = vmatpush1.bf16.msra.mxu0 0
      %5000 = vmatprep.subr.bf16.mxu0 0
      %5001 = vmatpush1.bf16.msra.mxu0 0
      %5002 = vmatprep.subr.bf16.mxu0 0
      %5003 = vmatpush1.bf16.msra.mxu0 0
      %5004 = vmatprep.subr.bf16.mxu0 0
      %5005 = vmatpush1.bf16.msra.mxu0 0
      %5006 = vmatprep.subr.bf16.mxu0 0
      %5007 = vmatpush1.bf16.msra.mxu0 0
      %5008 = vmatprep.subr.bf16.mxu0 0
      %5009 = vmatpush1.bf16.msra.mxu0 0
      %5010 = vmatprep.subr.bf16.mxu0 %v4944
      %5011 = vmatpush1.bf16.msra.mxu0 %v4941
      %5012 = vmatprep.subr.bf16.mxu0 0
      %5013 = vmatpush2.bf16.msra.mxu0 0
      %5014 = vmatprep.subr.bf16.mxu0 0
      %5015 = vmatpush2.bf16.msra.mxu0 0
      %5016 = vmatprep.subr.bf16.mxu0 0
      %5017 = vmatpush2.bf16.msra.mxu0 0
      %5018 = vmatprep.subr.bf16.mxu0 0
      %5019 = vmatpush2.bf16.msra.mxu0 0
      %5020 = vmatprep.subr.bf16.mxu0 0
      %5021 = vmatpush2.bf16.msra.mxu0 0
      %5022 = vmatprep.subr.bf16.mxu0 0
      %5023 = vmatpush2.bf16.msra.mxu0 0
      %5024 = vmatprep.subr.bf16.mxu0 0
      %5025 = vmatpush2.bf16.msra.mxu0 0
      %5026 = vmatprep.subr.bf16.mxu0 0
      %5027 = vmatpush2.bf16.msra.mxu0 0
      %5028 = vmatprep.mubr.bf16.mxu0 0
      %5029 = vmatmul.mubr.bf16.gmra.mxu0 %v4932
      %v5030 = vpop.f32.mrf.mxu0
      %v5031 = vadd.f32 0.0, %v5030
      %v5032 = vpop.f32.mrf.mxu0
      %v5033 = vadd.f32 0.0, %v5032
      %v5034 = vpop.f32.mrf.mxu0
      %v5035 = vpop.f32.mrf.mxu0
      %5036 = vdwg.mxu0
      %5037 = vmatprep.subr.bf16.mxu0 0
      %5038 = vmatpush1.bf16.msra.mxu0 0
      %5039 = vmatprep.subr.bf16.mxu0 0
      %5040 = vmatpush1.bf16.msra.mxu0 0
      %5041 = vmatprep.subr.bf16.mxu0 0
      %5042 = vmatpush1.bf16.msra.mxu0 0
      %5043 = vmatprep.subr.bf16.mxu0 0
      %5044 = vmatpush1.bf16.msra.mxu0 0
      %5045 = vmatprep.subr.bf16.mxu0 0
      %5046 = vmatpush1.bf16.msra.mxu0 0
      %5047 = vmatprep.subr.bf16.mxu0 0
      %5048 = vmatpush1.bf16.msra.mxu0 0
      %5049 = vmatprep.subr.bf16.mxu0 0
      %5050 = vmatpush1.bf16.msra.mxu0 0
      %5051 = vmatprep.subr.bf16.mxu0 %v4950
      %5052 = vmatpush1.bf16.msra.mxu0 %v4947
      %5053 = vmatprep.subr.bf16.mxu0 0
      %5054 = vmatpush2.bf16.msra.mxu0 0
      %5055 = vmatprep.subr.bf16.mxu0 0
      %5056 = vmatpush2.bf16.msra.mxu0 0
      %5057 = vmatprep.subr.bf16.mxu0 0
      %5058 = vmatpush2.bf16.msra.mxu0 0
      %5059 = vmatprep.subr.bf16.mxu0 0
      %5060 = vmatpush2.bf16.msra.mxu0 0
      %5061 = vmatprep.subr.bf16.mxu0 0
      %5062 = vmatpush2.bf16.msra.mxu0 0
      %5063 = vmatprep.subr.bf16.mxu0 0
      %5064 = vmatpush2.bf16.msra.mxu0 0
      %5065 = vmatprep.subr.bf16.mxu0 0
      %5066 = vmatpush2.bf16.msra.mxu0 0
      %5067 = vmatprep.subr.bf16.mxu0 0
      %5068 = vmatpush2.bf16.msra.mxu0 0
      %5069 = vmatprep.mubr.bf16.mxu0 0
      %5070 = vmatmul.mubr.bf16.gmra.mxu0 %v4932
      %v5071 = vpop.f32.mrf.mxu0
      %v5072 = vadd.f32 0.0, %v5071
      %v5073 = vpop.f32.mrf.mxu0
      %v5074 = vadd.f32 0.0, %v5073
      %v5075 = vpop.f32.mrf.mxu0
      %v5076 = vpop.f32.mrf.mxu0
      %5077 = vdwg.mxu0
      %5078 = vmatprep.subr.bf16.mxu0 0
      %5079 = vmatpush1.bf16.msra.mxu0 0
      %5080 = vmatprep.subr.bf16.mxu0 0
      %5081 = vmatpush1.bf16.msra.mxu0 0
      %5082 = vmatprep.subr.bf16.mxu0 0
      %5083 = vmatpush1.bf16.msra.mxu0 0
      %5084 = vmatprep.subr.bf16.mxu0 0
      %5085 = vmatpush1.bf16.msra.mxu0 0
      %5086 = vmatprep.subr.bf16.mxu0 0
      %5087 = vmatpush1.bf16.msra.mxu0 0
      %5088 = vmatprep.subr.bf16.mxu0 0
      %5089 = vmatpush1.bf16.msra.mxu0 0
      %5090 = vmatprep.subr.bf16.mxu0 0
      %5091 = vmatpush1.bf16.msra.mxu0 0
      %5092 = vmatprep.subr.bf16.mxu0 0
      %5093 = vmatpush1.bf16.msra.mxu0 %v4953
      %5094 = vmatprep.subr.bf16.mxu0 0
      %5095 = vmatpush2.bf16.msra.mxu0 0
      %5096 = vmatprep.subr.bf16.mxu0 0
      %5097 = vmatpush2.bf16.msra.mxu0 0
      %5098 = vmatprep.subr.bf16.mxu0 0
      %5099 = vmatpush2.bf16.msra.mxu0 0
      %5100 = vmatprep.subr.bf16.mxu0 0
      %5101 = vmatpush2.bf16.msra.mxu0 0
      %5102 = vmatprep.subr.bf16.mxu0 0
      %5103 = vmatpush2.bf16.msra.mxu0 0
      %5104 = vmatprep.subr.bf16.mxu0 0
      %5105 = vmatpush2.bf16.msra.mxu0 0
      %5106 = vmatprep.subr.bf16.mxu0 0
      %5107 = vmatpush2.bf16.msra.mxu0 0
      %5108 = vmatprep.subr.bf16.mxu0 0
      %5109 = vmatpush2.bf16.msra.mxu0 0
      %5110 = vmatprep.mubr.bf16.mxu0 0
      %5111 = vmatmul.mubr.bf16.gmra.mxu0 %v4932
      %v5112 = vpop.f32.mrf.mxu0
      %v5113 = vadd.f32 0.0, %v5112
      %v5114 = vpop.f32.mrf.mxu0
      %v5115 = vpop.f32.mrf.mxu0
      %v5116 = vpop.f32.mrf.mxu0
      %5117 = vdwg.mxu0
      %v5118 = vadd.f32 %v4901, %v4990
      %v5119 = vadd.f32 %v4902, %v4992
      %v5120 = vadd.f32 %v4903, %v5031
      %v5121 = vadd.f32 %v4904, %v5033
      %v5122 = vadd.f32 %v4905, %v5072
      %v5123 = vadd.f32 %v4906, %v5074
      %v5124 = vadd.f32 %v4907, %v5113
      %5125 = vrot.lane.b32.xlu0 %v340, 40
      %v5126 = vpop.permute.xlu0 %5125
      %5127 = vrot.lane.b32.xlu0 %v360, 45
      %v5128 = vpop.permute.xlu0 %5127
      %5129 = vrot.lane.b32.xlu0 %v359, 45
      %v5130 = vpop.permute.xlu0 %5129
      %5131 = vrot.lane.b32.xlu0 %v361, 45
      %v5132 = vpop.permute.xlu0 %5131
      %5133 = vrot.lane.b32.xlu0 %v369, 45
      %v5134 = vpop.permute.xlu0 %5133
      %5135 = vrot.lane.b32.xlu0 %v377, 45
      %v5136 = vpop.permute.xlu0 %5135
      %5137 = vrot.lane.b32.xlu0 %v376, 45
      %v5138 = vpop.permute.xlu0 %5137
      %5139 = vrot.lane.b32.xlu0 %v3598, 45
      %v5140 = vpop.permute.xlu0 %5139
      %vm5141 = vcmask 367616
      %v5142 = vsel %vm5141, %v5128, %v5130
      %v5143 = vsel %vm5141, %v5130, %v5132
      %v5144 = vsel %vm5141, %v5132, %v5134
      %v5145 = vsel %vm5141, %v5134, %v5136
      %v5146 = vsel %vm5141, %v5136, %v5138
      %v5147 = vsel %vm5141, %v5138, %v5140
      %v5149 = vsel %vm399, %v5126, 0
      %v5152 = vsel %vm403, %v5142, 0
      %v5155 = vsel %vm403, %v5143, 0
      %v5158 = vsel %vm403, %v5144, 0
      %v5161 = vsel %vm403, %v5145, 0
      %v5164 = vsel %vm403, %v5146, 0
      %v5167 = vsel %vm403, %v5147, 0
      %v5170 = vsel %vm403, %v5140, 0
      %5172 = vmatprep.subr.bf16.mxu0 0
      %5173 = vmatpush1.bf16.msra.mxu0 0
      %5174 = vmatprep.subr.bf16.mxu0 0
      %5175 = vmatpush1.bf16.msra.mxu0 0
      %5176 = vmatprep.subr.bf16.mxu0 0
      %5177 = vmatpush1.bf16.msra.mxu0 0
      %5178 = vmatprep.subr.bf16.mxu0 0
      %5179 = vmatpush1.bf16.msra.mxu0 0
      %5180 = vmatprep.subr.bf16.mxu0 0
      %5181 = vmatpush1.bf16.msra.mxu0 0
      %5182 = vmatprep.subr.bf16.mxu0 0
      %5183 = vmatpush1.bf16.msra.mxu0 0
      %5184 = vmatprep.subr.bf16.mxu0 0
      %5185 = vmatpush1.bf16.msra.mxu0 0
      %5186 = vmatprep.subr.bf16.mxu0 %v5155
      %5187 = vmatpush1.bf16.msra.mxu0 %v5152
      %5188 = vmatprep.subr.bf16.mxu0 0
      %5189 = vmatpush2.bf16.msra.mxu0 0
      %5190 = vmatprep.subr.bf16.mxu0 0
      %5191 = vmatpush2.bf16.msra.mxu0 0
      %5192 = vmatprep.subr.bf16.mxu0 0
      %5193 = vmatpush2.bf16.msra.mxu0 0
      %5194 = vmatprep.subr.bf16.mxu0 0
      %5195 = vmatpush2.bf16.msra.mxu0 0
      %5196 = vmatprep.subr.bf16.mxu0 0
      %5197 = vmatpush2.bf16.msra.mxu0 0
      %5198 = vmatprep.subr.bf16.mxu0 0
      %5199 = vmatpush2.bf16.msra.mxu0 0
      %5200 = vmatprep.subr.bf16.mxu0 0
      %5201 = vmatpush2.bf16.msra.mxu0 0
      %5202 = vmatprep.subr.bf16.mxu0 0
      %5203 = vmatpush2.bf16.msra.mxu0 0
      %5204 = vmatprep.mubr.bf16.mxu0 0
      %5205 = vmatmul.mubr.bf16.gmra.mxu0 %v5149
      %v5206 = vpop.f32.mrf.mxu0
      %v5207 = vadd.f32 0.0, %v5206
      %v5208 = vpop.f32.mrf.mxu0
      %v5209 = vadd.f32 0.0, %v5208
      %v5210 = vpop.f32.mrf.mxu0
      %v5211 = vpop.f32.mrf.mxu0
      %5212 = vdwg.mxu0
      %5213 = vmatprep.subr.bf16.mxu0 0
      %5214 = vmatpush1.bf16.msra.mxu0 0
      %5215 = vmatprep.subr.bf16.mxu0 0
      %5216 = vmatpush1.bf16.msra.mxu0 0
      %5217 = vmatprep.subr.bf16.mxu0 0
      %5218 = vmatpush1.bf16.msra.mxu0 0
      %5219 = vmatprep.subr.bf16.mxu0 0
      %5220 = vmatpush1.bf16.msra.mxu0 0
      %5221 = vmatprep.subr.bf16.mxu0 0
      %5222 = vmatpush1.bf16.msra.mxu0 0
      %5223 = vmatprep.subr.bf16.mxu0 0
      %5224 = vmatpush1.bf16.msra.mxu0 0
      %5225 = vmatprep.subr.bf16.mxu0 0
      %5226 = vmatpush1.bf16.msra.mxu0 0
      %5227 = vmatprep.subr.bf16.mxu0 %v5161
      %5228 = vmatpush1.bf16.msra.mxu0 %v5158
      %5229 = vmatprep.subr.bf16.mxu0 0
      %5230 = vmatpush2.bf16.msra.mxu0 0
      %5231 = vmatprep.subr.bf16.mxu0 0
      %5232 = vmatpush2.bf16.msra.mxu0 0
      %5233 = vmatprep.subr.bf16.mxu0 0
      %5234 = vmatpush2.bf16.msra.mxu0 0
      %5235 = vmatprep.subr.bf16.mxu0 0
      %5236 = vmatpush2.bf16.msra.mxu0 0
      %5237 = vmatprep.subr.bf16.mxu0 0
      %5238 = vmatpush2.bf16.msra.mxu0 0
      %5239 = vmatprep.subr.bf16.mxu0 0
      %5240 = vmatpush2.bf16.msra.mxu0 0
      %5241 = vmatprep.subr.bf16.mxu0 0
      %5242 = vmatpush2.bf16.msra.mxu0 0
      %5243 = vmatprep.subr.bf16.mxu0 0
      %5244 = vmatpush2.bf16.msra.mxu0 0
      %5245 = vmatprep.mubr.bf16.mxu0 0
      %5246 = vmatmul.mubr.bf16.gmra.mxu0 %v5149
      %v5247 = vpop.f32.mrf.mxu0
      %v5248 = vadd.f32 0.0, %v5247
      %v5249 = vpop.f32.mrf.mxu0
      %v5250 = vadd.f32 0.0, %v5249
      %v5251 = vpop.f32.mrf.mxu0
      %v5252 = vpop.f32.mrf.mxu0
      %5253 = vdwg.mxu0
      %5254 = vmatprep.subr.bf16.mxu0 0
      %5255 = vmatpush1.bf16.msra.mxu0 0
      %5256 = vmatprep.subr.bf16.mxu0 0
      %5257 = vmatpush1.bf16.msra.mxu0 0
      %5258 = vmatprep.subr.bf16.mxu0 0
      %5259 = vmatpush1.bf16.msra.mxu0 0
      %5260 = vmatprep.subr.bf16.mxu0 0
      %5261 = vmatpush1.bf16.msra.mxu0 0
      %5262 = vmatprep.subr.bf16.mxu0 0
      %5263 = vmatpush1.bf16.msra.mxu0 0
      %5264 = vmatprep.subr.bf16.mxu0 0
      %5265 = vmatpush1.bf16.msra.mxu0 0
      %5266 = vmatprep.subr.bf16.mxu0 0
      %5267 = vmatpush1.bf16.msra.mxu0 0
      %5268 = vmatprep.subr.bf16.mxu0 %v5167
      %5269 = vmatpush1.bf16.msra.mxu0 %v5164
      %5270 = vmatprep.subr.bf16.mxu0 0
      %5271 = vmatpush2.bf16.msra.mxu0 0
      %5272 = vmatprep.subr.bf16.mxu0 0
      %5273 = vmatpush2.bf16.msra.mxu0 0
      %5274 = vmatprep.subr.bf16.mxu0 0
      %5275 = vmatpush2.bf16.msra.mxu0 0
      %5276 = vmatprep.subr.bf16.mxu0 0
      %5277 = vmatpush2.bf16.msra.mxu0 0
      %5278 = vmatprep.subr.bf16.mxu0 0
      %5279 = vmatpush2.bf16.msra.mxu0 0
      %5280 = vmatprep.subr.bf16.mxu0 0
      %5281 = vmatpush2.bf16.msra.mxu0 0
      %5282 = vmatprep.subr.bf16.mxu0 0
      %5283 = vmatpush2.bf16.msra.mxu0 0
      %5284 = vmatprep.subr.bf16.mxu0 0
      %5285 = vmatpush2.bf16.msra.mxu0 0
      %5286 = vmatprep.mubr.bf16.mxu0 0
      %5287 = vmatmul.mubr.bf16.gmra.mxu0 %v5149
      %v5288 = vpop.f32.mrf.mxu0
      %v5289 = vadd.f32 0.0, %v5288
      %v5290 = vpop.f32.mrf.mxu0
      %v5291 = vadd.f32 0.0, %v5290
      %v5292 = vpop.f32.mrf.mxu0
      %v5293 = vpop.f32.mrf.mxu0
      %5294 = vdwg.mxu0
      %5295 = vmatprep.subr.bf16.mxu0 0
      %5296 = vmatpush1.bf16.msra.mxu0 0
      %5297 = vmatprep.subr.bf16.mxu0 0
      %5298 = vmatpush1.bf16.msra.mxu0 0
      %5299 = vmatprep.subr.bf16.mxu0 0
      %5300 = vmatpush1.bf16.msra.mxu0 0
      %5301 = vmatprep.subr.bf16.mxu0 0
      %5302 = vmatpush1.bf16.msra.mxu0 0
      %5303 = vmatprep.subr.bf16.mxu0 0
      %5304 = vmatpush1.bf16.msra.mxu0 0
      %5305 = vmatprep.subr.bf16.mxu0 0
      %5306 = vmatpush1.bf16.msra.mxu0 0
      %5307 = vmatprep.subr.bf16.mxu0 0
      %5308 = vmatpush1.bf16.msra.mxu0 0
      %5309 = vmatprep.subr.bf16.mxu0 0
      %5310 = vmatpush1.bf16.msra.mxu0 %v5170
      %5311 = vmatprep.subr.bf16.mxu0 0
      %5312 = vmatpush2.bf16.msra.mxu0 0
      %5313 = vmatprep.subr.bf16.mxu0 0
      %5314 = vmatpush2.bf16.msra.mxu0 0
      %5315 = vmatprep.subr.bf16.mxu0 0
      %5316 = vmatpush2.bf16.msra.mxu0 0
      %5317 = vmatprep.subr.bf16.mxu0 0
      %5318 = vmatpush2.bf16.msra.mxu0 0
      %5319 = vmatprep.subr.bf16.mxu0 0
      %5320 = vmatpush2.bf16.msra.mxu0 0
      %5321 = vmatprep.subr.bf16.mxu0 0
      %5322 = vmatpush2.bf16.msra.mxu0 0
      %5323 = vmatprep.subr.bf16.mxu0 0
      %5324 = vmatpush2.bf16.msra.mxu0 0
      %5325 = vmatprep.subr.bf16.mxu0 0
      %5326 = vmatpush2.bf16.msra.mxu0 0
      %5327 = vmatprep.mubr.bf16.mxu0 0
      %5328 = vmatmul.mubr.bf16.gmra.mxu0 %v5149
      %v5329 = vpop.f32.mrf.mxu0
      %v5330 = vadd.f32 0.0, %v5329
      %v5331 = vpop.f32.mrf.mxu0
      %v5332 = vpop.f32.mrf.mxu0
      %v5333 = vpop.f32.mrf.mxu0
      %5334 = vdwg.mxu0
      %v5335 = vadd.f32 %v5118, %v5207
      %v5336 = vadd.f32 %v5119, %v5209
      %v5337 = vadd.f32 %v5120, %v5248
      %v5338 = vadd.f32 %v5121, %v5250
      %v5339 = vadd.f32 %v5122, %v5289
      %v5340 = vadd.f32 %v5123, %v5291
      %v5341 = vadd.f32 %v5124, %v5330
      %5342 = vrot.lane.b32.xlu0 %v340, 36
      %v5343 = vpop.permute.xlu0 %5342
      %5344 = vrot.lane.b32.xlu0 %v360, 44
      %v5345 = vpop.permute.xlu0 %5344
      %5346 = vrot.lane.b32.xlu0 %v359, 44
      %v5347 = vpop.permute.xlu0 %5346
      %5348 = vrot.lane.b32.xlu0 %v361, 44
      %v5349 = vpop.permute.xlu0 %5348
      %5350 = vrot.lane.b32.xlu0 %v369, 44
      %v5351 = vpop.permute.xlu0 %5350
      %5352 = vrot.lane.b32.xlu0 %v377, 44
      %v5353 = vpop.permute.xlu0 %5352
      %5354 = vrot.lane.b32.xlu0 %v376, 44
      %v5355 = vpop.permute.xlu0 %5354
      %5356 = vrot.lane.b32.xlu0 %v3598, 44
      %v5357 = vpop.permute.xlu0 %5356
      %vm5358 = vcmask 359424
      %v5359 = vsel %vm5358, %v5345, %v5347
      %v5360 = vsel %vm5358, %v5347, %v5349
      %v5361 = vsel %vm5358, %v5349, %v5351
      %v5362 = vsel %vm5358, %v5351, %v5353
      %v5363 = vsel %vm5358, %v5353, %v5355
      %v5364 = vsel %vm5358, %v5355, %v5357
      %v5366 = vsel %vm399, %v5343, 0
      %v5369 = vsel %vm403, %v5359, 0
      %v5372 = vsel %vm403, %v5360, 0
      %v5375 = vsel %vm403, %v5361, 0
      %v5378 = vsel %vm403, %v5362, 0
      %v5381 = vsel %vm403, %v5363, 0
      %v5384 = vsel %vm403, %v5364, 0
      %v5387 = vsel %vm403, %v5357, 0
      %5389 = vmatprep.subr.bf16.mxu0 0
      %5390 = vmatpush1.bf16.msra.mxu0 0
      %5391 = vmatprep.subr.bf16.mxu0 0
      %5392 = vmatpush1.bf16.msra.mxu0 0
      %5393 = vmatprep.subr.bf16.mxu0 0
      %5394 = vmatpush1.bf16.msra.mxu0 0
      %5395 = vmatprep.subr.bf16.mxu0 0
      %5396 = vmatpush1.bf16.msra.mxu0 0
      %5397 = vmatprep.subr.bf16.mxu0 0
      %5398 = vmatpush1.bf16.msra.mxu0 0
      %5399 = vmatprep.subr.bf16.mxu0 0
      %5400 = vmatpush1.bf16.msra.mxu0 0
      %5401 = vmatprep.subr.bf16.mxu0 0
      %5402 = vmatpush1.bf16.msra.mxu0 0
      %5403 = vmatprep.subr.bf16.mxu0 %v5372
      %5404 = vmatpush1.bf16.msra.mxu0 %v5369
      %5405 = vmatprep.subr.bf16.mxu0 0
      %5406 = vmatpush2.bf16.msra.mxu0 0
      %5407 = vmatprep.subr.bf16.mxu0 0
      %5408 = vmatpush2.bf16.msra.mxu0 0
      %5409 = vmatprep.subr.bf16.mxu0 0
      %5410 = vmatpush2.bf16.msra.mxu0 0
      %5411 = vmatprep.subr.bf16.mxu0 0
      %5412 = vmatpush2.bf16.msra.mxu0 0
      %5413 = vmatprep.subr.bf16.mxu0 0
      %5414 = vmatpush2.bf16.msra.mxu0 0
      %5415 = vmatprep.subr.bf16.mxu0 0
      %5416 = vmatpush2.bf16.msra.mxu0 0
      %5417 = vmatprep.subr.bf16.mxu0 0
      %5418 = vmatpush2.bf16.msra.mxu0 0
      %5419 = vmatprep.subr.bf16.mxu0 0
      %5420 = vmatpush2.bf16.msra.mxu0 0
      %5421 = vmatprep.mubr.bf16.mxu0 0
      %5422 = vmatmul.mubr.bf16.gmra.mxu0 %v5366
      %v5423 = vpop.f32.mrf.mxu0
      %v5424 = vadd.f32 0.0, %v5423
      %v5425 = vpop.f32.mrf.mxu0
      %v5426 = vadd.f32 0.0, %v5425
      %v5427 = vpop.f32.mrf.mxu0
      %v5428 = vpop.f32.mrf.mxu0
      %5429 = vdwg.mxu0
      %5430 = vmatprep.subr.bf16.mxu0 0
      %5431 = vmatpush1.bf16.msra.mxu0 0
      %5432 = vmatprep.subr.bf16.mxu0 0
      %5433 = vmatpush1.bf16.msra.mxu0 0
      %5434 = vmatprep.subr.bf16.mxu0 0
      %5435 = vmatpush1.bf16.msra.mxu0 0
      %5436 = vmatprep.subr.bf16.mxu0 0
      %5437 = vmatpush1.bf16.msra.mxu0 0
      %5438 = vmatprep.subr.bf16.mxu0 0
      %5439 = vmatpush1.bf16.msra.mxu0 0
      %5440 = vmatprep.subr.bf16.mxu0 0
      %5441 = vmatpush1.bf16.msra.mxu0 0
      %5442 = vmatprep.subr.bf16.mxu0 0
      %5443 = vmatpush1.bf16.msra.mxu0 0
      %5444 = vmatprep.subr.bf16.mxu0 %v5378
      %5445 = vmatpush1.bf16.msra.mxu0 %v5375
      %5446 = vmatprep.subr.bf16.mxu0 0
      %5447 = vmatpush2.bf16.msra.mxu0 0
      %5448 = vmatprep.subr.bf16.mxu0 0
      %5449 = vmatpush2.bf16.msra.mxu0 0
      %5450 = vmatprep.subr.bf16.mxu0 0
      %5451 = vmatpush2.bf16.msra.mxu0 0
      %5452 = vmatprep.subr.bf16.mxu0 0
      %5453 = vmatpush2.bf16.msra.mxu0 0
      %5454 = vmatprep.subr.bf16.mxu0 0
      %5455 = vmatpush2.bf16.msra.mxu0 0
      %5456 = vmatprep.subr.bf16.mxu0 0
      %5457 = vmatpush2.bf16.msra.mxu0 0
      %5458 = vmatprep.subr.bf16.mxu0 0
      %5459 = vmatpush2.bf16.msra.mxu0 0
      %5460 = vmatprep.subr.bf16.mxu0 0
      %5461 = vmatpush2.bf16.msra.mxu0 0
      %5462 = vmatprep.mubr.bf16.mxu0 0
      %5463 = vmatmul.mubr.bf16.gmra.mxu0 %v5366
      %v5464 = vpop.f32.mrf.mxu0
      %v5465 = vadd.f32 0.0, %v5464
      %v5466 = vpop.f32.mrf.mxu0
      %v5467 = vadd.f32 0.0, %v5466
      %v5468 = vpop.f32.mrf.mxu0
      %v5469 = vpop.f32.mrf.mxu0
      %5470 = vdwg.mxu0
      %5471 = vmatprep.subr.bf16.mxu0 0
      %5472 = vmatpush1.bf16.msra.mxu0 0
      %5473 = vmatprep.subr.bf16.mxu0 0
      %5474 = vmatpush1.bf16.msra.mxu0 0
      %5475 = vmatprep.subr.bf16.mxu0 0
      %5476 = vmatpush1.bf16.msra.mxu0 0
      %5477 = vmatprep.subr.bf16.mxu0 0
      %5478 = vmatpush1.bf16.msra.mxu0 0
      %5479 = vmatprep.subr.bf16.mxu0 0
      %5480 = vmatpush1.bf16.msra.mxu0 0
      %5481 = vmatprep.subr.bf16.mxu0 0
      %5482 = vmatpush1.bf16.msra.mxu0 0
      %5483 = vmatprep.subr.bf16.mxu0 0
      %5484 = vmatpush1.bf16.msra.mxu0 0
      %5485 = vmatprep.subr.bf16.mxu0 %v5384
      %5486 = vmatpush1.bf16.msra.mxu0 %v5381
      %5487 = vmatprep.subr.bf16.mxu0 0
      %5488 = vmatpush2.bf16.msra.mxu0 0
      %5489 = vmatprep.subr.bf16.mxu0 0
      %5490 = vmatpush2.bf16.msra.mxu0 0
      %5491 = vmatprep.subr.bf16.mxu0 0
      %5492 = vmatpush2.bf16.msra.mxu0 0
      %5493 = vmatprep.subr.bf16.mxu0 0
      %5494 = vmatpush2.bf16.msra.mxu0 0
      %5495 = vmatprep.subr.bf16.mxu0 0
      %5496 = vmatpush2.bf16.msra.mxu0 0
      %5497 = vmatprep.subr.bf16.mxu0 0
      %5498 = vmatpush2.bf16.msra.mxu0 0
      %5499 = vmatprep.subr.bf16.mxu0 0
      %5500 = vmatpush2.bf16.msra.mxu0 0
      %5501 = vmatprep.subr.bf16.mxu0 0
      %5502 = vmatpush2.bf16.msra.mxu0 0
      %5503 = vmatprep.mubr.bf16.mxu0 0
      %5504 = vmatmul.mubr.bf16.gmra.mxu0 %v5366
      %v5505 = vpop.f32.mrf.mxu0
      %v5506 = vadd.f32 0.0, %v5505
      %v5507 = vpop.f32.mrf.mxu0
      %v5508 = vadd.f32 0.0, %v5507
      %v5509 = vpop.f32.mrf.mxu0
      %v5510 = vpop.f32.mrf.mxu0
      %5511 = vdwg.mxu0
      %5512 = vmatprep.subr.bf16.mxu0 0
      %5513 = vmatpush1.bf16.msra.mxu0 0
      %5514 = vmatprep.subr.bf16.mxu0 0
      %5515 = vmatpush1.bf16.msra.mxu0 0
      %5516 = vmatprep.subr.bf16.mxu0 0
      %5517 = vmatpush1.bf16.msra.mxu0 0
      %5518 = vmatprep.subr.bf16.mxu0 0
      %5519 = vmatpush1.bf16.msra.mxu0 0
      %5520 = vmatprep.subr.bf16.mxu0 0
      %5521 = vmatpush1.bf16.msra.mxu0 0
      %5522 = vmatprep.subr.bf16.mxu0 0
      %5523 = vmatpush1.bf16.msra.mxu0 0
      %5524 = vmatprep.subr.bf16.mxu0 0
      %5525 = vmatpush1.bf16.msra.mxu0 0
      %5526 = vmatprep.subr.bf16.mxu0 0
      %5527 = vmatpush1.bf16.msra.mxu0 %v5387
      %5528 = vmatprep.subr.bf16.mxu0 0
      %5529 = vmatpush2.bf16.msra.mxu0 0
      %5530 = vmatprep.subr.bf16.mxu0 0
      %5531 = vmatpush2.bf16.msra.mxu0 0
      %5532 = vmatprep.subr.bf16.mxu0 0
      %5533 = vmatpush2.bf16.msra.mxu0 0
      %5534 = vmatprep.subr.bf16.mxu0 0
      %5535 = vmatpush2.bf16.msra.mxu0 0
      %5536 = vmatprep.subr.bf16.mxu0 0
      %5537 = vmatpush2.bf16.msra.mxu0 0
      %5538 = vmatprep.subr.bf16.mxu0 0
      %5539 = vmatpush2.bf16.msra.mxu0 0
      %5540 = vmatprep.subr.bf16.mxu0 0
      %5541 = vmatpush2.bf16.msra.mxu0 0
      %5542 = vmatprep.subr.bf16.mxu0 0
      %5543 = vmatpush2.bf16.msra.mxu0 0
      %5544 = vmatprep.mubr.bf16.mxu0 0
      %5545 = vmatmul.mubr.bf16.gmra.mxu0 %v5366
      %v5546 = vpop.f32.mrf.mxu0
      %v5547 = vadd.f32 0.0, %v5546
      %v5548 = vpop.f32.mrf.mxu0
      %v5549 = vpop.f32.mrf.mxu0
      %v5550 = vpop.f32.mrf.mxu0
      %5551 = vdwg.mxu0
      %v5552 = vadd.f32 %v5335, %v5424
      %v5553 = vadd.f32 %v5336, %v5426
      %v5554 = vadd.f32 %v5337, %v5465
      %v5555 = vadd.f32 %v5338, %v5467
      %v5556 = vadd.f32 %v5339, %v5506
      %v5557 = vadd.f32 %v5340, %v5508
      %v5558 = vadd.f32 %v5341, %v5547
      %5559 = vrot.lane.b32.xlu0 %v340, 32
      %v5560 = vpop.permute.xlu0 %5559
      %5561 = vrot.lane.b32.xlu0 %v360, 36
      %v5562 = vpop.permute.xlu0 %5561
      %5563 = vrot.lane.b32.xlu0 %v359, 36
      %v5564 = vpop.permute.xlu0 %5563
      %5565 = vrot.lane.b32.xlu0 %v361, 36
      %v5566 = vpop.permute.xlu0 %5565
      %5567 = vrot.lane.b32.xlu0 %v369, 36
      %v5568 = vpop.permute.xlu0 %5567
      %5569 = vrot.lane.b32.xlu0 %v377, 36
      %v5570 = vpop.permute.xlu0 %5569
      %5571 = vrot.lane.b32.xlu0 %v376, 36
      %v5572 = vpop.permute.xlu0 %5571
      %5573 = vrot.lane.b32.xlu0 %v3598, 36
      %v5574 = vpop.permute.xlu0 %5573
      %vm5575 = vcmask 293888
      %v5576 = vsel %vm5575, %v5562, %v5564
      %v5577 = vsel %vm5575, %v5564, %v5566
      %v5578 = vsel %vm5575, %v5566, %v5568
      %v5579 = vsel %vm5575, %v5568, %v5570
      %v5580 = vsel %vm5575, %v5570, %v5572
      %v5581 = vsel %vm5575, %v5572, %v5574
      %v5583 = vsel %vm399, %v5560, 0
      %v5586 = vsel %vm403, %v5576, 0
      %v5589 = vsel %vm403, %v5577, 0
      %v5592 = vsel %vm403, %v5578, 0
      %v5595 = vsel %vm403, %v5579, 0
      %v5598 = vsel %vm403, %v5580, 0
      %v5601 = vsel %vm403, %v5581, 0
      %v5604 = vsel %vm403, %v5574, 0
      %5606 = vmatprep.subr.bf16.mxu0 0
      %5607 = vmatpush1.bf16.msra.mxu0 0
      %5608 = vmatprep.subr.bf16.mxu0 0
      %5609 = vmatpush1.bf16.msra.mxu0 0
      %5610 = vmatprep.subr.bf16.mxu0 0
      %5611 = vmatpush1.bf16.msra.mxu0 0
      %5612 = vmatprep.subr.bf16.mxu0 0
      %5613 = vmatpush1.bf16.msra.mxu0 0
      %5614 = vmatprep.subr.bf16.mxu0 0
      %5615 = vmatpush1.bf16.msra.mxu0 0
      %5616 = vmatprep.subr.bf16.mxu0 0
      %5617 = vmatpush1.bf16.msra.mxu0 0
      %5618 = vmatprep.subr.bf16.mxu0 0
      %5619 = vmatpush1.bf16.msra.mxu0 0
      %5620 = vmatprep.subr.bf16.mxu0 %v5589
      %5621 = vmatpush1.bf16.msra.mxu0 %v5586
      %5622 = vmatprep.subr.bf16.mxu0 0
      %5623 = vmatpush2.bf16.msra.mxu0 0
      %5624 = vmatprep.subr.bf16.mxu0 0
      %5625 = vmatpush2.bf16.msra.mxu0 0
      %5626 = vmatprep.subr.bf16.mxu0 0
      %5627 = vmatpush2.bf16.msra.mxu0 0
      %5628 = vmatprep.subr.bf16.mxu0 0
      %5629 = vmatpush2.bf16.msra.mxu0 0
      %5630 = vmatprep.subr.bf16.mxu0 0
      %5631 = vmatpush2.bf16.msra.mxu0 0
      %5632 = vmatprep.subr.bf16.mxu0 0
      %5633 = vmatpush2.bf16.msra.mxu0 0
      %5634 = vmatprep.subr.bf16.mxu0 0
      %5635 = vmatpush2.bf16.msra.mxu0 0
      %5636 = vmatprep.subr.bf16.mxu0 0
      %5637 = vmatpush2.bf16.msra.mxu0 0
      %5638 = vmatprep.mubr.bf16.mxu0 0
      %5639 = vmatmul.mubr.bf16.gmra.mxu0 %v5583
      %v5640 = vpop.f32.mrf.mxu0
      %v5641 = vadd.f32 0.0, %v5640
      %v5642 = vpop.f32.mrf.mxu0
      %v5643 = vadd.f32 0.0, %v5642
      %v5644 = vpop.f32.mrf.mxu0
      %v5645 = vpop.f32.mrf.mxu0
      %5646 = vdwg.mxu0
      %5647 = vmatprep.subr.bf16.mxu0 0
      %5648 = vmatpush1.bf16.msra.mxu0 0
      %5649 = vmatprep.subr.bf16.mxu0 0
      %5650 = vmatpush1.bf16.msra.mxu0 0
      %5651 = vmatprep.subr.bf16.mxu0 0
      %5652 = vmatpush1.bf16.msra.mxu0 0
      %5653 = vmatprep.subr.bf16.mxu0 0
      %5654 = vmatpush1.bf16.msra.mxu0 0
      %5655 = vmatprep.subr.bf16.mxu0 0
      %5656 = vmatpush1.bf16.msra.mxu0 0
      %5657 = vmatprep.subr.bf16.mxu0 0
      %5658 = vmatpush1.bf16.msra.mxu0 0
      %5659 = vmatprep.subr.bf16.mxu0 0
      %5660 = vmatpush1.bf16.msra.mxu0 0
      %5661 = vmatprep.subr.bf16.mxu0 %v5595
      %5662 = vmatpush1.bf16.msra.mxu0 %v5592
      %5663 = vmatprep.subr.bf16.mxu0 0
      %5664 = vmatpush2.bf16.msra.mxu0 0
      %5665 = vmatprep.subr.bf16.mxu0 0
      %5666 = vmatpush2.bf16.msra.mxu0 0
      %5667 = vmatprep.subr.bf16.mxu0 0
      %5668 = vmatpush2.bf16.msra.mxu0 0
      %5669 = vmatprep.subr.bf16.mxu0 0
      %5670 = vmatpush2.bf16.msra.mxu0 0
      %5671 = vmatprep.subr.bf16.mxu0 0
      %5672 = vmatpush2.bf16.msra.mxu0 0
      %5673 = vmatprep.subr.bf16.mxu0 0
      %5674 = vmatpush2.bf16.msra.mxu0 0
      %5675 = vmatprep.subr.bf16.mxu0 0
      %5676 = vmatpush2.bf16.msra.mxu0 0
      %5677 = vmatprep.subr.bf16.mxu0 0
      %5678 = vmatpush2.bf16.msra.mxu0 0
      %5679 = vmatprep.mubr.bf16.mxu0 0
      %5680 = vmatmul.mubr.bf16.gmra.mxu0 %v5583
      %v5681 = vpop.f32.mrf.mxu0
      %v5682 = vadd.f32 0.0, %v5681
      %v5683 = vpop.f32.mrf.mxu0
      %v5684 = vadd.f32 0.0, %v5683
      %v5685 = vpop.f32.mrf.mxu0
      %v5686 = vpop.f32.mrf.mxu0
      %5687 = vdwg.mxu0
      %5688 = vmatprep.subr.bf16.mxu0 0
      %5689 = vmatpush1.bf16.msra.mxu0 0
      %5690 = vmatprep.subr.bf16.mxu0 0
      %5691 = vmatpush1.bf16.msra.mxu0 0
      %5692 = vmatprep.subr.bf16.mxu0 0
      %5693 = vmatpush1.bf16.msra.mxu0 0
      %5694 = vmatprep.subr.bf16.mxu0 0
      %5695 = vmatpush1.bf16.msra.mxu0 0
      %5696 = vmatprep.subr.bf16.mxu0 0
      %5697 = vmatpush1.bf16.msra.mxu0 0
      %5698 = vmatprep.subr.bf16.mxu0 0
      %5699 = vmatpush1.bf16.msra.mxu0 0
      %5700 = vmatprep.subr.bf16.mxu0 0
      %5701 = vmatpush1.bf16.msra.mxu0 0
      %5702 = vmatprep.subr.bf16.mxu0 %v5601
      %5703 = vmatpush1.bf16.msra.mxu0 %v5598
      %5704 = vmatprep.subr.bf16.mxu0 0
      %5705 = vmatpush2.bf16.msra.mxu0 0
      %5706 = vmatprep.subr.bf16.mxu0 0
      %5707 = vmatpush2.bf16.msra.mxu0 0
      %5708 = vmatprep.subr.bf16.mxu0 0
      %5709 = vmatpush2.bf16.msra.mxu0 0
      %5710 = vmatprep.subr.bf16.mxu0 0
      %5711 = vmatpush2.bf16.msra.mxu0 0
      %5712 = vmatprep.subr.bf16.mxu0 0
      %5713 = vmatpush2.bf16.msra.mxu0 0
      %5714 = vmatprep.subr.bf16.mxu0 0
      %5715 = vmatpush2.bf16.msra.mxu0 0
      %5716 = vmatprep.subr.bf16.mxu0 0
      %5717 = vmatpush2.bf16.msra.mxu0 0
      %5718 = vmatprep.subr.bf16.mxu0 0
      %5719 = vmatpush2.bf16.msra.mxu0 0
      %5720 = vmatprep.mubr.bf16.mxu0 0
      %5721 = vmatmul.mubr.bf16.gmra.mxu0 %v5583
      %v5722 = vpop.f32.mrf.mxu0
      %v5723 = vadd.f32 0.0, %v5722
      %v5724 = vpop.f32.mrf.mxu0
      %v5725 = vadd.f32 0.0, %v5724
      %v5726 = vpop.f32.mrf.mxu0
      %v5727 = vpop.f32.mrf.mxu0
      %5728 = vdwg.mxu0
      %5729 = vmatprep.subr.bf16.mxu0 0
      %5730 = vmatpush1.bf16.msra.mxu0 0
      %5731 = vmatprep.subr.bf16.mxu0 0
      %5732 = vmatpush1.bf16.msra.mxu0 0
      %5733 = vmatprep.subr.bf16.mxu0 0
      %5734 = vmatpush1.bf16.msra.mxu0 0
      %5735 = vmatprep.subr.bf16.mxu0 0
      %5736 = vmatpush1.bf16.msra.mxu0 0
      %5737 = vmatprep.subr.bf16.mxu0 0
      %5738 = vmatpush1.bf16.msra.mxu0 0
      %5739 = vmatprep.subr.bf16.mxu0 0
      %5740 = vmatpush1.bf16.msra.mxu0 0
      %5741 = vmatprep.subr.bf16.mxu0 0
      %5742 = vmatpush1.bf16.msra.mxu0 0
      %5743 = vmatprep.subr.bf16.mxu0 0
      %5744 = vmatpush1.bf16.msra.mxu0 %v5604
      %5745 = vmatprep.subr.bf16.mxu0 0
      %5746 = vmatpush2.bf16.msra.mxu0 0
      %5747 = vmatprep.subr.bf16.mxu0 0
      %5748 = vmatpush2.bf16.msra.mxu0 0
      %5749 = vmatprep.subr.bf16.mxu0 0
      %5750 = vmatpush2.bf16.msra.mxu0 0
      %5751 = vmatprep.subr.bf16.mxu0 0
      %5752 = vmatpush2.bf16.msra.mxu0 0
      %5753 = vmatprep.subr.bf16.mxu0 0
      %5754 = vmatpush2.bf16.msra.mxu0 0
      %5755 = vmatprep.subr.bf16.mxu0 0
      %5756 = vmatpush2.bf16.msra.mxu0 0
      %5757 = vmatprep.subr.bf16.mxu0 0
      %5758 = vmatpush2.bf16.msra.mxu0 0
      %5759 = vmatprep.subr.bf16.mxu0 0
      %5760 = vmatpush2.bf16.msra.mxu0 0
      %5761 = vmatprep.mubr.bf16.mxu0 0
      %5762 = vmatmul.mubr.bf16.gmra.mxu0 %v5583
      %v5763 = vpop.f32.mrf.mxu0
      %v5764 = vadd.f32 0.0, %v5763
      %v5765 = vpop.f32.mrf.mxu0
      %v5766 = vpop.f32.mrf.mxu0
      %v5767 = vpop.f32.mrf.mxu0
      %5768 = vdwg.mxu0
      %v5769 = vadd.f32 %v5552, %v5641
      %v5770 = vadd.f32 %v5553, %v5643
      %v5771 = vadd.f32 %v5554, %v5682
      %v5772 = vadd.f32 %v5555, %v5684
      %v5773 = vadd.f32 %v5556, %v5723
      %v5774 = vadd.f32 %v5557, %v5725
      %v5775 = vadd.f32 %v5558, %v5764
      %5776 = vrot.lane.b32.xlu0 %v340, 28
      %v5777 = vpop.permute.xlu0 %5776
      %5778 = vrot.lane.b32.xlu0 %v360, 35
      %v5779 = vpop.permute.xlu0 %5778
      %5780 = vrot.lane.b32.xlu0 %v359, 35
      %v5781 = vpop.permute.xlu0 %5780
      %5782 = vrot.lane.b32.xlu0 %v361, 35
      %v5783 = vpop.permute.xlu0 %5782
      %5784 = vrot.lane.b32.xlu0 %v369, 35
      %v5785 = vpop.permute.xlu0 %5784
      %5786 = vrot.lane.b32.xlu0 %v377, 35
      %v5787 = vpop.permute.xlu0 %5786
      %5788 = vrot.lane.b32.xlu0 %v376, 35
      %v5789 = vpop.permute.xlu0 %5788
      %5790 = vrot.lane.b32.xlu0 %v3598, 35
      %v5791 = vpop.permute.xlu0 %5790
      %vm5792 = vcmask 285696
      %v5793 = vsel %vm5792, %v5779, %v5781
      %v5794 = vsel %vm5792, %v5781, %v5783
      %v5795 = vsel %vm5792, %v5783, %v5785
      %v5796 = vsel %vm5792, %v5785, %v5787
      %v5797 = vsel %vm5792, %v5787, %v5789
      %v5798 = vsel %vm5792, %v5789, %v5791
      %v5800 = vsel %vm399, %v5777, 0
      %v5803 = vsel %vm403, %v5793, 0
      %v5806 = vsel %vm403, %v5794, 0
      %v5809 = vsel %vm403, %v5795, 0
      %v5812 = vsel %vm403, %v5796, 0
      %v5815 = vsel %vm403, %v5797, 0
      %v5818 = vsel %vm403, %v5798, 0
      %v5821 = vsel %vm403, %v5791, 0
      %5823 = vmatprep.subr.bf16.mxu0 0
      %5824 = vmatpush1.bf16.msra.mxu0 0
      %5825 = vmatprep.subr.bf16.mxu0 0
      %5826 = vmatpush1.bf16.msra.mxu0 0
      %5827 = vmatprep.subr.bf16.mxu0 0
      %5828 = vmatpush1.bf16.msra.mxu0 0
      %5829 = vmatprep.subr.bf16.mxu0 0
      %5830 = vmatpush1.bf16.msra.mxu0 0
      %5831 = vmatprep.subr.bf16.mxu0 0
      %5832 = vmatpush1.bf16.msra.mxu0 0
      %5833 = vmatprep.subr.bf16.mxu0 0
      %5834 = vmatpush1.bf16.msra.mxu0 0
      %5835 = vmatprep.subr.bf16.mxu0 0
      %5836 = vmatpush1.bf16.msra.mxu0 0
      %5837 = vmatprep.subr.bf16.mxu0 %v5806
      %5838 = vmatpush1.bf16.msra.mxu0 %v5803
      %5839 = vmatprep.subr.bf16.mxu0 0
      %5840 = vmatpush2.bf16.msra.mxu0 0
      %5841 = vmatprep.subr.bf16.mxu0 0
      %5842 = vmatpush2.bf16.msra.mxu0 0
      %5843 = vmatprep.subr.bf16.mxu0 0
      %5844 = vmatpush2.bf16.msra.mxu0 0
      %5845 = vmatprep.subr.bf16.mxu0 0
      %5846 = vmatpush2.bf16.msra.mxu0 0
      %5847 = vmatprep.subr.bf16.mxu0 0
      %5848 = vmatpush2.bf16.msra.mxu0 0
      %5849 = vmatprep.subr.bf16.mxu0 0
      %5850 = vmatpush2.bf16.msra.mxu0 0
      %5851 = vmatprep.subr.bf16.mxu0 0
      %5852 = vmatpush2.bf16.msra.mxu0 0
      %5853 = vmatprep.subr.bf16.mxu0 0
      %5854 = vmatpush2.bf16.msra.mxu0 0
      %5855 = vmatprep.mubr.bf16.mxu0 0
      %5856 = vmatmul.mubr.bf16.gmra.mxu0 %v5800
      %v5857 = vpop.f32.mrf.mxu0
      %v5858 = vadd.f32 0.0, %v5857
      %v5859 = vpop.f32.mrf.mxu0
      %v5860 = vadd.f32 0.0, %v5859
      %v5861 = vpop.f32.mrf.mxu0
      %v5862 = vpop.f32.mrf.mxu0
      %5863 = vdwg.mxu0
      %5864 = vmatprep.subr.bf16.mxu0 0
      %5865 = vmatpush1.bf16.msra.mxu0 0
      %5866 = vmatprep.subr.bf16.mxu0 0
      %5867 = vmatpush1.bf16.msra.mxu0 0
      %5868 = vmatprep.subr.bf16.mxu0 0
      %5869 = vmatpush1.bf16.msra.mxu0 0
      %5870 = vmatprep.subr.bf16.mxu0 0
      %5871 = vmatpush1.bf16.msra.mxu0 0
      %5872 = vmatprep.subr.bf16.mxu0 0
      %5873 = vmatpush1.bf16.msra.mxu0 0
      %5874 = vmatprep.subr.bf16.mxu0 0
      %5875 = vmatpush1.bf16.msra.mxu0 0
      %5876 = vmatprep.subr.bf16.mxu0 0
      %5877 = vmatpush1.bf16.msra.mxu0 0
      %5878 = vmatprep.subr.bf16.mxu0 %v5812
      %5879 = vmatpush1.bf16.msra.mxu0 %v5809
      %5880 = vmatprep.subr.bf16.mxu0 0
      %5881 = vmatpush2.bf16.msra.mxu0 0
      %5882 = vmatprep.subr.bf16.mxu0 0
      %5883 = vmatpush2.bf16.msra.mxu0 0
      %5884 = vmatprep.subr.bf16.mxu0 0
      %5885 = vmatpush2.bf16.msra.mxu0 0
      %5886 = vmatprep.subr.bf16.mxu0 0
      %5887 = vmatpush2.bf16.msra.mxu0 0
      %5888 = vmatprep.subr.bf16.mxu0 0
      %5889 = vmatpush2.bf16.msra.mxu0 0
      %5890 = vmatprep.subr.bf16.mxu0 0
      %5891 = vmatpush2.bf16.msra.mxu0 0
      %5892 = vmatprep.subr.bf16.mxu0 0
      %5893 = vmatpush2.bf16.msra.mxu0 0
      %5894 = vmatprep.subr.bf16.mxu0 0
      %5895 = vmatpush2.bf16.msra.mxu0 0
      %5896 = vmatprep.mubr.bf16.mxu0 0
      %5897 = vmatmul.mubr.bf16.gmra.mxu0 %v5800
      %v5898 = vpop.f32.mrf.mxu0
      %v5899 = vadd.f32 0.0, %v5898
      %v5900 = vpop.f32.mrf.mxu0
      %v5901 = vadd.f32 0.0, %v5900
      %v5902 = vpop.f32.mrf.mxu0
      %v5903 = vpop.f32.mrf.mxu0
      %5904 = vdwg.mxu0
      %5905 = vmatprep.subr.bf16.mxu0 0
      %5906 = vmatpush1.bf16.msra.mxu0 0
      %5907 = vmatprep.subr.bf16.mxu0 0
      %5908 = vmatpush1.bf16.msra.mxu0 0
      %5909 = vmatprep.subr.bf16.mxu0 0
      %5910 = vmatpush1.bf16.msra.mxu0 0
      %5911 = vmatprep.subr.bf16.mxu0 0
      %5912 = vmatpush1.bf16.msra.mxu0 0
      %5913 = vmatprep.subr.bf16.mxu0 0
      %5914 = vmatpush1.bf16.msra.mxu0 0
      %5915 = vmatprep.subr.bf16.mxu0 0
      %5916 = vmatpush1.bf16.msra.mxu0 0
      %5917 = vmatprep.subr.bf16.mxu0 0
      %5918 = vmatpush1.bf16.msra.mxu0 0
      %5919 = vmatprep.subr.bf16.mxu0 %v5818
      %5920 = vmatpush1.bf16.msra.mxu0 %v5815
      %5921 = vmatprep.subr.bf16.mxu0 0
      %5922 = vmatpush2.bf16.msra.mxu0 0
      %5923 = vmatprep.subr.bf16.mxu0 0
      %5924 = vmatpush2.bf16.msra.mxu0 0
      %5925 = vmatprep.subr.bf16.mxu0 0
      %5926 = vmatpush2.bf16.msra.mxu0 0
      %5927 = vmatprep.subr.bf16.mxu0 0
      %5928 = vmatpush2.bf16.msra.mxu0 0
      %5929 = vmatprep.subr.bf16.mxu0 0
      %5930 = vmatpush2.bf16.msra.mxu0 0
      %5931 = vmatprep.subr.bf16.mxu0 0
      %5932 = vmatpush2.bf16.msra.mxu0 0
      %5933 = vmatprep.subr.bf16.mxu0 0
      %5934 = vmatpush2.bf16.msra.mxu0 0
      %5935 = vmatprep.subr.bf16.mxu0 0
      %5936 = vmatpush2.bf16.msra.mxu0 0
      %5937 = vmatprep.mubr.bf16.mxu0 0
      %5938 = vmatmul.mubr.bf16.gmra.mxu0 %v5800
      %v5939 = vpop.f32.mrf.mxu0
      %v5940 = vadd.f32 0.0, %v5939
      %v5941 = vpop.f32.mrf.mxu0
      %v5942 = vadd.f32 0.0, %v5941
      %v5943 = vpop.f32.mrf.mxu0
      %v5944 = vpop.f32.mrf.mxu0
      %5945 = vdwg.mxu0
      %5946 = vmatprep.subr.bf16.mxu0 0
      %5947 = vmatpush1.bf16.msra.mxu0 0
      %5948 = vmatprep.subr.bf16.mxu0 0
      %5949 = vmatpush1.bf16.msra.mxu0 0
      %5950 = vmatprep.subr.bf16.mxu0 0
      %5951 = vmatpush1.bf16.msra.mxu0 0
      %5952 = vmatprep.subr.bf16.mxu0 0
      %5953 = vmatpush1.bf16.msra.mxu0 0
      %5954 = vmatprep.subr.bf16.mxu0 0
      %5955 = vmatpush1.bf16.msra.mxu0 0
      %5956 = vmatprep.subr.bf16.mxu0 0
      %5957 = vmatpush1.bf16.msra.mxu0 0
      %5958 = vmatprep.subr.bf16.mxu0 0
      %5959 = vmatpush1.bf16.msra.mxu0 0
      %5960 = vmatprep.subr.bf16.mxu0 0
      %5961 = vmatpush1.bf16.msra.mxu0 %v5821
      %5962 = vmatprep.subr.bf16.mxu0 0
      %5963 = vmatpush2.bf16.msra.mxu0 0
      %5964 = vmatprep.subr.bf16.mxu0 0
      %5965 = vmatpush2.bf16.msra.mxu0 0
      %5966 = vmatprep.subr.bf16.mxu0 0
      %5967 = vmatpush2.bf16.msra.mxu0 0
      %5968 = vmatprep.subr.bf16.mxu0 0
      %5969 = vmatpush2.bf16.msra.mxu0 0
      %5970 = vmatprep.subr.bf16.mxu0 0
      %5971 = vmatpush2.bf16.msra.mxu0 0
      %5972 = vmatprep.subr.bf16.mxu0 0
      %5973 = vmatpush2.bf16.msra.mxu0 0
      %5974 = vmatprep.subr.bf16.mxu0 0
      %5975 = vmatpush2.bf16.msra.mxu0 0
      %5976 = vmatprep.subr.bf16.mxu0 0
      %5977 = vmatpush2.bf16.msra.mxu0 0
      %5978 = vmatprep.mubr.bf16.mxu0 0
      %5979 = vmatmul.mubr.bf16.gmra.mxu0 %v5800
      %v5980 = vpop.f32.mrf.mxu0
      %v5981 = vadd.f32 0.0, %v5980
      %v5982 = vpop.f32.mrf.mxu0
      %v5983 = vpop.f32.mrf.mxu0
      %v5984 = vpop.f32.mrf.mxu0
      %5985 = vdwg.mxu0
      %v5986 = vadd.f32 %v5769, %v5858
      %v5987 = vadd.f32 %v5770, %v5860
      %v5988 = vadd.f32 %v5771, %v5899
      %v5989 = vadd.f32 %v5772, %v5901
      %v5990 = vadd.f32 %v5773, %v5940
      %v5991 = vadd.f32 %v5774, %v5942
      %v5992 = vadd.f32 %v5775, %v5981
      %5993 = vrot.lane.b32.xlu0 %v340, 24
      %v5994 = vpop.permute.xlu0 %5993
      %5995 = vrot.lane.b32.xlu0 %v360, 34
      %v5996 = vpop.permute.xlu0 %5995
      %5997 = vrot.lane.b32.xlu0 %v359, 34
      %v5998 = vpop.permute.xlu0 %5997
      %5999 = vrot.lane.b32.xlu0 %v361, 34
      %v6000 = vpop.permute.xlu0 %5999
      %6001 = vrot.lane.b32.xlu0 %v369, 34
      %v6002 = vpop.permute.xlu0 %6001
      %6003 = vrot.lane.b32.xlu0 %v377, 34
      %v6004 = vpop.permute.xlu0 %6003
      %6005 = vrot.lane.b32.xlu0 %v376, 34
      %v6006 = vpop.permute.xlu0 %6005
      %6007 = vrot.lane.b32.xlu0 %v3598, 34
      %v6008 = vpop.permute.xlu0 %6007
      %vm6009 = vcmask 277504
      %v6010 = vsel %vm6009, %v5996, %v5998
      %v6011 = vsel %vm6009, %v5998, %v6000
      %v6012 = vsel %vm6009, %v6000, %v6002
      %v6013 = vsel %vm6009, %v6002, %v6004
      %v6014 = vsel %vm6009, %v6004, %v6006
      %v6015 = vsel %vm6009, %v6006, %v6008
      %v6017 = vsel %vm399, %v5994, 0
      %v6020 = vsel %vm403, %v6010, 0
      %v6023 = vsel %vm403, %v6011, 0
      %v6026 = vsel %vm403, %v6012, 0
      %v6029 = vsel %vm403, %v6013, 0
      %v6032 = vsel %vm403, %v6014, 0
      %v6035 = vsel %vm403, %v6015, 0
      %v6038 = vsel %vm403, %v6008, 0
      %6040 = vmatprep.subr.bf16.mxu0 0
      %6041 = vmatpush1.bf16.msra.mxu0 0
      %6042 = vmatprep.subr.bf16.mxu0 0
      %6043 = vmatpush1.bf16.msra.mxu0 0
      %6044 = vmatprep.subr.bf16.mxu0 0
      %6045 = vmatpush1.bf16.msra.mxu0 0
      %6046 = vmatprep.subr.bf16.mxu0 0
      %6047 = vmatpush1.bf16.msra.mxu0 0
      %6048 = vmatprep.subr.bf16.mxu0 0
      %6049 = vmatpush1.bf16.msra.mxu0 0
      %6050 = vmatprep.subr.bf16.mxu0 0
      %6051 = vmatpush1.bf16.msra.mxu0 0
      %6052 = vmatprep.subr.bf16.mxu0 0
      %6053 = vmatpush1.bf16.msra.mxu0 0
      %6054 = vmatprep.subr.bf16.mxu0 %v6023
      %6055 = vmatpush1.bf16.msra.mxu0 %v6020
      %6056 = vmatprep.subr.bf16.mxu0 0
      %6057 = vmatpush2.bf16.msra.mxu0 0
      %6058 = vmatprep.subr.bf16.mxu0 0
      %6059 = vmatpush2.bf16.msra.mxu0 0
      %6060 = vmatprep.subr.bf16.mxu0 0
      %6061 = vmatpush2.bf16.msra.mxu0 0
      %6062 = vmatprep.subr.bf16.mxu0 0
      %6063 = vmatpush2.bf16.msra.mxu0 0
      %6064 = vmatprep.subr.bf16.mxu0 0
      %6065 = vmatpush2.bf16.msra.mxu0 0
      %6066 = vmatprep.subr.bf16.mxu0 0
      %6067 = vmatpush2.bf16.msra.mxu0 0
      %6068 = vmatprep.subr.bf16.mxu0 0
      %6069 = vmatpush2.bf16.msra.mxu0 0
      %6070 = vmatprep.subr.bf16.mxu0 0
      %6071 = vmatpush2.bf16.msra.mxu0 0
      %6072 = vmatprep.mubr.bf16.mxu0 0
      %6073 = vmatmul.mubr.bf16.gmra.mxu0 %v6017
      %v6074 = vpop.f32.mrf.mxu0
      %v6075 = vadd.f32 0.0, %v6074
      %v6076 = vpop.f32.mrf.mxu0
      %v6077 = vadd.f32 0.0, %v6076
      %v6078 = vpop.f32.mrf.mxu0
      %v6079 = vpop.f32.mrf.mxu0
      %6080 = vdwg.mxu0
      %6081 = vmatprep.subr.bf16.mxu0 0
      %6082 = vmatpush1.bf16.msra.mxu0 0
      %6083 = vmatprep.subr.bf16.mxu0 0
      %6084 = vmatpush1.bf16.msra.mxu0 0
      %6085 = vmatprep.subr.bf16.mxu0 0
      %6086 = vmatpush1.bf16.msra.mxu0 0
      %6087 = vmatprep.subr.bf16.mxu0 0
      %6088 = vmatpush1.bf16.msra.mxu0 0
      %6089 = vmatprep.subr.bf16.mxu0 0
      %6090 = vmatpush1.bf16.msra.mxu0 0
      %6091 = vmatprep.subr.bf16.mxu0 0
      %6092 = vmatpush1.bf16.msra.mxu0 0
      %6093 = vmatprep.subr.bf16.mxu0 0
      %6094 = vmatpush1.bf16.msra.mxu0 0
      %6095 = vmatprep.subr.bf16.mxu0 %v6029
      %6096 = vmatpush1.bf16.msra.mxu0 %v6026
      %6097 = vmatprep.subr.bf16.mxu0 0
      %6098 = vmatpush2.bf16.msra.mxu0 0
      %6099 = vmatprep.subr.bf16.mxu0 0
      %6100 = vmatpush2.bf16.msra.mxu0 0
      %6101 = vmatprep.subr.bf16.mxu0 0
      %6102 = vmatpush2.bf16.msra.mxu0 0
      %6103 = vmatprep.subr.bf16.mxu0 0
      %6104 = vmatpush2.bf16.msra.mxu0 0
      %6105 = vmatprep.subr.bf16.mxu0 0
      %6106 = vmatpush2.bf16.msra.mxu0 0
      %6107 = vmatprep.subr.bf16.mxu0 0
      %6108 = vmatpush2.bf16.msra.mxu0 0
      %6109 = vmatprep.subr.bf16.mxu0 0
      %6110 = vmatpush2.bf16.msra.mxu0 0
      %6111 = vmatprep.subr.bf16.mxu0 0
      %6112 = vmatpush2.bf16.msra.mxu0 0
      %6113 = vmatprep.mubr.bf16.mxu0 0
      %6114 = vmatmul.mubr.bf16.gmra.mxu0 %v6017
      %v6115 = vpop.f32.mrf.mxu0
      %v6116 = vadd.f32 0.0, %v6115
      %v6117 = vpop.f32.mrf.mxu0
      %v6118 = vadd.f32 0.0, %v6117
      %v6119 = vpop.f32.mrf.mxu0
      %v6120 = vpop.f32.mrf.mxu0
      %6121 = vdwg.mxu0
      %6122 = vmatprep.subr.bf16.mxu0 0
      %6123 = vmatpush1.bf16.msra.mxu0 0
      %6124 = vmatprep.subr.bf16.mxu0 0
      %6125 = vmatpush1.bf16.msra.mxu0 0
      %6126 = vmatprep.subr.bf16.mxu0 0
      %6127 = vmatpush1.bf16.msra.mxu0 0
      %6128 = vmatprep.subr.bf16.mxu0 0
      %6129 = vmatpush1.bf16.msra.mxu0 0
      %6130 = vmatprep.subr.bf16.mxu0 0
      %6131 = vmatpush1.bf16.msra.mxu0 0
      %6132 = vmatprep.subr.bf16.mxu0 0
      %6133 = vmatpush1.bf16.msra.mxu0 0
      %6134 = vmatprep.subr.bf16.mxu0 0
      %6135 = vmatpush1.bf16.msra.mxu0 0
      %6136 = vmatprep.subr.bf16.mxu0 %v6035
      %6137 = vmatpush1.bf16.msra.mxu0 %v6032
      %6138 = vmatprep.subr.bf16.mxu0 0
      %6139 = vmatpush2.bf16.msra.mxu0 0
      %6140 = vmatprep.subr.bf16.mxu0 0
      %6141 = vmatpush2.bf16.msra.mxu0 0
      %6142 = vmatprep.subr.bf16.mxu0 0
      %6143 = vmatpush2.bf16.msra.mxu0 0
      %6144 = vmatprep.subr.bf16.mxu0 0
      %6145 = vmatpush2.bf16.msra.mxu0 0
      %6146 = vmatprep.subr.bf16.mxu0 0
      %6147 = vmatpush2.bf16.msra.mxu0 0
      %6148 = vmatprep.subr.bf16.mxu0 0
      %6149 = vmatpush2.bf16.msra.mxu0 0
      %6150 = vmatprep.subr.bf16.mxu0 0
      %6151 = vmatpush2.bf16.msra.mxu0 0
      %6152 = vmatprep.subr.bf16.mxu0 0
      %6153 = vmatpush2.bf16.msra.mxu0 0
      %6154 = vmatprep.mubr.bf16.mxu0 0
      %6155 = vmatmul.mubr.bf16.gmra.mxu0 %v6017
      %v6156 = vpop.f32.mrf.mxu0
      %v6157 = vadd.f32 0.0, %v6156
      %v6158 = vpop.f32.mrf.mxu0
      %v6159 = vadd.f32 0.0, %v6158
      %v6160 = vpop.f32.mrf.mxu0
      %v6161 = vpop.f32.mrf.mxu0
      %6162 = vdwg.mxu0
      %6163 = vmatprep.subr.bf16.mxu0 0
      %6164 = vmatpush1.bf16.msra.mxu0 0
      %6165 = vmatprep.subr.bf16.mxu0 0
      %6166 = vmatpush1.bf16.msra.mxu0 0
      %6167 = vmatprep.subr.bf16.mxu0 0
      %6168 = vmatpush1.bf16.msra.mxu0 0
      %6169 = vmatprep.subr.bf16.mxu0 0
      %6170 = vmatpush1.bf16.msra.mxu0 0
      %6171 = vmatprep.subr.bf16.mxu0 0
      %6172 = vmatpush1.bf16.msra.mxu0 0
      %6173 = vmatprep.subr.bf16.mxu0 0
      %6174 = vmatpush1.bf16.msra.mxu0 0
      %6175 = vmatprep.subr.bf16.mxu0 0
      %6176 = vmatpush1.bf16.msra.mxu0 0
      %6177 = vmatprep.subr.bf16.mxu0 0
      %6178 = vmatpush1.bf16.msra.mxu0 %v6038
      %6179 = vmatprep.subr.bf16.mxu0 0
      %6180 = vmatpush2.bf16.msra.mxu0 0
      %6181 = vmatprep.subr.bf16.mxu0 0
      %6182 = vmatpush2.bf16.msra.mxu0 0
      %6183 = vmatprep.subr.bf16.mxu0 0
      %6184 = vmatpush2.bf16.msra.mxu0 0
      %6185 = vmatprep.subr.bf16.mxu0 0
      %6186 = vmatpush2.bf16.msra.mxu0 0
      %6187 = vmatprep.subr.bf16.mxu0 0
      %6188 = vmatpush2.bf16.msra.mxu0 0
      %6189 = vmatprep.subr.bf16.mxu0 0
      %6190 = vmatpush2.bf16.msra.mxu0 0
      %6191 = vmatprep.subr.bf16.mxu0 0
      %6192 = vmatpush2.bf16.msra.mxu0 0
      %6193 = vmatprep.subr.bf16.mxu0 0
      %6194 = vmatpush2.bf16.msra.mxu0 0
      %6195 = vmatprep.mubr.bf16.mxu0 0
      %6196 = vmatmul.mubr.bf16.gmra.mxu0 %v6017
      %v6197 = vpop.f32.mrf.mxu0
      %v6198 = vadd.f32 0.0, %v6197
      %v6199 = vpop.f32.mrf.mxu0
      %v6200 = vpop.f32.mrf.mxu0
      %v6201 = vpop.f32.mrf.mxu0
      %6202 = vdwg.mxu0
      %v6203 = vadd.f32 %v5986, %v6075
      %v6204 = vadd.f32 %v5987, %v6077
      %v6205 = vadd.f32 %v5988, %v6116
      %v6206 = vadd.f32 %v5989, %v6118
      %v6207 = vadd.f32 %v5990, %v6157
      %v6208 = vadd.f32 %v5991, %v6159
      %v6209 = vadd.f32 %v5992, %v6198
      %v6210 = vld [vmem:[%s2] sm:$0xff]
      %v6211 = vld [vmem:[%s3] sm:$0xff]
      %v6213 = vlaneseq
      %v6214 = vshrl.u32 %v6213, 7
      %v6215 = vsub.s32 0, %v6214
      %v6216 = vrot.slane %v336, %v6215
      %v6217 = vlaneseq
      %v6218 = vshrl.u32 %v6217, 7
      %v6219 = vsub.s32 1, %v6218
      %v6220 = vrot.slane %v336, %v6219
      %v6221 = vlaneseq
      %v6222 = vshrl.u32 %v6221, 7
      %v6223 = vsub.s32 2, %v6222
      %v6224 = vrot.slane %v336, %v6223
      %v6225 = vlaneseq
      %v6226 = vshrl.u32 %v6225, 7
      %v6227 = vsub.s32 3, %v6226
      %v6228 = vrot.slane %v336, %v6227
      %v6229 = vlaneseq
      %v6230 = vshrl.u32 %v6229, 7
      %v6231 = vsub.s32 4, %v6230
      %v6232 = vrot.slane %v336, %v6231
      %v6233 = vlaneseq
      %v6234 = vshrl.u32 %v6233, 7
      %v6235 = vsub.s32 5, %v6234
      %v6236 = vrot.slane %v336, %v6235
      %v6237 = vlaneseq
      %v6238 = vshrl.u32 %v6237, 7
      %v6239 = vsub.s32 6, %v6238
      %v6240 = vrot.slane %v336, %v6239
      %v6248 = vmul.f32 %v6203, %v6216
      %v6249 = vmul.f32 %v6204, %v6220
      %v6250 = vmul.f32 %v6205, %v6224
      %v6251 = vmul.f32 %v6206, %v6228
      %v6252 = vmul.f32 %v6207, %v6232
      %v6253 = vmul.f32 %v6208, %v6236
      %v6254 = vmul.f32 %v6209, %v6240
      %v6255 = vadd.f32 %v6248, %v6249
      %v6256 = vadd.f32 %v6255, %v6250
      %v6257 = vadd.f32 %v6256, %v6251
      %v6258 = vadd.f32 %v6257, %v6252
      %v6259 = vadd.f32 %v6258, %v6253
      %vm6260 = vcmask 80896
      %v6261 = vsel %vm6260, %v6254, 0.0
      %v6262 = vadd.f32 %v6259, %v6261
      %6263 = vadd.xlane.f32.xlu0 %v6262
      %v6264 = vpop.xlane.xlu0 %6263
      %v6265 = vmul.f32 %v6264, 0.001953125
      %v6266 = vmul.f32 %v6248, %v6248
      %v6267 = vmul.f32 %v6249, %v6249
      %v6268 = vmul.f32 %v6250, %v6250
      %v6269 = vmul.f32 %v6251, %v6251
      %v6270 = vmul.f32 %v6252, %v6252
      %v6271 = vmul.f32 %v6253, %v6253
      %v6272 = vmul.f32 %v6254, %v6254
      %v6273 = vadd.f32 %v6266, %v6267
      %v6274 = vadd.f32 %v6273, %v6268
      %v6275 = vadd.f32 %v6274, %v6269
      %v6276 = vadd.f32 %v6275, %v6270
      %v6277 = vadd.f32 %v6276, %v6271
      %v6278 = vsel %vm6260, %v6272, 0.0
      %v6279 = vadd.f32 %v6277, %v6278
      %6280 = vadd.xlane.f32.xlu0 %v6279
      %v6281 = vpop.xlane.xlu0 %6280
      %v6282 = vmul.f32 %v6281, 0.001953125
      %v6283 = vmul.f32 %v6265, %v6265
      %v6284 = vsub.f32 %v6282, %v6283
      %v6285 = vmax.f32 %v6284, 0.0
      %v6286 = vadd.f32 %v6285, 1e-05
      %v6287 = vrsqrt.pop %v6286
      %v6288 = vmul.f32 %v6210, %v6287
      %v6289 = vmul.f32 %v6265, %v6288
      %v6290 = vsub.f32 %v6211, %v6289
      %6292 = vset.pattern.permute.xlu0 0
      %6293 = vperm.xlu0 %6292, %v6288
      %v6294 = vpop.permute.xlu0 %6293
      %v6296 = vmul.f32 %v6203, %v6294
      %v6297 = vmul.f32 %v6204, %v6294
      %v6298 = vmul.f32 %v6205, %v6294
      %v6299 = vmul.f32 %v6206, %v6294
      %v6300 = vmul.f32 %v6207, %v6294
      %v6301 = vmul.f32 %v6208, %v6294
      %v6302 = vmul.f32 %v6209, %v6294
      %6304 = vset.pattern.permute.xlu0 0
      %6305 = vperm.xlu0 %6304, %v6290
      %v6306 = vpop.permute.xlu0 %6305
      %v6308 = vadd.f32 %v6296, %v6306
      %v6309 = vadd.f32 %v6297, %v6306
      %v6310 = vadd.f32 %v6298, %v6306
      %v6311 = vadd.f32 %v6299, %v6306
      %v6312 = vadd.f32 %v6300, %v6306
      %v6313 = vadd.f32 %v6301, %v6306
      %v6314 = vadd.f32 %v6302, %v6306
      %vm6315 = vcmp.gt.f32.partialorder %v6308, 0.0
      %vm6316 = vcmp.gt.f32.partialorder %v6309, 0.0
      %vm6317 = vcmp.gt.f32.partialorder %v6310, 0.0
      %vm6318 = vcmp.gt.f32.partialorder %v6311, 0.0
      %vm6319 = vcmp.gt.f32.partialorder %v6312, 0.0
      %vm6320 = vcmp.gt.f32.partialorder %v6313, 0.0
      %vm6321 = vcmp.gt.f32.partialorder %v6314, 0.0
      %v6322 = vmul.f32 %v6308, 0.01
      %v6323 = vmul.f32 %v6309, 0.01
      %v6324 = vmul.f32 %v6310, 0.01
      %v6325 = vmul.f32 %v6311, 0.01
      %v6326 = vmul.f32 %v6312, 0.01
      %v6327 = vmul.f32 %v6313, 0.01
      %v6328 = vmul.f32 %v6314, 0.01
      %v6329 = vsel %vm6315, %v6308, %v6322
      %v6330 = vsel %vm6316, %v6309, %v6323
      %v6331 = vsel %vm6317, %v6310, %v6324
      %v6332 = vsel %vm6318, %v6311, %v6325
      %v6333 = vsel %vm6319, %v6312, %v6326
      %v6334 = vsel %vm6320, %v6313, %v6327
      %v6335 = vsel %vm6321, %v6314, %v6328
      %v6336 = vpack.c.bf16 %v6329, %v6329
      %v6337 = vpack.c.bf16 %v6330, %v6330
      %v6338 = vpack.c.bf16 %v6331, %v6331
      %v6339 = vpack.c.bf16 %v6332, %v6332
      %v6340 = vpack.c.bf16 %v6333, %v6333
      %v6341 = vpack.c.bf16 %v6334, %v6334
      %v6342 = vpack.c.bf16 %v6335, %v6335
      %v6343 = vld [vmem:[%s4] sm:$0xff]
      %v6345 = vunpack.c.l.b16 %v6343
      %v6346 = vpack.c.b16 %v6345, %v6345
      %6347 = vrot.lane.b32.xlu0 %v6346, 120
      %v6348 = vpop.permute.xlu0 %6347
      %6354 = vrot.lane.b32.xlu0 %v6336, 127
      %v6355 = vpop.permute.xlu0 %6354
      %6356 = vrot.lane.b32.xlu0 %v6337, 127
      %v6357 = vpop.permute.xlu0 %6356
      %6358 = vrot.lane.b32.xlu0 %v6338, 127
      %v6359 = vpop.permute.xlu0 %6358
      %6360 = vrot.lane.b32.xlu0 %v6339, 127
      %v6361 = vpop.permute.xlu0 %6360
      %6362 = vrot.lane.b32.xlu0 %v6340, 127
      %v6363 = vpop.permute.xlu0 %6362
      %v6364 = vsel %vm392, %v6355, %v6357
      %v6365 = vsel %vm392, %v6357, %v6359
      %v6366 = vsel %vm392, %v6359, %v6361
      %v6367 = vsel %vm392, %v6361, %v6363
      %vm6368 = vcmask 64512
      %v6370 = vsel %vm6368, %v6348, 0
      %vm6372 = vcmask 1043456
      %v6374 = vsel %vm6372, %v6364, 0
      %v6377 = vsel %vm6372, %v6365, 0
      %v6380 = vsel %vm6372, %v6366, 0
      %v6383 = vsel %vm6372, %v6367, 0
      %v6386 = vsel %vm6372, %v6363, 0
      %6388 = vmatprep.subr.bf16.mxu0 0
      %6389 = vmatpush1.bf16.msra.mxu0 0
      %6390 = vmatprep.subr.bf16.mxu0 0
      %6391 = vmatpush1.bf16.msra.mxu0 0
      %6392 = vmatprep.subr.bf16.mxu0 0
      %6393 = vmatpush1.bf16.msra.mxu0 0
      %6394 = vmatprep.subr.bf16.mxu0 0
      %6395 = vmatpush1.bf16.msra.mxu0 0
      %6396 = vmatprep.subr.bf16.mxu0 0
      %6397 = vmatpush1.bf16.msra.mxu0 0
      %6398 = vmatprep.subr.bf16.mxu0 0
      %6399 = vmatpush1.bf16.msra.mxu0 0
      %6400 = vmatprep.subr.bf16.mxu0 0
      %6401 = vmatpush1.bf16.msra.mxu0 0
      %6402 = vmatprep.subr.bf16.mxu0 %v6377
      %6403 = vmatpush1.bf16.msra.mxu0 %v6374
      %6404 = vmatprep.subr.bf16.mxu0 0
      %6405 = vmatpush2.bf16.msra.mxu0 0
      %6406 = vmatprep.subr.bf16.mxu0 0
      %6407 = vmatpush2.bf16.msra.mxu0 0
      %6408 = vmatprep.subr.bf16.mxu0 0
      %6409 = vmatpush2.bf16.msra.mxu0 0
      %6410 = vmatprep.subr.bf16.mxu0 0
      %6411 = vmatpush2.bf16.msra.mxu0 0
      %6412 = vmatprep.subr.bf16.mxu0 0
      %6413 = vmatpush2.bf16.msra.mxu0 0
      %6414 = vmatprep.subr.bf16.mxu0 0
      %6415 = vmatpush2.bf16.msra.mxu0 0
      %6416 = vmatprep.subr.bf16.mxu0 0
      %6417 = vmatpush2.bf16.msra.mxu0 0
      %6418 = vmatprep.subr.bf16.mxu0 0
      %6419 = vmatpush2.bf16.msra.mxu0 0
      %6420 = vmatprep.mubr.bf16.mxu0 0
      %6421 = vmatmul.mubr.bf16.gmra.mxu0 %v6370
      %v6422 = vpop.f32.mrf.mxu0
      %v6423 = vadd.f32 0.0, %v6422
      %v6424 = vpop.f32.mrf.mxu0
      %v6425 = vadd.f32 0.0, %v6424
      %v6426 = vpop.f32.mrf.mxu0
      %v6427 = vpop.f32.mrf.mxu0
      %6428 = vdwg.mxu0
      %6429 = vmatprep.subr.bf16.mxu0 0
      %6430 = vmatpush1.bf16.msra.mxu0 0
      %6431 = vmatprep.subr.bf16.mxu0 0
      %6432 = vmatpush1.bf16.msra.mxu0 0
      %6433 = vmatprep.subr.bf16.mxu0 0
      %6434 = vmatpush1.bf16.msra.mxu0 0
      %6435 = vmatprep.subr.bf16.mxu0 0
      %6436 = vmatpush1.bf16.msra.mxu0 0
      %6437 = vmatprep.subr.bf16.mxu0 0
      %6438 = vmatpush1.bf16.msra.mxu0 0
      %6439 = vmatprep.subr.bf16.mxu0 0
      %6440 = vmatpush1.bf16.msra.mxu0 0
      %6441 = vmatprep.subr.bf16.mxu0 0
      %6442 = vmatpush1.bf16.msra.mxu0 0
      %6443 = vmatprep.subr.bf16.mxu0 %v6383
      %6444 = vmatpush1.bf16.msra.mxu0 %v6380
      %6445 = vmatprep.subr.bf16.mxu0 0
      %6446 = vmatpush2.bf16.msra.mxu0 0
      %6447 = vmatprep.subr.bf16.mxu0 0
      %6448 = vmatpush2.bf16.msra.mxu0 0
      %6449 = vmatprep.subr.bf16.mxu0 0
      %6450 = vmatpush2.bf16.msra.mxu0 0
      %6451 = vmatprep.subr.bf16.mxu0 0
      %6452 = vmatpush2.bf16.msra.mxu0 0
      %6453 = vmatprep.subr.bf16.mxu0 0
      %6454 = vmatpush2.bf16.msra.mxu0 0
      %6455 = vmatprep.subr.bf16.mxu0 0
      %6456 = vmatpush2.bf16.msra.mxu0 0
      %6457 = vmatprep.subr.bf16.mxu0 0
      %6458 = vmatpush2.bf16.msra.mxu0 0
      %6459 = vmatprep.subr.bf16.mxu0 0
      %6460 = vmatpush2.bf16.msra.mxu0 0
      %6461 = vmatprep.mubr.bf16.mxu0 0
      %6462 = vmatmul.mubr.bf16.gmra.mxu0 %v6370
      %v6463 = vpop.f32.mrf.mxu0
      %v6464 = vadd.f32 0.0, %v6463
      %v6465 = vpop.f32.mrf.mxu0
      %v6466 = vadd.f32 0.0, %v6465
      %v6467 = vpop.f32.mrf.mxu0
      %v6468 = vpop.f32.mrf.mxu0
      %6469 = vdwg.mxu0
      %6470 = vmatprep.subr.bf16.mxu0 0
      %6471 = vmatpush1.bf16.msra.mxu0 0
      %6472 = vmatprep.subr.bf16.mxu0 0
      %6473 = vmatpush1.bf16.msra.mxu0 0
      %6474 = vmatprep.subr.bf16.mxu0 0
      %6475 = vmatpush1.bf16.msra.mxu0 0
      %6476 = vmatprep.subr.bf16.mxu0 0
      %6477 = vmatpush1.bf16.msra.mxu0 0
      %6478 = vmatprep.subr.bf16.mxu0 0
      %6479 = vmatpush1.bf16.msra.mxu0 0
      %6480 = vmatprep.subr.bf16.mxu0 0
      %6481 = vmatpush1.bf16.msra.mxu0 0
      %6482 = vmatprep.subr.bf16.mxu0 0
      %6483 = vmatpush1.bf16.msra.mxu0 0
      %6484 = vmatprep.subr.bf16.mxu0 0
      %6485 = vmatpush1.bf16.msra.mxu0 %v6386
      %6486 = vmatprep.subr.bf16.mxu0 0
      %6487 = vmatpush2.bf16.msra.mxu0 0
      %6488 = vmatprep.subr.bf16.mxu0 0
      %6489 = vmatpush2.bf16.msra.mxu0 0
      %6490 = vmatprep.subr.bf16.mxu0 0
      %6491 = vmatpush2.bf16.msra.mxu0 0
      %6492 = vmatprep.subr.bf16.mxu0 0
      %6493 = vmatpush2.bf16.msra.mxu0 0
      %6494 = vmatprep.subr.bf16.mxu0 0
      %6495 = vmatpush2.bf16.msra.mxu0 0
      %6496 = vmatprep.subr.bf16.mxu0 0
      %6497 = vmatpush2.bf16.msra.mxu0 0
      %6498 = vmatprep.subr.bf16.mxu0 0
      %6499 = vmatpush2.bf16.msra.mxu0 0
      %6500 = vmatprep.subr.bf16.mxu0 0
      %6501 = vmatpush2.bf16.msra.mxu0 0
      %6502 = vmatprep.mubr.bf16.mxu0 0
      %6503 = vmatmul.mubr.bf16.gmra.mxu0 %v6370
      %v6504 = vpop.f32.mrf.mxu0
      %v6505 = vadd.f32 0.0, %v6504
      %v6506 = vpop.f32.mrf.mxu0
      %v6507 = vpop.f32.mrf.mxu0
      %v6508 = vpop.f32.mrf.mxu0
      %6509 = vdwg.mxu0
      %v6511 = vsel %vm6368, %v6343, 0
      %v6514 = vsel %vm6372, %v6336, 0
      %v6517 = vsel %vm6372, %v6337, 0
      %v6520 = vsel %vm6372, %v6338, 0
      %v6523 = vsel %vm6372, %v6339, 0
      %v6526 = vsel %vm6372, %v6340, 0
      %6528 = vmatprep.subr.bf16.mxu0 0
      %6529 = vmatpush1.bf16.msra.mxu0 0
      %6530 = vmatprep.subr.bf16.mxu0 0
      %6531 = vmatpush1.bf16.msra.mxu0 0
      %6532 = vmatprep.subr.bf16.mxu0 0
      %6533 = vmatpush1.bf16.msra.mxu0 0
      %6534 = vmatprep.subr.bf16.mxu0 0
      %6535 = vmatpush1.bf16.msra.mxu0 0
      %6536 = vmatprep.subr.bf16.mxu0 0
      %6537 = vmatpush1.bf16.msra.mxu0 0
      %6538 = vmatprep.subr.bf16.mxu0 0
      %6539 = vmatpush1.bf16.msra.mxu0 0
      %6540 = vmatprep.subr.bf16.mxu0 0
      %6541 = vmatpush1.bf16.msra.mxu0 0
      %6542 = vmatprep.subr.bf16.mxu0 %v6517
      %6543 = vmatpush1.bf16.msra.mxu0 %v6514
      %6544 = vmatprep.subr.bf16.mxu0 0
      %6545 = vmatpush2.bf16.msra.mxu0 0
      %6546 = vmatprep.subr.bf16.mxu0 0
      %6547 = vmatpush2.bf16.msra.mxu0 0
      %6548 = vmatprep.subr.bf16.mxu0 0
      %6549 = vmatpush2.bf16.msra.mxu0 0
      %6550 = vmatprep.subr.bf16.mxu0 0
      %6551 = vmatpush2.bf16.msra.mxu0 0
      %6552 = vmatprep.subr.bf16.mxu0 0
      %6553 = vmatpush2.bf16.msra.mxu0 0
      %6554 = vmatprep.subr.bf16.mxu0 0
      %6555 = vmatpush2.bf16.msra.mxu0 0
      %6556 = vmatprep.subr.bf16.mxu0 0
      %6557 = vmatpush2.bf16.msra.mxu0 0
      %6558 = vmatprep.subr.bf16.mxu0 0
      %6559 = vmatpush2.bf16.msra.mxu0 0
      %6560 = vmatprep.mubr.bf16.mxu0 0
      %6561 = vmatmul.mubr.bf16.gmra.mxu0 %v6511
      %v6562 = vpop.f32.mrf.mxu0
      %v6563 = vadd.f32 %v6423, %v6562
      %v6564 = vpop.f32.mrf.mxu0
      %v6565 = vadd.f32 %v6425, %v6564
      %v6566 = vpop.f32.mrf.mxu0
      %v6567 = vpop.f32.mrf.mxu0
      %6568 = vdwg.mxu0
      %6569 = vmatprep.subr.bf16.mxu0 0
      %6570 = vmatpush1.bf16.msra.mxu0 0
      %6571 = vmatprep.subr.bf16.mxu0 0
      %6572 = vmatpush1.bf16.msra.mxu0 0
      %6573 = vmatprep.subr.bf16.mxu0 0
      %6574 = vmatpush1.bf16.msra.mxu0 0
      %6575 = vmatprep.subr.bf16.mxu0 0
      %6576 = vmatpush1.bf16.msra.mxu0 0
      %6577 = vmatprep.subr.bf16.mxu0 0
      %6578 = vmatpush1.bf16.msra.mxu0 0
      %6579 = vmatprep.subr.bf16.mxu0 0
      %6580 = vmatpush1.bf16.msra.mxu0 0
      %6581 = vmatprep.subr.bf16.mxu0 0
      %6582 = vmatpush1.bf16.msra.mxu0 0
      %6583 = vmatprep.subr.bf16.mxu0 %v6523
      %6584 = vmatpush1.bf16.msra.mxu0 %v6520
      %6585 = vmatprep.subr.bf16.mxu0 0
      %6586 = vmatpush2.bf16.msra.mxu0 0
      %6587 = vmatprep.subr.bf16.mxu0 0
      %6588 = vmatpush2.bf16.msra.mxu0 0
      %6589 = vmatprep.subr.bf16.mxu0 0
      %6590 = vmatpush2.bf16.msra.mxu0 0
      %6591 = vmatprep.subr.bf16.mxu0 0
      %6592 = vmatpush2.bf16.msra.mxu0 0
      %6593 = vmatprep.subr.bf16.mxu0 0
      %6594 = vmatpush2.bf16.msra.mxu0 0
      %6595 = vmatprep.subr.bf16.mxu0 0
      %6596 = vmatpush2.bf16.msra.mxu0 0
      %6597 = vmatprep.subr.bf16.mxu0 0
      %6598 = vmatpush2.bf16.msra.mxu0 0
      %6599 = vmatprep.subr.bf16.mxu0 0
      %6600 = vmatpush2.bf16.msra.mxu0 0
      %6601 = vmatprep.mubr.bf16.mxu0 0
      %6602 = vmatmul.mubr.bf16.gmra.mxu0 %v6511
      %v6603 = vpop.f32.mrf.mxu0
      %v6604 = vadd.f32 %v6464, %v6603
      %v6605 = vpop.f32.mrf.mxu0
      %v6606 = vadd.f32 %v6466, %v6605
      %v6607 = vpop.f32.mrf.mxu0
      %v6608 = vpop.f32.mrf.mxu0
      %6609 = vdwg.mxu0
      %6610 = vmatprep.subr.bf16.mxu0 0
      %6611 = vmatpush1.bf16.msra.mxu0 0
      %6612 = vmatprep.subr.bf16.mxu0 0
      %6613 = vmatpush1.bf16.msra.mxu0 0
      %6614 = vmatprep.subr.bf16.mxu0 0
      %6615 = vmatpush1.bf16.msra.mxu0 0
      %6616 = vmatprep.subr.bf16.mxu0 0
      %6617 = vmatpush1.bf16.msra.mxu0 0
      %6618 = vmatprep.subr.bf16.mxu0 0
      %6619 = vmatpush1.bf16.msra.mxu0 0
      %6620 = vmatprep.subr.bf16.mxu0 0
      %6621 = vmatpush1.bf16.msra.mxu0 0
      %6622 = vmatprep.subr.bf16.mxu0 0
      %6623 = vmatpush1.bf16.msra.mxu0 0
      %6624 = vmatprep.subr.bf16.mxu0 0
      %6625 = vmatpush1.bf16.msra.mxu0 %v6526
      %6626 = vmatprep.subr.bf16.mxu0 0
      %6627 = vmatpush2.bf16.msra.mxu0 0
      %6628 = vmatprep.subr.bf16.mxu0 0
      %6629 = vmatpush2.bf16.msra.mxu0 0
      %6630 = vmatprep.subr.bf16.mxu0 0
      %6631 = vmatpush2.bf16.msra.mxu0 0
      %6632 = vmatprep.subr.bf16.mxu0 0
      %6633 = vmatpush2.bf16.msra.mxu0 0
      %6634 = vmatprep.subr.bf16.mxu0 0
      %6635 = vmatpush2.bf16.msra.mxu0 0
      %6636 = vmatprep.subr.bf16.mxu0 0
      %6637 = vmatpush2.bf16.msra.mxu0 0
      %6638 = vmatprep.subr.bf16.mxu0 0
      %6639 = vmatpush2.bf16.msra.mxu0 0
      %6640 = vmatprep.subr.bf16.mxu0 0
      %6641 = vmatpush2.bf16.msra.mxu0 0
      %6642 = vmatprep.mubr.bf16.mxu0 0
      %6643 = vmatmul.mubr.bf16.gmra.mxu0 %v6511
      %v6644 = vpop.f32.mrf.mxu0
      %v6645 = vadd.f32 %v6505, %v6644
      %v6646 = vpop.f32.mrf.mxu0
      %v6647 = vpop.f32.mrf.mxu0
      %v6648 = vpop.f32.mrf.mxu0
      %6649 = vdwg.mxu0
      %6650 = vrot.lane.b32.xlu0 %v6346, 112
      %v6651 = vpop.permute.xlu0 %6650
      %6652 = vrot.lane.b32.xlu0 %v6336, 126
      %v6653 = vpop.permute.xlu0 %6652
      %6654 = vrot.lane.b32.xlu0 %v6337, 126
      %v6655 = vpop.permute.xlu0 %6654
      %6656 = vrot.lane.b32.xlu0 %v6338, 126
      %v6657 = vpop.permute.xlu0 %6656
      %6658 = vrot.lane.b32.xlu0 %v6339, 126
      %v6659 = vpop.permute.xlu0 %6658
      %6660 = vrot.lane.b32.xlu0 %v6340, 126
      %v6661 = vpop.permute.xlu0 %6660
      %v6662 = vsel %vm791, %v6653, %v6655
      %v6663 = vsel %vm791, %v6655, %v6657
      %v6664 = vsel %vm791, %v6657, %v6659
      %v6665 = vsel %vm791, %v6659, %v6661
      %v6667 = vsel %vm6368, %v6651, 0
      %v6670 = vsel %vm6372, %v6662, 0
      %v6673 = vsel %vm6372, %v6663, 0
      %v6676 = vsel %vm6372, %v6664, 0
      %v6679 = vsel %vm6372, %v6665, 0
      %v6682 = vsel %vm6372, %v6661, 0
      %6684 = vmatprep.subr.bf16.mxu0 0
      %6685 = vmatpush1.bf16.msra.mxu0 0
      %6686 = vmatprep.subr.bf16.mxu0 0
      %6687 = vmatpush1.bf16.msra.mxu0 0
      %6688 = vmatprep.subr.bf16.mxu0 0
      %6689 = vmatpush1.bf16.msra.mxu0 0
      %6690 = vmatprep.subr.bf16.mxu0 0
      %6691 = vmatpush1.bf16.msra.mxu0 0
      %6692 = vmatprep.subr.bf16.mxu0 0
      %6693 = vmatpush1.bf16.msra.mxu0 0
      %6694 = vmatprep.subr.bf16.mxu0 0
      %6695 = vmatpush1.bf16.msra.mxu0 0
      %6696 = vmatprep.subr.bf16.mxu0 0
      %6697 = vmatpush1.bf16.msra.mxu0 0
      %6698 = vmatprep.subr.bf16.mxu0 %v6673
      %6699 = vmatpush1.bf16.msra.mxu0 %v6670
      %6700 = vmatprep.subr.bf16.mxu0 0
      %6701 = vmatpush2.bf16.msra.mxu0 0
      %6702 = vmatprep.subr.bf16.mxu0 0
      %6703 = vmatpush2.bf16.msra.mxu0 0
      %6704 = vmatprep.subr.bf16.mxu0 0
      %6705 = vmatpush2.bf16.msra.mxu0 0
      %6706 = vmatprep.subr.bf16.mxu0 0
      %6707 = vmatpush2.bf16.msra.mxu0 0
      %6708 = vmatprep.subr.bf16.mxu0 0
      %6709 = vmatpush2.bf16.msra.mxu0 0
      %6710 = vmatprep.subr.bf16.mxu0 0
      %6711 = vmatpush2.bf16.msra.mxu0 0
      %6712 = vmatprep.subr.bf16.mxu0 0
      %6713 = vmatpush2.bf16.msra.mxu0 0
      %6714 = vmatprep.subr.bf16.mxu0 0
      %6715 = vmatpush2.bf16.msra.mxu0 0
      %6716 = vmatprep.mubr.bf16.mxu0 0
      %6717 = vmatmul.mubr.bf16.gmra.mxu0 %v6667
      %v6718 = vpop.f32.mrf.mxu0
      %v6719 = vadd.f32 0.0, %v6718
      %v6720 = vpop.f32.mrf.mxu0
      %v6721 = vadd.f32 0.0, %v6720
      %v6722 = vpop.f32.mrf.mxu0
      %v6723 = vpop.f32.mrf.mxu0
      %6724 = vdwg.mxu0
      %6725 = vmatprep.subr.bf16.mxu0 0
      %6726 = vmatpush1.bf16.msra.mxu0 0
      %6727 = vmatprep.subr.bf16.mxu0 0
      %6728 = vmatpush1.bf16.msra.mxu0 0
      %6729 = vmatprep.subr.bf16.mxu0 0
      %6730 = vmatpush1.bf16.msra.mxu0 0
      %6731 = vmatprep.subr.bf16.mxu0 0
      %6732 = vmatpush1.bf16.msra.mxu0 0
      %6733 = vmatprep.subr.bf16.mxu0 0
      %6734 = vmatpush1.bf16.msra.mxu0 0
      %6735 = vmatprep.subr.bf16.mxu0 0
      %6736 = vmatpush1.bf16.msra.mxu0 0
      %6737 = vmatprep.subr.bf16.mxu0 0
      %6738 = vmatpush1.bf16.msra.mxu0 0
      %6739 = vmatprep.subr.bf16.mxu0 %v6679
      %6740 = vmatpush1.bf16.msra.mxu0 %v6676
      %6741 = vmatprep.subr.bf16.mxu0 0
      %6742 = vmatpush2.bf16.msra.mxu0 0
      %6743 = vmatprep.subr.bf16.mxu0 0
      %6744 = vmatpush2.bf16.msra.mxu0 0
      %6745 = vmatprep.subr.bf16.mxu0 0
      %6746 = vmatpush2.bf16.msra.mxu0 0
      %6747 = vmatprep.subr.bf16.mxu0 0
      %6748 = vmatpush2.bf16.msra.mxu0 0
      %6749 = vmatprep.subr.bf16.mxu0 0
      %6750 = vmatpush2.bf16.msra.mxu0 0
      %6751 = vmatprep.subr.bf16.mxu0 0
      %6752 = vmatpush2.bf16.msra.mxu0 0
      %6753 = vmatprep.subr.bf16.mxu0 0
      %6754 = vmatpush2.bf16.msra.mxu0 0
      %6755 = vmatprep.subr.bf16.mxu0 0
      %6756 = vmatpush2.bf16.msra.mxu0 0
      %6757 = vmatprep.mubr.bf16.mxu0 0
      %6758 = vmatmul.mubr.bf16.gmra.mxu0 %v6667
      %v6759 = vpop.f32.mrf.mxu0
      %v6760 = vadd.f32 0.0, %v6759
      %v6761 = vpop.f32.mrf.mxu0
      %v6762 = vadd.f32 0.0, %v6761
      %v6763 = vpop.f32.mrf.mxu0
      %v6764 = vpop.f32.mrf.mxu0
      %6765 = vdwg.mxu0
      %6766 = vmatprep.subr.bf16.mxu0 0
      %6767 = vmatpush1.bf16.msra.mxu0 0
      %6768 = vmatprep.subr.bf16.mxu0 0
      %6769 = vmatpush1.bf16.msra.mxu0 0
      %6770 = vmatprep.subr.bf16.mxu0 0
      %6771 = vmatpush1.bf16.msra.mxu0 0
      %6772 = vmatprep.subr.bf16.mxu0 0
      %6773 = vmatpush1.bf16.msra.mxu0 0
      %6774 = vmatprep.subr.bf16.mxu0 0
      %6775 = vmatpush1.bf16.msra.mxu0 0
      %6776 = vmatprep.subr.bf16.mxu0 0
      %6777 = vmatpush1.bf16.msra.mxu0 0
      %6778 = vmatprep.subr.bf16.mxu0 0
      %6779 = vmatpush1.bf16.msra.mxu0 0
      %6780 = vmatprep.subr.bf16.mxu0 0
      %6781 = vmatpush1.bf16.msra.mxu0 %v6682
      %6782 = vmatprep.subr.bf16.mxu0 0
      %6783 = vmatpush2.bf16.msra.mxu0 0
      %6784 = vmatprep.subr.bf16.mxu0 0
      %6785 = vmatpush2.bf16.msra.mxu0 0
      %6786 = vmatprep.subr.bf16.mxu0 0
      %6787 = vmatpush2.bf16.msra.mxu0 0
      %6788 = vmatprep.subr.bf16.mxu0 0
      %6789 = vmatpush2.bf16.msra.mxu0 0
      %6790 = vmatprep.subr.bf16.mxu0 0
      %6791 = vmatpush2.bf16.msra.mxu0 0
      %6792 = vmatprep.subr.bf16.mxu0 0
      %6793 = vmatpush2.bf16.msra.mxu0 0
      %6794 = vmatprep.subr.bf16.mxu0 0
      %6795 = vmatpush2.bf16.msra.mxu0 0
      %6796 = vmatprep.subr.bf16.mxu0 0
      %6797 = vmatpush2.bf16.msra.mxu0 0
      %6798 = vmatprep.mubr.bf16.mxu0 0
      %6799 = vmatmul.mubr.bf16.gmra.mxu0 %v6667
      %v6800 = vpop.f32.mrf.mxu0
      %v6801 = vadd.f32 0.0, %v6800
      %v6802 = vpop.f32.mrf.mxu0
      %v6803 = vpop.f32.mrf.mxu0
      %v6804 = vpop.f32.mrf.mxu0
      %6805 = vdwg.mxu0
      %v6806 = vadd.f32 %v6563, %v6719
      %v6807 = vadd.f32 %v6565, %v6721
      %v6808 = vadd.f32 %v6604, %v6760
      %v6809 = vadd.f32 %v6606, %v6762
      %v6810 = vadd.f32 %v6645, %v6801
      %6811 = vrot.lane.b32.xlu0 %v6346, 104
      %v6812 = vpop.permute.xlu0 %6811
      %6813 = vrot.lane.b32.xlu0 %v6336, 118
      %v6814 = vpop.permute.xlu0 %6813
      %6815 = vrot.lane.b32.xlu0 %v6337, 118
      %v6816 = vpop.permute.xlu0 %6815
      %6817 = vrot.lane.b32.xlu0 %v6338, 118
      %v6818 = vpop.permute.xlu0 %6817
      %6819 = vrot.lane.b32.xlu0 %v6339, 118
      %v6820 = vpop.permute.xlu0 %6819
      %6821 = vrot.lane.b32.xlu0 %v6340, 118
      %v6822 = vpop.permute.xlu0 %6821
      %v6823 = vsel %vm1008, %v6814, %v6816
      %v6824 = vsel %vm1008, %v6816, %v6818
      %v6825 = vsel %vm1008, %v6818, %v6820
      %v6826 = vsel %vm1008, %v6820, %v6822
      %v6828 = vsel %vm6368, %v6812, 0
      %v6831 = vsel %vm6372, %v6823, 0
      %v6834 = vsel %vm6372, %v6824, 0
      %v6837 = vsel %vm6372, %v6825, 0
      %v6840 = vsel %vm6372, %v6826, 0
      %v6843 = vsel %vm6372, %v6822, 0
      %6845 = vmatprep.subr.bf16.mxu0 0
      %6846 = vmatpush1.bf16.msra.mxu0 0
      %6847 = vmatprep.subr.bf16.mxu0 0
      %6848 = vmatpush1.bf16.msra.mxu0 0
      %6849 = vmatprep.subr.bf16.mxu0 0
      %6850 = vmatpush1.bf16.msra.mxu0 0
      %6851 = vmatprep.subr.bf16.mxu0 0
      %6852 = vmatpush1.bf16.msra.mxu0 0
      %6853 = vmatprep.subr.bf16.mxu0 0
      %6854 = vmatpush1.bf16.msra.mxu0 0
      %6855 = vmatprep.subr.bf16.mxu0 0
      %6856 = vmatpush1.bf16.msra.mxu0 0
      %6857 = vmatprep.subr.bf16.mxu0 0
      %6858 = vmatpush1.bf16.msra.mxu0 0
      %6859 = vmatprep.subr.bf16.mxu0 %v6834
      %6860 = vmatpush1.bf16.msra.mxu0 %v6831
      %6861 = vmatprep.subr.bf16.mxu0 0
      %6862 = vmatpush2.bf16.msra.mxu0 0
      %6863 = vmatprep.subr.bf16.mxu0 0
      %6864 = vmatpush2.bf16.msra.mxu0 0
      %6865 = vmatprep.subr.bf16.mxu0 0
      %6866 = vmatpush2.bf16.msra.mxu0 0
      %6867 = vmatprep.subr.bf16.mxu0 0
      %6868 = vmatpush2.bf16.msra.mxu0 0
      %6869 = vmatprep.subr.bf16.mxu0 0
      %6870 = vmatpush2.bf16.msra.mxu0 0
      %6871 = vmatprep.subr.bf16.mxu0 0
      %6872 = vmatpush2.bf16.msra.mxu0 0
      %6873 = vmatprep.subr.bf16.mxu0 0
      %6874 = vmatpush2.bf16.msra.mxu0 0
      %6875 = vmatprep.subr.bf16.mxu0 0
      %6876 = vmatpush2.bf16.msra.mxu0 0
      %6877 = vmatprep.mubr.bf16.mxu0 0
      %6878 = vmatmul.mubr.bf16.gmra.mxu0 %v6828
      %v6879 = vpop.f32.mrf.mxu0
      %v6880 = vadd.f32 0.0, %v6879
      %v6881 = vpop.f32.mrf.mxu0
      %v6882 = vadd.f32 0.0, %v6881
      %v6883 = vpop.f32.mrf.mxu0
      %v6884 = vpop.f32.mrf.mxu0
      %6885 = vdwg.mxu0
      %6886 = vmatprep.subr.bf16.mxu0 0
      %6887 = vmatpush1.bf16.msra.mxu0 0
      %6888 = vmatprep.subr.bf16.mxu0 0
      %6889 = vmatpush1.bf16.msra.mxu0 0
      %6890 = vmatprep.subr.bf16.mxu0 0
      %6891 = vmatpush1.bf16.msra.mxu0 0
      %6892 = vmatprep.subr.bf16.mxu0 0
      %6893 = vmatpush1.bf16.msra.mxu0 0
      %6894 = vmatprep.subr.bf16.mxu0 0
      %6895 = vmatpush1.bf16.msra.mxu0 0
      %6896 = vmatprep.subr.bf16.mxu0 0
      %6897 = vmatpush1.bf16.msra.mxu0 0
      %6898 = vmatprep.subr.bf16.mxu0 0
      %6899 = vmatpush1.bf16.msra.mxu0 0
      %6900 = vmatprep.subr.bf16.mxu0 %v6840
      %6901 = vmatpush1.bf16.msra.mxu0 %v6837
      %6902 = vmatprep.subr.bf16.mxu0 0
      %6903 = vmatpush2.bf16.msra.mxu0 0
      %6904 = vmatprep.subr.bf16.mxu0 0
      %6905 = vmatpush2.bf16.msra.mxu0 0
      %6906 = vmatprep.subr.bf16.mxu0 0
      %6907 = vmatpush2.bf16.msra.mxu0 0
      %6908 = vmatprep.subr.bf16.mxu0 0
      %6909 = vmatpush2.bf16.msra.mxu0 0
      %6910 = vmatprep.subr.bf16.mxu0 0
      %6911 = vmatpush2.bf16.msra.mxu0 0
      %6912 = vmatprep.subr.bf16.mxu0 0
      %6913 = vmatpush2.bf16.msra.mxu0 0
      %6914 = vmatprep.subr.bf16.mxu0 0
      %6915 = vmatpush2.bf16.msra.mxu0 0
      %6916 = vmatprep.subr.bf16.mxu0 0
      %6917 = vmatpush2.bf16.msra.mxu0 0
      %6918 = vmatprep.mubr.bf16.mxu0 0
      %6919 = vmatmul.mubr.bf16.gmra.mxu0 %v6828
      %v6920 = vpop.f32.mrf.mxu0
      %v6921 = vadd.f32 0.0, %v6920
      %v6922 = vpop.f32.mrf.mxu0
      %v6923 = vadd.f32 0.0, %v6922
      %v6924 = vpop.f32.mrf.mxu0
      %v6925 = vpop.f32.mrf.mxu0
      %6926 = vdwg.mxu0
      %6927 = vmatprep.subr.bf16.mxu0 0
      %6928 = vmatpush1.bf16.msra.mxu0 0
      %6929 = vmatprep.subr.bf16.mxu0 0
      %6930 = vmatpush1.bf16.msra.mxu0 0
      %6931 = vmatprep.subr.bf16.mxu0 0
      %6932 = vmatpush1.bf16.msra.mxu0 0
      %6933 = vmatprep.subr.bf16.mxu0 0
      %6934 = vmatpush1.bf16.msra.mxu0 0
      %6935 = vmatprep.subr.bf16.mxu0 0
      %6936 = vmatpush1.bf16.msra.mxu0 0
      %6937 = vmatprep.subr.bf16.mxu0 0
      %6938 = vmatpush1.bf16.msra.mxu0 0
      %6939 = vmatprep.subr.bf16.mxu0 0
      %6940 = vmatpush1.bf16.msra.mxu0 0
      %6941 = vmatprep.subr.bf16.mxu0 0
      %6942 = vmatpush1.bf16.msra.mxu0 %v6843
      %6943 = vmatprep.subr.bf16.mxu0 0
      %6944 = vmatpush2.bf16.msra.mxu0 0
      %6945 = vmatprep.subr.bf16.mxu0 0
      %6946 = vmatpush2.bf16.msra.mxu0 0
      %6947 = vmatprep.subr.bf16.mxu0 0
      %6948 = vmatpush2.bf16.msra.mxu0 0
      %6949 = vmatprep.subr.bf16.mxu0 0
      %6950 = vmatpush2.bf16.msra.mxu0 0
      %6951 = vmatprep.subr.bf16.mxu0 0
      %6952 = vmatpush2.bf16.msra.mxu0 0
      %6953 = vmatprep.subr.bf16.mxu0 0
      %6954 = vmatpush2.bf16.msra.mxu0 0
      %6955 = vmatprep.subr.bf16.mxu0 0
      %6956 = vmatpush2.bf16.msra.mxu0 0
      %6957 = vmatprep.subr.bf16.mxu0 0
      %6958 = vmatpush2.bf16.msra.mxu0 0
      %6959 = vmatprep.mubr.bf16.mxu0 0
      %6960 = vmatmul.mubr.bf16.gmra.mxu0 %v6828
      %v6961 = vpop.f32.mrf.mxu0
      %v6962 = vadd.f32 0.0, %v6961
      %v6963 = vpop.f32.mrf.mxu0
      %v6964 = vpop.f32.mrf.mxu0
      %v6965 = vpop.f32.mrf.mxu0
      %6966 = vdwg.mxu0
      %v6967 = vadd.f32 %v6806, %v6880
      %v6968 = vadd.f32 %v6807, %v6882
      %v6969 = vadd.f32 %v6808, %v6921
      %v6970 = vadd.f32 %v6809, %v6923
      %v6971 = vadd.f32 %v6810, %v6962
      %6972 = vrot.lane.b32.xlu0 %v6346, 96
      %v6973 = vpop.permute.xlu0 %6972
      %6974 = vrot.lane.b32.xlu0 %v6336, 117
      %v6975 = vpop.permute.xlu0 %6974
      %6976 = vrot.lane.b32.xlu0 %v6337, 117
      %v6977 = vpop.permute.xlu0 %6976
      %6978 = vrot.lane.b32.xlu0 %v6338, 117
      %v6979 = vpop.permute.xlu0 %6978
      %6980 = vrot.lane.b32.xlu0 %v6339, 117
      %v6981 = vpop.permute.xlu0 %6980
      %6982 = vrot.lane.b32.xlu0 %v6340, 117
      %v6983 = vpop.permute.xlu0 %6982
      %v6984 = vsel %vm1225, %v6975, %v6977
      %v6985 = vsel %vm1225, %v6977, %v6979
      %v6986 = vsel %vm1225, %v6979, %v6981
      %v6987 = vsel %vm1225, %v6981, %v6983
      %v6989 = vsel %vm6368, %v6973, 0
      %v6992 = vsel %vm6372, %v6984, 0
      %v6995 = vsel %vm6372, %v6985, 0
      %v6998 = vsel %vm6372, %v6986, 0
      %v7001 = vsel %vm6372, %v6987, 0
      %v7004 = vsel %vm6372, %v6983, 0
      %7006 = vmatprep.subr.bf16.mxu0 0
      %7007 = vmatpush1.bf16.msra.mxu0 0
      %7008 = vmatprep.subr.bf16.mxu0 0
      %7009 = vmatpush1.bf16.msra.mxu0 0
      %7010 = vmatprep.subr.bf16.mxu0 0
      %7011 = vmatpush1.bf16.msra.mxu0 0
      %7012 = vmatprep.subr.bf16.mxu0 0
      %7013 = vmatpush1.bf16.msra.mxu0 0
      %7014 = vmatprep.subr.bf16.mxu0 0
      %7015 = vmatpush1.bf16.msra.mxu0 0
      %7016 = vmatprep.subr.bf16.mxu0 0
      %7017 = vmatpush1.bf16.msra.mxu0 0
      %7018 = vmatprep.subr.bf16.mxu0 0
      %7019 = vmatpush1.bf16.msra.mxu0 0
      %7020 = vmatprep.subr.bf16.mxu0 %v6995
      %7021 = vmatpush1.bf16.msra.mxu0 %v6992
      %7022 = vmatprep.subr.bf16.mxu0 0
      %7023 = vmatpush2.bf16.msra.mxu0 0
      %7024 = vmatprep.subr.bf16.mxu0 0
      %7025 = vmatpush2.bf16.msra.mxu0 0
      %7026 = vmatprep.subr.bf16.mxu0 0
      %7027 = vmatpush2.bf16.msra.mxu0 0
      %7028 = vmatprep.subr.bf16.mxu0 0
      %7029 = vmatpush2.bf16.msra.mxu0 0
      %7030 = vmatprep.subr.bf16.mxu0 0
      %7031 = vmatpush2.bf16.msra.mxu0 0
      %7032 = vmatprep.subr.bf16.mxu0 0
      %7033 = vmatpush2.bf16.msra.mxu0 0
      %7034 = vmatprep.subr.bf16.mxu0 0
      %7035 = vmatpush2.bf16.msra.mxu0 0
      %7036 = vmatprep.subr.bf16.mxu0 0
      %7037 = vmatpush2.bf16.msra.mxu0 0
      %7038 = vmatprep.mubr.bf16.mxu0 0
      %7039 = vmatmul.mubr.bf16.gmra.mxu0 %v6989
      %v7040 = vpop.f32.mrf.mxu0
      %v7041 = vadd.f32 0.0, %v7040
      %v7042 = vpop.f32.mrf.mxu0
      %v7043 = vadd.f32 0.0, %v7042
      %v7044 = vpop.f32.mrf.mxu0
      %v7045 = vpop.f32.mrf.mxu0
      %7046 = vdwg.mxu0
      %7047 = vmatprep.subr.bf16.mxu0 0
      %7048 = vmatpush1.bf16.msra.mxu0 0
      %7049 = vmatprep.subr.bf16.mxu0 0
      %7050 = vmatpush1.bf16.msra.mxu0 0
      %7051 = vmatprep.subr.bf16.mxu0 0
      %7052 = vmatpush1.bf16.msra.mxu0 0
      %7053 = vmatprep.subr.bf16.mxu0 0
      %7054 = vmatpush1.bf16.msra.mxu0 0
      %7055 = vmatprep.subr.bf16.mxu0 0
      %7056 = vmatpush1.bf16.msra.mxu0 0
      %7057 = vmatprep.subr.bf16.mxu0 0
      %7058 = vmatpush1.bf16.msra.mxu0 0
      %7059 = vmatprep.subr.bf16.mxu0 0
      %7060 = vmatpush1.bf16.msra.mxu0 0
      %7061 = vmatprep.subr.bf16.mxu0 %v7001
      %7062 = vmatpush1.bf16.msra.mxu0 %v6998
      %7063 = vmatprep.subr.bf16.mxu0 0
      %7064 = vmatpush2.bf16.msra.mxu0 0
      %7065 = vmatprep.subr.bf16.mxu0 0
      %7066 = vmatpush2.bf16.msra.mxu0 0
      %7067 = vmatprep.subr.bf16.mxu0 0
      %7068 = vmatpush2.bf16.msra.mxu0 0
      %7069 = vmatprep.subr.bf16.mxu0 0
      %7070 = vmatpush2.bf16.msra.mxu0 0
      %7071 = vmatprep.subr.bf16.mxu0 0
      %7072 = vmatpush2.bf16.msra.mxu0 0
      %7073 = vmatprep.subr.bf16.mxu0 0
      %7074 = vmatpush2.bf16.msra.mxu0 0
      %7075 = vmatprep.subr.bf16.mxu0 0
      %7076 = vmatpush2.bf16.msra.mxu0 0
      %7077 = vmatprep.subr.bf16.mxu0 0
      %7078 = vmatpush2.bf16.msra.mxu0 0
      %7079 = vmatprep.mubr.bf16.mxu0 0
      %7080 = vmatmul.mubr.bf16.gmra.mxu0 %v6989
      %v7081 = vpop.f32.mrf.mxu0
      %v7082 = vadd.f32 0.0, %v7081
      %v7083 = vpop.f32.mrf.mxu0
      %v7084 = vadd.f32 0.0, %v7083
      %v7085 = vpop.f32.mrf.mxu0
      %v7086 = vpop.f32.mrf.mxu0
      %7087 = vdwg.mxu0
      %7088 = vmatprep.subr.bf16.mxu0 0
      %7089 = vmatpush1.bf16.msra.mxu0 0
      %7090 = vmatprep.subr.bf16.mxu0 0
      %7091 = vmatpush1.bf16.msra.mxu0 0
      %7092 = vmatprep.subr.bf16.mxu0 0
      %7093 = vmatpush1.bf16.msra.mxu0 0
      %7094 = vmatprep.subr.bf16.mxu0 0
      %7095 = vmatpush1.bf16.msra.mxu0 0
      %7096 = vmatprep.subr.bf16.mxu0 0
      %7097 = vmatpush1.bf16.msra.mxu0 0
      %7098 = vmatprep.subr.bf16.mxu0 0
      %7099 = vmatpush1.bf16.msra.mxu0 0
      %7100 = vmatprep.subr.bf16.mxu0 0
      %7101 = vmatpush1.bf16.msra.mxu0 0
      %7102 = vmatprep.subr.bf16.mxu0 0
      %7103 = vmatpush1.bf16.msra.mxu0 %v7004
      %7104 = vmatprep.subr.bf16.mxu0 0
      %7105 = vmatpush2.bf16.msra.mxu0 0
      %7106 = vmatprep.subr.bf16.mxu0 0
      %7107 = vmatpush2.bf16.msra.mxu0 0
      %7108 = vmatprep.subr.bf16.mxu0 0
      %7109 = vmatpush2.bf16.msra.mxu0 0
      %7110 = vmatprep.subr.bf16.mxu0 0
      %7111 = vmatpush2.bf16.msra.mxu0 0
      %7112 = vmatprep.subr.bf16.mxu0 0
      %7113 = vmatpush2.bf16.msra.mxu0 0
      %7114 = vmatprep.subr.bf16.mxu0 0
      %7115 = vmatpush2.bf16.msra.mxu0 0
      %7116 = vmatprep.subr.bf16.mxu0 0
      %7117 = vmatpush2.bf16.msra.mxu0 0
      %7118 = vmatprep.subr.bf16.mxu0 0
      %7119 = vmatpush2.bf16.msra.mxu0 0
      %7120 = vmatprep.mubr.bf16.mxu0 0
      %7121 = vmatmul.mubr.bf16.gmra.mxu0 %v6989
      %v7122 = vpop.f32.mrf.mxu0
      %v7123 = vadd.f32 0.0, %v7122
      %v7124 = vpop.f32.mrf.mxu0
      %v7125 = vpop.f32.mrf.mxu0
      %v7126 = vpop.f32.mrf.mxu0
      %7127 = vdwg.mxu0
      %v7128 = vadd.f32 %v6967, %v7041
      %v7129 = vadd.f32 %v6968, %v7043
      %v7130 = vadd.f32 %v6969, %v7082
      %v7131 = vadd.f32 %v6970, %v7084
      %v7132 = vadd.f32 %v6971, %v7123
      %7133 = vrot.lane.b32.xlu0 %v6346, 88
      %v7134 = vpop.permute.xlu0 %7133
      %7135 = vrot.lane.b32.xlu0 %v6336, 116
      %v7136 = vpop.permute.xlu0 %7135
      %7137 = vrot.lane.b32.xlu0 %v6337, 116
      %v7138 = vpop.permute.xlu0 %7137
      %7139 = vrot.lane.b32.xlu0 %v6338, 116
      %v7140 = vpop.permute.xlu0 %7139
      %7141 = vrot.lane.b32.xlu0 %v6339, 116
      %v7142 = vpop.permute.xlu0 %7141
      %7143 = vrot.lane.b32.xlu0 %v6340, 116
      %v7144 = vpop.permute.xlu0 %7143
      %v7145 = vsel %vm1442, %v7136, %v7138
      %v7146 = vsel %vm1442, %v7138, %v7140
      %v7147 = vsel %vm1442, %v7140, %v7142
      %v7148 = vsel %vm1442, %v7142, %v7144
      %v7150 = vsel %vm6368, %v7134, 0
      %v7153 = vsel %vm6372, %v7145, 0
      %v7156 = vsel %vm6372, %v7146, 0
      %v7159 = vsel %vm6372, %v7147, 0
      %v7162 = vsel %vm6372, %v7148, 0
      %v7165 = vsel %vm6372, %v7144, 0
      %7167 = vmatprep.subr.bf16.mxu0 0
      %7168 = vmatpush1.bf16.msra.mxu0 0
      %7169 = vmatprep.subr.bf16.mxu0 0
      %7170 = vmatpush1.bf16.msra.mxu0 0
      %7171 = vmatprep.subr.bf16.mxu0 0
      %7172 = vmatpush1.bf16.msra.mxu0 0
      %7173 = vmatprep.subr.bf16.mxu0 0
      %7174 = vmatpush1.bf16.msra.mxu0 0
      %7175 = vmatprep.subr.bf16.mxu0 0
      %7176 = vmatpush1.bf16.msra.mxu0 0
      %7177 = vmatprep.subr.bf16.mxu0 0
      %7178 = vmatpush1.bf16.msra.mxu0 0
      %7179 = vmatprep.subr.bf16.mxu0 0
      %7180 = vmatpush1.bf16.msra.mxu0 0
      %7181 = vmatprep.subr.bf16.mxu0 %v7156
      %7182 = vmatpush1.bf16.msra.mxu0 %v7153
      %7183 = vmatprep.subr.bf16.mxu0 0
      %7184 = vmatpush2.bf16.msra.mxu0 0
      %7185 = vmatprep.subr.bf16.mxu0 0
      %7186 = vmatpush2.bf16.msra.mxu0 0
      %7187 = vmatprep.subr.bf16.mxu0 0
      %7188 = vmatpush2.bf16.msra.mxu0 0
      %7189 = vmatprep.subr.bf16.mxu0 0
      %7190 = vmatpush2.bf16.msra.mxu0 0
      %7191 = vmatprep.subr.bf16.mxu0 0
      %7192 = vmatpush2.bf16.msra.mxu0 0
      %7193 = vmatprep.subr.bf16.mxu0 0
      %7194 = vmatpush2.bf16.msra.mxu0 0
      %7195 = vmatprep.subr.bf16.mxu0 0
      %7196 = vmatpush2.bf16.msra.mxu0 0
      %7197 = vmatprep.subr.bf16.mxu0 0
      %7198 = vmatpush2.bf16.msra.mxu0 0
      %7199 = vmatprep.mubr.bf16.mxu0 0
      %7200 = vmatmul.mubr.bf16.gmra.mxu0 %v7150
      %v7201 = vpop.f32.mrf.mxu0
      %v7202 = vadd.f32 0.0, %v7201
      %v7203 = vpop.f32.mrf.mxu0
      %v7204 = vadd.f32 0.0, %v7203
      %v7205 = vpop.f32.mrf.mxu0
      %v7206 = vpop.f32.mrf.mxu0
      %7207 = vdwg.mxu0
      %7208 = vmatprep.subr.bf16.mxu0 0
      %7209 = vmatpush1.bf16.msra.mxu0 0
      %7210 = vmatprep.subr.bf16.mxu0 0
      %7211 = vmatpush1.bf16.msra.mxu0 0
      %7212 = vmatprep.subr.bf16.mxu0 0
      %7213 = vmatpush1.bf16.msra.mxu0 0
      %7214 = vmatprep.subr.bf16.mxu0 0
      %7215 = vmatpush1.bf16.msra.mxu0 0
      %7216 = vmatprep.subr.bf16.mxu0 0
      %7217 = vmatpush1.bf16.msra.mxu0 0
      %7218 = vmatprep.subr.bf16.mxu0 0
      %7219 = vmatpush1.bf16.msra.mxu0 0
      %7220 = vmatprep.subr.bf16.mxu0 0
      %7221 = vmatpush1.bf16.msra.mxu0 0
      %7222 = vmatprep.subr.bf16.mxu0 %v7162
      %7223 = vmatpush1.bf16.msra.mxu0 %v7159
      %7224 = vmatprep.subr.bf16.mxu0 0
      %7225 = vmatpush2.bf16.msra.mxu0 0
      %7226 = vmatprep.subr.bf16.mxu0 0
      %7227 = vmatpush2.bf16.msra.mxu0 0
      %7228 = vmatprep.subr.bf16.mxu0 0
      %7229 = vmatpush2.bf16.msra.mxu0 0
      %7230 = vmatprep.subr.bf16.mxu0 0
      %7231 = vmatpush2.bf16.msra.mxu0 0
      %7232 = vmatprep.subr.bf16.mxu0 0
      %7233 = vmatpush2.bf16.msra.mxu0 0
      %7234 = vmatprep.subr.bf16.mxu0 0
      %7235 = vmatpush2.bf16.msra.mxu0 0
      %7236 = vmatprep.subr.bf16.mxu0 0
      %7237 = vmatpush2.bf16.msra.mxu0 0
      %7238 = vmatprep.subr.bf16.mxu0 0
      %7239 = vmatpush2.bf16.msra.mxu0 0
      %7240 = vmatprep.mubr.bf16.mxu0 0
      %7241 = vmatmul.mubr.bf16.gmra.mxu0 %v7150
      %v7242 = vpop.f32.mrf.mxu0
      %v7243 = vadd.f32 0.0, %v7242
      %v7244 = vpop.f32.mrf.mxu0
      %v7245 = vadd.f32 0.0, %v7244
      %v7246 = vpop.f32.mrf.mxu0
      %v7247 = vpop.f32.mrf.mxu0
      %7248 = vdwg.mxu0
      %7249 = vmatprep.subr.bf16.mxu0 0
      %7250 = vmatpush1.bf16.msra.mxu0 0
      %7251 = vmatprep.subr.bf16.mxu0 0
      %7252 = vmatpush1.bf16.msra.mxu0 0
      %7253 = vmatprep.subr.bf16.mxu0 0
      %7254 = vmatpush1.bf16.msra.mxu0 0
      %7255 = vmatprep.subr.bf16.mxu0 0
      %7256 = vmatpush1.bf16.msra.mxu0 0
      %7257 = vmatprep.subr.bf16.mxu0 0
      %7258 = vmatpush1.bf16.msra.mxu0 0
      %7259 = vmatprep.subr.bf16.mxu0 0
      %7260 = vmatpush1.bf16.msra.mxu0 0
      %7261 = vmatprep.subr.bf16.mxu0 0
      %7262 = vmatpush1.bf16.msra.mxu0 0
      %7263 = vmatprep.subr.bf16.mxu0 0
      %7264 = vmatpush1.bf16.msra.mxu0 %v7165
      %7265 = vmatprep.subr.bf16.mxu0 0
      %7266 = vmatpush2.bf16.msra.mxu0 0
      %7267 = vmatprep.subr.bf16.mxu0 0
      %7268 = vmatpush2.bf16.msra.mxu0 0
      %7269 = vmatprep.subr.bf16.mxu0 0
      %7270 = vmatpush2.bf16.msra.mxu0 0
      %7271 = vmatprep.subr.bf16.mxu0 0
      %7272 = vmatpush2.bf16.msra.mxu0 0
      %7273 = vmatprep.subr.bf16.mxu0 0
      %7274 = vmatpush2.bf16.msra.mxu0 0
      %7275 = vmatprep.subr.bf16.mxu0 0
      %7276 = vmatpush2.bf16.msra.mxu0 0
      %7277 = vmatprep.subr.bf16.mxu0 0
      %7278 = vmatpush2.bf16.msra.mxu0 0
      %7279 = vmatprep.subr.bf16.mxu0 0
      %7280 = vmatpush2.bf16.msra.mxu0 0
      %7281 = vmatprep.mubr.bf16.mxu0 0
      %7282 = vmatmul.mubr.bf16.gmra.mxu0 %v7150
      %v7283 = vpop.f32.mrf.mxu0
      %v7284 = vadd.f32 0.0, %v7283
      %v7285 = vpop.f32.mrf.mxu0
      %v7286 = vpop.f32.mrf.mxu0
      %v7287 = vpop.f32.mrf.mxu0
      %7288 = vdwg.mxu0
      %v7289 = vadd.f32 %v7128, %v7202
      %v7290 = vadd.f32 %v7129, %v7204
      %v7291 = vadd.f32 %v7130, %v7243
      %v7292 = vadd.f32 %v7131, %v7245
      %v7293 = vadd.f32 %v7132, %v7284
      %7294 = vrot.lane.b32.xlu0 %v6346, 80
      %v7295 = vpop.permute.xlu0 %7294
      %7296 = vrot.lane.b32.xlu0 %v6336, 108
      %v7297 = vpop.permute.xlu0 %7296
      %7298 = vrot.lane.b32.xlu0 %v6337, 108
      %v7299 = vpop.permute.xlu0 %7298
      %7300 = vrot.lane.b32.xlu0 %v6338, 108
      %v7301 = vpop.permute.xlu0 %7300
      %7302 = vrot.lane.b32.xlu0 %v6339, 108
      %v7303 = vpop.permute.xlu0 %7302
      %7304 = vrot.lane.b32.xlu0 %v6340, 108
      %v7305 = vpop.permute.xlu0 %7304
      %v7306 = vsel %vm1659, %v7297, %v7299
      %v7307 = vsel %vm1659, %v7299, %v7301
      %v7308 = vsel %vm1659, %v7301, %v7303
      %v7309 = vsel %vm1659, %v7303, %v7305
      %v7311 = vsel %vm6368, %v7295, 0
      %v7314 = vsel %vm6372, %v7306, 0
      %v7317 = vsel %vm6372, %v7307, 0
      %v7320 = vsel %vm6372, %v7308, 0
      %v7323 = vsel %vm6372, %v7309, 0
      %v7326 = vsel %vm6372, %v7305, 0
      %7328 = vmatprep.subr.bf16.mxu0 0
      %7329 = vmatpush1.bf16.msra.mxu0 0
      %7330 = vmatprep.subr.bf16.mxu0 0
      %7331 = vmatpush1.bf16.msra.mxu0 0
      %7332 = vmatprep.subr.bf16.mxu0 0
      %7333 = vmatpush1.bf16.msra.mxu0 0
      %7334 = vmatprep.subr.bf16.mxu0 0
      %7335 = vmatpush1.bf16.msra.mxu0 0
      %7336 = vmatprep.subr.bf16.mxu0 0
      %7337 = vmatpush1.bf16.msra.mxu0 0
      %7338 = vmatprep.subr.bf16.mxu0 0
      %7339 = vmatpush1.bf16.msra.mxu0 0
      %7340 = vmatprep.subr.bf16.mxu0 0
      %7341 = vmatpush1.bf16.msra.mxu0 0
      %7342 = vmatprep.subr.bf16.mxu0 %v7317
      %7343 = vmatpush1.bf16.msra.mxu0 %v7314
      %7344 = vmatprep.subr.bf16.mxu0 0
      %7345 = vmatpush2.bf16.msra.mxu0 0
      %7346 = vmatprep.subr.bf16.mxu0 0
      %7347 = vmatpush2.bf16.msra.mxu0 0
      %7348 = vmatprep.subr.bf16.mxu0 0
      %7349 = vmatpush2.bf16.msra.mxu0 0
      %7350 = vmatprep.subr.bf16.mxu0 0
      %7351 = vmatpush2.bf16.msra.mxu0 0
      %7352 = vmatprep.subr.bf16.mxu0 0
      %7353 = vmatpush2.bf16.msra.mxu0 0
      %7354 = vmatprep.subr.bf16.mxu0 0
      %7355 = vmatpush2.bf16.msra.mxu0 0
      %7356 = vmatprep.subr.bf16.mxu0 0
      %7357 = vmatpush2.bf16.msra.mxu0 0
      %7358 = vmatprep.subr.bf16.mxu0 0
      %7359 = vmatpush2.bf16.msra.mxu0 0
      %7360 = vmatprep.mubr.bf16.mxu0 0
      %7361 = vmatmul.mubr.bf16.gmra.mxu0 %v7311
      %v7362 = vpop.f32.mrf.mxu0
      %v7363 = vadd.f32 0.0, %v7362
      %v7364 = vpop.f32.mrf.mxu0
      %v7365 = vadd.f32 0.0, %v7364
      %v7366 = vpop.f32.mrf.mxu0
      %v7367 = vpop.f32.mrf.mxu0
      %7368 = vdwg.mxu0
      %7369 = vmatprep.subr.bf16.mxu0 0
      %7370 = vmatpush1.bf16.msra.mxu0 0
      %7371 = vmatprep.subr.bf16.mxu0 0
      %7372 = vmatpush1.bf16.msra.mxu0 0
      %7373 = vmatprep.subr.bf16.mxu0 0
      %7374 = vmatpush1.bf16.msra.mxu0 0
      %7375 = vmatprep.subr.bf16.mxu0 0
      %7376 = vmatpush1.bf16.msra.mxu0 0
      %7377 = vmatprep.subr.bf16.mxu0 0
      %7378 = vmatpush1.bf16.msra.mxu0 0
      %7379 = vmatprep.subr.bf16.mxu0 0
      %7380 = vmatpush1.bf16.msra.mxu0 0
      %7381 = vmatprep.subr.bf16.mxu0 0
      %7382 = vmatpush1.bf16.msra.mxu0 0
      %7383 = vmatprep.subr.bf16.mxu0 %v7323
      %7384 = vmatpush1.bf16.msra.mxu0 %v7320
      %7385 = vmatprep.subr.bf16.mxu0 0
      %7386 = vmatpush2.bf16.msra.mxu0 0
      %7387 = vmatprep.subr.bf16.mxu0 0
      %7388 = vmatpush2.bf16.msra.mxu0 0
      %7389 = vmatprep.subr.bf16.mxu0 0
      %7390 = vmatpush2.bf16.msra.mxu0 0
      %7391 = vmatprep.subr.bf16.mxu0 0
      %7392 = vmatpush2.bf16.msra.mxu0 0
      %7393 = vmatprep.subr.bf16.mxu0 0
      %7394 = vmatpush2.bf16.msra.mxu0 0
      %7395 = vmatprep.subr.bf16.mxu0 0
      %7396 = vmatpush2.bf16.msra.mxu0 0
      %7397 = vmatprep.subr.bf16.mxu0 0
      %7398 = vmatpush2.bf16.msra.mxu0 0
      %7399 = vmatprep.subr.bf16.mxu0 0
      %7400 = vmatpush2.bf16.msra.mxu0 0
      %7401 = vmatprep.mubr.bf16.mxu0 0
      %7402 = vmatmul.mubr.bf16.gmra.mxu0 %v7311
      %v7403 = vpop.f32.mrf.mxu0
      %v7404 = vadd.f32 0.0, %v7403
      %v7405 = vpop.f32.mrf.mxu0
      %v7406 = vadd.f32 0.0, %v7405
      %v7407 = vpop.f32.mrf.mxu0
      %v7408 = vpop.f32.mrf.mxu0
      %7409 = vdwg.mxu0
      %7410 = vmatprep.subr.bf16.mxu0 0
      %7411 = vmatpush1.bf16.msra.mxu0 0
      %7412 = vmatprep.subr.bf16.mxu0 0
      %7413 = vmatpush1.bf16.msra.mxu0 0
      %7414 = vmatprep.subr.bf16.mxu0 0
      %7415 = vmatpush1.bf16.msra.mxu0 0
      %7416 = vmatprep.subr.bf16.mxu0 0
      %7417 = vmatpush1.bf16.msra.mxu0 0
      %7418 = vmatprep.subr.bf16.mxu0 0
      %7419 = vmatpush1.bf16.msra.mxu0 0
      %7420 = vmatprep.subr.bf16.mxu0 0
      %7421 = vmatpush1.bf16.msra.mxu0 0
      %7422 = vmatprep.subr.bf16.mxu0 0
      %7423 = vmatpush1.bf16.msra.mxu0 0
      %7424 = vmatprep.subr.bf16.mxu0 0
      %7425 = vmatpush1.bf16.msra.mxu0 %v7326
      %7426 = vmatprep.subr.bf16.mxu0 0
      %7427 = vmatpush2.bf16.msra.mxu0 0
      %7428 = vmatprep.subr.bf16.mxu0 0
      %7429 = vmatpush2.bf16.msra.mxu0 0
      %7430 = vmatprep.subr.bf16.mxu0 0
      %7431 = vmatpush2.bf16.msra.mxu0 0
      %7432 = vmatprep.subr.bf16.mxu0 0
      %7433 = vmatpush2.bf16.msra.mxu0 0
      %7434 = vmatprep.subr.bf16.mxu0 0
      %7435 = vmatpush2.bf16.msra.mxu0 0
      %7436 = vmatprep.subr.bf16.mxu0 0
      %7437 = vmatpush2.bf16.msra.mxu0 0
      %7438 = vmatprep.subr.bf16.mxu0 0
      %7439 = vmatpush2.bf16.msra.mxu0 0
      %7440 = vmatprep.subr.bf16.mxu0 0
      %7441 = vmatpush2.bf16.msra.mxu0 0
      %7442 = vmatprep.mubr.bf16.mxu0 0
      %7443 = vmatmul.mubr.bf16.gmra.mxu0 %v7311
      %v7444 = vpop.f32.mrf.mxu0
      %v7445 = vadd.f32 0.0, %v7444
      %v7446 = vpop.f32.mrf.mxu0
      %v7447 = vpop.f32.mrf.mxu0
      %v7448 = vpop.f32.mrf.mxu0
      %7449 = vdwg.mxu0
      %v7450 = vadd.f32 %v7289, %v7363
      %v7451 = vadd.f32 %v7290, %v7365
      %v7452 = vadd.f32 %v7291, %v7404
      %v7453 = vadd.f32 %v7292, %v7406
      %v7454 = vadd.f32 %v7293, %v7445
      %7455 = vrot.lane.b32.xlu0 %v6346, 72
      %v7456 = vpop.permute.xlu0 %7455
      %7457 = vrot.lane.b32.xlu0 %v6336, 107
      %v7458 = vpop.permute.xlu0 %7457
      %7459 = vrot.lane.b32.xlu0 %v6337, 107
      %v7460 = vpop.permute.xlu0 %7459
      %7461 = vrot.lane.b32.xlu0 %v6338, 107
      %v7462 = vpop.permute.xlu0 %7461
      %7463 = vrot.lane.b32.xlu0 %v6339, 107
      %v7464 = vpop.permute.xlu0 %7463
      %7465 = vrot.lane.b32.xlu0 %v6340, 107
      %v7466 = vpop.permute.xlu0 %7465
      %v7467 = vsel %vm1876, %v7458, %v7460
      %v7468 = vsel %vm1876, %v7460, %v7462
      %v7469 = vsel %vm1876, %v7462, %v7464
      %v7470 = vsel %vm1876, %v7464, %v7466
      %v7472 = vsel %vm6368, %v7456, 0
      %v7475 = vsel %vm6372, %v7467, 0
      %v7478 = vsel %vm6372, %v7468, 0
      %v7481 = vsel %vm6372, %v7469, 0
      %v7484 = vsel %vm6372, %v7470, 0
      %v7487 = vsel %vm6372, %v7466, 0
      %7489 = vmatprep.subr.bf16.mxu0 0
      %7490 = vmatpush1.bf16.msra.mxu0 0
      %7491 = vmatprep.subr.bf16.mxu0 0
      %7492 = vmatpush1.bf16.msra.mxu0 0
      %7493 = vmatprep.subr.bf16.mxu0 0
      %7494 = vmatpush1.bf16.msra.mxu0 0
      %7495 = vmatprep.subr.bf16.mxu0 0
      %7496 = vmatpush1.bf16.msra.mxu0 0
      %7497 = vmatprep.subr.bf16.mxu0 0
      %7498 = vmatpush1.bf16.msra.mxu0 0
      %7499 = vmatprep.subr.bf16.mxu0 0
      %7500 = vmatpush1.bf16.msra.mxu0 0
      %7501 = vmatprep.subr.bf16.mxu0 0
      %7502 = vmatpush1.bf16.msra.mxu0 0
      %7503 = vmatprep.subr.bf16.mxu0 %v7478
      %7504 = vmatpush1.bf16.msra.mxu0 %v7475
      %7505 = vmatprep.subr.bf16.mxu0 0
      %7506 = vmatpush2.bf16.msra.mxu0 0
      %7507 = vmatprep.subr.bf16.mxu0 0
      %7508 = vmatpush2.bf16.msra.mxu0 0
      %7509 = vmatprep.subr.bf16.mxu0 0
      %7510 = vmatpush2.bf16.msra.mxu0 0
      %7511 = vmatprep.subr.bf16.mxu0 0
      %7512 = vmatpush2.bf16.msra.mxu0 0
      %7513 = vmatprep.subr.bf16.mxu0 0
      %7514 = vmatpush2.bf16.msra.mxu0 0
      %7515 = vmatprep.subr.bf16.mxu0 0
      %7516 = vmatpush2.bf16.msra.mxu0 0
      %7517 = vmatprep.subr.bf16.mxu0 0
      %7518 = vmatpush2.bf16.msra.mxu0 0
      %7519 = vmatprep.subr.bf16.mxu0 0
      %7520 = vmatpush2.bf16.msra.mxu0 0
      %7521 = vmatprep.mubr.bf16.mxu0 0
      %7522 = vmatmul.mubr.bf16.gmra.mxu0 %v7472
      %v7523 = vpop.f32.mrf.mxu0
      %v7524 = vadd.f32 0.0, %v7523
      %v7525 = vpop.f32.mrf.mxu0
      %v7526 = vadd.f32 0.0, %v7525
      %v7527 = vpop.f32.mrf.mxu0
      %v7528 = vpop.f32.mrf.mxu0
      %7529 = vdwg.mxu0
      %7530 = vmatprep.subr.bf16.mxu0 0
      %7531 = vmatpush1.bf16.msra.mxu0 0
      %7532 = vmatprep.subr.bf16.mxu0 0
      %7533 = vmatpush1.bf16.msra.mxu0 0
      %7534 = vmatprep.subr.bf16.mxu0 0
      %7535 = vmatpush1.bf16.msra.mxu0 0
      %7536 = vmatprep.subr.bf16.mxu0 0
      %7537 = vmatpush1.bf16.msra.mxu0 0
      %7538 = vmatprep.subr.bf16.mxu0 0
      %7539 = vmatpush1.bf16.msra.mxu0 0
      %7540 = vmatprep.subr.bf16.mxu0 0
      %7541 = vmatpush1.bf16.msra.mxu0 0
      %7542 = vmatprep.subr.bf16.mxu0 0
      %7543 = vmatpush1.bf16.msra.mxu0 0
      %7544 = vmatprep.subr.bf16.mxu0 %v7484
      %7545 = vmatpush1.bf16.msra.mxu0 %v7481
      %7546 = vmatprep.subr.bf16.mxu0 0
      %7547 = vmatpush2.bf16.msra.mxu0 0
      %7548 = vmatprep.subr.bf16.mxu0 0
      %7549 = vmatpush2.bf16.msra.mxu0 0
      %7550 = vmatprep.subr.bf16.mxu0 0
      %7551 = vmatpush2.bf16.msra.mxu0 0
      %7552 = vmatprep.subr.bf16.mxu0 0
      %7553 = vmatpush2.bf16.msra.mxu0 0
      %7554 = vmatprep.subr.bf16.mxu0 0
      %7555 = vmatpush2.bf16.msra.mxu0 0
      %7556 = vmatprep.subr.bf16.mxu0 0
      %7557 = vmatpush2.bf16.msra.mxu0 0
      %7558 = vmatprep.subr.bf16.mxu0 0
      %7559 = vmatpush2.bf16.msra.mxu0 0
      %7560 = vmatprep.subr.bf16.mxu0 0
      %7561 = vmatpush2.bf16.msra.mxu0 0
      %7562 = vmatprep.mubr.bf16.mxu0 0
      %7563 = vmatmul.mubr.bf16.gmra.mxu0 %v7472
      %v7564 = vpop.f32.mrf.mxu0
      %v7565 = vadd.f32 0.0, %v7564
      %v7566 = vpop.f32.mrf.mxu0
      %v7567 = vadd.f32 0.0, %v7566
      %v7568 = vpop.f32.mrf.mxu0
      %v7569 = vpop.f32.mrf.mxu0
      %7570 = vdwg.mxu0
      %7571 = vmatprep.subr.bf16.mxu0 0
      %7572 = vmatpush1.bf16.msra.mxu0 0
      %7573 = vmatprep.subr.bf16.mxu0 0
      %7574 = vmatpush1.bf16.msra.mxu0 0
      %7575 = vmatprep.subr.bf16.mxu0 0
      %7576 = vmatpush1.bf16.msra.mxu0 0
      %7577 = vmatprep.subr.bf16.mxu0 0
      %7578 = vmatpush1.bf16.msra.mxu0 0
      %7579 = vmatprep.subr.bf16.mxu0 0
      %7580 = vmatpush1.bf16.msra.mxu0 0
      %7581 = vmatprep.subr.bf16.mxu0 0
      %7582 = vmatpush1.bf16.msra.mxu0 0
      %7583 = vmatprep.subr.bf16.mxu0 0
      %7584 = vmatpush1.bf16.msra.mxu0 0
      %7585 = vmatprep.subr.bf16.mxu0 0
      %7586 = vmatpush1.bf16.msra.mxu0 %v7487
      %7587 = vmatprep.subr.bf16.mxu0 0
      %7588 = vmatpush2.bf16.msra.mxu0 0
      %7589 = vmatprep.subr.bf16.mxu0 0
      %7590 = vmatpush2.bf16.msra.mxu0 0
      %7591 = vmatprep.subr.bf16.mxu0 0
      %7592 = vmatpush2.bf16.msra.mxu0 0
      %7593 = vmatprep.subr.bf16.mxu0 0
      %7594 = vmatpush2.bf16.msra.mxu0 0
      %7595 = vmatprep.subr.bf16.mxu0 0
      %7596 = vmatpush2.bf16.msra.mxu0 0
      %7597 = vmatprep.subr.bf16.mxu0 0
      %7598 = vmatpush2.bf16.msra.mxu0 0
      %7599 = vmatprep.subr.bf16.mxu0 0
      %7600 = vmatpush2.bf16.msra.mxu0 0
      %7601 = vmatprep.subr.bf16.mxu0 0
      %7602 = vmatpush2.bf16.msra.mxu0 0
      %7603 = vmatprep.mubr.bf16.mxu0 0
      %7604 = vmatmul.mubr.bf16.gmra.mxu0 %v7472
      %v7605 = vpop.f32.mrf.mxu0
      %v7606 = vadd.f32 0.0, %v7605
      %v7607 = vpop.f32.mrf.mxu0
      %v7608 = vpop.f32.mrf.mxu0
      %v7609 = vpop.f32.mrf.mxu0
      %7610 = vdwg.mxu0
      %v7611 = vadd.f32 %v7450, %v7524
      %v7612 = vadd.f32 %v7451, %v7526
      %v7613 = vadd.f32 %v7452, %v7565
      %v7614 = vadd.f32 %v7453, %v7567
      %v7615 = vadd.f32 %v7454, %v7606
      %7616 = vrot.lane.b32.xlu0 %v6346, 64
      %v7617 = vpop.permute.xlu0 %7616
      %7618 = vrot.lane.b32.xlu0 %v6336, 106
      %v7619 = vpop.permute.xlu0 %7618
      %7620 = vrot.lane.b32.xlu0 %v6337, 106
      %v7621 = vpop.permute.xlu0 %7620
      %7622 = vrot.lane.b32.xlu0 %v6338, 106
      %v7623 = vpop.permute.xlu0 %7622
      %7624 = vrot.lane.b32.xlu0 %v6339, 106
      %v7625 = vpop.permute.xlu0 %7624
      %7626 = vrot.lane.b32.xlu0 %v6340, 106
      %v7627 = vpop.permute.xlu0 %7626
      %v7628 = vsel %vm2093, %v7619, %v7621
      %v7629 = vsel %vm2093, %v7621, %v7623
      %v7630 = vsel %vm2093, %v7623, %v7625
      %v7631 = vsel %vm2093, %v7625, %v7627
      %v7633 = vsel %vm6368, %v7617, 0
      %v7636 = vsel %vm6372, %v7628, 0
      %v7639 = vsel %vm6372, %v7629, 0
      %v7642 = vsel %vm6372, %v7630, 0
      %v7645 = vsel %vm6372, %v7631, 0
      %v7648 = vsel %vm6372, %v7627, 0
      %7650 = vmatprep.subr.bf16.mxu0 0
      %7651 = vmatpush1.bf16.msra.mxu0 0
      %7652 = vmatprep.subr.bf16.mxu0 0
      %7653 = vmatpush1.bf16.msra.mxu0 0
      %7654 = vmatprep.subr.bf16.mxu0 0
      %7655 = vmatpush1.bf16.msra.mxu0 0
      %7656 = vmatprep.subr.bf16.mxu0 0
      %7657 = vmatpush1.bf16.msra.mxu0 0
      %7658 = vmatprep.subr.bf16.mxu0 0
      %7659 = vmatpush1.bf16.msra.mxu0 0
      %7660 = vmatprep.subr.bf16.mxu0 0
      %7661 = vmatpush1.bf16.msra.mxu0 0
      %7662 = vmatprep.subr.bf16.mxu0 0
      %7663 = vmatpush1.bf16.msra.mxu0 0
      %7664 = vmatprep.subr.bf16.mxu0 %v7639
      %7665 = vmatpush1.bf16.msra.mxu0 %v7636
      %7666 = vmatprep.subr.bf16.mxu0 0
      %7667 = vmatpush2.bf16.msra.mxu0 0
      %7668 = vmatprep.subr.bf16.mxu0 0
      %7669 = vmatpush2.bf16.msra.mxu0 0
      %7670 = vmatprep.subr.bf16.mxu0 0
      %7671 = vmatpush2.bf16.msra.mxu0 0
      %7672 = vmatprep.subr.bf16.mxu0 0
      %7673 = vmatpush2.bf16.msra.mxu0 0
      %7674 = vmatprep.subr.bf16.mxu0 0
      %7675 = vmatpush2.bf16.msra.mxu0 0
      %7676 = vmatprep.subr.bf16.mxu0 0
      %7677 = vmatpush2.bf16.msra.mxu0 0
      %7678 = vmatprep.subr.bf16.mxu0 0
      %7679 = vmatpush2.bf16.msra.mxu0 0
      %7680 = vmatprep.subr.bf16.mxu0 0
      %7681 = vmatpush2.bf16.msra.mxu0 0
      %7682 = vmatprep.mubr.bf16.mxu0 0
      %7683 = vmatmul.mubr.bf16.gmra.mxu0 %v7633
      %v7684 = vpop.f32.mrf.mxu0
      %v7685 = vadd.f32 0.0, %v7684
      %v7686 = vpop.f32.mrf.mxu0
      %v7687 = vadd.f32 0.0, %v7686
      %v7688 = vpop.f32.mrf.mxu0
      %v7689 = vpop.f32.mrf.mxu0
      %7690 = vdwg.mxu0
      %7691 = vmatprep.subr.bf16.mxu0 0
      %7692 = vmatpush1.bf16.msra.mxu0 0
      %7693 = vmatprep.subr.bf16.mxu0 0
      %7694 = vmatpush1.bf16.msra.mxu0 0
      %7695 = vmatprep.subr.bf16.mxu0 0
      %7696 = vmatpush1.bf16.msra.mxu0 0
      %7697 = vmatprep.subr.bf16.mxu0 0
      %7698 = vmatpush1.bf16.msra.mxu0 0
      %7699 = vmatprep.subr.bf16.mxu0 0
      %7700 = vmatpush1.bf16.msra.mxu0 0
      %7701 = vmatprep.subr.bf16.mxu0 0
      %7702 = vmatpush1.bf16.msra.mxu0 0
      %7703 = vmatprep.subr.bf16.mxu0 0
      %7704 = vmatpush1.bf16.msra.mxu0 0
      %7705 = vmatprep.subr.bf16.mxu0 %v7645
      %7706 = vmatpush1.bf16.msra.mxu0 %v7642
      %7707 = vmatprep.subr.bf16.mxu0 0
      %7708 = vmatpush2.bf16.msra.mxu0 0
      %7709 = vmatprep.subr.bf16.mxu0 0
      %7710 = vmatpush2.bf16.msra.mxu0 0
      %7711 = vmatprep.subr.bf16.mxu0 0
      %7712 = vmatpush2.bf16.msra.mxu0 0
      %7713 = vmatprep.subr.bf16.mxu0 0
      %7714 = vmatpush2.bf16.msra.mxu0 0
      %7715 = vmatprep.subr.bf16.mxu0 0
      %7716 = vmatpush2.bf16.msra.mxu0 0
      %7717 = vmatprep.subr.bf16.mxu0 0
      %7718 = vmatpush2.bf16.msra.mxu0 0
      %7719 = vmatprep.subr.bf16.mxu0 0
      %7720 = vmatpush2.bf16.msra.mxu0 0
      %7721 = vmatprep.subr.bf16.mxu0 0
      %7722 = vmatpush2.bf16.msra.mxu0 0
      %7723 = vmatprep.mubr.bf16.mxu0 0
      %7724 = vmatmul.mubr.bf16.gmra.mxu0 %v7633
      %v7725 = vpop.f32.mrf.mxu0
      %v7726 = vadd.f32 0.0, %v7725
      %v7727 = vpop.f32.mrf.mxu0
      %v7728 = vadd.f32 0.0, %v7727
      %v7729 = vpop.f32.mrf.mxu0
      %v7730 = vpop.f32.mrf.mxu0
      %7731 = vdwg.mxu0
      %7732 = vmatprep.subr.bf16.mxu0 0
      %7733 = vmatpush1.bf16.msra.mxu0 0
      %7734 = vmatprep.subr.bf16.mxu0 0
      %7735 = vmatpush1.bf16.msra.mxu0 0
      %7736 = vmatprep.subr.bf16.mxu0 0
      %7737 = vmatpush1.bf16.msra.mxu0 0
      %7738 = vmatprep.subr.bf16.mxu0 0
      %7739 = vmatpush1.bf16.msra.mxu0 0
      %7740 = vmatprep.subr.bf16.mxu0 0
      %7741 = vmatpush1.bf16.msra.mxu0 0
      %7742 = vmatprep.subr.bf16.mxu0 0
      %7743 = vmatpush1.bf16.msra.mxu0 0
      %7744 = vmatprep.subr.bf16.mxu0 0
      %7745 = vmatpush1.bf16.msra.mxu0 0
      %7746 = vmatprep.subr.bf16.mxu0 0
      %7747 = vmatpush1.bf16.msra.mxu0 %v7648
      %7748 = vmatprep.subr.bf16.mxu0 0
      %7749 = vmatpush2.bf16.msra.mxu0 0
      %7750 = vmatprep.subr.bf16.mxu0 0
      %7751 = vmatpush2.bf16.msra.mxu0 0
      %7752 = vmatprep.subr.bf16.mxu0 0
      %7753 = vmatpush2.bf16.msra.mxu0 0
      %7754 = vmatprep.subr.bf16.mxu0 0
      %7755 = vmatpush2.bf16.msra.mxu0 0
      %7756 = vmatprep.subr.bf16.mxu0 0
      %7757 = vmatpush2.bf16.msra.mxu0 0
      %7758 = vmatprep.subr.bf16.mxu0 0
      %7759 = vmatpush2.bf16.msra.mxu0 0
      %7760 = vmatprep.subr.bf16.mxu0 0
      %7761 = vmatpush2.bf16.msra.mxu0 0
      %7762 = vmatprep.subr.bf16.mxu0 0
      %7763 = vmatpush2.bf16.msra.mxu0 0
      %7764 = vmatprep.mubr.bf16.mxu0 0
      %7765 = vmatmul.mubr.bf16.gmra.mxu0 %v7633
      %v7766 = vpop.f32.mrf.mxu0
      %v7767 = vadd.f32 0.0, %v7766
      %v7768 = vpop.f32.mrf.mxu0
      %v7769 = vpop.f32.mrf.mxu0
      %v7770 = vpop.f32.mrf.mxu0
      %7771 = vdwg.mxu0
      %v7772 = vadd.f32 %v7611, %v7685
      %v7773 = vadd.f32 %v7612, %v7687
      %v7774 = vadd.f32 %v7613, %v7726
      %v7775 = vadd.f32 %v7614, %v7728
      %v7776 = vadd.f32 %v7615, %v7767
      %7777 = vrot.lane.b32.xlu0 %v6346, 56
      %v7778 = vpop.permute.xlu0 %7777
      %7780 = vrot.lane.b32.xlu0 %v6336, 28
      %v7781 = vpop.permute.xlu0 %7780
      %7782 = vrot.lane.b32.xlu0 %v6337, 28
      %v7783 = vpop.permute.xlu0 %7782
      %7784 = vrot.lane.b32.xlu0 %v6338, 28
      %v7785 = vpop.permute.xlu0 %7784
      %7786 = vrot.lane.b32.xlu0 %v6339, 28
      %v7787 = vpop.permute.xlu0 %7786
      %7788 = vrot.lane.b32.xlu0 %v6340, 28
      %v7789 = vpop.permute.xlu0 %7788
      %7790 = vrot.lane.b32.xlu0 %v6341, 28
      %v7791 = vpop.permute.xlu0 %7790
      %v7792 = vsel %vm2310, %v7781, %v7783
      %v7793 = vsel %vm2310, %v7783, %v7785
      %v7794 = vsel %vm2310, %v7785, %v7787
      %v7795 = vsel %vm2310, %v7787, %v7789
      %v7796 = vsel %vm2310, %v7789, %v7791
      %v7798 = vsel %vm6368, %v7778, 0
      %v7801 = vsel %vm6372, %v7792, 0
      %v7804 = vsel %vm6372, %v7793, 0
      %v7807 = vsel %vm6372, %v7794, 0
      %v7810 = vsel %vm6372, %v7795, 0
      %v7813 = vsel %vm6372, %v7796, 0
      %7815 = vmatprep.subr.bf16.mxu0 0
      %7816 = vmatpush1.bf16.msra.mxu0 0
      %7817 = vmatprep.subr.bf16.mxu0 0
      %7818 = vmatpush1.bf16.msra.mxu0 0
      %7819 = vmatprep.subr.bf16.mxu0 0
      %7820 = vmatpush1.bf16.msra.mxu0 0
      %7821 = vmatprep.subr.bf16.mxu0 0
      %7822 = vmatpush1.bf16.msra.mxu0 0
      %7823 = vmatprep.subr.bf16.mxu0 0
      %7824 = vmatpush1.bf16.msra.mxu0 0
      %7825 = vmatprep.subr.bf16.mxu0 0
      %7826 = vmatpush1.bf16.msra.mxu0 0
      %7827 = vmatprep.subr.bf16.mxu0 0
      %7828 = vmatpush1.bf16.msra.mxu0 0
      %7829 = vmatprep.subr.bf16.mxu0 %v7804
      %7830 = vmatpush1.bf16.msra.mxu0 %v7801
      %7831 = vmatprep.subr.bf16.mxu0 0
      %7832 = vmatpush2.bf16.msra.mxu0 0
      %7833 = vmatprep.subr.bf16.mxu0 0
      %7834 = vmatpush2.bf16.msra.mxu0 0
      %7835 = vmatprep.subr.bf16.mxu0 0
      %7836 = vmatpush2.bf16.msra.mxu0 0
      %7837 = vmatprep.subr.bf16.mxu0 0
      %7838 = vmatpush2.bf16.msra.mxu0 0
      %7839 = vmatprep.subr.bf16.mxu0 0
      %7840 = vmatpush2.bf16.msra.mxu0 0
      %7841 = vmatprep.subr.bf16.mxu0 0
      %7842 = vmatpush2.bf16.msra.mxu0 0
      %7843 = vmatprep.subr.bf16.mxu0 0
      %7844 = vmatpush2.bf16.msra.mxu0 0
      %7845 = vmatprep.subr.bf16.mxu0 0
      %7846 = vmatpush2.bf16.msra.mxu0 0
      %7847 = vmatprep.mubr.bf16.mxu0 0
      %7848 = vmatmul.mubr.bf16.gmra.mxu0 %v7798
      %v7849 = vpop.f32.mrf.mxu0
      %v7850 = vadd.f32 0.0, %v7849
      %v7851 = vpop.f32.mrf.mxu0
      %v7852 = vadd.f32 0.0, %v7851
      %v7853 = vpop.f32.mrf.mxu0
      %v7854 = vpop.f32.mrf.mxu0
      %7855 = vdwg.mxu0
      %7856 = vmatprep.subr.bf16.mxu0 0
      %7857 = vmatpush1.bf16.msra.mxu0 0
      %7858 = vmatprep.subr.bf16.mxu0 0
      %7859 = vmatpush1.bf16.msra.mxu0 0
      %7860 = vmatprep.subr.bf16.mxu0 0
      %7861 = vmatpush1.bf16.msra.mxu0 0
      %7862 = vmatprep.subr.bf16.mxu0 0
      %7863 = vmatpush1.bf16.msra.mxu0 0
      %7864 = vmatprep.subr.bf16.mxu0 0
      %7865 = vmatpush1.bf16.msra.mxu0 0
      %7866 = vmatprep.subr.bf16.mxu0 0
      %7867 = vmatpush1.bf16.msra.mxu0 0
      %7868 = vmatprep.subr.bf16.mxu0 0
      %7869 = vmatpush1.bf16.msra.mxu0 0
      %7870 = vmatprep.subr.bf16.mxu0 %v7810
      %7871 = vmatpush1.bf16.msra.mxu0 %v7807
      %7872 = vmatprep.subr.bf16.mxu0 0
      %7873 = vmatpush2.bf16.msra.mxu0 0
      %7874 = vmatprep.subr.bf16.mxu0 0
      %7875 = vmatpush2.bf16.msra.mxu0 0
      %7876 = vmatprep.subr.bf16.mxu0 0
      %7877 = vmatpush2.bf16.msra.mxu0 0
      %7878 = vmatprep.subr.bf16.mxu0 0
      %7879 = vmatpush2.bf16.msra.mxu0 0
      %7880 = vmatprep.subr.bf16.mxu0 0
      %7881 = vmatpush2.bf16.msra.mxu0 0
      %7882 = vmatprep.subr.bf16.mxu0 0
      %7883 = vmatpush2.bf16.msra.mxu0 0
      %7884 = vmatprep.subr.bf16.mxu0 0
      %7885 = vmatpush2.bf16.msra.mxu0 0
      %7886 = vmatprep.subr.bf16.mxu0 0
      %7887 = vmatpush2.bf16.msra.mxu0 0
      %7888 = vmatprep.mubr.bf16.mxu0 0
      %7889 = vmatmul.mubr.bf16.gmra.mxu0 %v7798
      %v7890 = vpop.f32.mrf.mxu0
      %v7891 = vadd.f32 0.0, %v7890
      %v7892 = vpop.f32.mrf.mxu0
      %v7893 = vadd.f32 0.0, %v7892
      %v7894 = vpop.f32.mrf.mxu0
      %v7895 = vpop.f32.mrf.mxu0
      %7896 = vdwg.mxu0
      %7897 = vmatprep.subr.bf16.mxu0 0
      %7898 = vmatpush1.bf16.msra.mxu0 0
      %7899 = vmatprep.subr.bf16.mxu0 0
      %7900 = vmatpush1.bf16.msra.mxu0 0
      %7901 = vmatprep.subr.bf16.mxu0 0
      %7902 = vmatpush1.bf16.msra.mxu0 0
      %7903 = vmatprep.subr.bf16.mxu0 0
      %7904 = vmatpush1.bf16.msra.mxu0 0
      %7905 = vmatprep.subr.bf16.mxu0 0
      %7906 = vmatpush1.bf16.msra.mxu0 0
      %7907 = vmatprep.subr.bf16.mxu0 0
      %7908 = vmatpush1.bf16.msra.mxu0 0
      %7909 = vmatprep.subr.bf16.mxu0 0
      %7910 = vmatpush1.bf16.msra.mxu0 0
      %7911 = vmatprep.subr.bf16.mxu0 0
      %7912 = vmatpush1.bf16.msra.mxu0 %v7813
      %7913 = vmatprep.subr.bf16.mxu0 0
      %7914 = vmatpush2.bf16.msra.mxu0 0
      %7915 = vmatprep.subr.bf16.mxu0 0
      %7916 = vmatpush2.bf16.msra.mxu0 0
      %7917 = vmatprep.subr.bf16.mxu0 0
      %7918 = vmatpush2.bf16.msra.mxu0 0
      %7919 = vmatprep.subr.bf16.mxu0 0
      %7920 = vmatpush2.bf16.msra.mxu0 0
      %7921 = vmatprep.subr.bf16.mxu0 0
      %7922 = vmatpush2.bf16.msra.mxu0 0
      %7923 = vmatprep.subr.bf16.mxu0 0
      %7924 = vmatpush2.bf16.msra.mxu0 0
      %7925 = vmatprep.subr.bf16.mxu0 0
      %7926 = vmatpush2.bf16.msra.mxu0 0
      %7927 = vmatprep.subr.bf16.mxu0 0
      %7928 = vmatpush2.bf16.msra.mxu0 0
      %7929 = vmatprep.mubr.bf16.mxu0 0
      %7930 = vmatmul.mubr.bf16.gmra.mxu0 %v7798
      %v7931 = vpop.f32.mrf.mxu0
      %v7932 = vadd.f32 0.0, %v7931
      %v7933 = vpop.f32.mrf.mxu0
      %v7934 = vpop.f32.mrf.mxu0
      %v7935 = vpop.f32.mrf.mxu0
      %7936 = vdwg.mxu0
      %v7937 = vadd.f32 %v7772, %v7850
      %v7938 = vadd.f32 %v7773, %v7852
      %v7939 = vadd.f32 %v7774, %v7891
      %v7940 = vadd.f32 %v7775, %v7893
      %v7941 = vadd.f32 %v7776, %v7932
      %7942 = vrot.lane.b32.xlu0 %v6346, 48
      %v7943 = vpop.permute.xlu0 %7942
      %7944 = vrot.lane.b32.xlu0 %v6336, 27
      %v7945 = vpop.permute.xlu0 %7944
      %7946 = vrot.lane.b32.xlu0 %v6337, 27
      %v7947 = vpop.permute.xlu0 %7946
      %7948 = vrot.lane.b32.xlu0 %v6338, 27
      %v7949 = vpop.permute.xlu0 %7948
      %7950 = vrot.lane.b32.xlu0 %v6339, 27
      %v7951 = vpop.permute.xlu0 %7950
      %7952 = vrot.lane.b32.xlu0 %v6340, 27
      %v7953 = vpop.permute.xlu0 %7952
      %7954 = vrot.lane.b32.xlu0 %v6341, 27
      %v7955 = vpop.permute.xlu0 %7954
      %v7956 = vsel %vm2527, %v7945, %v7947
      %v7957 = vsel %vm2527, %v7947, %v7949
      %v7958 = vsel %vm2527, %v7949, %v7951
      %v7959 = vsel %vm2527, %v7951, %v7953
      %v7960 = vsel %vm2527, %v7953, %v7955
      %v7962 = vsel %vm6368, %v7943, 0
      %v7965 = vsel %vm6372, %v7956, 0
      %v7968 = vsel %vm6372, %v7957, 0
      %v7971 = vsel %vm6372, %v7958, 0
      %v7974 = vsel %vm6372, %v7959, 0
      %v7977 = vsel %vm6372, %v7960, 0
      %7979 = vmatprep.subr.bf16.mxu0 0
      %7980 = vmatpush1.bf16.msra.mxu0 0
      %7981 = vmatprep.subr.bf16.mxu0 0
      %7982 = vmatpush1.bf16.msra.mxu0 0
      %7983 = vmatprep.subr.bf16.mxu0 0
      %7984 = vmatpush1.bf16.msra.mxu0 0
      %7985 = vmatprep.subr.bf16.mxu0 0
      %7986 = vmatpush1.bf16.msra.mxu0 0
      %7987 = vmatprep.subr.bf16.mxu0 0
      %7988 = vmatpush1.bf16.msra.mxu0 0
      %7989 = vmatprep.subr.bf16.mxu0 0
      %7990 = vmatpush1.bf16.msra.mxu0 0
      %7991 = vmatprep.subr.bf16.mxu0 0
      %7992 = vmatpush1.bf16.msra.mxu0 0
      %7993 = vmatprep.subr.bf16.mxu0 %v7968
      %7994 = vmatpush1.bf16.msra.mxu0 %v7965
      %7995 = vmatprep.subr.bf16.mxu0 0
      %7996 = vmatpush2.bf16.msra.mxu0 0
      %7997 = vmatprep.subr.bf16.mxu0 0
      %7998 = vmatpush2.bf16.msra.mxu0 0
      %7999 = vmatprep.subr.bf16.mxu0 0
      %8000 = vmatpush2.bf16.msra.mxu0 0
      %8001 = vmatprep.subr.bf16.mxu0 0
      %8002 = vmatpush2.bf16.msra.mxu0 0
      %8003 = vmatprep.subr.bf16.mxu0 0
      %8004 = vmatpush2.bf16.msra.mxu0 0
      %8005 = vmatprep.subr.bf16.mxu0 0
      %8006 = vmatpush2.bf16.msra.mxu0 0
      %8007 = vmatprep.subr.bf16.mxu0 0
      %8008 = vmatpush2.bf16.msra.mxu0 0
      %8009 = vmatprep.subr.bf16.mxu0 0
      %8010 = vmatpush2.bf16.msra.mxu0 0
      %8011 = vmatprep.mubr.bf16.mxu0 0
      %8012 = vmatmul.mubr.bf16.gmra.mxu0 %v7962
      %v8013 = vpop.f32.mrf.mxu0
      %v8014 = vadd.f32 0.0, %v8013
      %v8015 = vpop.f32.mrf.mxu0
      %v8016 = vadd.f32 0.0, %v8015
      %v8017 = vpop.f32.mrf.mxu0
      %v8018 = vpop.f32.mrf.mxu0
      %8019 = vdwg.mxu0
      %8020 = vmatprep.subr.bf16.mxu0 0
      %8021 = vmatpush1.bf16.msra.mxu0 0
      %8022 = vmatprep.subr.bf16.mxu0 0
      %8023 = vmatpush1.bf16.msra.mxu0 0
      %8024 = vmatprep.subr.bf16.mxu0 0
      %8025 = vmatpush1.bf16.msra.mxu0 0
      %8026 = vmatprep.subr.bf16.mxu0 0
      %8027 = vmatpush1.bf16.msra.mxu0 0
      %8028 = vmatprep.subr.bf16.mxu0 0
      %8029 = vmatpush1.bf16.msra.mxu0 0
      %8030 = vmatprep.subr.bf16.mxu0 0
      %8031 = vmatpush1.bf16.msra.mxu0 0
      %8032 = vmatprep.subr.bf16.mxu0 0
      %8033 = vmatpush1.bf16.msra.mxu0 0
      %8034 = vmatprep.subr.bf16.mxu0 %v7974
      %8035 = vmatpush1.bf16.msra.mxu0 %v7971
      %8036 = vmatprep.subr.bf16.mxu0 0
      %8037 = vmatpush2.bf16.msra.mxu0 0
      %8038 = vmatprep.subr.bf16.mxu0 0
      %8039 = vmatpush2.bf16.msra.mxu0 0
      %8040 = vmatprep.subr.bf16.mxu0 0
      %8041 = vmatpush2.bf16.msra.mxu0 0
      %8042 = vmatprep.subr.bf16.mxu0 0
      %8043 = vmatpush2.bf16.msra.mxu0 0
      %8044 = vmatprep.subr.bf16.mxu0 0
      %8045 = vmatpush2.bf16.msra.mxu0 0
      %8046 = vmatprep.subr.bf16.mxu0 0
      %8047 = vmatpush2.bf16.msra.mxu0 0
      %8048 = vmatprep.subr.bf16.mxu0 0
      %8049 = vmatpush2.bf16.msra.mxu0 0
      %8050 = vmatprep.subr.bf16.mxu0 0
      %8051 = vmatpush2.bf16.msra.mxu0 0
      %8052 = vmatprep.mubr.bf16.mxu0 0
      %8053 = vmatmul.mubr.bf16.gmra.mxu0 %v7962
      %v8054 = vpop.f32.mrf.mxu0
      %v8055 = vadd.f32 0.0, %v8054
      %v8056 = vpop.f32.mrf.mxu0
      %v8057 = vadd.f32 0.0, %v8056
      %v8058 = vpop.f32.mrf.mxu0
      %v8059 = vpop.f32.mrf.mxu0
      %8060 = vdwg.mxu0
      %8061 = vmatprep.subr.bf16.mxu0 0
      %8062 = vmatpush1.bf16.msra.mxu0 0
      %8063 = vmatprep.subr.bf16.mxu0 0
      %8064 = vmatpush1.bf16.msra.mxu0 0
      %8065 = vmatprep.subr.bf16.mxu0 0
      %8066 = vmatpush1.bf16.msra.mxu0 0
      %8067 = vmatprep.subr.bf16.mxu0 0
      %8068 = vmatpush1.bf16.msra.mxu0 0
      %8069 = vmatprep.subr.bf16.mxu0 0
      %8070 = vmatpush1.bf16.msra.mxu0 0
      %8071 = vmatprep.subr.bf16.mxu0 0
      %8072 = vmatpush1.bf16.msra.mxu0 0
      %8073 = vmatprep.subr.bf16.mxu0 0
      %8074 = vmatpush1.bf16.msra.mxu0 0
      %8075 = vmatprep.subr.bf16.mxu0 0
      %8076 = vmatpush1.bf16.msra.mxu0 %v7977
      %8077 = vmatprep.subr.bf16.mxu0 0
      %8078 = vmatpush2.bf16.msra.mxu0 0
      %8079 = vmatprep.subr.bf16.mxu0 0
      %8080 = vmatpush2.bf16.msra.mxu0 0
      %8081 = vmatprep.subr.bf16.mxu0 0
      %8082 = vmatpush2.bf16.msra.mxu0 0
      %8083 = vmatprep.subr.bf16.mxu0 0
      %8084 = vmatpush2.bf16.msra.mxu0 0
      %8085 = vmatprep.subr.bf16.mxu0 0
      %8086 = vmatpush2.bf16.msra.mxu0 0
      %8087 = vmatprep.subr.bf16.mxu0 0
      %8088 = vmatpush2.bf16.msra.mxu0 0
      %8089 = vmatprep.subr.bf16.mxu0 0
      %8090 = vmatpush2.bf16.msra.mxu0 0
      %8091 = vmatprep.subr.bf16.mxu0 0
      %8092 = vmatpush2.bf16.msra.mxu0 0
      %8093 = vmatprep.mubr.bf16.mxu0 0
      %8094 = vmatmul.mubr.bf16.gmra.mxu0 %v7962
      %v8095 = vpop.f32.mrf.mxu0
      %v8096 = vadd.f32 0.0, %v8095
      %v8097 = vpop.f32.mrf.mxu0
      %v8098 = vpop.f32.mrf.mxu0
      %v8099 = vpop.f32.mrf.mxu0
      %8100 = vdwg.mxu0
      %v8101 = vadd.f32 %v7937, %v8014
      %v8102 = vadd.f32 %v7938, %v8016
      %v8103 = vadd.f32 %v7939, %v8055
      %v8104 = vadd.f32 %v7940, %v8057
      %v8105 = vadd.f32 %v7941, %v8096
      %8106 = vrot.lane.b32.xlu0 %v6346, 40
      %v8107 = vpop.permute.xlu0 %8106
      %8108 = vrot.lane.b32.xlu0 %v6336, 26
      %v8109 = vpop.permute.xlu0 %8108
      %8110 = vrot.lane.b32.xlu0 %v6337, 26
      %v8111 = vpop.permute.xlu0 %8110
      %8112 = vrot.lane.b32.xlu0 %v6338, 26
      %v8113 = vpop.permute.xlu0 %8112
      %8114 = vrot.lane.b32.xlu0 %v6339, 26
      %v8115 = vpop.permute.xlu0 %8114
      %8116 = vrot.lane.b32.xlu0 %v6340, 26
      %v8117 = vpop.permute.xlu0 %8116
      %8118 = vrot.lane.b32.xlu0 %v6341, 26
      %v8119 = vpop.permute.xlu0 %8118
      %v8120 = vsel %vm2744, %v8109, %v8111
      %v8121 = vsel %vm2744, %v8111, %v8113
      %v8122 = vsel %vm2744, %v8113, %v8115
      %v8123 = vsel %vm2744, %v8115, %v8117
      %v8124 = vsel %vm2744, %v8117, %v8119
      %v8126 = vsel %vm6368, %v8107, 0
      %v8129 = vsel %vm6372, %v8120, 0
      %v8132 = vsel %vm6372, %v8121, 0
      %v8135 = vsel %vm6372, %v8122, 0
      %v8138 = vsel %vm6372, %v8123, 0
      %v8141 = vsel %vm6372, %v8124, 0
      %8143 = vmatprep.subr.bf16.mxu0 0
      %8144 = vmatpush1.bf16.msra.mxu0 0
      %8145 = vmatprep.subr.bf16.mxu0 0
      %8146 = vmatpush1.bf16.msra.mxu0 0
      %8147 = vmatprep.subr.bf16.mxu0 0
      %8148 = vmatpush1.bf16.msra.mxu0 0
      %8149 = vmatprep.subr.bf16.mxu0 0
      %8150 = vmatpush1.bf16.msra.mxu0 0
      %8151 = vmatprep.subr.bf16.mxu0 0
      %8152 = vmatpush1.bf16.msra.mxu0 0
      %8153 = vmatprep.subr.bf16.mxu0 0
      %8154 = vmatpush1.bf16.msra.mxu0 0
      %8155 = vmatprep.subr.bf16.mxu0 0
      %8156 = vmatpush1.bf16.msra.mxu0 0
      %8157 = vmatprep.subr.bf16.mxu0 %v8132
      %8158 = vmatpush1.bf16.msra.mxu0 %v8129
      %8159 = vmatprep.subr.bf16.mxu0 0
      %8160 = vmatpush2.bf16.msra.mxu0 0
      %8161 = vmatprep.subr.bf16.mxu0 0
      %8162 = vmatpush2.bf16.msra.mxu0 0
      %8163 = vmatprep.subr.bf16.mxu0 0
      %8164 = vmatpush2.bf16.msra.mxu0 0
      %8165 = vmatprep.subr.bf16.mxu0 0
      %8166 = vmatpush2.bf16.msra.mxu0 0
      %8167 = vmatprep.subr.bf16.mxu0 0
      %8168 = vmatpush2.bf16.msra.mxu0 0
      %8169 = vmatprep.subr.bf16.mxu0 0
      %8170 = vmatpush2.bf16.msra.mxu0 0
      %8171 = vmatprep.subr.bf16.mxu0 0
      %8172 = vmatpush2.bf16.msra.mxu0 0
      %8173 = vmatprep.subr.bf16.mxu0 0
      %8174 = vmatpush2.bf16.msra.mxu0 0
      %8175 = vmatprep.mubr.bf16.mxu0 0
      %8176 = vmatmul.mubr.bf16.gmra.mxu0 %v8126
      %v8177 = vpop.f32.mrf.mxu0
      %v8178 = vadd.f32 0.0, %v8177
      %v8179 = vpop.f32.mrf.mxu0
      %v8180 = vadd.f32 0.0, %v8179
      %v8181 = vpop.f32.mrf.mxu0
      %v8182 = vpop.f32.mrf.mxu0
      %8183 = vdwg.mxu0
      %8184 = vmatprep.subr.bf16.mxu0 0
      %8185 = vmatpush1.bf16.msra.mxu0 0
      %8186 = vmatprep.subr.bf16.mxu0 0
      %8187 = vmatpush1.bf16.msra.mxu0 0
      %8188 = vmatprep.subr.bf16.mxu0 0
      %8189 = vmatpush1.bf16.msra.mxu0 0
      %8190 = vmatprep.subr.bf16.mxu0 0
      %8191 = vmatpush1.bf16.msra.mxu0 0
      %8192 = vmatprep.subr.bf16.mxu0 0
      %8193 = vmatpush1.bf16.msra.mxu0 0
      %8194 = vmatprep.subr.bf16.mxu0 0
      %8195 = vmatpush1.bf16.msra.mxu0 0
      %8196 = vmatprep.subr.bf16.mxu0 0
      %8197 = vmatpush1.bf16.msra.mxu0 0
      %8198 = vmatprep.subr.bf16.mxu0 %v8138
      %8199 = vmatpush1.bf16.msra.mxu0 %v8135
      %8200 = vmatprep.subr.bf16.mxu0 0
      %8201 = vmatpush2.bf16.msra.mxu0 0
      %8202 = vmatprep.subr.bf16.mxu0 0
      %8203 = vmatpush2.bf16.msra.mxu0 0
      %8204 = vmatprep.subr.bf16.mxu0 0
      %8205 = vmatpush2.bf16.msra.mxu0 0
      %8206 = vmatprep.subr.bf16.mxu0 0
      %8207 = vmatpush2.bf16.msra.mxu0 0
      %8208 = vmatprep.subr.bf16.mxu0 0
      %8209 = vmatpush2.bf16.msra.mxu0 0
      %8210 = vmatprep.subr.bf16.mxu0 0
      %8211 = vmatpush2.bf16.msra.mxu0 0
      %8212 = vmatprep.subr.bf16.mxu0 0
      %8213 = vmatpush2.bf16.msra.mxu0 0
      %8214 = vmatprep.subr.bf16.mxu0 0
      %8215 = vmatpush2.bf16.msra.mxu0 0
      %8216 = vmatprep.mubr.bf16.mxu0 0
      %8217 = vmatmul.mubr.bf16.gmra.mxu0 %v8126
      %v8218 = vpop.f32.mrf.mxu0
      %v8219 = vadd.f32 0.0, %v8218
      %v8220 = vpop.f32.mrf.mxu0
      %v8221 = vadd.f32 0.0, %v8220
      %v8222 = vpop.f32.mrf.mxu0
      %v8223 = vpop.f32.mrf.mxu0
      %8224 = vdwg.mxu0
      %8225 = vmatprep.subr.bf16.mxu0 0
      %8226 = vmatpush1.bf16.msra.mxu0 0
      %8227 = vmatprep.subr.bf16.mxu0 0
      %8228 = vmatpush1.bf16.msra.mxu0 0
      %8229 = vmatprep.subr.bf16.mxu0 0
      %8230 = vmatpush1.bf16.msra.mxu0 0
      %8231 = vmatprep.subr.bf16.mxu0 0
      %8232 = vmatpush1.bf16.msra.mxu0 0
      %8233 = vmatprep.subr.bf16.mxu0 0
      %8234 = vmatpush1.bf16.msra.mxu0 0
      %8235 = vmatprep.subr.bf16.mxu0 0
      %8236 = vmatpush1.bf16.msra.mxu0 0
      %8237 = vmatprep.subr.bf16.mxu0 0
      %8238 = vmatpush1.bf16.msra.mxu0 0
      %8239 = vmatprep.subr.bf16.mxu0 0
      %8240 = vmatpush1.bf16.msra.mxu0 %v8141
      %8241 = vmatprep.subr.bf16.mxu0 0
      %8242 = vmatpush2.bf16.msra.mxu0 0
      %8243 = vmatprep.subr.bf16.mxu0 0
      %8244 = vmatpush2.bf16.msra.mxu0 0
      %8245 = vmatprep.subr.bf16.mxu0 0
      %8246 = vmatpush2.bf16.msra.mxu0 0
      %8247 = vmatprep.subr.bf16.mxu0 0
      %8248 = vmatpush2.bf16.msra.mxu0 0
      %8249 = vmatprep.subr.bf16.mxu0 0
      %8250 = vmatpush2.bf16.msra.mxu0 0
      %8251 = vmatprep.subr.bf16.mxu0 0
      %8252 = vmatpush2.bf16.msra.mxu0 0
      %8253 = vmatprep.subr.bf16.mxu0 0
      %8254 = vmatpush2.bf16.msra.mxu0 0
      %8255 = vmatprep.subr.bf16.mxu0 0
      %8256 = vmatpush2.bf16.msra.mxu0 0
      %8257 = vmatprep.mubr.bf16.mxu0 0
      %8258 = vmatmul.mubr.bf16.gmra.mxu0 %v8126
      %v8259 = vpop.f32.mrf.mxu0
      %v8260 = vadd.f32 0.0, %v8259
      %v8261 = vpop.f32.mrf.mxu0
      %v8262 = vpop.f32.mrf.mxu0
      %v8263 = vpop.f32.mrf.mxu0
      %8264 = vdwg.mxu0
      %v8265 = vadd.f32 %v8101, %v8178
      %v8266 = vadd.f32 %v8102, %v8180
      %v8267 = vadd.f32 %v8103, %v8219
      %v8268 = vadd.f32 %v8104, %v8221
      %v8269 = vadd.f32 %v8105, %v8260
      %8270 = vrot.lane.b32.xlu0 %v6346, 32
      %v8271 = vpop.permute.xlu0 %8270
      %8272 = vrot.lane.b32.xlu0 %v6336, 18
      %v8273 = vpop.permute.xlu0 %8272
      %8274 = vrot.lane.b32.xlu0 %v6337, 18
      %v8275 = vpop.permute.xlu0 %8274
      %8276 = vrot.lane.b32.xlu0 %v6338, 18
      %v8277 = vpop.permute.xlu0 %8276
      %8278 = vrot.lane.b32.xlu0 %v6339, 18
      %v8279 = vpop.permute.xlu0 %8278
      %8280 = vrot.lane.b32.xlu0 %v6340, 18
      %v8281 = vpop.permute.xlu0 %8280
      %8282 = vrot.lane.b32.xlu0 %v6341, 18
      %v8283 = vpop.permute.xlu0 %8282
      %v8284 = vsel %vm2961, %v8273, %v8275
      %v8285 = vsel %vm2961, %v8275, %v8277
      %v8286 = vsel %vm2961, %v8277, %v8279
      %v8287 = vsel %vm2961, %v8279, %v8281
      %v8288 = vsel %vm2961, %v8281, %v8283
      %v8290 = vsel %vm6368, %v8271, 0
      %v8293 = vsel %vm6372, %v8284, 0
      %v8296 = vsel %vm6372, %v8285, 0
      %v8299 = vsel %vm6372, %v8286, 0
      %v8302 = vsel %vm6372, %v8287, 0
      %v8305 = vsel %vm6372, %v8288, 0
      %8307 = vmatprep.subr.bf16.mxu0 0
      %8308 = vmatpush1.bf16.msra.mxu0 0
      %8309 = vmatprep.subr.bf16.mxu0 0
      %8310 = vmatpush1.bf16.msra.mxu0 0
      %8311 = vmatprep.subr.bf16.mxu0 0
      %8312 = vmatpush1.bf16.msra.mxu0 0
      %8313 = vmatprep.subr.bf16.mxu0 0
      %8314 = vmatpush1.bf16.msra.mxu0 0
      %8315 = vmatprep.subr.bf16.mxu0 0
      %8316 = vmatpush1.bf16.msra.mxu0 0
      %8317 = vmatprep.subr.bf16.mxu0 0
      %8318 = vmatpush1.bf16.msra.mxu0 0
      %8319 = vmatprep.subr.bf16.mxu0 0
      %8320 = vmatpush1.bf16.msra.mxu0 0
      %8321 = vmatprep.subr.bf16.mxu0 %v8296
      %8322 = vmatpush1.bf16.msra.mxu0 %v8293
      %8323 = vmatprep.subr.bf16.mxu0 0
      %8324 = vmatpush2.bf16.msra.mxu0 0
      %8325 = vmatprep.subr.bf16.mxu0 0
      %8326 = vmatpush2.bf16.msra.mxu0 0
      %8327 = vmatprep.subr.bf16.mxu0 0
      %8328 = vmatpush2.bf16.msra.mxu0 0
      %8329 = vmatprep.subr.bf16.mxu0 0
      %8330 = vmatpush2.bf16.msra.mxu0 0
      %8331 = vmatprep.subr.bf16.mxu0 0
      %8332 = vmatpush2.bf16.msra.mxu0 0
      %8333 = vmatprep.subr.bf16.mxu0 0
      %8334 = vmatpush2.bf16.msra.mxu0 0
      %8335 = vmatprep.subr.bf16.mxu0 0
      %8336 = vmatpush2.bf16.msra.mxu0 0
      %8337 = vmatprep.subr.bf16.mxu0 0
      %8338 = vmatpush2.bf16.msra.mxu0 0
      %8339 = vmatprep.mubr.bf16.mxu0 0
      %8340 = vmatmul.mubr.bf16.gmra.mxu0 %v8290
      %v8341 = vpop.f32.mrf.mxu0
      %v8342 = vadd.f32 0.0, %v8341
      %v8343 = vpop.f32.mrf.mxu0
      %v8344 = vadd.f32 0.0, %v8343
      %v8345 = vpop.f32.mrf.mxu0
      %v8346 = vpop.f32.mrf.mxu0
      %8347 = vdwg.mxu0
      %8348 = vmatprep.subr.bf16.mxu0 0
      %8349 = vmatpush1.bf16.msra.mxu0 0
      %8350 = vmatprep.subr.bf16.mxu0 0
      %8351 = vmatpush1.bf16.msra.mxu0 0
      %8352 = vmatprep.subr.bf16.mxu0 0
      %8353 = vmatpush1.bf16.msra.mxu0 0
      %8354 = vmatprep.subr.bf16.mxu0 0
      %8355 = vmatpush1.bf16.msra.mxu0 0
      %8356 = vmatprep.subr.bf16.mxu0 0
      %8357 = vmatpush1.bf16.msra.mxu0 0
      %8358 = vmatprep.subr.bf16.mxu0 0
      %8359 = vmatpush1.bf16.msra.mxu0 0
      %8360 = vmatprep.subr.bf16.mxu0 0
      %8361 = vmatpush1.bf16.msra.mxu0 0
      %8362 = vmatprep.subr.bf16.mxu0 %v8302
      %8363 = vmatpush1.bf16.msra.mxu0 %v8299
      %8364 = vmatprep.subr.bf16.mxu0 0
      %8365 = vmatpush2.bf16.msra.mxu0 0
      %8366 = vmatprep.subr.bf16.mxu0 0
      %8367 = vmatpush2.bf16.msra.mxu0 0
      %8368 = vmatprep.subr.bf16.mxu0 0
      %8369 = vmatpush2.bf16.msra.mxu0 0
      %8370 = vmatprep.subr.bf16.mxu0 0
      %8371 = vmatpush2.bf16.msra.mxu0 0
      %8372 = vmatprep.subr.bf16.mxu0 0
      %8373 = vmatpush2.bf16.msra.mxu0 0
      %8374 = vmatprep.subr.bf16.mxu0 0
      %8375 = vmatpush2.bf16.msra.mxu0 0
      %8376 = vmatprep.subr.bf16.mxu0 0
      %8377 = vmatpush2.bf16.msra.mxu0 0
      %8378 = vmatprep.subr.bf16.mxu0 0
      %8379 = vmatpush2.bf16.msra.mxu0 0
      %8380 = vmatprep.mubr.bf16.mxu0 0
      %8381 = vmatmul.mubr.bf16.gmra.mxu0 %v8290
      %v8382 = vpop.f32.mrf.mxu0
      %v8383 = vadd.f32 0.0, %v8382
      %v8384 = vpop.f32.mrf.mxu0
      %v8385 = vadd.f32 0.0, %v8384
      %v8386 = vpop.f32.mrf.mxu0
      %v8387 = vpop.f32.mrf.mxu0
      %8388 = vdwg.mxu0
      %8389 = vmatprep.subr.bf16.mxu0 0
      %8390 = vmatpush1.bf16.msra.mxu0 0
      %8391 = vmatprep.subr.bf16.mxu0 0
      %8392 = vmatpush1.bf16.msra.mxu0 0
      %8393 = vmatprep.subr.bf16.mxu0 0
      %8394 = vmatpush1.bf16.msra.mxu0 0
      %8395 = vmatprep.subr.bf16.mxu0 0
      %8396 = vmatpush1.bf16.msra.mxu0 0
      %8397 = vmatprep.subr.bf16.mxu0 0
      %8398 = vmatpush1.bf16.msra.mxu0 0
      %8399 = vmatprep.subr.bf16.mxu0 0
      %8400 = vmatpush1.bf16.msra.mxu0 0
      %8401 = vmatprep.subr.bf16.mxu0 0
      %8402 = vmatpush1.bf16.msra.mxu0 0
      %8403 = vmatprep.subr.bf16.mxu0 0
      %8404 = vmatpush1.bf16.msra.mxu0 %v8305
      %8405 = vmatprep.subr.bf16.mxu0 0
      %8406 = vmatpush2.bf16.msra.mxu0 0
      %8407 = vmatprep.subr.bf16.mxu0 0
      %8408 = vmatpush2.bf16.msra.mxu0 0
      %8409 = vmatprep.subr.bf16.mxu0 0
      %8410 = vmatpush2.bf16.msra.mxu0 0
      %8411 = vmatprep.subr.bf16.mxu0 0
      %8412 = vmatpush2.bf16.msra.mxu0 0
      %8413 = vmatprep.subr.bf16.mxu0 0
      %8414 = vmatpush2.bf16.msra.mxu0 0
      %8415 = vmatprep.subr.bf16.mxu0 0
      %8416 = vmatpush2.bf16.msra.mxu0 0
      %8417 = vmatprep.subr.bf16.mxu0 0
      %8418 = vmatpush2.bf16.msra.mxu0 0
      %8419 = vmatprep.subr.bf16.mxu0 0
      %8420 = vmatpush2.bf16.msra.mxu0 0
      %8421 = vmatprep.mubr.bf16.mxu0 0
      %8422 = vmatmul.mubr.bf16.gmra.mxu0 %v8290
      %v8423 = vpop.f32.mrf.mxu0
      %v8424 = vadd.f32 0.0, %v8423
      %v8425 = vpop.f32.mrf.mxu0
      %v8426 = vpop.f32.mrf.mxu0
      %v8427 = vpop.f32.mrf.mxu0
      %8428 = vdwg.mxu0
      %v8429 = vadd.f32 %v8265, %v8342
      %v8430 = vadd.f32 %v8266, %v8344
      %v8431 = vadd.f32 %v8267, %v8383
      %v8432 = vadd.f32 %v8268, %v8385
      %v8433 = vadd.f32 %v8269, %v8424
      %8434 = vrot.lane.b32.xlu0 %v6346, 24
      %v8435 = vpop.permute.xlu0 %8434
      %8436 = vrot.lane.b32.xlu0 %v6336, 17
      %v8437 = vpop.permute.xlu0 %8436
      %8438 = vrot.lane.b32.xlu0 %v6337, 17
      %v8439 = vpop.permute.xlu0 %8438
      %8440 = vrot.lane.b32.xlu0 %v6338, 17
      %v8441 = vpop.permute.xlu0 %8440
      %8442 = vrot.lane.b32.xlu0 %v6339, 17
      %v8443 = vpop.permute.xlu0 %8442
      %8444 = vrot.lane.b32.xlu0 %v6340, 17
      %v8445 = vpop.permute.xlu0 %8444
      %8446 = vrot.lane.b32.xlu0 %v6341, 17
      %v8447 = vpop.permute.xlu0 %8446
      %v8448 = vsel %vm3178, %v8437, %v8439
      %v8449 = vsel %vm3178, %v8439, %v8441
      %v8450 = vsel %vm3178, %v8441, %v8443
      %v8451 = vsel %vm3178, %v8443, %v8445
      %v8452 = vsel %vm3178, %v8445, %v8447
      %v8454 = vsel %vm6368, %v8435, 0
      %v8457 = vsel %vm6372, %v8448, 0
      %v8460 = vsel %vm6372, %v8449, 0
      %v8463 = vsel %vm6372, %v8450, 0
      %v8466 = vsel %vm6372, %v8451, 0
      %v8469 = vsel %vm6372, %v8452, 0
      %8471 = vmatprep.subr.bf16.mxu0 0
      %8472 = vmatpush1.bf16.msra.mxu0 0
      %8473 = vmatprep.subr.bf16.mxu0 0
      %8474 = vmatpush1.bf16.msra.mxu0 0
      %8475 = vmatprep.subr.bf16.mxu0 0
      %8476 = vmatpush1.bf16.msra.mxu0 0
      %8477 = vmatprep.subr.bf16.mxu0 0
      %8478 = vmatpush1.bf16.msra.mxu0 0
      %8479 = vmatprep.subr.bf16.mxu0 0
      %8480 = vmatpush1.bf16.msra.mxu0 0
      %8481 = vmatprep.subr.bf16.mxu0 0
      %8482 = vmatpush1.bf16.msra.mxu0 0
      %8483 = vmatprep.subr.bf16.mxu0 0
      %8484 = vmatpush1.bf16.msra.mxu0 0
      %8485 = vmatprep.subr.bf16.mxu0 %v8460
      %8486 = vmatpush1.bf16.msra.mxu0 %v8457
      %8487 = vmatprep.subr.bf16.mxu0 0
      %8488 = vmatpush2.bf16.msra.mxu0 0
      %8489 = vmatprep.subr.bf16.mxu0 0
      %8490 = vmatpush2.bf16.msra.mxu0 0
      %8491 = vmatprep.subr.bf16.mxu0 0
      %8492 = vmatpush2.bf16.msra.mxu0 0
      %8493 = vmatprep.subr.bf16.mxu0 0
      %8494 = vmatpush2.bf16.msra.mxu0 0
      %8495 = vmatprep.subr.bf16.mxu0 0
      %8496 = vmatpush2.bf16.msra.mxu0 0
      %8497 = vmatprep.subr.bf16.mxu0 0
      %8498 = vmatpush2.bf16.msra.mxu0 0
      %8499 = vmatprep.subr.bf16.mxu0 0
      %8500 = vmatpush2.bf16.msra.mxu0 0
      %8501 = vmatprep.subr.bf16.mxu0 0
      %8502 = vmatpush2.bf16.msra.mxu0 0
      %8503 = vmatprep.mubr.bf16.mxu0 0
      %8504 = vmatmul.mubr.bf16.gmra.mxu0 %v8454
      %v8505 = vpop.f32.mrf.mxu0
      %v8506 = vadd.f32 0.0, %v8505
      %v8507 = vpop.f32.mrf.mxu0
      %v8508 = vadd.f32 0.0, %v8507
      %v8509 = vpop.f32.mrf.mxu0
      %v8510 = vpop.f32.mrf.mxu0
      %8511 = vdwg.mxu0
      %8512 = vmatprep.subr.bf16.mxu0 0
      %8513 = vmatpush1.bf16.msra.mxu0 0
      %8514 = vmatprep.subr.bf16.mxu0 0
      %8515 = vmatpush1.bf16.msra.mxu0 0
      %8516 = vmatprep.subr.bf16.mxu0 0
      %8517 = vmatpush1.bf16.msra.mxu0 0
      %8518 = vmatprep.subr.bf16.mxu0 0
      %8519 = vmatpush1.bf16.msra.mxu0 0
      %8520 = vmatprep.subr.bf16.mxu0 0
      %8521 = vmatpush1.bf16.msra.mxu0 0
      %8522 = vmatprep.subr.bf16.mxu0 0
      %8523 = vmatpush1.bf16.msra.mxu0 0
      %8524 = vmatprep.subr.bf16.mxu0 0
      %8525 = vmatpush1.bf16.msra.mxu0 0
      %8526 = vmatprep.subr.bf16.mxu0 %v8466
      %8527 = vmatpush1.bf16.msra.mxu0 %v8463
      %8528 = vmatprep.subr.bf16.mxu0 0
      %8529 = vmatpush2.bf16.msra.mxu0 0
      %8530 = vmatprep.subr.bf16.mxu0 0
      %8531 = vmatpush2.bf16.msra.mxu0 0
      %8532 = vmatprep.subr.bf16.mxu0 0
      %8533 = vmatpush2.bf16.msra.mxu0 0
      %8534 = vmatprep.subr.bf16.mxu0 0
      %8535 = vmatpush2.bf16.msra.mxu0 0
      %8536 = vmatprep.subr.bf16.mxu0 0
      %8537 = vmatpush2.bf16.msra.mxu0 0
      %8538 = vmatprep.subr.bf16.mxu0 0
      %8539 = vmatpush2.bf16.msra.mxu0 0
      %8540 = vmatprep.subr.bf16.mxu0 0
      %8541 = vmatpush2.bf16.msra.mxu0 0
      %8542 = vmatprep.subr.bf16.mxu0 0
      %8543 = vmatpush2.bf16.msra.mxu0 0
      %8544 = vmatprep.mubr.bf16.mxu0 0
      %8545 = vmatmul.mubr.bf16.gmra.mxu0 %v8454
      %v8546 = vpop.f32.mrf.mxu0
      %v8547 = vadd.f32 0.0, %v8546
      %v8548 = vpop.f32.mrf.mxu0
      %v8549 = vadd.f32 0.0, %v8548
      %v8550 = vpop.f32.mrf.mxu0
      %v8551 = vpop.f32.mrf.mxu0
      %8552 = vdwg.mxu0
      %8553 = vmatprep.subr.bf16.mxu0 0
      %8554 = vmatpush1.bf16.msra.mxu0 0
      %8555 = vmatprep.subr.bf16.mxu0 0
      %8556 = vmatpush1.bf16.msra.mxu0 0
      %8557 = vmatprep.subr.bf16.mxu0 0
      %8558 = vmatpush1.bf16.msra.mxu0 0
      %8559 = vmatprep.subr.bf16.mxu0 0
      %8560 = vmatpush1.bf16.msra.mxu0 0
      %8561 = vmatprep.subr.bf16.mxu0 0
      %8562 = vmatpush1.bf16.msra.mxu0 0
      %8563 = vmatprep.subr.bf16.mxu0 0
      %8564 = vmatpush1.bf16.msra.mxu0 0
      %8565 = vmatprep.subr.bf16.mxu0 0
      %8566 = vmatpush1.bf16.msra.mxu0 0
      %8567 = vmatprep.subr.bf16.mxu0 0
      %8568 = vmatpush1.bf16.msra.mxu0 %v8469
      %8569 = vmatprep.subr.bf16.mxu0 0
      %8570 = vmatpush2.bf16.msra.mxu0 0
      %8571 = vmatprep.subr.bf16.mxu0 0
      %8572 = vmatpush2.bf16.msra.mxu0 0
      %8573 = vmatprep.subr.bf16.mxu0 0
      %8574 = vmatpush2.bf16.msra.mxu0 0
      %8575 = vmatprep.subr.bf16.mxu0 0
      %8576 = vmatpush2.bf16.msra.mxu0 0
      %8577 = vmatprep.subr.bf16.mxu0 0
      %8578 = vmatpush2.bf16.msra.mxu0 0
      %8579 = vmatprep.subr.bf16.mxu0 0
      %8580 = vmatpush2.bf16.msra.mxu0 0
      %8581 = vmatprep.subr.bf16.mxu0 0
      %8582 = vmatpush2.bf16.msra.mxu0 0
      %8583 = vmatprep.subr.bf16.mxu0 0
      %8584 = vmatpush2.bf16.msra.mxu0 0
      %8585 = vmatprep.mubr.bf16.mxu0 0
      %8586 = vmatmul.mubr.bf16.gmra.mxu0 %v8454
      %v8587 = vpop.f32.mrf.mxu0
      %v8588 = vadd.f32 0.0, %v8587
      %v8589 = vpop.f32.mrf.mxu0
      %v8590 = vpop.f32.mrf.mxu0
      %v8591 = vpop.f32.mrf.mxu0
      %8592 = vdwg.mxu0
      %v8593 = vadd.f32 %v8429, %v8506
      %v8594 = vadd.f32 %v8430, %v8508
      %v8595 = vadd.f32 %v8431, %v8547
      %v8596 = vadd.f32 %v8432, %v8549
      %v8597 = vadd.f32 %v8433, %v8588
      %8598 = vrot.lane.b32.xlu0 %v6346, 16
      %v8599 = vpop.permute.xlu0 %8598
      %8600 = vrot.lane.b32.xlu0 %v6336, 16
      %v8601 = vpop.permute.xlu0 %8600
      %8602 = vrot.lane.b32.xlu0 %v6337, 16
      %v8603 = vpop.permute.xlu0 %8602
      %8604 = vrot.lane.b32.xlu0 %v6338, 16
      %v8605 = vpop.permute.xlu0 %8604
      %8606 = vrot.lane.b32.xlu0 %v6339, 16
      %v8607 = vpop.permute.xlu0 %8606
      %8608 = vrot.lane.b32.xlu0 %v6340, 16
      %v8609 = vpop.permute.xlu0 %8608
      %8610 = vrot.lane.b32.xlu0 %v6341, 16
      %v8611 = vpop.permute.xlu0 %8610
      %v8612 = vsel %vm3395, %v8601, %v8603
      %v8613 = vsel %vm3395, %v8603, %v8605
      %v8614 = vsel %vm3395, %v8605, %v8607
      %v8615 = vsel %vm3395, %v8607, %v8609
      %v8616 = vsel %vm3395, %v8609, %v8611
      %v8618 = vsel %vm6368, %v8599, 0
      %v8621 = vsel %vm6372, %v8612, 0
      %v8624 = vsel %vm6372, %v8613, 0
      %v8627 = vsel %vm6372, %v8614, 0
      %v8630 = vsel %vm6372, %v8615, 0
      %v8633 = vsel %vm6372, %v8616, 0
      %8635 = vmatprep.subr.bf16.mxu0 0
      %8636 = vmatpush1.bf16.msra.mxu0 0
      %8637 = vmatprep.subr.bf16.mxu0 0
      %8638 = vmatpush1.bf16.msra.mxu0 0
      %8639 = vmatprep.subr.bf16.mxu0 0
      %8640 = vmatpush1.bf16.msra.mxu0 0
      %8641 = vmatprep.subr.bf16.mxu0 0
      %8642 = vmatpush1.bf16.msra.mxu0 0
      %8643 = vmatprep.subr.bf16.mxu0 0
      %8644 = vmatpush1.bf16.msra.mxu0 0
      %8645 = vmatprep.subr.bf16.mxu0 0
      %8646 = vmatpush1.bf16.msra.mxu0 0
      %8647 = vmatprep.subr.bf16.mxu0 0
      %8648 = vmatpush1.bf16.msra.mxu0 0
      %8649 = vmatprep.subr.bf16.mxu0 %v8624
      %8650 = vmatpush1.bf16.msra.mxu0 %v8621
      %8651 = vmatprep.subr.bf16.mxu0 0
      %8652 = vmatpush2.bf16.msra.mxu0 0
      %8653 = vmatprep.subr.bf16.mxu0 0
      %8654 = vmatpush2.bf16.msra.mxu0 0
      %8655 = vmatprep.subr.bf16.mxu0 0
      %8656 = vmatpush2.bf16.msra.mxu0 0
      %8657 = vmatprep.subr.bf16.mxu0 0
      %8658 = vmatpush2.bf16.msra.mxu0 0
      %8659 = vmatprep.subr.bf16.mxu0 0
      %8660 = vmatpush2.bf16.msra.mxu0 0
      %8661 = vmatprep.subr.bf16.mxu0 0
      %8662 = vmatpush2.bf16.msra.mxu0 0
      %8663 = vmatprep.subr.bf16.mxu0 0
      %8664 = vmatpush2.bf16.msra.mxu0 0
      %8665 = vmatprep.subr.bf16.mxu0 0
      %8666 = vmatpush2.bf16.msra.mxu0 0
      %8667 = vmatprep.mubr.bf16.mxu0 0
      %8668 = vmatmul.mubr.bf16.gmra.mxu0 %v8618
      %v8669 = vpop.f32.mrf.mxu0
      %v8670 = vadd.f32 0.0, %v8669
      %v8671 = vpop.f32.mrf.mxu0
      %v8672 = vadd.f32 0.0, %v8671
      %v8673 = vpop.f32.mrf.mxu0
      %v8674 = vpop.f32.mrf.mxu0
      %8675 = vdwg.mxu0
      %8676 = vmatprep.subr.bf16.mxu0 0
      %8677 = vmatpush1.bf16.msra.mxu0 0
      %8678 = vmatprep.subr.bf16.mxu0 0
      %8679 = vmatpush1.bf16.msra.mxu0 0
      %8680 = vmatprep.subr.bf16.mxu0 0
      %8681 = vmatpush1.bf16.msra.mxu0 0
      %8682 = vmatprep.subr.bf16.mxu0 0
      %8683 = vmatpush1.bf16.msra.mxu0 0
      %8684 = vmatprep.subr.bf16.mxu0 0
      %8685 = vmatpush1.bf16.msra.mxu0 0
      %8686 = vmatprep.subr.bf16.mxu0 0
      %8687 = vmatpush1.bf16.msra.mxu0 0
      %8688 = vmatprep.subr.bf16.mxu0 0
      %8689 = vmatpush1.bf16.msra.mxu0 0
      %8690 = vmatprep.subr.bf16.mxu0 %v8630
      %8691 = vmatpush1.bf16.msra.mxu0 %v8627
      %8692 = vmatprep.subr.bf16.mxu0 0
      %8693 = vmatpush2.bf16.msra.mxu0 0
      %8694 = vmatprep.subr.bf16.mxu0 0
      %8695 = vmatpush2.bf16.msra.mxu0 0
      %8696 = vmatprep.subr.bf16.mxu0 0
      %8697 = vmatpush2.bf16.msra.mxu0 0
      %8698 = vmatprep.subr.bf16.mxu0 0
      %8699 = vmatpush2.bf16.msra.mxu0 0
      %8700 = vmatprep.subr.bf16.mxu0 0
      %8701 = vmatpush2.bf16.msra.mxu0 0
      %8702 = vmatprep.subr.bf16.mxu0 0
      %8703 = vmatpush2.bf16.msra.mxu0 0
      %8704 = vmatprep.subr.bf16.mxu0 0
      %8705 = vmatpush2.bf16.msra.mxu0 0
      %8706 = vmatprep.subr.bf16.mxu0 0
      %8707 = vmatpush2.bf16.msra.mxu0 0
      %8708 = vmatprep.mubr.bf16.mxu0 0
      %8709 = vmatmul.mubr.bf16.gmra.mxu0 %v8618
      %v8710 = vpop.f32.mrf.mxu0
      %v8711 = vadd.f32 0.0, %v8710
      %v8712 = vpop.f32.mrf.mxu0
      %v8713 = vadd.f32 0.0, %v8712
      %v8714 = vpop.f32.mrf.mxu0
      %v8715 = vpop.f32.mrf.mxu0
      %8716 = vdwg.mxu0
      %8717 = vmatprep.subr.bf16.mxu0 0
      %8718 = vmatpush1.bf16.msra.mxu0 0
      %8719 = vmatprep.subr.bf16.mxu0 0
      %8720 = vmatpush1.bf16.msra.mxu0 0
      %8721 = vmatprep.subr.bf16.mxu0 0
      %8722 = vmatpush1.bf16.msra.mxu0 0
      %8723 = vmatprep.subr.bf16.mxu0 0
      %8724 = vmatpush1.bf16.msra.mxu0 0
      %8725 = vmatprep.subr.bf16.mxu0 0
      %8726 = vmatpush1.bf16.msra.mxu0 0
      %8727 = vmatprep.subr.bf16.mxu0 0
      %8728 = vmatpush1.bf16.msra.mxu0 0
      %8729 = vmatprep.subr.bf16.mxu0 0
      %8730 = vmatpush1.bf16.msra.mxu0 0
      %8731 = vmatprep.subr.bf16.mxu0 0
      %8732 = vmatpush1.bf16.msra.mxu0 %v8633
      %8733 = vmatprep.subr.bf16.mxu0 0
      %8734 = vmatpush2.bf16.msra.mxu0 0
      %8735 = vmatprep.subr.bf16.mxu0 0
      %8736 = vmatpush2.bf16.msra.mxu0 0
      %8737 = vmatprep.subr.bf16.mxu0 0
      %8738 = vmatpush2.bf16.msra.mxu0 0
      %8739 = vmatprep.subr.bf16.mxu0 0
      %8740 = vmatpush2.bf16.msra.mxu0 0
      %8741 = vmatprep.subr.bf16.mxu0 0
      %8742 = vmatpush2.bf16.msra.mxu0 0
      %8743 = vmatprep.subr.bf16.mxu0 0
      %8744 = vmatpush2.bf16.msra.mxu0 0
      %8745 = vmatprep.subr.bf16.mxu0 0
      %8746 = vmatpush2.bf16.msra.mxu0 0
      %8747 = vmatprep.subr.bf16.mxu0 0
      %8748 = vmatpush2.bf16.msra.mxu0 0
      %8749 = vmatprep.mubr.bf16.mxu0 0
      %8750 = vmatmul.mubr.bf16.gmra.mxu0 %v8618
      %v8751 = vpop.f32.mrf.mxu0
      %v8752 = vadd.f32 0.0, %v8751
      %v8753 = vpop.f32.mrf.mxu0
      %v8754 = vpop.f32.mrf.mxu0
      %v8755 = vpop.f32.mrf.mxu0
      %8756 = vdwg.mxu0
      %v8757 = vadd.f32 %v8593, %v8670
      %v8758 = vadd.f32 %v8594, %v8672
      %v8759 = vadd.f32 %v8595, %v8711
      %v8760 = vadd.f32 %v8596, %v8713
      %v8761 = vadd.f32 %v8597, %v8752
      %8762 = vrot.lane.b32.xlu0 %v6346, 8
      %v8763 = vpop.permute.xlu0 %8762
      %8764 = vrot.lane.b32.xlu0 %v6336, 8
      %v8765 = vpop.permute.xlu0 %8764
      %8766 = vrot.lane.b32.xlu0 %v6337, 8
      %v8767 = vpop.permute.xlu0 %8766
      %8768 = vrot.lane.b32.xlu0 %v6338, 8
      %v8769 = vpop.permute.xlu0 %8768
      %8770 = vrot.lane.b32.xlu0 %v6339, 8
      %v8771 = vpop.permute.xlu0 %8770
      %8772 = vrot.lane.b32.xlu0 %v6340, 8
      %v8773 = vpop.permute.xlu0 %8772
      %8774 = vrot.lane.b32.xlu0 %v6341, 8
      %v8775 = vpop.permute.xlu0 %8774
      %v8776 = vsel %vm3615, %v8765, %v8767
      %v8777 = vsel %vm3615, %v8767, %v8769
      %v8778 = vsel %vm3615, %v8769, %v8771
      %v8779 = vsel %vm3615, %v8771, %v8773
      %v8780 = vsel %vm3615, %v8773, %v8775
      %v8782 = vsel %vm6368, %v8763, 0
      %v8785 = vsel %vm6372, %v8776, 0
      %v8788 = vsel %vm6372, %v8777, 0
      %v8791 = vsel %vm6372, %v8778, 0
      %v8794 = vsel %vm6372, %v8779, 0
      %v8797 = vsel %vm6372, %v8780, 0
      %8799 = vmatprep.subr.bf16.mxu0 0
      %8800 = vmatpush1.bf16.msra.mxu0 0
      %8801 = vmatprep.subr.bf16.mxu0 0
      %8802 = vmatpush1.bf16.msra.mxu0 0
      %8803 = vmatprep.subr.bf16.mxu0 0
      %8804 = vmatpush1.bf16.msra.mxu0 0
      %8805 = vmatprep.subr.bf16.mxu0 0
      %8806 = vmatpush1.bf16.msra.mxu0 0
      %8807 = vmatprep.subr.bf16.mxu0 0
      %8808 = vmatpush1.bf16.msra.mxu0 0
      %8809 = vmatprep.subr.bf16.mxu0 0
      %8810 = vmatpush1.bf16.msra.mxu0 0
      %8811 = vmatprep.subr.bf16.mxu0 0
      %8812 = vmatpush1.bf16.msra.mxu0 0
      %8813 = vmatprep.subr.bf16.mxu0 %v8788
      %8814 = vmatpush1.bf16.msra.mxu0 %v8785
      %8815 = vmatprep.subr.bf16.mxu0 0
      %8816 = vmatpush2.bf16.msra.mxu0 0
      %8817 = vmatprep.subr.bf16.mxu0 0
      %8818 = vmatpush2.bf16.msra.mxu0 0
      %8819 = vmatprep.subr.bf16.mxu0 0
      %8820 = vmatpush2.bf16.msra.mxu0 0
      %8821 = vmatprep.subr.bf16.mxu0 0
      %8822 = vmatpush2.bf16.msra.mxu0 0
      %8823 = vmatprep.subr.bf16.mxu0 0
      %8824 = vmatpush2.bf16.msra.mxu0 0
      %8825 = vmatprep.subr.bf16.mxu0 0
      %8826 = vmatpush2.bf16.msra.mxu0 0
      %8827 = vmatprep.subr.bf16.mxu0 0
      %8828 = vmatpush2.bf16.msra.mxu0 0
      %8829 = vmatprep.subr.bf16.mxu0 0
      %8830 = vmatpush2.bf16.msra.mxu0 0
      %8831 = vmatprep.mubr.bf16.mxu0 0
      %8832 = vmatmul.mubr.bf16.gmra.mxu0 %v8782
      %v8833 = vpop.f32.mrf.mxu0
      %v8834 = vadd.f32 0.0, %v8833
      %v8835 = vpop.f32.mrf.mxu0
      %v8836 = vadd.f32 0.0, %v8835
      %v8837 = vpop.f32.mrf.mxu0
      %v8838 = vpop.f32.mrf.mxu0
      %8839 = vdwg.mxu0
      %8840 = vmatprep.subr.bf16.mxu0 0
      %8841 = vmatpush1.bf16.msra.mxu0 0
      %8842 = vmatprep.subr.bf16.mxu0 0
      %8843 = vmatpush1.bf16.msra.mxu0 0
      %8844 = vmatprep.subr.bf16.mxu0 0
      %8845 = vmatpush1.bf16.msra.mxu0 0
      %8846 = vmatprep.subr.bf16.mxu0 0
      %8847 = vmatpush1.bf16.msra.mxu0 0
      %8848 = vmatprep.subr.bf16.mxu0 0
      %8849 = vmatpush1.bf16.msra.mxu0 0
      %8850 = vmatprep.subr.bf16.mxu0 0
      %8851 = vmatpush1.bf16.msra.mxu0 0
      %8852 = vmatprep.subr.bf16.mxu0 0
      %8853 = vmatpush1.bf16.msra.mxu0 0
      %8854 = vmatprep.subr.bf16.mxu0 %v8794
      %8855 = vmatpush1.bf16.msra.mxu0 %v8791
      %8856 = vmatprep.subr.bf16.mxu0 0
      %8857 = vmatpush2.bf16.msra.mxu0 0
      %8858 = vmatprep.subr.bf16.mxu0 0
      %8859 = vmatpush2.bf16.msra.mxu0 0
      %8860 = vmatprep.subr.bf16.mxu0 0
      %8861 = vmatpush2.bf16.msra.mxu0 0
      %8862 = vmatprep.subr.bf16.mxu0 0
      %8863 = vmatpush2.bf16.msra.mxu0 0
      %8864 = vmatprep.subr.bf16.mxu0 0
      %8865 = vmatpush2.bf16.msra.mxu0 0
      %8866 = vmatprep.subr.bf16.mxu0 0
      %8867 = vmatpush2.bf16.msra.mxu0 0
      %8868 = vmatprep.subr.bf16.mxu0 0
      %8869 = vmatpush2.bf16.msra.mxu0 0
      %8870 = vmatprep.subr.bf16.mxu0 0
      %8871 = vmatpush2.bf16.msra.mxu0 0
      %8872 = vmatprep.mubr.bf16.mxu0 0
      %8873 = vmatmul.mubr.bf16.gmra.mxu0 %v8782
      %v8874 = vpop.f32.mrf.mxu0
      %v8875 = vadd.f32 0.0, %v8874
      %v8876 = vpop.f32.mrf.mxu0
      %v8877 = vadd.f32 0.0, %v8876
      %v8878 = vpop.f32.mrf.mxu0
      %v8879 = vpop.f32.mrf.mxu0
      %8880 = vdwg.mxu0
      %8881 = vmatprep.subr.bf16.mxu0 0
      %8882 = vmatpush1.bf16.msra.mxu0 0
      %8883 = vmatprep.subr.bf16.mxu0 0
      %8884 = vmatpush1.bf16.msra.mxu0 0
      %8885 = vmatprep.subr.bf16.mxu0 0
      %8886 = vmatpush1.bf16.msra.mxu0 0
      %8887 = vmatprep.subr.bf16.mxu0 0
      %8888 = vmatpush1.bf16.msra.mxu0 0
      %8889 = vmatprep.subr.bf16.mxu0 0
      %8890 = vmatpush1.bf16.msra.mxu0 0
      %8891 = vmatprep.subr.bf16.mxu0 0
      %8892 = vmatpush1.bf16.msra.mxu0 0
      %8893 = vmatprep.subr.bf16.mxu0 0
      %8894 = vmatpush1.bf16.msra.mxu0 0
      %8895 = vmatprep.subr.bf16.mxu0 0
      %8896 = vmatpush1.bf16.msra.mxu0 %v8797
      %8897 = vmatprep.subr.bf16.mxu0 0
      %8898 = vmatpush2.bf16.msra.mxu0 0
      %8899 = vmatprep.subr.bf16.mxu0 0
      %8900 = vmatpush2.bf16.msra.mxu0 0
      %8901 = vmatprep.subr.bf16.mxu0 0
      %8902 = vmatpush2.bf16.msra.mxu0 0
      %8903 = vmatprep.subr.bf16.mxu0 0
      %8904 = vmatpush2.bf16.msra.mxu0 0
      %8905 = vmatprep.subr.bf16.mxu0 0
      %8906 = vmatpush2.bf16.msra.mxu0 0
      %8907 = vmatprep.subr.bf16.mxu0 0
      %8908 = vmatpush2.bf16.msra.mxu0 0
      %8909 = vmatprep.subr.bf16.mxu0 0
      %8910 = vmatpush2.bf16.msra.mxu0 0
      %8911 = vmatprep.subr.bf16.mxu0 0
      %8912 = vmatpush2.bf16.msra.mxu0 0
      %8913 = vmatprep.mubr.bf16.mxu0 0
      %8914 = vmatmul.mubr.bf16.gmra.mxu0 %v8782
      %v8915 = vpop.f32.mrf.mxu0
      %v8916 = vadd.f32 0.0, %v8915
      %v8917 = vpop.f32.mrf.mxu0
      %v8918 = vpop.f32.mrf.mxu0
      %v8919 = vpop.f32.mrf.mxu0
      %8920 = vdwg.mxu0
      %v8921 = vadd.f32 %v8757, %v8834
      %v8922 = vadd.f32 %v8758, %v8836
      %v8923 = vadd.f32 %v8759, %v8875
      %v8924 = vadd.f32 %v8760, %v8877
      %v8925 = vadd.f32 %v8761, %v8916
      %v8926 = vunpack.c.h.b16 %v6343
      %v8927 = vpack.c.b16 %v8926, %v8926
      %8928 = vrot.lane.b32.xlu0 %v6336, 7
      %v8929 = vpop.permute.xlu0 %8928
      %8930 = vrot.lane.b32.xlu0 %v6337, 7
      %v8931 = vpop.permute.xlu0 %8930
      %8932 = vrot.lane.b32.xlu0 %v6338, 7
      %v8933 = vpop.permute.xlu0 %8932
      %8934 = vrot.lane.b32.xlu0 %v6339, 7
      %v8935 = vpop.permute.xlu0 %8934
      %8936 = vrot.lane.b32.xlu0 %v6340, 7
      %v8937 = vpop.permute.xlu0 %8936
      %8938 = vrot.lane.b32.xlu0 %v6341, 7
      %v8939 = vpop.permute.xlu0 %8938
      %v8940 = vsel %vm3835, %v8929, %v8931
      %v8941 = vsel %vm3835, %v8931, %v8933
      %v8942 = vsel %vm3835, %v8933, %v8935
      %v8943 = vsel %vm3835, %v8935, %v8937
      %v8944 = vsel %vm3835, %v8937, %v8939
      %v8946 = vsel %vm6368, %v8927, 0
      %v8949 = vsel %vm6372, %v8940, 0
      %v8952 = vsel %vm6372, %v8941, 0
      %v8955 = vsel %vm6372, %v8942, 0
      %v8958 = vsel %vm6372, %v8943, 0
      %v8961 = vsel %vm6372, %v8944, 0
      %8963 = vmatprep.subr.bf16.mxu0 0
      %8964 = vmatpush1.bf16.msra.mxu0 0
      %8965 = vmatprep.subr.bf16.mxu0 0
      %8966 = vmatpush1.bf16.msra.mxu0 0
      %8967 = vmatprep.subr.bf16.mxu0 0
      %8968 = vmatpush1.bf16.msra.mxu0 0
      %8969 = vmatprep.subr.bf16.mxu0 0
      %8970 = vmatpush1.bf16.msra.mxu0 0
      %8971 = vmatprep.subr.bf16.mxu0 0
      %8972 = vmatpush1.bf16.msra.mxu0 0
      %8973 = vmatprep.subr.bf16.mxu0 0
      %8974 = vmatpush1.bf16.msra.mxu0 0
      %8975 = vmatprep.subr.bf16.mxu0 0
      %8976 = vmatpush1.bf16.msra.mxu0 0
      %8977 = vmatprep.subr.bf16.mxu0 %v8952
      %8978 = vmatpush1.bf16.msra.mxu0 %v8949
      %8979 = vmatprep.subr.bf16.mxu0 0
      %8980 = vmatpush2.bf16.msra.mxu0 0
      %8981 = vmatprep.subr.bf16.mxu0 0
      %8982 = vmatpush2.bf16.msra.mxu0 0
      %8983 = vmatprep.subr.bf16.mxu0 0
      %8984 = vmatpush2.bf16.msra.mxu0 0
      %8985 = vmatprep.subr.bf16.mxu0 0
      %8986 = vmatpush2.bf16.msra.mxu0 0
      %8987 = vmatprep.subr.bf16.mxu0 0
      %8988 = vmatpush2.bf16.msra.mxu0 0
      %8989 = vmatprep.subr.bf16.mxu0 0
      %8990 = vmatpush2.bf16.msra.mxu0 0
      %8991 = vmatprep.subr.bf16.mxu0 0
      %8992 = vmatpush2.bf16.msra.mxu0 0
      %8993 = vmatprep.subr.bf16.mxu0 0
      %8994 = vmatpush2.bf16.msra.mxu0 0
      %8995 = vmatprep.mubr.bf16.mxu0 0
      %8996 = vmatmul.mubr.bf16.gmra.mxu0 %v8946
      %v8997 = vpop.f32.mrf.mxu0
      %v8998 = vadd.f32 0.0, %v8997
      %v8999 = vpop.f32.mrf.mxu0
      %v9000 = vadd.f32 0.0, %v8999
      %v9001 = vpop.f32.mrf.mxu0
      %v9002 = vpop.f32.mrf.mxu0
      %9003 = vdwg.mxu0
      %9004 = vmatprep.subr.bf16.mxu0 0
      %9005 = vmatpush1.bf16.msra.mxu0 0
      %9006 = vmatprep.subr.bf16.mxu0 0
      %9007 = vmatpush1.bf16.msra.mxu0 0
      %9008 = vmatprep.subr.bf16.mxu0 0
      %9009 = vmatpush1.bf16.msra.mxu0 0
      %9010 = vmatprep.subr.bf16.mxu0 0
      %9011 = vmatpush1.bf16.msra.mxu0 0
      %9012 = vmatprep.subr.bf16.mxu0 0
      %9013 = vmatpush1.bf16.msra.mxu0 0
      %9014 = vmatprep.subr.bf16.mxu0 0
      %9015 = vmatpush1.bf16.msra.mxu0 0
      %9016 = vmatprep.subr.bf16.mxu0 0
      %9017 = vmatpush1.bf16.msra.mxu0 0
      %9018 = vmatprep.subr.bf16.mxu0 %v8958
      %9019 = vmatpush1.bf16.msra.mxu0 %v8955
      %9020 = vmatprep.subr.bf16.mxu0 0
      %9021 = vmatpush2.bf16.msra.mxu0 0
      %9022 = vmatprep.subr.bf16.mxu0 0
      %9023 = vmatpush2.bf16.msra.mxu0 0
      %9024 = vmatprep.subr.bf16.mxu0 0
      %9025 = vmatpush2.bf16.msra.mxu0 0
      %9026 = vmatprep.subr.bf16.mxu0 0
      %9027 = vmatpush2.bf16.msra.mxu0 0
      %9028 = vmatprep.subr.bf16.mxu0 0
      %9029 = vmatpush2.bf16.msra.mxu0 0
      %9030 = vmatprep.subr.bf16.mxu0 0
      %9031 = vmatpush2.bf16.msra.mxu0 0
      %9032 = vmatprep.subr.bf16.mxu0 0
      %9033 = vmatpush2.bf16.msra.mxu0 0
      %9034 = vmatprep.subr.bf16.mxu0 0
      %9035 = vmatpush2.bf16.msra.mxu0 0
      %9036 = vmatprep.mubr.bf16.mxu0 0
      %9037 = vmatmul.mubr.bf16.gmra.mxu0 %v8946
      %v9038 = vpop.f32.mrf.mxu0
      %v9039 = vadd.f32 0.0, %v9038
      %v9040 = vpop.f32.mrf.mxu0
      %v9041 = vadd.f32 0.0, %v9040
      %v9042 = vpop.f32.mrf.mxu0
      %v9043 = vpop.f32.mrf.mxu0
      %9044 = vdwg.mxu0
      %9045 = vmatprep.subr.bf16.mxu0 0
      %9046 = vmatpush1.bf16.msra.mxu0 0
      %9047 = vmatprep.subr.bf16.mxu0 0
      %9048 = vmatpush1.bf16.msra.mxu0 0
      %9049 = vmatprep.subr.bf16.mxu0 0
      %9050 = vmatpush1.bf16.msra.mxu0 0
      %9051 = vmatprep.subr.bf16.mxu0 0
      %9052 = vmatpush1.bf16.msra.mxu0 0
      %9053 = vmatprep.subr.bf16.mxu0 0
      %9054 = vmatpush1.bf16.msra.mxu0 0
      %9055 = vmatprep.subr.bf16.mxu0 0
      %9056 = vmatpush1.bf16.msra.mxu0 0
      %9057 = vmatprep.subr.bf16.mxu0 0
      %9058 = vmatpush1.bf16.msra.mxu0 0
      %9059 = vmatprep.subr.bf16.mxu0 0
      %9060 = vmatpush1.bf16.msra.mxu0 %v8961
      %9061 = vmatprep.subr.bf16.mxu0 0
      %9062 = vmatpush2.bf16.msra.mxu0 0
      %9063 = vmatprep.subr.bf16.mxu0 0
      %9064 = vmatpush2.bf16.msra.mxu0 0
      %9065 = vmatprep.subr.bf16.mxu0 0
      %9066 = vmatpush2.bf16.msra.mxu0 0
      %9067 = vmatprep.subr.bf16.mxu0 0
      %9068 = vmatpush2.bf16.msra.mxu0 0
      %9069 = vmatprep.subr.bf16.mxu0 0
      %9070 = vmatpush2.bf16.msra.mxu0 0
      %9071 = vmatprep.subr.bf16.mxu0 0
      %9072 = vmatpush2.bf16.msra.mxu0 0
      %9073 = vmatprep.subr.bf16.mxu0 0
      %9074 = vmatpush2.bf16.msra.mxu0 0
      %9075 = vmatprep.subr.bf16.mxu0 0
      %9076 = vmatpush2.bf16.msra.mxu0 0
      %9077 = vmatprep.mubr.bf16.mxu0 0
      %9078 = vmatmul.mubr.bf16.gmra.mxu0 %v8946
      %v9079 = vpop.f32.mrf.mxu0
      %v9080 = vadd.f32 0.0, %v9079
      %v9081 = vpop.f32.mrf.mxu0
      %v9082 = vpop.f32.mrf.mxu0
      %v9083 = vpop.f32.mrf.mxu0
      %9084 = vdwg.mxu0
      %v9085 = vadd.f32 %v8921, %v8998
      %v9086 = vadd.f32 %v8922, %v9000
      %v9087 = vadd.f32 %v8923, %v9039
      %v9088 = vadd.f32 %v8924, %v9041
      %v9089 = vadd.f32 %v8925, %v9080
      %9090 = vrot.lane.b32.xlu0 %v8927, 120
      %v9091 = vpop.permute.xlu0 %9090
      %9092 = vrot.lane.b32.xlu0 %v6336, 6
      %v9093 = vpop.permute.xlu0 %9092
      %9094 = vrot.lane.b32.xlu0 %v6337, 6
      %v9095 = vpop.permute.xlu0 %9094
      %9096 = vrot.lane.b32.xlu0 %v6338, 6
      %v9097 = vpop.permute.xlu0 %9096
      %9098 = vrot.lane.b32.xlu0 %v6339, 6
      %v9099 = vpop.permute.xlu0 %9098
      %9100 = vrot.lane.b32.xlu0 %v6340, 6
      %v9101 = vpop.permute.xlu0 %9100
      %9102 = vrot.lane.b32.xlu0 %v6341, 6
      %v9103 = vpop.permute.xlu0 %9102
      %v9104 = vsel %vm4055, %v9093, %v9095
      %v9105 = vsel %vm4055, %v9095, %v9097
      %v9106 = vsel %vm4055, %v9097, %v9099
      %v9107 = vsel %vm4055, %v9099, %v9101
      %v9108 = vsel %vm4055, %v9101, %v9103
      %v9110 = vsel %vm6368, %v9091, 0
      %v9113 = vsel %vm6372, %v9104, 0
      %v9116 = vsel %vm6372, %v9105, 0
      %v9119 = vsel %vm6372, %v9106, 0
      %v9122 = vsel %vm6372, %v9107, 0
      %v9125 = vsel %vm6372, %v9108, 0
      %9127 = vmatprep.subr.bf16.mxu0 0
      %9128 = vmatpush1.bf16.msra.mxu0 0
      %9129 = vmatprep.subr.bf16.mxu0 0
      %9130 = vmatpush1.bf16.msra.mxu0 0
      %9131 = vmatprep.subr.bf16.mxu0 0
      %9132 = vmatpush1.bf16.msra.mxu0 0
      %9133 = vmatprep.subr.bf16.mxu0 0
      %9134 = vmatpush1.bf16.msra.mxu0 0
      %9135 = vmatprep.subr.bf16.mxu0 0
      %9136 = vmatpush1.bf16.msra.mxu0 0
      %9137 = vmatprep.subr.bf16.mxu0 0
      %9138 = vmatpush1.bf16.msra.mxu0 0
      %9139 = vmatprep.subr.bf16.mxu0 0
      %9140 = vmatpush1.bf16.msra.mxu0 0
      %9141 = vmatprep.subr.bf16.mxu0 %v9116
      %9142 = vmatpush1.bf16.msra.mxu0 %v9113
      %9143 = vmatprep.subr.bf16.mxu0 0
      %9144 = vmatpush2.bf16.msra.mxu0 0
      %9145 = vmatprep.subr.bf16.mxu0 0
      %9146 = vmatpush2.bf16.msra.mxu0 0
      %9147 = vmatprep.subr.bf16.mxu0 0
      %9148 = vmatpush2.bf16.msra.mxu0 0
      %9149 = vmatprep.subr.bf16.mxu0 0
      %9150 = vmatpush2.bf16.msra.mxu0 0
      %9151 = vmatprep.subr.bf16.mxu0 0
      %9152 = vmatpush2.bf16.msra.mxu0 0
      %9153 = vmatprep.subr.bf16.mxu0 0
      %9154 = vmatpush2.bf16.msra.mxu0 0
      %9155 = vmatprep.subr.bf16.mxu0 0
      %9156 = vmatpush2.bf16.msra.mxu0 0
      %9157 = vmatprep.subr.bf16.mxu0 0
      %9158 = vmatpush2.bf16.msra.mxu0 0
      %9159 = vmatprep.mubr.bf16.mxu0 0
      %9160 = vmatmul.mubr.bf16.gmra.mxu0 %v9110
      %v9161 = vpop.f32.mrf.mxu0
      %v9162 = vadd.f32 0.0, %v9161
      %v9163 = vpop.f32.mrf.mxu0
      %v9164 = vadd.f32 0.0, %v9163
      %v9165 = vpop.f32.mrf.mxu0
      %v9166 = vpop.f32.mrf.mxu0
      %9167 = vdwg.mxu0
      %9168 = vmatprep.subr.bf16.mxu0 0
      %9169 = vmatpush1.bf16.msra.mxu0 0
      %9170 = vmatprep.subr.bf16.mxu0 0
      %9171 = vmatpush1.bf16.msra.mxu0 0
      %9172 = vmatprep.subr.bf16.mxu0 0
      %9173 = vmatpush1.bf16.msra.mxu0 0
      %9174 = vmatprep.subr.bf16.mxu0 0
      %9175 = vmatpush1.bf16.msra.mxu0 0
      %9176 = vmatprep.subr.bf16.mxu0 0
      %9177 = vmatpush1.bf16.msra.mxu0 0
      %9178 = vmatprep.subr.bf16.mxu0 0
      %9179 = vmatpush1.bf16.msra.mxu0 0
      %9180 = vmatprep.subr.bf16.mxu0 0
      %9181 = vmatpush1.bf16.msra.mxu0 0
      %9182 = vmatprep.subr.bf16.mxu0 %v9122
      %9183 = vmatpush1.bf16.msra.mxu0 %v9119
      %9184 = vmatprep.subr.bf16.mxu0 0
      %9185 = vmatpush2.bf16.msra.mxu0 0
      %9186 = vmatprep.subr.bf16.mxu0 0
      %9187 = vmatpush2.bf16.msra.mxu0 0
      %9188 = vmatprep.subr.bf16.mxu0 0
      %9189 = vmatpush2.bf16.msra.mxu0 0
      %9190 = vmatprep.subr.bf16.mxu0 0
      %9191 = vmatpush2.bf16.msra.mxu0 0
      %9192 = vmatprep.subr.bf16.mxu0 0
      %9193 = vmatpush2.bf16.msra.mxu0 0
      %9194 = vmatprep.subr.bf16.mxu0 0
      %9195 = vmatpush2.bf16.msra.mxu0 0
      %9196 = vmatprep.subr.bf16.mxu0 0
      %9197 = vmatpush2.bf16.msra.mxu0 0
      %9198 = vmatprep.subr.bf16.mxu0 0
      %9199 = vmatpush2.bf16.msra.mxu0 0
      %9200 = vmatprep.mubr.bf16.mxu0 0
      %9201 = vmatmul.mubr.bf16.gmra.mxu0 %v9110
      %v9202 = vpop.f32.mrf.mxu0
      %v9203 = vadd.f32 0.0, %v9202
      %v9204 = vpop.f32.mrf.mxu0
      %v9205 = vadd.f32 0.0, %v9204
      %v9206 = vpop.f32.mrf.mxu0
      %v9207 = vpop.f32.mrf.mxu0
      %9208 = vdwg.mxu0
      %9209 = vmatprep.subr.bf16.mxu0 0
      %9210 = vmatpush1.bf16.msra.mxu0 0
      %9211 = vmatprep.subr.bf16.mxu0 0
      %9212 = vmatpush1.bf16.msra.mxu0 0
      %9213 = vmatprep.subr.bf16.mxu0 0
      %9214 = vmatpush1.bf16.msra.mxu0 0
      %9215 = vmatprep.subr.bf16.mxu0 0
      %9216 = vmatpush1.bf16.msra.mxu0 0
      %9217 = vmatprep.subr.bf16.mxu0 0
      %9218 = vmatpush1.bf16.msra.mxu0 0
      %9219 = vmatprep.subr.bf16.mxu0 0
      %9220 = vmatpush1.bf16.msra.mxu0 0
      %9221 = vmatprep.subr.bf16.mxu0 0
      %9222 = vmatpush1.bf16.msra.mxu0 0
      %9223 = vmatprep.subr.bf16.mxu0 0
      %9224 = vmatpush1.bf16.msra.mxu0 %v9125
      %9225 = vmatprep.subr.bf16.mxu0 0
      %9226 = vmatpush2.bf16.msra.mxu0 0
      %9227 = vmatprep.subr.bf16.mxu0 0
      %9228 = vmatpush2.bf16.msra.mxu0 0
      %9229 = vmatprep.subr.bf16.mxu0 0
      %9230 = vmatpush2.bf16.msra.mxu0 0
      %9231 = vmatprep.subr.bf16.mxu0 0
      %9232 = vmatpush2.bf16.msra.mxu0 0
      %9233 = vmatprep.subr.bf16.mxu0 0
      %9234 = vmatpush2.bf16.msra.mxu0 0
      %9235 = vmatprep.subr.bf16.mxu0 0
      %9236 = vmatpush2.bf16.msra.mxu0 0
      %9237 = vmatprep.subr.bf16.mxu0 0
      %9238 = vmatpush2.bf16.msra.mxu0 0
      %9239 = vmatprep.subr.bf16.mxu0 0
      %9240 = vmatpush2.bf16.msra.mxu0 0
      %9241 = vmatprep.mubr.bf16.mxu0 0
      %9242 = vmatmul.mubr.bf16.gmra.mxu0 %v9110
      %v9243 = vpop.f32.mrf.mxu0
      %v9244 = vadd.f32 0.0, %v9243
      %v9245 = vpop.f32.mrf.mxu0
      %v9246 = vpop.f32.mrf.mxu0
      %v9247 = vpop.f32.mrf.mxu0
      %9248 = vdwg.mxu0
      %v9249 = vadd.f32 %v9085, %v9162
      %v9250 = vadd.f32 %v9086, %v9164
      %v9251 = vadd.f32 %v9087, %v9203
      %v9252 = vadd.f32 %v9088, %v9205
      %v9253 = vadd.f32 %v9089, %v9244
      %9254 = vrot.lane.b32.xlu0 %v8927, 112
      %v9255 = vpop.permute.xlu0 %9254
      %9256 = vrot.lane.b32.xlu0 %v6337, 56
      %v9257 = vpop.permute.xlu0 %9256
      %9258 = vrot.lane.b32.xlu0 %v6338, 56
      %v9259 = vpop.permute.xlu0 %9258
      %9260 = vrot.lane.b32.xlu0 %v6339, 56
      %v9261 = vpop.permute.xlu0 %9260
      %9262 = vrot.lane.b32.xlu0 %v6340, 56
      %v9263 = vpop.permute.xlu0 %9262
      %9264 = vrot.lane.b32.xlu0 %v6341, 56
      %v9265 = vpop.permute.xlu0 %9264
      %v9266 = vsel %vm4273, %v9257, %v9259
      %v9267 = vsel %vm4273, %v9259, %v9261
      %v9268 = vsel %vm4273, %v9261, %v9263
      %v9269 = vsel %vm4273, %v9263, %v9265
      %v9271 = vsel %vm6368, %v9255, 0
      %v9274 = vsel %vm6372, %v9266, 0
      %v9277 = vsel %vm6372, %v9267, 0
      %v9280 = vsel %vm6372, %v9268, 0
      %v9283 = vsel %vm6372, %v9269, 0
      %v9286 = vsel %vm6372, %v9265, 0
      %9288 = vmatprep.subr.bf16.mxu0 0
      %9289 = vmatpush1.bf16.msra.mxu0 0
      %9290 = vmatprep.subr.bf16.mxu0 0
      %9291 = vmatpush1.bf16.msra.mxu0 0
      %9292 = vmatprep.subr.bf16.mxu0 0
      %9293 = vmatpush1.bf16.msra.mxu0 0
      %9294 = vmatprep.subr.bf16.mxu0 0
      %9295 = vmatpush1.bf16.msra.mxu0 0
      %9296 = vmatprep.subr.bf16.mxu0 0
      %9297 = vmatpush1.bf16.msra.mxu0 0
      %9298 = vmatprep.subr.bf16.mxu0 0
      %9299 = vmatpush1.bf16.msra.mxu0 0
      %9300 = vmatprep.subr.bf16.mxu0 0
      %9301 = vmatpush1.bf16.msra.mxu0 0
      %9302 = vmatprep.subr.bf16.mxu0 %v9277
      %9303 = vmatpush1.bf16.msra.mxu0 %v9274
      %9304 = vmatprep.subr.bf16.mxu0 0
      %9305 = vmatpush2.bf16.msra.mxu0 0
      %9306 = vmatprep.subr.bf16.mxu0 0
      %9307 = vmatpush2.bf16.msra.mxu0 0
      %9308 = vmatprep.subr.bf16.mxu0 0
      %9309 = vmatpush2.bf16.msra.mxu0 0
      %9310 = vmatprep.subr.bf16.mxu0 0
      %9311 = vmatpush2.bf16.msra.mxu0 0
      %9312 = vmatprep.subr.bf16.mxu0 0
      %9313 = vmatpush2.bf16.msra.mxu0 0
      %9314 = vmatprep.subr.bf16.mxu0 0
      %9315 = vmatpush2.bf16.msra.mxu0 0
      %9316 = vmatprep.subr.bf16.mxu0 0
      %9317 = vmatpush2.bf16.msra.mxu0 0
      %9318 = vmatprep.subr.bf16.mxu0 0
      %9319 = vmatpush2.bf16.msra.mxu0 0
      %9320 = vmatprep.mubr.bf16.mxu0 0
      %9321 = vmatmul.mubr.bf16.gmra.mxu0 %v9271
      %v9322 = vpop.f32.mrf.mxu0
      %v9323 = vadd.f32 0.0, %v9322
      %v9324 = vpop.f32.mrf.mxu0
      %v9325 = vadd.f32 0.0, %v9324
      %v9326 = vpop.f32.mrf.mxu0
      %v9327 = vpop.f32.mrf.mxu0
      %9328 = vdwg.mxu0
      %9329 = vmatprep.subr.bf16.mxu0 0
      %9330 = vmatpush1.bf16.msra.mxu0 0
      %9331 = vmatprep.subr.bf16.mxu0 0
      %9332 = vmatpush1.bf16.msra.mxu0 0
      %9333 = vmatprep.subr.bf16.mxu0 0
      %9334 = vmatpush1.bf16.msra.mxu0 0
      %9335 = vmatprep.subr.bf16.mxu0 0
      %9336 = vmatpush1.bf16.msra.mxu0 0
      %9337 = vmatprep.subr.bf16.mxu0 0
      %9338 = vmatpush1.bf16.msra.mxu0 0
      %9339 = vmatprep.subr.bf16.mxu0 0
      %9340 = vmatpush1.bf16.msra.mxu0 0
      %9341 = vmatprep.subr.bf16.mxu0 0
      %9342 = vmatpush1.bf16.msra.mxu0 0
      %9343 = vmatprep.subr.bf16.mxu0 %v9283
      %9344 = vmatpush1.bf16.msra.mxu0 %v9280
      %9345 = vmatprep.subr.bf16.mxu0 0
      %9346 = vmatpush2.bf16.msra.mxu0 0
      %9347 = vmatprep.subr.bf16.mxu0 0
      %9348 = vmatpush2.bf16.msra.mxu0 0
      %9349 = vmatprep.subr.bf16.mxu0 0
      %9350 = vmatpush2.bf16.msra.mxu0 0
      %9351 = vmatprep.subr.bf16.mxu0 0
      %9352 = vmatpush2.bf16.msra.mxu0 0
      %9353 = vmatprep.subr.bf16.mxu0 0
      %9354 = vmatpush2.bf16.msra.mxu0 0
      %9355 = vmatprep.subr.bf16.mxu0 0
      %9356 = vmatpush2.bf16.msra.mxu0 0
      %9357 = vmatprep.subr.bf16.mxu0 0
      %9358 = vmatpush2.bf16.msra.mxu0 0
      %9359 = vmatprep.subr.bf16.mxu0 0
      %9360 = vmatpush2.bf16.msra.mxu0 0
      %9361 = vmatprep.mubr.bf16.mxu0 0
      %9362 = vmatmul.mubr.bf16.gmra.mxu0 %v9271
      %v9363 = vpop.f32.mrf.mxu0
      %v9364 = vadd.f32 0.0, %v9363
      %v9365 = vpop.f32.mrf.mxu0
      %v9366 = vadd.f32 0.0, %v9365
      %v9367 = vpop.f32.mrf.mxu0
      %v9368 = vpop.f32.mrf.mxu0
      %9369 = vdwg.mxu0
      %9370 = vmatprep.subr.bf16.mxu0 0
      %9371 = vmatpush1.bf16.msra.mxu0 0
      %9372 = vmatprep.subr.bf16.mxu0 0
      %9373 = vmatpush1.bf16.msra.mxu0 0
      %9374 = vmatprep.subr.bf16.mxu0 0
      %9375 = vmatpush1.bf16.msra.mxu0 0
      %9376 = vmatprep.subr.bf16.mxu0 0
      %9377 = vmatpush1.bf16.msra.mxu0 0
      %9378 = vmatprep.subr.bf16.mxu0 0
      %9379 = vmatpush1.bf16.msra.mxu0 0
      %9380 = vmatprep.subr.bf16.mxu0 0
      %9381 = vmatpush1.bf16.msra.mxu0 0
      %9382 = vmatprep.subr.bf16.mxu0 0
      %9383 = vmatpush1.bf16.msra.mxu0 0
      %9384 = vmatprep.subr.bf16.mxu0 0
      %9385 = vmatpush1.bf16.msra.mxu0 %v9286
      %9386 = vmatprep.subr.bf16.mxu0 0
      %9387 = vmatpush2.bf16.msra.mxu0 0
      %9388 = vmatprep.subr.bf16.mxu0 0
      %9389 = vmatpush2.bf16.msra.mxu0 0
      %9390 = vmatprep.subr.bf16.mxu0 0
      %9391 = vmatpush2.bf16.msra.mxu0 0
      %9392 = vmatprep.subr.bf16.mxu0 0
      %9393 = vmatpush2.bf16.msra.mxu0 0
      %9394 = vmatprep.subr.bf16.mxu0 0
      %9395 = vmatpush2.bf16.msra.mxu0 0
      %9396 = vmatprep.subr.bf16.mxu0 0
      %9397 = vmatpush2.bf16.msra.mxu0 0
      %9398 = vmatprep.subr.bf16.mxu0 0
      %9399 = vmatpush2.bf16.msra.mxu0 0
      %9400 = vmatprep.subr.bf16.mxu0 0
      %9401 = vmatpush2.bf16.msra.mxu0 0
      %9402 = vmatprep.mubr.bf16.mxu0 0
      %9403 = vmatmul.mubr.bf16.gmra.mxu0 %v9271
      %v9404 = vpop.f32.mrf.mxu0
      %v9405 = vadd.f32 0.0, %v9404
      %v9406 = vpop.f32.mrf.mxu0
      %v9407 = vpop.f32.mrf.mxu0
      %v9408 = vpop.f32.mrf.mxu0
      %9409 = vdwg.mxu0
      %v9410 = vadd.f32 %v9249, %v9323
      %v9411 = vadd.f32 %v9250, %v9325
      %v9412 = vadd.f32 %v9251, %v9364
      %v9413 = vadd.f32 %v9252, %v9366
      %v9414 = vadd.f32 %v9253, %v9405
      %9415 = vrot.lane.b32.xlu0 %v8927, 104
      %v9416 = vpop.permute.xlu0 %9415
      %9417 = vrot.lane.b32.xlu0 %v6337, 55
      %v9418 = vpop.permute.xlu0 %9417
      %9419 = vrot.lane.b32.xlu0 %v6338, 55
      %v9420 = vpop.permute.xlu0 %9419
      %9421 = vrot.lane.b32.xlu0 %v6339, 55
      %v9422 = vpop.permute.xlu0 %9421
      %9423 = vrot.lane.b32.xlu0 %v6340, 55
      %v9424 = vpop.permute.xlu0 %9423
      %9425 = vrot.lane.b32.xlu0 %v6341, 55
      %v9426 = vpop.permute.xlu0 %9425
      %v9427 = vsel %vm4490, %v9418, %v9420
      %v9428 = vsel %vm4490, %v9420, %v9422
      %v9429 = vsel %vm4490, %v9422, %v9424
      %v9430 = vsel %vm4490, %v9424, %v9426
      %v9432 = vsel %vm6368, %v9416, 0
      %v9435 = vsel %vm6372, %v9427, 0
      %v9438 = vsel %vm6372, %v9428, 0
      %v9441 = vsel %vm6372, %v9429, 0
      %v9444 = vsel %vm6372, %v9430, 0
      %v9447 = vsel %vm6372, %v9426, 0
      %9449 = vmatprep.subr.bf16.mxu0 0
      %9450 = vmatpush1.bf16.msra.mxu0 0
      %9451 = vmatprep.subr.bf16.mxu0 0
      %9452 = vmatpush1.bf16.msra.mxu0 0
      %9453 = vmatprep.subr.bf16.mxu0 0
      %9454 = vmatpush1.bf16.msra.mxu0 0
      %9455 = vmatprep.subr.bf16.mxu0 0
      %9456 = vmatpush1.bf16.msra.mxu0 0
      %9457 = vmatprep.subr.bf16.mxu0 0
      %9458 = vmatpush1.bf16.msra.mxu0 0
      %9459 = vmatprep.subr.bf16.mxu0 0
      %9460 = vmatpush1.bf16.msra.mxu0 0
      %9461 = vmatprep.subr.bf16.mxu0 0
      %9462 = vmatpush1.bf16.msra.mxu0 0
      %9463 = vmatprep.subr.bf16.mxu0 %v9438
      %9464 = vmatpush1.bf16.msra.mxu0 %v9435
      %9465 = vmatprep.subr.bf16.mxu0 0
      %9466 = vmatpush2.bf16.msra.mxu0 0
      %9467 = vmatprep.subr.bf16.mxu0 0
      %9468 = vmatpush2.bf16.msra.mxu0 0
      %9469 = vmatprep.subr.bf16.mxu0 0
      %9470 = vmatpush2.bf16.msra.mxu0 0
      %9471 = vmatprep.subr.bf16.mxu0 0
      %9472 = vmatpush2.bf16.msra.mxu0 0
      %9473 = vmatprep.subr.bf16.mxu0 0
      %9474 = vmatpush2.bf16.msra.mxu0 0
      %9475 = vmatprep.subr.bf16.mxu0 0
      %9476 = vmatpush2.bf16.msra.mxu0 0
      %9477 = vmatprep.subr.bf16.mxu0 0
      %9478 = vmatpush2.bf16.msra.mxu0 0
      %9479 = vmatprep.subr.bf16.mxu0 0
      %9480 = vmatpush2.bf16.msra.mxu0 0
      %9481 = vmatprep.mubr.bf16.mxu0 0
      %9482 = vmatmul.mubr.bf16.gmra.mxu0 %v9432
      %v9483 = vpop.f32.mrf.mxu0
      %v9484 = vadd.f32 0.0, %v9483
      %v9485 = vpop.f32.mrf.mxu0
      %v9486 = vadd.f32 0.0, %v9485
      %v9487 = vpop.f32.mrf.mxu0
      %v9488 = vpop.f32.mrf.mxu0
      %9489 = vdwg.mxu0
      %9490 = vmatprep.subr.bf16.mxu0 0
      %9491 = vmatpush1.bf16.msra.mxu0 0
      %9492 = vmatprep.subr.bf16.mxu0 0
      %9493 = vmatpush1.bf16.msra.mxu0 0
      %9494 = vmatprep.subr.bf16.mxu0 0
      %9495 = vmatpush1.bf16.msra.mxu0 0
      %9496 = vmatprep.subr.bf16.mxu0 0
      %9497 = vmatpush1.bf16.msra.mxu0 0
      %9498 = vmatprep.subr.bf16.mxu0 0
      %9499 = vmatpush1.bf16.msra.mxu0 0
      %9500 = vmatprep.subr.bf16.mxu0 0
      %9501 = vmatpush1.bf16.msra.mxu0 0
      %9502 = vmatprep.subr.bf16.mxu0 0
      %9503 = vmatpush1.bf16.msra.mxu0 0
      %9504 = vmatprep.subr.bf16.mxu0 %v9444
      %9505 = vmatpush1.bf16.msra.mxu0 %v9441
      %9506 = vmatprep.subr.bf16.mxu0 0
      %9507 = vmatpush2.bf16.msra.mxu0 0
      %9508 = vmatprep.subr.bf16.mxu0 0
      %9509 = vmatpush2.bf16.msra.mxu0 0
      %9510 = vmatprep.subr.bf16.mxu0 0
      %9511 = vmatpush2.bf16.msra.mxu0 0
      %9512 = vmatprep.subr.bf16.mxu0 0
      %9513 = vmatpush2.bf16.msra.mxu0 0
      %9514 = vmatprep.subr.bf16.mxu0 0
      %9515 = vmatpush2.bf16.msra.mxu0 0
      %9516 = vmatprep.subr.bf16.mxu0 0
      %9517 = vmatpush2.bf16.msra.mxu0 0
      %9518 = vmatprep.subr.bf16.mxu0 0
      %9519 = vmatpush2.bf16.msra.mxu0 0
      %9520 = vmatprep.subr.bf16.mxu0 0
      %9521 = vmatpush2.bf16.msra.mxu0 0
      %9522 = vmatprep.mubr.bf16.mxu0 0
      %9523 = vmatmul.mubr.bf16.gmra.mxu0 %v9432
      %v9524 = vpop.f32.mrf.mxu0
      %v9525 = vadd.f32 0.0, %v9524
      %v9526 = vpop.f32.mrf.mxu0
      %v9527 = vadd.f32 0.0, %v9526
      %v9528 = vpop.f32.mrf.mxu0
      %v9529 = vpop.f32.mrf.mxu0
      %9530 = vdwg.mxu0
      %9531 = vmatprep.subr.bf16.mxu0 0
      %9532 = vmatpush1.bf16.msra.mxu0 0
      %9533 = vmatprep.subr.bf16.mxu0 0
      %9534 = vmatpush1.bf16.msra.mxu0 0
      %9535 = vmatprep.subr.bf16.mxu0 0
      %9536 = vmatpush1.bf16.msra.mxu0 0
      %9537 = vmatprep.subr.bf16.mxu0 0
      %9538 = vmatpush1.bf16.msra.mxu0 0
      %9539 = vmatprep.subr.bf16.mxu0 0
      %9540 = vmatpush1.bf16.msra.mxu0 0
      %9541 = vmatprep.subr.bf16.mxu0 0
      %9542 = vmatpush1.bf16.msra.mxu0 0
      %9543 = vmatprep.subr.bf16.mxu0 0
      %9544 = vmatpush1.bf16.msra.mxu0 0
      %9545 = vmatprep.subr.bf16.mxu0 0
      %9546 = vmatpush1.bf16.msra.mxu0 %v9447
      %9547 = vmatprep.subr.bf16.mxu0 0
      %9548 = vmatpush2.bf16.msra.mxu0 0
      %9549 = vmatprep.subr.bf16.mxu0 0
      %9550 = vmatpush2.bf16.msra.mxu0 0
      %9551 = vmatprep.subr.bf16.mxu0 0
      %9552 = vmatpush2.bf16.msra.mxu0 0
      %9553 = vmatprep.subr.bf16.mxu0 0
      %9554 = vmatpush2.bf16.msra.mxu0 0
      %9555 = vmatprep.subr.bf16.mxu0 0
      %9556 = vmatpush2.bf16.msra.mxu0 0
      %9557 = vmatprep.subr.bf16.mxu0 0
      %9558 = vmatpush2.bf16.msra.mxu0 0
      %9559 = vmatprep.subr.bf16.mxu0 0
      %9560 = vmatpush2.bf16.msra.mxu0 0
      %9561 = vmatprep.subr.bf16.mxu0 0
      %9562 = vmatpush2.bf16.msra.mxu0 0
      %9563 = vmatprep.mubr.bf16.mxu0 0
      %9564 = vmatmul.mubr.bf16.gmra.mxu0 %v9432
      %v9565 = vpop.f32.mrf.mxu0
      %v9566 = vadd.f32 0.0, %v9565
      %v9567 = vpop.f32.mrf.mxu0
      %v9568 = vpop.f32.mrf.mxu0
      %v9569 = vpop.f32.mrf.mxu0
      %9570 = vdwg.mxu0
      %v9571 = vadd.f32 %v9410, %v9484
      %v9572 = vadd.f32 %v9411, %v9486
      %v9573 = vadd.f32 %v9412, %v9525
      %v9574 = vadd.f32 %v9413, %v9527
      %v9575 = vadd.f32 %v9414, %v9566
      %9576 = vrot.lane.b32.xlu0 %v8927, 96
      %v9577 = vpop.permute.xlu0 %9576
      %9578 = vrot.lane.b32.xlu0 %v6337, 54
      %v9579 = vpop.permute.xlu0 %9578
      %9580 = vrot.lane.b32.xlu0 %v6338, 54
      %v9581 = vpop.permute.xlu0 %9580
      %9582 = vrot.lane.b32.xlu0 %v6339, 54
      %v9583 = vpop.permute.xlu0 %9582
      %9584 = vrot.lane.b32.xlu0 %v6340, 54
      %v9585 = vpop.permute.xlu0 %9584
      %9586 = vrot.lane.b32.xlu0 %v6341, 54
      %v9587 = vpop.permute.xlu0 %9586
      %v9588 = vsel %vm4707, %v9579, %v9581
      %v9589 = vsel %vm4707, %v9581, %v9583
      %v9590 = vsel %vm4707, %v9583, %v9585
      %v9591 = vsel %vm4707, %v9585, %v9587
      %v9593 = vsel %vm6368, %v9577, 0
      %v9596 = vsel %vm6372, %v9588, 0
      %v9599 = vsel %vm6372, %v9589, 0
      %v9602 = vsel %vm6372, %v9590, 0
      %v9605 = vsel %vm6372, %v9591, 0
      %v9608 = vsel %vm6372, %v9587, 0
      %9610 = vmatprep.subr.bf16.mxu0 0
      %9611 = vmatpush1.bf16.msra.mxu0 0
      %9612 = vmatprep.subr.bf16.mxu0 0
      %9613 = vmatpush1.bf16.msra.mxu0 0
      %9614 = vmatprep.subr.bf16.mxu0 0
      %9615 = vmatpush1.bf16.msra.mxu0 0
      %9616 = vmatprep.subr.bf16.mxu0 0
      %9617 = vmatpush1.bf16.msra.mxu0 0
      %9618 = vmatprep.subr.bf16.mxu0 0
      %9619 = vmatpush1.bf16.msra.mxu0 0
      %9620 = vmatprep.subr.bf16.mxu0 0
      %9621 = vmatpush1.bf16.msra.mxu0 0
      %9622 = vmatprep.subr.bf16.mxu0 0
      %9623 = vmatpush1.bf16.msra.mxu0 0
      %9624 = vmatprep.subr.bf16.mxu0 %v9599
      %9625 = vmatpush1.bf16.msra.mxu0 %v9596
      %9626 = vmatprep.subr.bf16.mxu0 0
      %9627 = vmatpush2.bf16.msra.mxu0 0
      %9628 = vmatprep.subr.bf16.mxu0 0
      %9629 = vmatpush2.bf16.msra.mxu0 0
      %9630 = vmatprep.subr.bf16.mxu0 0
      %9631 = vmatpush2.bf16.msra.mxu0 0
      %9632 = vmatprep.subr.bf16.mxu0 0
      %9633 = vmatpush2.bf16.msra.mxu0 0
      %9634 = vmatprep.subr.bf16.mxu0 0
      %9635 = vmatpush2.bf16.msra.mxu0 0
      %9636 = vmatprep.subr.bf16.mxu0 0
      %9637 = vmatpush2.bf16.msra.mxu0 0
      %9638 = vmatprep.subr.bf16.mxu0 0
      %9639 = vmatpush2.bf16.msra.mxu0 0
      %9640 = vmatprep.subr.bf16.mxu0 0
      %9641 = vmatpush2.bf16.msra.mxu0 0
      %9642 = vmatprep.mubr.bf16.mxu0 0
      %9643 = vmatmul.mubr.bf16.gmra.mxu0 %v9593
      %v9644 = vpop.f32.mrf.mxu0
      %v9645 = vadd.f32 0.0, %v9644
      %v9646 = vpop.f32.mrf.mxu0
      %v9647 = vadd.f32 0.0, %v9646
      %v9648 = vpop.f32.mrf.mxu0
      %v9649 = vpop.f32.mrf.mxu0
      %9650 = vdwg.mxu0
      %9651 = vmatprep.subr.bf16.mxu0 0
      %9652 = vmatpush1.bf16.msra.mxu0 0
      %9653 = vmatprep.subr.bf16.mxu0 0
      %9654 = vmatpush1.bf16.msra.mxu0 0
      %9655 = vmatprep.subr.bf16.mxu0 0
      %9656 = vmatpush1.bf16.msra.mxu0 0
      %9657 = vmatprep.subr.bf16.mxu0 0
      %9658 = vmatpush1.bf16.msra.mxu0 0
      %9659 = vmatprep.subr.bf16.mxu0 0
      %9660 = vmatpush1.bf16.msra.mxu0 0
      %9661 = vmatprep.subr.bf16.mxu0 0
      %9662 = vmatpush1.bf16.msra.mxu0 0
      %9663 = vmatprep.subr.bf16.mxu0 0
      %9664 = vmatpush1.bf16.msra.mxu0 0
      %9665 = vmatprep.subr.bf16.mxu0 %v9605
      %9666 = vmatpush1.bf16.msra.mxu0 %v9602
      %9667 = vmatprep.subr.bf16.mxu0 0
      %9668 = vmatpush2.bf16.msra.mxu0 0
      %9669 = vmatprep.subr.bf16.mxu0 0
      %9670 = vmatpush2.bf16.msra.mxu0 0
      %9671 = vmatprep.subr.bf16.mxu0 0
      %9672 = vmatpush2.bf16.msra.mxu0 0
      %9673 = vmatprep.subr.bf16.mxu0 0
      %9674 = vmatpush2.bf16.msra.mxu0 0
      %9675 = vmatprep.subr.bf16.mxu0 0
      %9676 = vmatpush2.bf16.msra.mxu0 0
      %9677 = vmatprep.subr.bf16.mxu0 0
      %9678 = vmatpush2.bf16.msra.mxu0 0
      %9679 = vmatprep.subr.bf16.mxu0 0
      %9680 = vmatpush2.bf16.msra.mxu0 0
      %9681 = vmatprep.subr.bf16.mxu0 0
      %9682 = vmatpush2.bf16.msra.mxu0 0
      %9683 = vmatprep.mubr.bf16.mxu0 0
      %9684 = vmatmul.mubr.bf16.gmra.mxu0 %v9593
      %v9685 = vpop.f32.mrf.mxu0
      %v9686 = vadd.f32 0.0, %v9685
      %v9687 = vpop.f32.mrf.mxu0
      %v9688 = vadd.f32 0.0, %v9687
      %v9689 = vpop.f32.mrf.mxu0
      %v9690 = vpop.f32.mrf.mxu0
      %9691 = vdwg.mxu0
      %9692 = vmatprep.subr.bf16.mxu0 0
      %9693 = vmatpush1.bf16.msra.mxu0 0
      %9694 = vmatprep.subr.bf16.mxu0 0
      %9695 = vmatpush1.bf16.msra.mxu0 0
      %9696 = vmatprep.subr.bf16.mxu0 0
      %9697 = vmatpush1.bf16.msra.mxu0 0
      %9698 = vmatprep.subr.bf16.mxu0 0
      %9699 = vmatpush1.bf16.msra.mxu0 0
      %9700 = vmatprep.subr.bf16.mxu0 0
      %9701 = vmatpush1.bf16.msra.mxu0 0
      %9702 = vmatprep.subr.bf16.mxu0 0
      %9703 = vmatpush1.bf16.msra.mxu0 0
      %9704 = vmatprep.subr.bf16.mxu0 0
      %9705 = vmatpush1.bf16.msra.mxu0 0
      %9706 = vmatprep.subr.bf16.mxu0 0
      %9707 = vmatpush1.bf16.msra.mxu0 %v9608
      %9708 = vmatprep.subr.bf16.mxu0 0
      %9709 = vmatpush2.bf16.msra.mxu0 0
      %9710 = vmatprep.subr.bf16.mxu0 0
      %9711 = vmatpush2.bf16.msra.mxu0 0
      %9712 = vmatprep.subr.bf16.mxu0 0
      %9713 = vmatpush2.bf16.msra.mxu0 0
      %9714 = vmatprep.subr.bf16.mxu0 0
      %9715 = vmatpush2.bf16.msra.mxu0 0
      %9716 = vmatprep.subr.bf16.mxu0 0
      %9717 = vmatpush2.bf16.msra.mxu0 0
      %9718 = vmatprep.subr.bf16.mxu0 0
      %9719 = vmatpush2.bf16.msra.mxu0 0
      %9720 = vmatprep.subr.bf16.mxu0 0
      %9721 = vmatpush2.bf16.msra.mxu0 0
      %9722 = vmatprep.subr.bf16.mxu0 0
      %9723 = vmatpush2.bf16.msra.mxu0 0
      %9724 = vmatprep.mubr.bf16.mxu0 0
      %9725 = vmatmul.mubr.bf16.gmra.mxu0 %v9593
      %v9726 = vpop.f32.mrf.mxu0
      %v9727 = vadd.f32 0.0, %v9726
      %v9728 = vpop.f32.mrf.mxu0
      %v9729 = vpop.f32.mrf.mxu0
      %v9730 = vpop.f32.mrf.mxu0
      %9731 = vdwg.mxu0
      %v9732 = vadd.f32 %v9571, %v9645
      %v9733 = vadd.f32 %v9572, %v9647
      %v9734 = vadd.f32 %v9573, %v9686
      %v9735 = vadd.f32 %v9574, %v9688
      %v9736 = vadd.f32 %v9575, %v9727
      %9737 = vrot.lane.b32.xlu0 %v8927, 88
      %v9738 = vpop.permute.xlu0 %9737
      %9739 = vrot.lane.b32.xlu0 %v6337, 46
      %v9740 = vpop.permute.xlu0 %9739
      %9741 = vrot.lane.b32.xlu0 %v6338, 46
      %v9742 = vpop.permute.xlu0 %9741
      %9743 = vrot.lane.b32.xlu0 %v6339, 46
      %v9744 = vpop.permute.xlu0 %9743
      %9745 = vrot.lane.b32.xlu0 %v6340, 46
      %v9746 = vpop.permute.xlu0 %9745
      %9747 = vrot.lane.b32.xlu0 %v6341, 46
      %v9748 = vpop.permute.xlu0 %9747
      %v9749 = vsel %vm4924, %v9740, %v9742
      %v9750 = vsel %vm4924, %v9742, %v9744
      %v9751 = vsel %vm4924, %v9744, %v9746
      %v9752 = vsel %vm4924, %v9746, %v9748
      %v9754 = vsel %vm6368, %v9738, 0
      %v9757 = vsel %vm6372, %v9749, 0
      %v9760 = vsel %vm6372, %v9750, 0
      %v9763 = vsel %vm6372, %v9751, 0
      %v9766 = vsel %vm6372, %v9752, 0
      %v9769 = vsel %vm6372, %v9748, 0
      %9771 = vmatprep.subr.bf16.mxu0 0
      %9772 = vmatpush1.bf16.msra.mxu0 0
      %9773 = vmatprep.subr.bf16.mxu0 0
      %9774 = vmatpush1.bf16.msra.mxu0 0
      %9775 = vmatprep.subr.bf16.mxu0 0
      %9776 = vmatpush1.bf16.msra.mxu0 0
      %9777 = vmatprep.subr.bf16.mxu0 0
      %9778 = vmatpush1.bf16.msra.mxu0 0
      %9779 = vmatprep.subr.bf16.mxu0 0
      %9780 = vmatpush1.bf16.msra.mxu0 0
      %9781 = vmatprep.subr.bf16.mxu0 0
      %9782 = vmatpush1.bf16.msra.mxu0 0
      %9783 = vmatprep.subr.bf16.mxu0 0
      %9784 = vmatpush1.bf16.msra.mxu0 0
      %9785 = vmatprep.subr.bf16.mxu0 %v9760
      %9786 = vmatpush1.bf16.msra.mxu0 %v9757
      %9787 = vmatprep.subr.bf16.mxu0 0
      %9788 = vmatpush2.bf16.msra.mxu0 0
      %9789 = vmatprep.subr.bf16.mxu0 0
      %9790 = vmatpush2.bf16.msra.mxu0 0
      %9791 = vmatprep.subr.bf16.mxu0 0
      %9792 = vmatpush2.bf16.msra.mxu0 0
      %9793 = vmatprep.subr.bf16.mxu0 0
      %9794 = vmatpush2.bf16.msra.mxu0 0
      %9795 = vmatprep.subr.bf16.mxu0 0
      %9796 = vmatpush2.bf16.msra.mxu0 0
      %9797 = vmatprep.subr.bf16.mxu0 0
      %9798 = vmatpush2.bf16.msra.mxu0 0
      %9799 = vmatprep.subr.bf16.mxu0 0
      %9800 = vmatpush2.bf16.msra.mxu0 0
      %9801 = vmatprep.subr.bf16.mxu0 0
      %9802 = vmatpush2.bf16.msra.mxu0 0
      %9803 = vmatprep.mubr.bf16.mxu0 0
      %9804 = vmatmul.mubr.bf16.gmra.mxu0 %v9754
      %v9805 = vpop.f32.mrf.mxu0
      %v9806 = vadd.f32 0.0, %v9805
      %v9807 = vpop.f32.mrf.mxu0
      %v9808 = vadd.f32 0.0, %v9807
      %v9809 = vpop.f32.mrf.mxu0
      %v9810 = vpop.f32.mrf.mxu0
      %9811 = vdwg.mxu0
      %9812 = vmatprep.subr.bf16.mxu0 0
      %9813 = vmatpush1.bf16.msra.mxu0 0
      %9814 = vmatprep.subr.bf16.mxu0 0
      %9815 = vmatpush1.bf16.msra.mxu0 0
      %9816 = vmatprep.subr.bf16.mxu0 0
      %9817 = vmatpush1.bf16.msra.mxu0 0
      %9818 = vmatprep.subr.bf16.mxu0 0
      %9819 = vmatpush1.bf16.msra.mxu0 0
      %9820 = vmatprep.subr.bf16.mxu0 0
      %9821 = vmatpush1.bf16.msra.mxu0 0
      %9822 = vmatprep.subr.bf16.mxu0 0
      %9823 = vmatpush1.bf16.msra.mxu0 0
      %9824 = vmatprep.subr.bf16.mxu0 0
      %9825 = vmatpush1.bf16.msra.mxu0 0
      %9826 = vmatprep.subr.bf16.mxu0 %v9766
      %9827 = vmatpush1.bf16.msra.mxu0 %v9763
      %9828 = vmatprep.subr.bf16.mxu0 0
      %9829 = vmatpush2.bf16.msra.mxu0 0
      %9830 = vmatprep.subr.bf16.mxu0 0
      %9831 = vmatpush2.bf16.msra.mxu0 0
      %9832 = vmatprep.subr.bf16.mxu0 0
      %9833 = vmatpush2.bf16.msra.mxu0 0
      %9834 = vmatprep.subr.bf16.mxu0 0
      %9835 = vmatpush2.bf16.msra.mxu0 0
      %9836 = vmatprep.subr.bf16.mxu0 0
      %9837 = vmatpush2.bf16.msra.mxu0 0
      %9838 = vmatprep.subr.bf16.mxu0 0
      %9839 = vmatpush2.bf16.msra.mxu0 0
      %9840 = vmatprep.subr.bf16.mxu0 0
      %9841 = vmatpush2.bf16.msra.mxu0 0
      %9842 = vmatprep.subr.bf16.mxu0 0
      %9843 = vmatpush2.bf16.msra.mxu0 0
      %9844 = vmatprep.mubr.bf16.mxu0 0
      %9845 = vmatmul.mubr.bf16.gmra.mxu0 %v9754
      %v9846 = vpop.f32.mrf.mxu0
      %v9847 = vadd.f32 0.0, %v9846
      %v9848 = vpop.f32.mrf.mxu0
      %v9849 = vadd.f32 0.0, %v9848
      %v9850 = vpop.f32.mrf.mxu0
      %v9851 = vpop.f32.mrf.mxu0
      %9852 = vdwg.mxu0
      %9853 = vmatprep.subr.bf16.mxu0 0
      %9854 = vmatpush1.bf16.msra.mxu0 0
      %9855 = vmatprep.subr.bf16.mxu0 0
      %9856 = vmatpush1.bf16.msra.mxu0 0
      %9857 = vmatprep.subr.bf16.mxu0 0
      %9858 = vmatpush1.bf16.msra.mxu0 0
      %9859 = vmatprep.subr.bf16.mxu0 0
      %9860 = vmatpush1.bf16.msra.mxu0 0
      %9861 = vmatprep.subr.bf16.mxu0 0
      %9862 = vmatpush1.bf16.msra.mxu0 0
      %9863 = vmatprep.subr.bf16.mxu0 0
      %9864 = vmatpush1.bf16.msra.mxu0 0
      %9865 = vmatprep.subr.bf16.mxu0 0
      %9866 = vmatpush1.bf16.msra.mxu0 0
      %9867 = vmatprep.subr.bf16.mxu0 0
      %9868 = vmatpush1.bf16.msra.mxu0 %v9769
      %9869 = vmatprep.subr.bf16.mxu0 0
      %9870 = vmatpush2.bf16.msra.mxu0 0
      %9871 = vmatprep.subr.bf16.mxu0 0
      %9872 = vmatpush2.bf16.msra.mxu0 0
      %9873 = vmatprep.subr.bf16.mxu0 0
      %9874 = vmatpush2.bf16.msra.mxu0 0
      %9875 = vmatprep.subr.bf16.mxu0 0
      %9876 = vmatpush2.bf16.msra.mxu0 0
      %9877 = vmatprep.subr.bf16.mxu0 0
      %9878 = vmatpush2.bf16.msra.mxu0 0
      %9879 = vmatprep.subr.bf16.mxu0 0
      %9880 = vmatpush2.bf16.msra.mxu0 0
      %9881 = vmatprep.subr.bf16.mxu0 0
      %9882 = vmatpush2.bf16.msra.mxu0 0
      %9883 = vmatprep.subr.bf16.mxu0 0
      %9884 = vmatpush2.bf16.msra.mxu0 0
      %9885 = vmatprep.mubr.bf16.mxu0 0
      %9886 = vmatmul.mubr.bf16.gmra.mxu0 %v9754
      %v9887 = vpop.f32.mrf.mxu0
      %v9888 = vadd.f32 0.0, %v9887
      %v9889 = vpop.f32.mrf.mxu0
      %v9890 = vpop.f32.mrf.mxu0
      %v9891 = vpop.f32.mrf.mxu0
      %9892 = vdwg.mxu0
      %v9893 = vadd.f32 %v9732, %v9806
      %v9894 = vadd.f32 %v9733, %v9808
      %v9895 = vadd.f32 %v9734, %v9847
      %v9896 = vadd.f32 %v9735, %v9849
      %v9897 = vadd.f32 %v9736, %v9888
      %9898 = vrot.lane.b32.xlu0 %v8927, 80
      %v9899 = vpop.permute.xlu0 %9898
      %9900 = vrot.lane.b32.xlu0 %v6337, 45
      %v9901 = vpop.permute.xlu0 %9900
      %9902 = vrot.lane.b32.xlu0 %v6338, 45
      %v9903 = vpop.permute.xlu0 %9902
      %9904 = vrot.lane.b32.xlu0 %v6339, 45
      %v9905 = vpop.permute.xlu0 %9904
      %9906 = vrot.lane.b32.xlu0 %v6340, 45
      %v9907 = vpop.permute.xlu0 %9906
      %9908 = vrot.lane.b32.xlu0 %v6341, 45
      %v9909 = vpop.permute.xlu0 %9908
      %v9910 = vsel %vm5141, %v9901, %v9903
      %v9911 = vsel %vm5141, %v9903, %v9905
      %v9912 = vsel %vm5141, %v9905, %v9907
      %v9913 = vsel %vm5141, %v9907, %v9909
      %v9915 = vsel %vm6368, %v9899, 0
      %v9918 = vsel %vm6372, %v9910, 0
      %v9921 = vsel %vm6372, %v9911, 0
      %v9924 = vsel %vm6372, %v9912, 0
      %v9927 = vsel %vm6372, %v9913, 0
      %v9930 = vsel %vm6372, %v9909, 0
      %9932 = vmatprep.subr.bf16.mxu0 0
      %9933 = vmatpush1.bf16.msra.mxu0 0
      %9934 = vmatprep.subr.bf16.mxu0 0
      %9935 = vmatpush1.bf16.msra.mxu0 0
      %9936 = vmatprep.subr.bf16.mxu0 0
      %9937 = vmatpush1.bf16.msra.mxu0 0
      %9938 = vmatprep.subr.bf16.mxu0 0
      %9939 = vmatpush1.bf16.msra.mxu0 0
      %9940 = vmatprep.subr.bf16.mxu0 0
      %9941 = vmatpush1.bf16.msra.mxu0 0
      %9942 = vmatprep.subr.bf16.mxu0 0
      %9943 = vmatpush1.bf16.msra.mxu0 0
      %9944 = vmatprep.subr.bf16.mxu0 0
      %9945 = vmatpush1.bf16.msra.mxu0 0
      %9946 = vmatprep.subr.bf16.mxu0 %v9921
      %9947 = vmatpush1.bf16.msra.mxu0 %v9918
      %9948 = vmatprep.subr.bf16.mxu0 0
      %9949 = vmatpush2.bf16.msra.mxu0 0
      %9950 = vmatprep.subr.bf16.mxu0 0
      %9951 = vmatpush2.bf16.msra.mxu0 0
      %9952 = vmatprep.subr.bf16.mxu0 0
      %9953 = vmatpush2.bf16.msra.mxu0 0
      %9954 = vmatprep.subr.bf16.mxu0 0
      %9955 = vmatpush2.bf16.msra.mxu0 0
      %9956 = vmatprep.subr.bf16.mxu0 0
      %9957 = vmatpush2.bf16.msra.mxu0 0
      %9958 = vmatprep.subr.bf16.mxu0 0
      %9959 = vmatpush2.bf16.msra.mxu0 0
      %9960 = vmatprep.subr.bf16.mxu0 0
      %9961 = vmatpush2.bf16.msra.mxu0 0
      %9962 = vmatprep.subr.bf16.mxu0 0
      %9963 = vmatpush2.bf16.msra.mxu0 0
      %9964 = vmatprep.mubr.bf16.mxu0 0
      %9965 = vmatmul.mubr.bf16.gmra.mxu0 %v9915
      %v9966 = vpop.f32.mrf.mxu0
      %v9967 = vadd.f32 0.0, %v9966
      %v9968 = vpop.f32.mrf.mxu0
      %v9969 = vadd.f32 0.0, %v9968
      %v9970 = vpop.f32.mrf.mxu0
      %v9971 = vpop.f32.mrf.mxu0
      %9972 = vdwg.mxu0
      %9973 = vmatprep.subr.bf16.mxu0 0
      %9974 = vmatpush1.bf16.msra.mxu0 0
      %9975 = vmatprep.subr.bf16.mxu0 0
      %9976 = vmatpush1.bf16.msra.mxu0 0
      %9977 = vmatprep.subr.bf16.mxu0 0
      %9978 = vmatpush1.bf16.msra.mxu0 0
      %9979 = vmatprep.subr.bf16.mxu0 0
      %9980 = vmatpush1.bf16.msra.mxu0 0
      %9981 = vmatprep.subr.bf16.mxu0 0
      %9982 = vmatpush1.bf16.msra.mxu0 0
      %9983 = vmatprep.subr.bf16.mxu0 0
      %9984 = vmatpush1.bf16.msra.mxu0 0
      %9985 = vmatprep.subr.bf16.mxu0 0
      %9986 = vmatpush1.bf16.msra.mxu0 0
      %9987 = vmatprep.subr.bf16.mxu0 %v9927
      %9988 = vmatpush1.bf16.msra.mxu0 %v9924
      %9989 = vmatprep.subr.bf16.mxu0 0
      %9990 = vmatpush2.bf16.msra.mxu0 0
      %9991 = vmatprep.subr.bf16.mxu0 0
      %9992 = vmatpush2.bf16.msra.mxu0 0
      %9993 = vmatprep.subr.bf16.mxu0 0
      %9994 = vmatpush2.bf16.msra.mxu0 0
      %9995 = vmatprep.subr.bf16.mxu0 0
      %9996 = vmatpush2.bf16.msra.mxu0 0
      %9997 = vmatprep.subr.bf16.mxu0 0
      %9998 = vmatpush2.bf16.msra.mxu0 0
      %9999 = vmatprep.subr.bf16.mxu0 0
      %10000 = vmatpush2.bf16.msra.mxu0 0
      %10001 = vmatprep.subr.bf16.mxu0 0
      %10002 = vmatpush2.bf16.msra.mxu0 0
      %10003 = vmatprep.subr.bf16.mxu0 0
      %10004 = vmatpush2.bf16.msra.mxu0 0
      %10005 = vmatprep.mubr.bf16.mxu0 0
      %10006 = vmatmul.mubr.bf16.gmra.mxu0 %v9915
      %v10007 = vpop.f32.mrf.mxu0
      %v10008 = vadd.f32 0.0, %v10007
      %v10009 = vpop.f32.mrf.mxu0
      %v10010 = vadd.f32 0.0, %v10009
      %v10011 = vpop.f32.mrf.mxu0
      %v10012 = vpop.f32.mrf.mxu0
      %10013 = vdwg.mxu0
      %10014 = vmatprep.subr.bf16.mxu0 0
      %10015 = vmatpush1.bf16.msra.mxu0 0
      %10016 = vmatprep.subr.bf16.mxu0 0
      %10017 = vmatpush1.bf16.msra.mxu0 0
      %10018 = vmatprep.subr.bf16.mxu0 0
      %10019 = vmatpush1.bf16.msra.mxu0 0
      %10020 = vmatprep.subr.bf16.mxu0 0
      %10021 = vmatpush1.bf16.msra.mxu0 0
      %10022 = vmatprep.subr.bf16.mxu0 0
      %10023 = vmatpush1.bf16.msra.mxu0 0
      %10024 = vmatprep.subr.bf16.mxu0 0
      %10025 = vmatpush1.bf16.msra.mxu0 0
      %10026 = vmatprep.subr.bf16.mxu0 0
      %10027 = vmatpush1.bf16.msra.mxu0 0
      %10028 = vmatprep.subr.bf16.mxu0 0
      %10029 = vmatpush1.bf16.msra.mxu0 %v9930
      %10030 = vmatprep.subr.bf16.mxu0 0
      %10031 = vmatpush2.bf16.msra.mxu0 0
      %10032 = vmatprep.subr.bf16.mxu0 0
      %10033 = vmatpush2.bf16.msra.mxu0 0
      %10034 = vmatprep.subr.bf16.mxu0 0
      %10035 = vmatpush2.bf16.msra.mxu0 0
      %10036 = vmatprep.subr.bf16.mxu0 0
      %10037 = vmatpush2.bf16.msra.mxu0 0
      %10038 = vmatprep.subr.bf16.mxu0 0
      %10039 = vmatpush2.bf16.msra.mxu0 0
      %10040 = vmatprep.subr.bf16.mxu0 0
      %10041 = vmatpush2.bf16.msra.mxu0 0
      %10042 = vmatprep.subr.bf16.mxu0 0
      %10043 = vmatpush2.bf16.msra.mxu0 0
      %10044 = vmatprep.subr.bf16.mxu0 0
      %10045 = vmatpush2.bf16.msra.mxu0 0
      %10046 = vmatprep.mubr.bf16.mxu0 0
      %10047 = vmatmul.mubr.bf16.gmra.mxu0 %v9915
      %v10048 = vpop.f32.mrf.mxu0
      %v10049 = vadd.f32 0.0, %v10048
      %v10050 = vpop.f32.mrf.mxu0
      %v10051 = vpop.f32.mrf.mxu0
      %v10052 = vpop.f32.mrf.mxu0
      %10053 = vdwg.mxu0
      %v10054 = vadd.f32 %v9893, %v9967
      %v10055 = vadd.f32 %v9894, %v9969
      %v10056 = vadd.f32 %v9895, %v10008
      %v10057 = vadd.f32 %v9896, %v10010
      %v10058 = vadd.f32 %v9897, %v10049
      %10059 = vrot.lane.b32.xlu0 %v8927, 72
      %v10060 = vpop.permute.xlu0 %10059
      %10061 = vrot.lane.b32.xlu0 %v6337, 44
      %v10062 = vpop.permute.xlu0 %10061
      %10063 = vrot.lane.b32.xlu0 %v6338, 44
      %v10064 = vpop.permute.xlu0 %10063
      %10065 = vrot.lane.b32.xlu0 %v6339, 44
      %v10066 = vpop.permute.xlu0 %10065
      %10067 = vrot.lane.b32.xlu0 %v6340, 44
      %v10068 = vpop.permute.xlu0 %10067
      %10069 = vrot.lane.b32.xlu0 %v6341, 44
      %v10070 = vpop.permute.xlu0 %10069
      %v10071 = vsel %vm5358, %v10062, %v10064
      %v10072 = vsel %vm5358, %v10064, %v10066
      %v10073 = vsel %vm5358, %v10066, %v10068
      %v10074 = vsel %vm5358, %v10068, %v10070
      %v10076 = vsel %vm6368, %v10060, 0
      %v10079 = vsel %vm6372, %v10071, 0
      %v10082 = vsel %vm6372, %v10072, 0
      %v10085 = vsel %vm6372, %v10073, 0
      %v10088 = vsel %vm6372, %v10074, 0
      %v10091 = vsel %vm6372, %v10070, 0
      %10093 = vmatprep.subr.bf16.mxu0 0
      %10094 = vmatpush1.bf16.msra.mxu0 0
      %10095 = vmatprep.subr.bf16.mxu0 0
      %10096 = vmatpush1.bf16.msra.mxu0 0
      %10097 = vmatprep.subr.bf16.mxu0 0
      %10098 = vmatpush1.bf16.msra.mxu0 0
      %10099 = vmatprep.subr.bf16.mxu0 0
      %10100 = vmatpush1.bf16.msra.mxu0 0
      %10101 = vmatprep.subr.bf16.mxu0 0
      %10102 = vmatpush1.bf16.msra.mxu0 0
      %10103 = vmatprep.subr.bf16.mxu0 0
      %10104 = vmatpush1.bf16.msra.mxu0 0
      %10105 = vmatprep.subr.bf16.mxu0 0
      %10106 = vmatpush1.bf16.msra.mxu0 0
      %10107 = vmatprep.subr.bf16.mxu0 %v10082
      %10108 = vmatpush1.bf16.msra.mxu0 %v10079
      %10109 = vmatprep.subr.bf16.mxu0 0
      %10110 = vmatpush2.bf16.msra.mxu0 0
      %10111 = vmatprep.subr.bf16.mxu0 0
      %10112 = vmatpush2.bf16.msra.mxu0 0
      %10113 = vmatprep.subr.bf16.mxu0 0
      %10114 = vmatpush2.bf16.msra.mxu0 0
      %10115 = vmatprep.subr.bf16.mxu0 0
      %10116 = vmatpush2.bf16.msra.mxu0 0
      %10117 = vmatprep.subr.bf16.mxu0 0
      %10118 = vmatpush2.bf16.msra.mxu0 0
      %10119 = vmatprep.subr.bf16.mxu0 0
      %10120 = vmatpush2.bf16.msra.mxu0 0
      %10121 = vmatprep.subr.bf16.mxu0 0
      %10122 = vmatpush2.bf16.msra.mxu0 0
      %10123 = vmatprep.subr.bf16.mxu0 0
      %10124 = vmatpush2.bf16.msra.mxu0 0
      %10125 = vmatprep.mubr.bf16.mxu0 0
      %10126 = vmatmul.mubr.bf16.gmra.mxu0 %v10076
      %v10127 = vpop.f32.mrf.mxu0
      %v10128 = vadd.f32 0.0, %v10127
      %v10129 = vpop.f32.mrf.mxu0
      %v10130 = vadd.f32 0.0, %v10129
      %v10131 = vpop.f32.mrf.mxu0
      %v10132 = vpop.f32.mrf.mxu0
      %10133 = vdwg.mxu0
      %10134 = vmatprep.subr.bf16.mxu0 0
      %10135 = vmatpush1.bf16.msra.mxu0 0
      %10136 = vmatprep.subr.bf16.mxu0 0
      %10137 = vmatpush1.bf16.msra.mxu0 0
      %10138 = vmatprep.subr.bf16.mxu0 0
      %10139 = vmatpush1.bf16.msra.mxu0 0
      %10140 = vmatprep.subr.bf16.mxu0 0
      %10141 = vmatpush1.bf16.msra.mxu0 0
      %10142 = vmatprep.subr.bf16.mxu0 0
      %10143 = vmatpush1.bf16.msra.mxu0 0
      %10144 = vmatprep.subr.bf16.mxu0 0
      %10145 = vmatpush1.bf16.msra.mxu0 0
      %10146 = vmatprep.subr.bf16.mxu0 0
      %10147 = vmatpush1.bf16.msra.mxu0 0
      %10148 = vmatprep.subr.bf16.mxu0 %v10088
      %10149 = vmatpush1.bf16.msra.mxu0 %v10085
      %10150 = vmatprep.subr.bf16.mxu0 0
      %10151 = vmatpush2.bf16.msra.mxu0 0
      %10152 = vmatprep.subr.bf16.mxu0 0
      %10153 = vmatpush2.bf16.msra.mxu0 0
      %10154 = vmatprep.subr.bf16.mxu0 0
      %10155 = vmatpush2.bf16.msra.mxu0 0
      %10156 = vmatprep.subr.bf16.mxu0 0
      %10157 = vmatpush2.bf16.msra.mxu0 0
      %10158 = vmatprep.subr.bf16.mxu0 0
      %10159 = vmatpush2.bf16.msra.mxu0 0
      %10160 = vmatprep.subr.bf16.mxu0 0
      %10161 = vmatpush2.bf16.msra.mxu0 0
      %10162 = vmatprep.subr.bf16.mxu0 0
      %10163 = vmatpush2.bf16.msra.mxu0 0
      %10164 = vmatprep.subr.bf16.mxu0 0
      %10165 = vmatpush2.bf16.msra.mxu0 0
      %10166 = vmatprep.mubr.bf16.mxu0 0
      %10167 = vmatmul.mubr.bf16.gmra.mxu0 %v10076
      %v10168 = vpop.f32.mrf.mxu0
      %v10169 = vadd.f32 0.0, %v10168
      %v10170 = vpop.f32.mrf.mxu0
      %v10171 = vadd.f32 0.0, %v10170
      %v10172 = vpop.f32.mrf.mxu0
      %v10173 = vpop.f32.mrf.mxu0
      %10174 = vdwg.mxu0
      %10175 = vmatprep.subr.bf16.mxu0 0
      %10176 = vmatpush1.bf16.msra.mxu0 0
      %10177 = vmatprep.subr.bf16.mxu0 0
      %10178 = vmatpush1.bf16.msra.mxu0 0
      %10179 = vmatprep.subr.bf16.mxu0 0
      %10180 = vmatpush1.bf16.msra.mxu0 0
      %10181 = vmatprep.subr.bf16.mxu0 0
      %10182 = vmatpush1.bf16.msra.mxu0 0
      %10183 = vmatprep.subr.bf16.mxu0 0
      %10184 = vmatpush1.bf16.msra.mxu0 0
      %10185 = vmatprep.subr.bf16.mxu0 0
      %10186 = vmatpush1.bf16.msra.mxu0 0
      %10187 = vmatprep.subr.bf16.mxu0 0
      %10188 = vmatpush1.bf16.msra.mxu0 0
      %10189 = vmatprep.subr.bf16.mxu0 0
      %10190 = vmatpush1.bf16.msra.mxu0 %v10091
      %10191 = vmatprep.subr.bf16.mxu0 0
      %10192 = vmatpush2.bf16.msra.mxu0 0
      %10193 = vmatprep.subr.bf16.mxu0 0
      %10194 = vmatpush2.bf16.msra.mxu0 0
      %10195 = vmatprep.subr.bf16.mxu0 0
      %10196 = vmatpush2.bf16.msra.mxu0 0
      %10197 = vmatprep.subr.bf16.mxu0 0
      %10198 = vmatpush2.bf16.msra.mxu0 0
      %10199 = vmatprep.subr.bf16.mxu0 0
      %10200 = vmatpush2.bf16.msra.mxu0 0
      %10201 = vmatprep.subr.bf16.mxu0 0
      %10202 = vmatpush2.bf16.msra.mxu0 0
      %10203 = vmatprep.subr.bf16.mxu0 0
      %10204 = vmatpush2.bf16.msra.mxu0 0
      %10205 = vmatprep.subr.bf16.mxu0 0
      %10206 = vmatpush2.bf16.msra.mxu0 0
      %10207 = vmatprep.mubr.bf16.mxu0 0
      %10208 = vmatmul.mubr.bf16.gmra.mxu0 %v10076
      %v10209 = vpop.f32.mrf.mxu0
      %v10210 = vadd.f32 0.0, %v10209
      %v10211 = vpop.f32.mrf.mxu0
      %v10212 = vpop.f32.mrf.mxu0
      %v10213 = vpop.f32.mrf.mxu0
      %10214 = vdwg.mxu0
      %v10215 = vadd.f32 %v10054, %v10128
      %v10216 = vadd.f32 %v10055, %v10130
      %v10217 = vadd.f32 %v10056, %v10169
      %v10218 = vadd.f32 %v10057, %v10171
      %v10219 = vadd.f32 %v10058, %v10210
      %10220 = vrot.lane.b32.xlu0 %v8927, 64
      %v10221 = vpop.permute.xlu0 %10220
      %10223 = vrot.lane.b32.xlu0 %v6337, 36
      %v10224 = vpop.permute.xlu0 %10223
      %10225 = vrot.lane.b32.xlu0 %v6338, 36
      %v10226 = vpop.permute.xlu0 %10225
      %10227 = vrot.lane.b32.xlu0 %v6339, 36
      %v10228 = vpop.permute.xlu0 %10227
      %10229 = vrot.lane.b32.xlu0 %v6340, 36
      %v10230 = vpop.permute.xlu0 %10229
      %10231 = vrot.lane.b32.xlu0 %v6341, 36
      %v10232 = vpop.permute.xlu0 %10231
      %10233 = vrot.lane.b32.xlu0 %v6342, 36
      %v10234 = vpop.permute.xlu0 %10233
      %v10235 = vsel %vm5575, %v10224, %v10226
      %v10236 = vsel %vm5575, %v10226, %v10228
      %v10237 = vsel %vm5575, %v10228, %v10230
      %v10238 = vsel %vm5575, %v10230, %v10232
      %v10239 = vsel %vm5575, %v10232, %v10234
      %v10241 = vsel %vm6368, %v10221, 0
      %v10244 = vsel %vm6372, %v10235, 0
      %v10247 = vsel %vm6372, %v10236, 0
      %v10250 = vsel %vm6372, %v10237, 0
      %v10253 = vsel %vm6372, %v10238, 0
      %v10256 = vsel %vm6372, %v10239, 0
      %10258 = vmatprep.subr.bf16.mxu0 0
      %10259 = vmatpush1.bf16.msra.mxu0 0
      %10260 = vmatprep.subr.bf16.mxu0 0
      %10261 = vmatpush1.bf16.msra.mxu0 0
      %10262 = vmatprep.subr.bf16.mxu0 0
      %10263 = vmatpush1.bf16.msra.mxu0 0
      %10264 = vmatprep.subr.bf16.mxu0 0
      %10265 = vmatpush1.bf16.msra.mxu0 0
      %10266 = vmatprep.subr.bf16.mxu0 0
      %10267 = vmatpush1.bf16.msra.mxu0 0
      %10268 = vmatprep.subr.bf16.mxu0 0
      %10269 = vmatpush1.bf16.msra.mxu0 0
      %10270 = vmatprep.subr.bf16.mxu0 0
      %10271 = vmatpush1.bf16.msra.mxu0 0
      %10272 = vmatprep.subr.bf16.mxu0 %v10247
      %10273 = vmatpush1.bf16.msra.mxu0 %v10244
      %10274 = vmatprep.subr.bf16.mxu0 0
      %10275 = vmatpush2.bf16.msra.mxu0 0
      %10276 = vmatprep.subr.bf16.mxu0 0
      %10277 = vmatpush2.bf16.msra.mxu0 0
      %10278 = vmatprep.subr.bf16.mxu0 0
      %10279 = vmatpush2.bf16.msra.mxu0 0
      %10280 = vmatprep.subr.bf16.mxu0 0
      %10281 = vmatpush2.bf16.msra.mxu0 0
      %10282 = vmatprep.subr.bf16.mxu0 0
      %10283 = vmatpush2.bf16.msra.mxu0 0
      %10284 = vmatprep.subr.bf16.mxu0 0
      %10285 = vmatpush2.bf16.msra.mxu0 0
      %10286 = vmatprep.subr.bf16.mxu0 0
      %10287 = vmatpush2.bf16.msra.mxu0 0
      %10288 = vmatprep.subr.bf16.mxu0 0
      %10289 = vmatpush2.bf16.msra.mxu0 0
      %10290 = vmatprep.mubr.bf16.mxu0 0
      %10291 = vmatmul.mubr.bf16.gmra.mxu0 %v10241
      %v10292 = vpop.f32.mrf.mxu0
      %v10293 = vadd.f32 0.0, %v10292
      %v10294 = vpop.f32.mrf.mxu0
      %v10295 = vadd.f32 0.0, %v10294
      %v10296 = vpop.f32.mrf.mxu0
      %v10297 = vpop.f32.mrf.mxu0
      %10298 = vdwg.mxu0
      %10299 = vmatprep.subr.bf16.mxu0 0
      %10300 = vmatpush1.bf16.msra.mxu0 0
      %10301 = vmatprep.subr.bf16.mxu0 0
      %10302 = vmatpush1.bf16.msra.mxu0 0
      %10303 = vmatprep.subr.bf16.mxu0 0
      %10304 = vmatpush1.bf16.msra.mxu0 0
      %10305 = vmatprep.subr.bf16.mxu0 0
      %10306 = vmatpush1.bf16.msra.mxu0 0
      %10307 = vmatprep.subr.bf16.mxu0 0
      %10308 = vmatpush1.bf16.msra.mxu0 0
      %10309 = vmatprep.subr.bf16.mxu0 0
      %10310 = vmatpush1.bf16.msra.mxu0 0
      %10311 = vmatprep.subr.bf16.mxu0 0
      %10312 = vmatpush1.bf16.msra.mxu0 0
      %10313 = vmatprep.subr.bf16.mxu0 %v10253
      %10314 = vmatpush1.bf16.msra.mxu0 %v10250
      %10315 = vmatprep.subr.bf16.mxu0 0
      %10316 = vmatpush2.bf16.msra.mxu0 0
      %10317 = vmatprep.subr.bf16.mxu0 0
      %10318 = vmatpush2.bf16.msra.mxu0 0
      %10319 = vmatprep.subr.bf16.mxu0 0
      %10320 = vmatpush2.bf16.msra.mxu0 0
      %10321 = vmatprep.subr.bf16.mxu0 0
      %10322 = vmatpush2.bf16.msra.mxu0 0
      %10323 = vmatprep.subr.bf16.mxu0 0
      %10324 = vmatpush2.bf16.msra.mxu0 0
      %10325 = vmatprep.subr.bf16.mxu0 0
      %10326 = vmatpush2.bf16.msra.mxu0 0
      %10327 = vmatprep.subr.bf16.mxu0 0
      %10328 = vmatpush2.bf16.msra.mxu0 0
      %10329 = vmatprep.subr.bf16.mxu0 0
      %10330 = vmatpush2.bf16.msra.mxu0 0
      %10331 = vmatprep.mubr.bf16.mxu0 0
      %10332 = vmatmul.mubr.bf16.gmra.mxu0 %v10241
      %v10333 = vpop.f32.mrf.mxu0
      %v10334 = vadd.f32 0.0, %v10333
      %v10335 = vpop.f32.mrf.mxu0
      %v10336 = vadd.f32 0.0, %v10335
      %v10337 = vpop.f32.mrf.mxu0
      %v10338 = vpop.f32.mrf.mxu0
      %10339 = vdwg.mxu0
      %10340 = vmatprep.subr.bf16.mxu0 0
      %10341 = vmatpush1.bf16.msra.mxu0 0
      %10342 = vmatprep.subr.bf16.mxu0 0
      %10343 = vmatpush1.bf16.msra.mxu0 0
      %10344 = vmatprep.subr.bf16.mxu0 0
      %10345 = vmatpush1.bf16.msra.mxu0 0
      %10346 = vmatprep.subr.bf16.mxu0 0
      %10347 = vmatpush1.bf16.msra.mxu0 0
      %10348 = vmatprep.subr.bf16.mxu0 0
      %10349 = vmatpush1.bf16.msra.mxu0 0
      %10350 = vmatprep.subr.bf16.mxu0 0
      %10351 = vmatpush1.bf16.msra.mxu0 0
      %10352 = vmatprep.subr.bf16.mxu0 0
      %10353 = vmatpush1.bf16.msra.mxu0 0
      %10354 = vmatprep.subr.bf16.mxu0 0
      %10355 = vmatpush1.bf16.msra.mxu0 %v10256
      %10356 = vmatprep.subr.bf16.mxu0 0
      %10357 = vmatpush2.bf16.msra.mxu0 0
      %10358 = vmatprep.subr.bf16.mxu0 0
      %10359 = vmatpush2.bf16.msra.mxu0 0
      %10360 = vmatprep.subr.bf16.mxu0 0
      %10361 = vmatpush2.bf16.msra.mxu0 0
      %10362 = vmatprep.subr.bf16.mxu0 0
      %10363 = vmatpush2.bf16.msra.mxu0 0
      %10364 = vmatprep.subr.bf16.mxu0 0
      %10365 = vmatpush2.bf16.msra.mxu0 0
      %10366 = vmatprep.subr.bf16.mxu0 0
      %10367 = vmatpush2.bf16.msra.mxu0 0
      %10368 = vmatprep.subr.bf16.mxu0 0
      %10369 = vmatpush2.bf16.msra.mxu0 0
      %10370 = vmatprep.subr.bf16.mxu0 0
      %10371 = vmatpush2.bf16.msra.mxu0 0
      %10372 = vmatprep.mubr.bf16.mxu0 0
      %10373 = vmatmul.mubr.bf16.gmra.mxu0 %v10241
      %v10374 = vpop.f32.mrf.mxu0
      %v10375 = vadd.f32 0.0, %v10374
      %v10376 = vpop.f32.mrf.mxu0
      %v10377 = vpop.f32.mrf.mxu0
      %v10378 = vpop.f32.mrf.mxu0
      %10379 = vdwg.mxu0
      %v10380 = vadd.f32 %v10215, %v10293
      %v10381 = vadd.f32 %v10216, %v10295
      %v10382 = vadd.f32 %v10217, %v10334
      %v10383 = vadd.f32 %v10218, %v10336
      %v10384 = vadd.f32 %v10219, %v10375
      %10385 = vrot.lane.b32.xlu0 %v8927, 56
      %v10386 = vpop.permute.xlu0 %10385
      %10387 = vrot.lane.b32.xlu0 %v6337, 35
      %v10388 = vpop.permute.xlu0 %10387
      %10389 = vrot.lane.b32.xlu0 %v6338, 35
      %v10390 = vpop.permute.xlu0 %10389
      %10391 = vrot.lane.b32.xlu0 %v6339, 35
      %v10392 = vpop.permute.xlu0 %10391
      %10393 = vrot.lane.b32.xlu0 %v6340, 35
      %v10394 = vpop.permute.xlu0 %10393
      %10395 = vrot.lane.b32.xlu0 %v6341, 35
      %v10396 = vpop.permute.xlu0 %10395
      %10397 = vrot.lane.b32.xlu0 %v6342, 35
      %v10398 = vpop.permute.xlu0 %10397
      %v10399 = vsel %vm5792, %v10388, %v10390
      %v10400 = vsel %vm5792, %v10390, %v10392
      %v10401 = vsel %vm5792, %v10392, %v10394
      %v10402 = vsel %vm5792, %v10394, %v10396
      %v10403 = vsel %vm5792, %v10396, %v10398
      %v10405 = vsel %vm6368, %v10386, 0
      %v10408 = vsel %vm6372, %v10399, 0
      %v10411 = vsel %vm6372, %v10400, 0
      %v10414 = vsel %vm6372, %v10401, 0
      %v10417 = vsel %vm6372, %v10402, 0
      %v10420 = vsel %vm6372, %v10403, 0
      %10422 = vmatprep.subr.bf16.mxu0 0
      %10423 = vmatpush1.bf16.msra.mxu0 0
      %10424 = vmatprep.subr.bf16.mxu0 0
      %10425 = vmatpush1.bf16.msra.mxu0 0
      %10426 = vmatprep.subr.bf16.mxu0 0
      %10427 = vmatpush1.bf16.msra.mxu0 0
      %10428 = vmatprep.subr.bf16.mxu0 0
      %10429 = vmatpush1.bf16.msra.mxu0 0
      %10430 = vmatprep.subr.bf16.mxu0 0
      %10431 = vmatpush1.bf16.msra.mxu0 0
      %10432 = vmatprep.subr.bf16.mxu0 0
      %10433 = vmatpush1.bf16.msra.mxu0 0
      %10434 = vmatprep.subr.bf16.mxu0 0
      %10435 = vmatpush1.bf16.msra.mxu0 0
      %10436 = vmatprep.subr.bf16.mxu0 %v10411
      %10437 = vmatpush1.bf16.msra.mxu0 %v10408
      %10438 = vmatprep.subr.bf16.mxu0 0
      %10439 = vmatpush2.bf16.msra.mxu0 0
      %10440 = vmatprep.subr.bf16.mxu0 0
      %10441 = vmatpush2.bf16.msra.mxu0 0
      %10442 = vmatprep.subr.bf16.mxu0 0
      %10443 = vmatpush2.bf16.msra.mxu0 0
      %10444 = vmatprep.subr.bf16.mxu0 0
      %10445 = vmatpush2.bf16.msra.mxu0 0
      %10446 = vmatprep.subr.bf16.mxu0 0
      %10447 = vmatpush2.bf16.msra.mxu0 0
      %10448 = vmatprep.subr.bf16.mxu0 0
      %10449 = vmatpush2.bf16.msra.mxu0 0
      %10450 = vmatprep.subr.bf16.mxu0 0
      %10451 = vmatpush2.bf16.msra.mxu0 0
      %10452 = vmatprep.subr.bf16.mxu0 0
      %10453 = vmatpush2.bf16.msra.mxu0 0
      %10454 = vmatprep.mubr.bf16.mxu0 0
      %10455 = vmatmul.mubr.bf16.gmra.mxu0 %v10405
      %v10456 = vpop.f32.mrf.mxu0
      %v10457 = vadd.f32 0.0, %v10456
      %v10458 = vpop.f32.mrf.mxu0
      %v10459 = vadd.f32 0.0, %v10458
      %v10460 = vpop.f32.mrf.mxu0
      %v10461 = vpop.f32.mrf.mxu0
      %10462 = vdwg.mxu0
      %10463 = vmatprep.subr.bf16.mxu0 0
      %10464 = vmatpush1.bf16.msra.mxu0 0
      %10465 = vmatprep.subr.bf16.mxu0 0
      %10466 = vmatpush1.bf16.msra.mxu0 0
      %10467 = vmatprep.subr.bf16.mxu0 0
      %10468 = vmatpush1.bf16.msra.mxu0 0
      %10469 = vmatprep.subr.bf16.mxu0 0
      %10470 = vmatpush1.bf16.msra.mxu0 0
      %10471 = vmatprep.subr.bf16.mxu0 0
      %10472 = vmatpush1.bf16.msra.mxu0 0
      %10473 = vmatprep.subr.bf16.mxu0 0
      %10474 = vmatpush1.bf16.msra.mxu0 0
      %10475 = vmatprep.subr.bf16.mxu0 0
      %10476 = vmatpush1.bf16.msra.mxu0 0
      %10477 = vmatprep.subr.bf16.mxu0 %v10417
      %10478 = vmatpush1.bf16.msra.mxu0 %v10414
      %10479 = vmatprep.subr.bf16.mxu0 0
      %10480 = vmatpush2.bf16.msra.mxu0 0
      %10481 = vmatprep.subr.bf16.mxu0 0
      %10482 = vmatpush2.bf16.msra.mxu0 0
      %10483 = vmatprep.subr.bf16.mxu0 0
      %10484 = vmatpush2.bf16.msra.mxu0 0
      %10485 = vmatprep.subr.bf16.mxu0 0
      %10486 = vmatpush2.bf16.msra.mxu0 0
      %10487 = vmatprep.subr.bf16.mxu0 0
      %10488 = vmatpush2.bf16.msra.mxu0 0
      %10489 = vmatprep.subr.bf16.mxu0 0
      %10490 = vmatpush2.bf16.msra.mxu0 0
      %10491 = vmatprep.subr.bf16.mxu0 0
      %10492 = vmatpush2.bf16.msra.mxu0 0
      %10493 = vmatprep.subr.bf16.mxu0 0
      %10494 = vmatpush2.bf16.msra.mxu0 0
      %10495 = vmatprep.mubr.bf16.mxu0 0
      %10496 = vmatmul.mubr.bf16.gmra.mxu0 %v10405
      %v10497 = vpop.f32.mrf.mxu0
      %v10498 = vadd.f32 0.0, %v10497
      %v10499 = vpop.f32.mrf.mxu0
      %v10500 = vadd.f32 0.0, %v10499
      %v10501 = vpop.f32.mrf.mxu0
      %v10502 = vpop.f32.mrf.mxu0
      %10503 = vdwg.mxu0
      %10504 = vmatprep.subr.bf16.mxu0 0
      %10505 = vmatpush1.bf16.msra.mxu0 0
      %10506 = vmatprep.subr.bf16.mxu0 0
      %10507 = vmatpush1.bf16.msra.mxu0 0
      %10508 = vmatprep.subr.bf16.mxu0 0
      %10509 = vmatpush1.bf16.msra.mxu0 0
      %10510 = vmatprep.subr.bf16.mxu0 0
      %10511 = vmatpush1.bf16.msra.mxu0 0
      %10512 = vmatprep.subr.bf16.mxu0 0
      %10513 = vmatpush1.bf16.msra.mxu0 0
      %10514 = vmatprep.subr.bf16.mxu0 0
      %10515 = vmatpush1.bf16.msra.mxu0 0
      %10516 = vmatprep.subr.bf16.mxu0 0
      %10517 = vmatpush1.bf16.msra.mxu0 0
      %10518 = vmatprep.subr.bf16.mxu0 0
      %10519 = vmatpush1.bf16.msra.mxu0 %v10420
      %10520 = vmatprep.subr.bf16.mxu0 0
      %10521 = vmatpush2.bf16.msra.mxu0 0
      %10522 = vmatprep.subr.bf16.mxu0 0
      %10523 = vmatpush2.bf16.msra.mxu0 0
      %10524 = vmatprep.subr.bf16.mxu0 0
      %10525 = vmatpush2.bf16.msra.mxu0 0
      %10526 = vmatprep.subr.bf16.mxu0 0
      %10527 = vmatpush2.bf16.msra.mxu0 0
      %10528 = vmatprep.subr.bf16.mxu0 0
      %10529 = vmatpush2.bf16.msra.mxu0 0
      %10530 = vmatprep.subr.bf16.mxu0 0
      %10531 = vmatpush2.bf16.msra.mxu0 0
      %10532 = vmatprep.subr.bf16.mxu0 0
      %10533 = vmatpush2.bf16.msra.mxu0 0
      %10534 = vmatprep.subr.bf16.mxu0 0
      %10535 = vmatpush2.bf16.msra.mxu0 0
      %10536 = vmatprep.mubr.bf16.mxu0 0
      %10537 = vmatmul.mubr.bf16.gmra.mxu0 %v10405
      %v10538 = vpop.f32.mrf.mxu0
      %v10539 = vadd.f32 0.0, %v10538
      %v10540 = vpop.f32.mrf.mxu0
      %v10541 = vpop.f32.mrf.mxu0
      %v10542 = vpop.f32.mrf.mxu0
      %10543 = vdwg.mxu0
      %v10544 = vadd.f32 %v10380, %v10457
      %v10545 = vadd.f32 %v10381, %v10459
      %v10546 = vadd.f32 %v10382, %v10498
      %v10547 = vadd.f32 %v10383, %v10500
      %v10548 = vadd.f32 %v10384, %v10539
      %10549 = vrot.lane.b32.xlu0 %v8927, 48
      %v10550 = vpop.permute.xlu0 %10549
      %10551 = vrot.lane.b32.xlu0 %v6337, 34
      %v10552 = vpop.permute.xlu0 %10551
      %10553 = vrot.lane.b32.xlu0 %v6338, 34
      %v10554 = vpop.permute.xlu0 %10553
      %10555 = vrot.lane.b32.xlu0 %v6339, 34
      %v10556 = vpop.permute.xlu0 %10555
      %10557 = vrot.lane.b32.xlu0 %v6340, 34
      %v10558 = vpop.permute.xlu0 %10557
      %10559 = vrot.lane.b32.xlu0 %v6341, 34
      %v10560 = vpop.permute.xlu0 %10559
      %10561 = vrot.lane.b32.xlu0 %v6342, 34
      %v10562 = vpop.permute.xlu0 %10561
      %v10563 = vsel %vm6009, %v10552, %v10554
      %v10564 = vsel %vm6009, %v10554, %v10556
      %v10565 = vsel %vm6009, %v10556, %v10558
      %v10566 = vsel %vm6009, %v10558, %v10560
      %v10567 = vsel %vm6009, %v10560, %v10562
      %v10569 = vsel %vm6368, %v10550, 0
      %v10572 = vsel %vm6372, %v10563, 0
      %v10575 = vsel %vm6372, %v10564, 0
      %v10578 = vsel %vm6372, %v10565, 0
      %v10581 = vsel %vm6372, %v10566, 0
      %v10584 = vsel %vm6372, %v10567, 0
      %10586 = vmatprep.subr.bf16.mxu0 0
      %10587 = vmatpush1.bf16.msra.mxu0 0
      %10588 = vmatprep.subr.bf16.mxu0 0
      %10589 = vmatpush1.bf16.msra.mxu0 0
      %10590 = vmatprep.subr.bf16.mxu0 0
      %10591 = vmatpush1.bf16.msra.mxu0 0
      %10592 = vmatprep.subr.bf16.mxu0 0
      %10593 = vmatpush1.bf16.msra.mxu0 0
      %10594 = vmatprep.subr.bf16.mxu0 0
      %10595 = vmatpush1.bf16.msra.mxu0 0
      %10596 = vmatprep.subr.bf16.mxu0 0
      %10597 = vmatpush1.bf16.msra.mxu0 0
      %10598 = vmatprep.subr.bf16.mxu0 0
      %10599 = vmatpush1.bf16.msra.mxu0 0
      %10600 = vmatprep.subr.bf16.mxu0 %v10575
      %10601 = vmatpush1.bf16.msra.mxu0 %v10572
      %10602 = vmatprep.subr.bf16.mxu0 0
      %10603 = vmatpush2.bf16.msra.mxu0 0
      %10604 = vmatprep.subr.bf16.mxu0 0
      %10605 = vmatpush2.bf16.msra.mxu0 0
      %10606 = vmatprep.subr.bf16.mxu0 0
      %10607 = vmatpush2.bf16.msra.mxu0 0
      %10608 = vmatprep.subr.bf16.mxu0 0
      %10609 = vmatpush2.bf16.msra.mxu0 0
      %10610 = vmatprep.subr.bf16.mxu0 0
      %10611 = vmatpush2.bf16.msra.mxu0 0
      %10612 = vmatprep.subr.bf16.mxu0 0
      %10613 = vmatpush2.bf16.msra.mxu0 0
      %10614 = vmatprep.subr.bf16.mxu0 0
      %10615 = vmatpush2.bf16.msra.mxu0 0
      %10616 = vmatprep.subr.bf16.mxu0 0
      %10617 = vmatpush2.bf16.msra.mxu0 0
      %10618 = vmatprep.mubr.bf16.mxu0 0
      %10619 = vmatmul.mubr.bf16.gmra.mxu0 %v10569
      %v10620 = vpop.f32.mrf.mxu0
      %v10621 = vadd.f32 0.0, %v10620
      %v10622 = vpop.f32.mrf.mxu0
      %v10623 = vadd.f32 0.0, %v10622
      %v10624 = vpop.f32.mrf.mxu0
      %v10625 = vpop.f32.mrf.mxu0
      %10626 = vdwg.mxu0
      %10627 = vmatprep.subr.bf16.mxu0 0
      %10628 = vmatpush1.bf16.msra.mxu0 0
      %10629 = vmatprep.subr.bf16.mxu0 0
      %10630 = vmatpush1.bf16.msra.mxu0 0
      %10631 = vmatprep.subr.bf16.mxu0 0
      %10632 = vmatpush1.bf16.msra.mxu0 0
      %10633 = vmatprep.subr.bf16.mxu0 0
      %10634 = vmatpush1.bf16.msra.mxu0 0
      %10635 = vmatprep.subr.bf16.mxu0 0
      %10636 = vmatpush1.bf16.msra.mxu0 0
      %10637 = vmatprep.subr.bf16.mxu0 0
      %10638 = vmatpush1.bf16.msra.mxu0 0
      %10639 = vmatprep.subr.bf16.mxu0 0
      %10640 = vmatpush1.bf16.msra.mxu0 0
      %10641 = vmatprep.subr.bf16.mxu0 %v10581
      %10642 = vmatpush1.bf16.msra.mxu0 %v10578
      %10643 = vmatprep.subr.bf16.mxu0 0
      %10644 = vmatpush2.bf16.msra.mxu0 0
      %10645 = vmatprep.subr.bf16.mxu0 0
      %10646 = vmatpush2.bf16.msra.mxu0 0
      %10647 = vmatprep.subr.bf16.mxu0 0
      %10648 = vmatpush2.bf16.msra.mxu0 0
      %10649 = vmatprep.subr.bf16.mxu0 0
      %10650 = vmatpush2.bf16.msra.mxu0 0
      %10651 = vmatprep.subr.bf16.mxu0 0
      %10652 = vmatpush2.bf16.msra.mxu0 0
      %10653 = vmatprep.subr.bf16.mxu0 0
      %10654 = vmatpush2.bf16.msra.mxu0 0
      %10655 = vmatprep.subr.bf16.mxu0 0
      %10656 = vmatpush2.bf16.msra.mxu0 0
      %10657 = vmatprep.subr.bf16.mxu0 0
      %10658 = vmatpush2.bf16.msra.mxu0 0
      %10659 = vmatprep.mubr.bf16.mxu0 0
      %10660 = vmatmul.mubr.bf16.gmra.mxu0 %v10569
      %v10661 = vpop.f32.mrf.mxu0
      %v10662 = vadd.f32 0.0, %v10661
      %v10663 = vpop.f32.mrf.mxu0
      %v10664 = vadd.f32 0.0, %v10663
      %v10665 = vpop.f32.mrf.mxu0
      %v10666 = vpop.f32.mrf.mxu0
      %10667 = vdwg.mxu0
      %10668 = vmatprep.subr.bf16.mxu0 0
      %10669 = vmatpush1.bf16.msra.mxu0 0
      %10670 = vmatprep.subr.bf16.mxu0 0
      %10671 = vmatpush1.bf16.msra.mxu0 0
      %10672 = vmatprep.subr.bf16.mxu0 0
      %10673 = vmatpush1.bf16.msra.mxu0 0
      %10674 = vmatprep.subr.bf16.mxu0 0
      %10675 = vmatpush1.bf16.msra.mxu0 0
      %10676 = vmatprep.subr.bf16.mxu0 0
      %10677 = vmatpush1.bf16.msra.mxu0 0
      %10678 = vmatprep.subr.bf16.mxu0 0
      %10679 = vmatpush1.bf16.msra.mxu0 0
      %10680 = vmatprep.subr.bf16.mxu0 0
      %10681 = vmatpush1.bf16.msra.mxu0 0
      %10682 = vmatprep.subr.bf16.mxu0 0
      %10683 = vmatpush1.bf16.msra.mxu0 %v10584
      %10684 = vmatprep.subr.bf16.mxu0 0
      %10685 = vmatpush2.bf16.msra.mxu0 0
      %10686 = vmatprep.subr.bf16.mxu0 0
      %10687 = vmatpush2.bf16.msra.mxu0 0
      %10688 = vmatprep.subr.bf16.mxu0 0
      %10689 = vmatpush2.bf16.msra.mxu0 0
      %10690 = vmatprep.subr.bf16.mxu0 0
      %10691 = vmatpush2.bf16.msra.mxu0 0
      %10692 = vmatprep.subr.bf16.mxu0 0
      %10693 = vmatpush2.bf16.msra.mxu0 0
      %10694 = vmatprep.subr.bf16.mxu0 0
      %10695 = vmatpush2.bf16.msra.mxu0 0
      %10696 = vmatprep.subr.bf16.mxu0 0
      %10697 = vmatpush2.bf16.msra.mxu0 0
      %10698 = vmatprep.subr.bf16.mxu0 0
      %10699 = vmatpush2.bf16.msra.mxu0 0
      %10700 = vmatprep.mubr.bf16.mxu0 0
      %10701 = vmatmul.mubr.bf16.gmra.mxu0 %v10569
      %v10702 = vpop.f32.mrf.mxu0
      %v10703 = vadd.f32 0.0, %v10702
      %v10704 = vpop.f32.mrf.mxu0
      %v10705 = vpop.f32.mrf.mxu0
      %v10706 = vpop.f32.mrf.mxu0
      %10707 = vdwg.mxu0
      %v10708 = vadd.f32 %v10544, %v10621
      %v10709 = vadd.f32 %v10545, %v10623
      %v10710 = vadd.f32 %v10546, %v10662
      %v10711 = vadd.f32 %v10547, %v10664
      %v10712 = vadd.f32 %v10548, %v10703
      %v10713 = vld [vmem:[%s8] sm:$0x1f]
      %v10714 = vld [vmem:[%s5] sm:$0xff]
      %v10715 = vld [vmem:[%s6] sm:$0xff]
      %v10717 = vlaneseq
      %v10718 = vshrl.u32 %v10717, 7
      %v10719 = vsub.s32 0, %v10718
      %v10720 = vrot.slane %v10713, %v10719
      %v10721 = vlaneseq
      %v10722 = vshrl.u32 %v10721, 7
      %v10723 = vsub.s32 1, %v10722
      %v10724 = vrot.slane %v10713, %v10723
      %v10725 = vlaneseq
      %v10726 = vshrl.u32 %v10725, 7
      %v10727 = vsub.s32 2, %v10726
      %v10728 = vrot.slane %v10713, %v10727
      %v10729 = vlaneseq
      %v10730 = vshrl.u32 %v10729, 7
      %v10731 = vsub.s32 3, %v10730
      %v10732 = vrot.slane %v10713, %v10731
      %v10733 = vlaneseq
      %v10734 = vshrl.u32 %v10733, 7
      %v10735 = vsub.s32 4, %v10734
      %v10736 = vrot.slane %v10713, %v10735
      %v10742 = vmul.f32 %v10708, %v10720
      %v10743 = vmul.f32 %v10709, %v10724
      %v10744 = vmul.f32 %v10710, %v10728
      %v10745 = vmul.f32 %v10711, %v10732
      %v10746 = vmul.f32 %v10712, %v10736
      %v10747 = vadd.f32 %v10742, %v10743
      %v10748 = vadd.f32 %v10747, %v10744
      %v10749 = vadd.f32 %v10748, %v10745
      %vm10750 = vcmask 359424
      %v10751 = vsel %vm10750, %v10746, 0.0
      %v10752 = vadd.f32 %v10749, %v10751
      %10753 = vadd.xlane.f32.xlu0 %v10752
      %v10754 = vpop.xlane.xlu0 %10753
      %v10755 = vmul.f32 %v10754, 0.0046296297
      %v10756 = vmul.f32 %v10742, %v10742
      %v10757 = vmul.f32 %v10743, %v10743
      %v10758 = vmul.f32 %v10744, %v10744
      %v10759 = vmul.f32 %v10745, %v10745
      %v10760 = vmul.f32 %v10746, %v10746
      %v10761 = vadd.f32 %v10756, %v10757
      %v10762 = vadd.f32 %v10761, %v10758
      %v10763 = vadd.f32 %v10762, %v10759
      %v10764 = vsel %vm10750, %v10760, 0.0
      %v10765 = vadd.f32 %v10763, %v10764
      %10766 = vadd.xlane.f32.xlu0 %v10765
      %v10767 = vpop.xlane.xlu0 %10766
      %v10768 = vmul.f32 %v10767, 0.0046296297
      %v10769 = vmul.f32 %v10755, %v10755
      %v10770 = vsub.f32 %v10768, %v10769
      %v10771 = vmax.f32 %v10770, 0.0
      %v10772 = vadd.f32 %v10771, 1e-05
      %v10773 = vrsqrt.pop %v10772
      %v10774 = vmul.f32 %v10714, %v10773
      %v10775 = vmul.f32 %v10755, %v10774
      %v10776 = vsub.f32 %v10715, %v10775
      %10778 = vset.pattern.permute.xlu0 0
      %10779 = vperm.xlu0 %10778, %v10774
      %v10780 = vpop.permute.xlu0 %10779
      %v10782 = vmul.f32 %v10708, %v10780
      %v10783 = vmul.f32 %v10709, %v10780
      %v10784 = vmul.f32 %v10710, %v10780
      %v10785 = vmul.f32 %v10711, %v10780
      %v10786 = vmul.f32 %v10712, %v10780
      %10788 = vset.pattern.permute.xlu0 0
      %10789 = vperm.xlu0 %10788, %v10776
      %v10790 = vpop.permute.xlu0 %10789
      %v10792 = vadd.f32 %v10782, %v10790
      %v10793 = vadd.f32 %v10783, %v10790
      %v10794 = vadd.f32 %v10784, %v10790
      %v10795 = vadd.f32 %v10785, %v10790
      %v10796 = vadd.f32 %v10786, %v10790
      %vm10797 = vcmp.gt.f32.partialorder %v10792, 0.0
      %vm10798 = vcmp.gt.f32.partialorder %v10793, 0.0
      %vm10799 = vcmp.gt.f32.partialorder %v10794, 0.0
      %vm10800 = vcmp.gt.f32.partialorder %v10795, 0.0
      %vm10801 = vcmp.gt.f32.partialorder %v10796, 0.0
      %v10802 = vmul.f32 %v10792, 0.01
      %v10803 = vmul.f32 %v10793, 0.01
      %v10804 = vmul.f32 %v10794, 0.01
      %v10805 = vmul.f32 %v10795, 0.01
      %v10806 = vmul.f32 %v10796, 0.01
      %v10807 = vsel %vm10797, %v10792, %v10802
      %v10808 = vsel %vm10798, %v10793, %v10803
      %v10809 = vsel %vm10799, %v10794, %v10804
      %v10810 = vsel %vm10800, %v10795, %v10805
      %v10811 = vsel %vm10801, %v10796, %v10806
      %10812 = vst [vmem:[%s332] sm:$0xff] %v10807
      %10813 = vst [vmem:[%s332 + $0x8] sm:$0xff] %v10808
      %10814 = vst [vmem:[%s332 + $0x10] sm:$0xff] %v10809
      %10815 = vst [vmem:[%s332 + $0x18] sm:$0xff] %v10810
      %10816 = vst.msk [vmem:[%s332 + $0x20] sm:$0xff] %vm10750, %v10811
      %p10817 = scmp.lt.s32.totalorder %s20, 1
      %s10818 = scalar_select %p10817, %s20, 1
      %s10819 = smul.addr %s10818, 5
      %s10820 = smul.addr %s10819, 8
      %s10821 = scalar_lea.vmem %s9, %s10820
      // Predicated region
      $region57: #{conv3d_block_forward.1} parent=55 // pred_check
        %p10822 = pneg %p232
      $region58: #{conv3d_block_forward.1} parent=55 // pred_check_branch
        %10824 = sbr.rel (%p10822) target = $region60
      $region59: #{conv3d_block_forward.1} parent=55 // pred_region
        _
      $region60: #{conv3d_block_forward.1} parent=55 // pred_fallthru
        _
    $region56: #{conv3d_block_forward.1} parent=5 // pred_fallthru
      _
    %p10825 = scmp.le.s32.totalorder 2, %s15
    // Predicated region
    $region61: #{conv3d_block_forward.1} parent=5 // pred_check
      %p10826 = pneg %p10825
    $region62: #{conv3d_block_forward.1} parent=5 // pred_check_branch
      %10828 = sbr.rel (%p10826) target = $region64
    $region63: #{conv3d_block_forward.1} parent=5 // pred_region
      %s10829 = ssub.s32 %s15, 2
      // Predicated region
      $region65: #{conv3d_block_forward.1} parent=63 // pred_check
        %p10830 = pneg %p238
      $region66: #{conv3d_block_forward.1} parent=63 // pred_check_branch
        %10832 = sbr.rel (%p10830) target = $region68
      $region67: #{conv3d_block_forward.1} parent=63 // pred_region
        %p10833 = scmp.lt.s32.totalorder %s21, 1
        %s10834 = scalar_select %p10833, %s21, 1
        %s10835 = smul.addr %s10834, 5
        %s10836 = smul.addr %s10835, 8
        %s10837 = scalar_lea.vmem %s9, %s10836
      $region68: #{conv3d_block_forward.1} parent=63 // pred_fallthru
        _
    $region64: #{conv3d_block_forward.1} parent=5 // pred_fallthru
      _
  $region6: #{conv3d_block_forward.1} parent=0 // loop_footer
    %s19 = sadd.s32 1, %s15
  $region7: #{conv3d_block_forward.1} parent=0 // loop_footer_branch
    %14 = sbr.rel target = $region3
  $region8: #{conv3d_block_forward.1} parent=0 // loop_exit
    _

</llo_original>
